<compile_context>
chip_gen: v7x
topology: tpu7x:2x2x1
jax: 0.10.0
libtpu: 0.0.40
codegen_flags: <defaults>
</compile_context>

<pallas_src>
import functools

import jax
import jax.numpy as jnp
from jax.experimental import pallas as pl
from jax.experimental.pallas import tpu as pltpu

BF16 = jnp.bfloat16
F32 = jnp.float32
NEG = -1e9


def _round_up(x, m):
    return (x + m - 1) // m * m


# Fixed operand orderings shared by the wrapper (packing) and the kernel (unpacking).
_ENC_KEYS = ("ln1_g", "ln1_b", "wqkv", "bqkv", "wo", "bo",
             "ln2_g", "ln2_b", "w1", "b1", "w2", "b2")
_DEC_KEYS = ("ln1_g", "ln1_b", "swqkv", "sbqkv", "swo", "sbo",
             "ln2_g", "ln2_b", "cwq", "cbq", "cwkv", "cbkv", "cwo", "cbo",
             "ln3_g", "ln3_b", "w1", "b1", "w2", "b2")
_GEN_KEYS = ("enc_g", "enc_b", "dec_g", "dec_b", "gen_w", "gen_b")


# --------------------------- in-kernel helpers -------------------------------

def _layer_norm(x, g, b, eps):
    mu = jnp.mean(x, axis=-1, keepdims=True)
    var = jnp.mean(jnp.square(x - mu), axis=-1, keepdims=True)
    return (x - mu) * jax.lax.rsqrt(var + eps) * g + b


def _attend(q, k, v, wo_split, bo, neg_mask, num_heads):
    """Per-head attention + output projection.

    q: (B, Sq, D) bf16 (scale already folded into Q weights); k, v: (B, Sk, D) bf16.
    wo_split: (H, dh, D) bf16; bo: (1, D) f32.
    neg_mask: additive f32 mask broadcastable to (B, Sq, Sk).
    The output projection is accumulated per head (== concat(heads) @ wo), so no
    concatenate/transpose of heads is needed.
    """
    B, Sq, D = q.shape
    dh = D // num_heads
    acc = None
    for h in range(num_heads):                      # static unroll; num_heads small
        sl = slice(h * dh, (h + 1) * dh)
        s = jnp.einsum('bqd,bkd->bqk', q[..., sl], k[..., sl],
                       preferred_element_type=F32)
        s = s + neg_mask
        m = jnp.max(s, axis=-1, keepdims=True)
        p = jnp.exp(s - m)
        # approx reciprocal runs on the EUP slot; fine for inference (~2^-12 rel err)
        p = p * pl.reciprocal(jnp.sum(p, axis=-1, keepdims=True), approx=True)
        ctx = jnp.einsum('bqk,bkd->bqd', p.astype(BF16), v[..., sl],
                         preferred_element_type=F32)
        part = jnp.dot(ctx.astype(BF16).reshape(B * Sq, dh), wo_split[h],
                       preferred_element_type=F32)
        acc = part if acc is None else acc + part
    return acc.reshape(B, Sq, D) + bo


def _self_attn(x3, wqkv, bqkv, wo_split, bo, neg_mask, num_heads):
    B, S, D = x3.shape
    qkv = jnp.dot(x3.reshape(B * S, D).astype(BF16), wqkv,
                  preferred_element_type=F32) + bqkv          # (B*S, 3D) f32
    qkv = qkv.astype(BF16).reshape(B, S, 3 * D)               # single cast pre head-loop
    q, k, v = qkv[..., :D], qkv[..., D:2 * D], qkv[..., 2 * D:]
    return _attend(q, k, v, wo_split, bo, neg_mask, num_heads)


def _cross_attn(x3, mem_b, wq, bq, wkv, bkv, wo_split, bo, neg_mask, num_heads):
    B, Tq, D = x3.shape
    Sk = mem_b.shape[1]
    q = jnp.dot(x3.reshape(B * Tq, D).astype(BF16), wq,
                preferred_element_type=F32) + bq
    q = q.astype(BF16).reshape(B, Tq, D)
    kv = jnp.dot(mem_b.reshape(B * Sk, D), wkv, preferred_element_type=F32) + bkv
    kv = kv.astype(BF16).reshape(B, Sk, 2 * D)
    k, v = kv[..., :D], kv[..., D:]
    return _attend(q, k, v, wo_split, bo, neg_mask, num_heads)


def _ffn(x3, w1, b1, w2, b2):
    B, S, D = x3.shape
    h = jnp.dot(x3.reshape(B * S, D).astype(BF16), w1,
                preferred_element_type=F32) + b1
    h = jnp.maximum(h, 0.0)
    y = jnp.dot(h.astype(BF16), w2, preferred_element_type=F32) + b2
    return y.reshape(B, S, D)


# --------------------------- the single fused kernel --------------------------

def _forward_kernel(lens_ref, x_enc_ref, x_dec_ref, *refs,
                    num_heads, inv_temp, eps):
    n_e, n_d, n_g = len(_ENC_KEYS), len(_DEC_KEYS), len(_GEN_KEYS)
    enc = dict(zip(_ENC_KEYS, refs[:n_e]))
    dec = dict(zip(_DEC_KEYS, refs[n_e:n_e + n_d]))
    gen = dict(zip(_GEN_KEYS, refs[n_e + n_d:n_e + n_d + n_g]))
    o_ref = refs[n_e + n_d + n_g]

    pid = pl.program_id(0)
    x = x_enc_ref[...]                    # (b_local, Skp, D) f32
    y = x_dec_ref[...]                    # (b_local, Tp,  D) f32
    b_local, Sk, D = x.shape
    Tq = y.shape[1]
    n_enc = enc["wqkv"].shape[0]
    n_dec = dec["swqkv"].shape[0]

    # --- source key-padding mask: key 0 = style token (never masked); key j>=1
    #     masked iff (j-1) >= length.  Built as (1, Sk) key rows from the
    #     SMEM-prefetched lengths, stacked per local batch element. ---
    key_iota = jax.lax.broadcasted_iota(jnp.int32, (1, Sk), 1)
    rows = [jnp.where(key_iota >= lens_ref[pid * b_local + j] + 1, NEG, 0.0)
            .astype(F32) for j in range(b_local)]
    pad_neg = jnp.concatenate(rows, axis=0)[:, None, :]        # (b_local, 1, Sk)

    # --- causal mask: grid-invariant, built once per kernel ---
    qi = jax.lax.broadcasted_iota(jnp.int32, (Tq, Tq), 0)
    ki = jax.lax.broadcasted_iota(jnp.int32, (Tq, Tq), 1)
    causal_neg = jnp.where(ki > qi, NEG, 0.0).astype(F32)       # (Tq, Tq)

    # ===================== encoder stack (weights VMEM-resident) ==============
    for l in range(n_enc):
        xn = _layer_norm(x, enc["ln1_g"][l], enc["ln1_b"][l], eps)
        x = x + _self_attn(xn, enc["wqkv"][l], enc["bqkv"][l],
                           enc["wo"][l], enc["bo"][l], pad_neg, num_heads)
        xn = _layer_norm(x, enc["ln2_g"][l], enc["ln2_b"][l], eps)
        x = x + _ffn(xn, enc["w1"][l], enc["b1"][l], enc["w2"][l], enc["b2"][l])

    # Encoder final norm applied exactly once; single bf16 cast reused by every
    # decoder layer's cross-attention K/V projection.
    mem_b = _layer_norm(x, gen["enc_g"][...], gen["enc_b"][...], eps).astype(BF16)

    # ===================== decoder stack ======================================
    for l in range(n_dec):
        yn = _layer_norm(y, dec["ln1_g"][l], dec["ln1_b"][l], eps)
        y = y + _self_attn(yn, dec["swqkv"][l], dec["sbqkv"][l],
                           dec["swo"][l], dec["sbo"][l], causal_neg, num_heads)
        yn = _layer_norm(y, dec["ln2_g"][l], dec["ln2_b"][l], eps)
        y = y + _cross_attn(yn, mem_b, dec["cwq"][l], dec["cbq"][l],
                            dec["cwkv"][l], dec["cbkv"][l],
                            dec["cwo"][l], dec["cbo"][l], pad_neg, num_heads)
        yn = _layer_norm(y, dec["ln3_g"][l], dec["ln3_b"][l], eps)
        y = y + _ffn(yn, dec["w1"][l], dec["b1"][l], dec["w2"][l], dec["b2"][l])

    # ============ generator: final LN -> linear -> /T -> log_softmax ==========
    # Vocab dim is pre-padded to a multiple of 128 lanes; padded bias = -1e9 so
    # the LSE over the padded width equals the LSE over the real vocab.
    yn = _layer_norm(y, gen["dec_g"][...], gen["dec_b"][...], eps)
    z = (jnp.dot(yn.reshape(b_local * Tq, D).astype(BF16), gen["gen_w"][...],
                 preferred_element_type=F32) + gen["gen_b"][...]) * inv_temp
    m = jnp.max(z, axis=-1, keepdims=True)
    e = jnp.exp(z - m)
    lse = m + jnp.log(jnp.sum(e, axis=-1, keepdims=True))
    o_ref[...] = (z - lse).reshape(b_local, Tq, -1)


# --------------------------- forward-pass wrapper -----------------------------

def style_transformer_forward(kp, cfg, src, tgt, inp_lengths, style, temperature):
    """generate=False (teacher-forced) forward; returns log-prob logits (B, T, V)."""
    B, S = src.shape
    L = cfg["max_allowed_length"]
    D = cfg["model_dim"]
    H = cfg["num_heads"]
    V = cfg["vocab_size"]
    assert S <= L, "max seq len exceeds allowed length"

    pos = jnp.arange(L, dtype=jnp.int32)
    lengths = inp_lengths.astype(jnp.int32)

    def embed(tokens, positions):
        return kp["tok_embed"][tokens] + kp["pos_embed"][positions]

    # Encoder input: [style_emb ; token+pos embeds], padded to a sublane multiple.
    style_emb = kp["style_embeds"][style].reshape(B, 1, D)
    enc_in = jnp.concatenate([style_emb, embed(src, pos[:S])], axis=1)   # (B, S+1, D)
    S1 = S + 1
    S1p = _round_up(S1, 8)
    enc_in = jnp.pad(enc_in, ((0, 0), (0, S1p - S1), (0, 0)))

    # Decoder input (teacher forcing): [sos ; shifted target embeds].
    T = tgt.shape[1]
    Tp = _round_up(T, 8)
    sos = jnp.broadcast_to(kp["sos_token"].reshape(1, 1, D), (B, 1, D))
    dec_in = jnp.concatenate([sos, embed(tgt[:, :-1], pos[:T - 1])], axis=1)
    dec_in = jnp.pad(dec_in, ((0, 0), (0, Tp - T), (0, 0)))

    # 2-wide parallel grid over batch halves feeds both v7x TensorCores; on
    # v5e/v6e (single TC) the second step only costs ~0.35us.
    num_splits = 2 if (B % 2 == 0 and B >= 2) else 1
    b_local = B // num_splits

    weights = ([kp["enc"][k] for k in _ENC_KEYS]
               + [kp["dec"][k] for k in _DEC_KEYS]
               + [kp["misc"][k] for k in _GEN_KEYS])
    Vp = kp["misc"]["gen_w"].shape[1]

    def _const_spec(w):
        nd = w.ndim
        return pl.BlockSpec(w.shape, lambda i, lens: (0,) * nd)

    kernel = functools.partial(_forward_kernel, num_heads=H,
                               inv_temp=1.0 / float(temperature), eps=1e-5)

    out = pl.pallas_call(
        kernel,
        out_shape=jax.ShapeDtypeStruct((B, Tp, Vp), F32),
        grid_spec=pltpu.PrefetchScalarGridSpec(
            num_scalar_prefetch=1,
            grid=(num_splits,),
            in_specs=[pl.BlockSpec((b_local, S1p, D), lambda i, lens: (i, 0, 0)),
                      pl.BlockSpec((b_local, Tp, D), lambda i, lens: (i, 0, 0))]
                     + [_const_spec(w) for w in weights],
            out_specs=pl.BlockSpec((b_local, Tp, Vp), lambda i, lens: (i, 0, 0)),
        ),
        # Weights here are ~0.2 MB and stay VMEM-resident.  At production dims
        # (D~512, d_ff~2k, vocab~32k) tile the generator vocab / FFN d_ff and
        # re-budget against v7x's 64 MiB physical / v5e's 16 MiB default scoped VMEM.
        compiler_params=pltpu.CompilerParams(
            dimension_semantics=("parallel",),
            vmem_limit_bytes=32 * 1024 * 1024),
    )(lengths, enc_in, dec_in, *weights)

    return out[:, :T, :V]


# --------------------------- params: init + kernel prep -----------------------

def init_params(key, vocab_size, num_style_embeds, num_enc_layers, num_dec_layers,
                model_dim, num_heads, d_ff, max_allowed_length, padding_idx):
    keys = iter(jax.random.split(key, 4096))

    def nrm(shape, scale=0.02):
        return jax.random.normal(next(keys), shape, F32) * scale

    def dense(din, dout):
        return nrm((din, dout)), jnp.zeros((1, dout), F32)

    def attn_params(D):
        wq, bq = dense(D, D)
        wk, bk = dense(D, D)
        wv, bv = dense(D, D)
        wo, bo = dense(D, D)
        return dict(wq=wq, bq=bq, wk=wk, bk=bk, wv=wv, bv=bv, wo=wo, bo=bo)

    def ln(D):
        return jnp.ones((1, D), F32), jnp.zeros((1, D), F32)

    def enc_layer(D):
        w1, b1 = dense(D, d_ff)
        w2, b2 = dense(d_ff, D)
        g1, bb1 = ln(D)
        g2, bb2 = ln(D)
        return dict(attn=attn_params(D), ln1_g=g1, ln1_b=bb1, ln2_g=g2, ln2_b=bb2,
                    w1=w1, b1=b1, w2=w2, b2=b2)

    def dec_layer(D):
        w1, b1 = dense(D, d_ff)
        w2, b2 = dense(d_ff, D)
        g1, bb1 = ln(D)
        g2, bb2 = ln(D)
        g3, bb3 = ln(D)
        return dict(self_attn=attn_params(D), cross_attn=attn_params(D),
                    ln1_g=g1, ln1_b=bb1, ln2_g=g2, ln2_b=bb2, ln3_g=g3, ln3_b=bb3,
                    w1=w1, b1=b1, w2=w2, b2=b2)

    tok_embed = nrm((vocab_size, model_dim), 0.1)
    if 0 <= padding_idx < vocab_size:
        tok_embed = tok_embed.at[padding_idx].set(0.0)

    enc_g, enc_b = ln(model_dim)
    dec_g, dec_b = ln(model_dim)
    gen_w, gen_b = dense(model_dim, vocab_size)

    return dict(
        style_embeds=nrm((num_style_embeds, model_dim), 0.1),
        tok_embed=tok_embed,
        pos_embed=nrm((max_allowed_length, model_dim), 0.1),
        sos_token=nrm((model_dim,), 0.1),
        enc_layers=[enc_layer(model_dim) for _ in range(num_enc_layers)],
        dec_layers=[dec_layer(model_dim) for _ in range(num_dec_layers)],
        enc_norm_g=enc_g, enc_norm_b=enc_b,
        dec_norm_g=dec_g, dec_norm_b=dec_b,
        gen_w=gen_w, gen_b=gen_b,
    )


def prepare_params(p, num_heads):
    """Fuse / stack / cast weights for the single fused kernel.

    - Q/K/V fused to one (D, 3D) bf16 matrix (K/V only, (D, 2D), for cross-attn);
      the 1/sqrt(dh) attention scale is folded into the Q weights/bias.
    - Output projections pre-split per head to (H, dh, D) bf16.
    - FFN / generator matmul weights bf16; generator vocab dim zero-padded to a
      multiple of 128 lanes with padded bias at -1e9 (keeps log_softmax exact).
    - Per-layer weights stacked along a leading layer axis (single kernel operand
      per weight kind, indexed statically inside the kernel).
    """
    D = p["tok_embed"].shape[1]
    dh = D // num_heads
    scale = 1.0 / float(dh) ** 0.5

    def fused_self(a):
        wqkv = jnp.concatenate([a["wq"] * scale, a["wk"], a["wv"]], axis=1).astype(BF16)
        bqkv = jnp.concatenate([a["bq"] * scale, a["bk"], a["bv"]], axis=1).astype(F32)
        wo = a["wo"].reshape(num_heads, dh, D).astype(BF16)
        return wqkv, bqkv, wo, a["bo"].astype(F32)

    def fused_cross(a):
        wq = (a["wq"] * scale).astype(BF16)
        bq = (a["bq"] * scale).astype(F32)
        wkv = jnp.concatenate([a["wk"], a["wv"]], axis=1).astype(BF16)
        bkv = jnp.concatenate([a["bk"], a["bv"]], axis=1).astype(F32)
        wo = a["wo"].reshape(num_heads, dh, D).astype(BF16)
        return wq, bq, wkv, bkv, wo, a["bo"].astype(F32)

    def enc_cols(lp):
        wqkv, bqkv, wo, bo = fused_self(lp["attn"])
        return (lp["ln1_g"], lp["ln1_b"], wqkv, bqkv, wo, bo,
                lp["ln2_g"], lp["ln2_b"],
                lp["w1"].astype(BF16), lp["b1"], lp["w2"].astype(BF16), lp["b2"])

    def dec_cols(lp):
        swqkv, sbqkv, swo, sbo = fused_self(lp["self_attn"])
        cwq, cbq, cwkv, cbkv, cwo, cbo = fused_cross(lp["cross_attn"])
        return (lp["ln1_g"], lp["ln1_b"], swqkv, sbqkv, swo, sbo,
                lp["ln2_g"], lp["ln2_b"], cwq, cbq, cwkv, cbkv, cwo, cbo,
                lp["ln3_g"], lp["ln3_b"],
                lp["w1"].astype(BF16), lp["b1"], lp["w2"].astype(BF16), lp["b2"])

    def stack(layers, cols_fn, keys):
        cols = list(zip(*[cols_fn(lp) for lp in layers]))
        return {k: jnp.stack(c, axis=0) for k, c in zip(keys, cols)}

    V = p["gen_w"].shape[1]
    Vp = _round_up(V, 128)
    gen_w = jnp.pad(p["gen_w"], ((0, 0), (0, Vp - V))).astype(BF16)
    gen_b = jnp.pad(p["gen_b"], ((0, 0), (0, Vp - V)), constant_values=NEG).astype(F32)

    return dict(
        tok_embed=p["tok_embed"], pos_embed=p["pos_embed"],
        style_embeds=p["style_embeds"], sos_token=p["sos_token"],
        enc=stack(p["enc_layers"], enc_cols, _ENC_KEYS),
        dec=stack(p["dec_layers"], dec_cols, _DEC_KEYS),
        misc=dict(enc_g=p["enc_norm_g"], enc_b=p["enc_norm_b"],
                  dec_g=p["dec_norm_g"], dec_b=p["dec_norm_b"],
                  gen_w=gen_w, gen_b=gen_b),
    )


# --------------------------------- main ---------------------------------------

if __name__ == "__main__":
    # Small config consistent with the module's __init__.
    vocab_size = 50
    num_style_embeds = 2
    num_enc_layers = 2
    num_dec_layers = 2
    model_dim = 32
    num_heads = 4
    d_ff = 4 * model_dim
    max_allowed_length = 8
    padding_idx = 0

    B, S, T = 2, 6, 6
    temperature = 1.0

    cfg = dict(max_allowed_length=max_allowed_length, model_dim=model_dim,
               num_heads=num_heads, vocab_size=vocab_size)

    key = jax.random.PRNGKey(0)
    k_params, k_src, k_tgt = jax.random.split(key, 3)
    params = init_params(k_params, vocab_size, num_style_embeds, num_enc_layers,
                         num_dec_layers, model_dim, num_heads, d_ff,
                         max_allowed_length, padding_idx)
    kparams = prepare_params(params, num_heads)

    src = jax.random.randint(k_src, (B, S), 1, vocab_size, dtype=jnp.int32)
    tgt = jax.random.randint(k_tgt, (B, T), 1, vocab_size, dtype=jnp.int32)
    inp_lengths = jnp.array([6, 4], dtype=jnp.int32)
    style = jnp.array([0, 1], dtype=jnp.int32)

    fwd = jax.jit(lambda p, s_, t_, il, st: style_transformer_forward(
        p, cfg, s_, t_, il, st, temperature))
    logits = fwd(kparams, src, tgt, inp_lengths, style)
    logits = jax.block_until_ready(logits)

    assert logits.shape == (B, T, vocab_size), logits.shape
    assert bool(jnp.all(jnp.isfinite(logits)))
    # rows of log_softmax should exponentiate-sum to ~1
    row_sums = jnp.exp(logits).sum(-1)
    assert bool(jnp.allclose(row_sums, 1.0, atol=1e-3))
    print("KERNEL_OK")
</pallas_src>

<mosaic_0001>
module attributes {stable_mosaic.version = 11 : i64} {
  func.func @_forward_kernel(%arg0: i32, %arg1: memref<2xi32, #tpu.memory_space<smem>>, %arg2: memref<1x8x32xf32, #tpu.memory_space<vmem>>, %arg3: memref<1x8x32xf32, #tpu.memory_space<vmem>>, %arg4: memref<2x1x32xf32, #tpu.memory_space<vmem>>, %arg5: memref<2x1x32xf32, #tpu.memory_space<vmem>>, %arg6: memref<2x32x96xbf16, #tpu.memory_space<vmem>>, %arg7: memref<2x1x96xf32, #tpu.memory_space<vmem>>, %arg8: memref<2x4x8x32xbf16, #tpu.memory_space<vmem>>, %arg9: memref<2x1x32xf32, #tpu.memory_space<vmem>>, %arg10: memref<2x1x32xf32, #tpu.memory_space<vmem>>, %arg11: memref<2x1x32xf32, #tpu.memory_space<vmem>>, %arg12: memref<2x32x128xbf16, #tpu.memory_space<vmem>>, %arg13: memref<2x1x128xf32, #tpu.memory_space<vmem>>, %arg14: memref<2x128x32xbf16, #tpu.memory_space<vmem>>, %arg15: memref<2x1x32xf32, #tpu.memory_space<vmem>>, %arg16: memref<2x1x32xf32, #tpu.memory_space<vmem>>, %arg17: memref<2x1x32xf32, #tpu.memory_space<vmem>>, %arg18: memref<2x32x96xbf16, #tpu.memory_space<vmem>>, %arg19: memref<2x1x96xf32, #tpu.memory_space<vmem>>, %arg20: memref<2x4x8x32xbf16, #tpu.memory_space<vmem>>, %arg21: memref<2x1x32xf32, #tpu.memory_space<vmem>>, %arg22: memref<2x1x32xf32, #tpu.memory_space<vmem>>, %arg23: memref<2x1x32xf32, #tpu.memory_space<vmem>>, %arg24: memref<2x32x32xbf16, #tpu.memory_space<vmem>>, %arg25: memref<2x1x32xf32, #tpu.memory_space<vmem>>, %arg26: memref<2x32x64xbf16, #tpu.memory_space<vmem>>, %arg27: memref<2x1x64xf32, #tpu.memory_space<vmem>>, %arg28: memref<2x4x8x32xbf16, #tpu.memory_space<vmem>>, %arg29: memref<2x1x32xf32, #tpu.memory_space<vmem>>, %arg30: memref<2x1x32xf32, #tpu.memory_space<vmem>>, %arg31: memref<2x1x32xf32, #tpu.memory_space<vmem>>, %arg32: memref<2x32x128xbf16, #tpu.memory_space<vmem>>, %arg33: memref<2x1x128xf32, #tpu.memory_space<vmem>>, %arg34: memref<2x128x32xbf16, #tpu.memory_space<vmem>>, %arg35: memref<2x1x32xf32, #tpu.memory_space<vmem>>, %arg36: memref<1x32xf32, #tpu.memory_space<vmem>>, %arg37: memref<1x32xf32, #tpu.memory_space<vmem>>, %arg38: memref<1x32xf32, #tpu.memory_space<vmem>>, %arg39: memref<1x32xf32, #tpu.memory_space<vmem>>, %arg40: memref<32x128xbf16, #tpu.memory_space<vmem>>, %arg41: memref<1x128xf32, #tpu.memory_space<vmem>>, %arg42: memref<1x8x128xf32, #tpu.memory_space<vmem>>) attributes {dimension_semantics = [#tpu.dimension_semantics<parallel>], iteration_bounds = array<i64: 2>, scalar_prefetch = 1 : i64, scratch_operands = 0 : i64, tpu.core_type = #tpu.core_type<tc>, window_params = [{transform_indices = @transform_0, window_bounds = array<i64: 1, 8, 32>}, {transform_indices = @transform_1, window_bounds = array<i64: 1, 8, 32>}, {pipeline_mode = #tpu.pipeline_mode<synchronous>, transform_indices = @transform_2, window_bounds = array<i64: 2, 1, 32>}, {pipeline_mode = #tpu.pipeline_mode<synchronous>, transform_indices = @transform_3, window_bounds = array<i64: 2, 1, 32>}, {pipeline_mode = #tpu.pipeline_mode<synchronous>, transform_indices = @transform_4, window_bounds = array<i64: 2, 32, 96>}, {pipeline_mode = #tpu.pipeline_mode<synchronous>, transform_indices = @transform_5, window_bounds = array<i64: 2, 1, 96>}, {pipeline_mode = #tpu.pipeline_mode<synchronous>, transform_indices = @transform_6, window_bounds = array<i64: 2, 4, 8, 32>}, {pipeline_mode = #tpu.pipeline_mode<synchronous>, transform_indices = @transform_7, window_bounds = array<i64: 2, 1, 32>}, {pipeline_mode = #tpu.pipeline_mode<synchronous>, transform_indices = @transform_8, window_bounds = array<i64: 2, 1, 32>}, {pipeline_mode = #tpu.pipeline_mode<synchronous>, transform_indices = @transform_9, window_bounds = array<i64: 2, 1, 32>}, {pipeline_mode = #tpu.pipeline_mode<synchronous>, transform_indices = @transform_10, window_bounds = array<i64: 2, 32, 128>}, {pipeline_mode = #tpu.pipeline_mode<synchronous>, transform_indices = @transform_11, window_bounds = array<i64: 2, 1, 128>}, {pipeline_mode = #tpu.pipeline_mode<synchronous>, transform_indices = @transform_12, window_bounds = array<i64: 2, 128, 32>}, {pipeline_mode = #tpu.pipeline_mode<synchronous>, transform_indices = @transform_13, window_bounds = array<i64: 2, 1, 32>}, {pipeline_mode = #tpu.pipeline_mode<synchronous>, transform_indices = @transform_14, window_bounds = array<i64: 2, 1, 32>}, {pipeline_mode = #tpu.pipeline_mode<synchronous>, transform_indices = @transform_15, window_bounds = array<i64: 2, 1, 32>}, {pipeline_mode = #tpu.pipeline_mode<synchronous>, transform_indices = @transform_16, window_bounds = array<i64: 2, 32, 96>}, {pipeline_mode = #tpu.pipeline_mode<synchronous>, transform_indices = @transform_17, window_bounds = array<i64: 2, 1, 96>}, {pipeline_mode = #tpu.pipeline_mode<synchronous>, transform_indices = @transform_18, window_bounds = array<i64: 2, 4, 8, 32>}, {pipeline_mode = #tpu.pipeline_mode<synchronous>, transform_indices = @transform_19, window_bounds = array<i64: 2, 1, 32>}, {pipeline_mode = #tpu.pipeline_mode<synchronous>, transform_indices = @transform_20, window_bounds = array<i64: 2, 1, 32>}, {pipeline_mode = #tpu.pipeline_mode<synchronous>, transform_indices = @transform_21, window_bounds = array<i64: 2, 1, 32>}, {pipeline_mode = #tpu.pipeline_mode<synchronous>, transform_indices = @transform_22, window_bounds = array<i64: 2, 32, 32>}, {pipeline_mode = #tpu.pipeline_mode<synchronous>, transform_indices = @transform_23, window_bounds = array<i64: 2, 1, 32>}, {pipeline_mode = #tpu.pipeline_mode<synchronous>, transform_indices = @transform_24, window_bounds = array<i64: 2, 32, 64>}, {pipeline_mode = #tpu.pipeline_mode<synchronous>, transform_indices = @transform_25, window_bounds = array<i64: 2, 1, 64>}, {pipeline_mode = #tpu.pipeline_mode<synchronous>, transform_indices = @transform_26, window_bounds = array<i64: 2, 4, 8, 32>}, {pipeline_mode = #tpu.pipeline_mode<synchronous>, transform_indices = @transform_27, window_bounds = array<i64: 2, 1, 32>}, {pipeline_mode = #tpu.pipeline_mode<synchronous>, transform_indices = @transform_28, window_bounds = array<i64: 2, 1, 32>}, {pipeline_mode = #tpu.pipeline_mode<synchronous>, transform_indices = @transform_29, window_bounds = array<i64: 2, 1, 32>}, {pipeline_mode = #tpu.pipeline_mode<synchronous>, transform_indices = @transform_30, window_bounds = array<i64: 2, 32, 128>}, {pipeline_mode = #tpu.pipeline_mode<synchronous>, transform_indices = @transform_31, window_bounds = array<i64: 2, 1, 128>}, {pipeline_mode = #tpu.pipeline_mode<synchronous>, transform_indices = @transform_32, window_bounds = array<i64: 2, 128, 32>}, {pipeline_mode = #tpu.pipeline_mode<synchronous>, transform_indices = @transform_33, window_bounds = array<i64: 2, 1, 32>}, {pipeline_mode = #tpu.pipeline_mode<synchronous>, transform_indices = @transform_34, window_bounds = array<i64: 1, 32>}, {pipeline_mode = #tpu.pipeline_mode<synchronous>, transform_indices = @transform_35, window_bounds = array<i64: 1, 32>}, {pipeline_mode = #tpu.pipeline_mode<synchronous>, transform_indices = @transform_36, window_bounds = array<i64: 1, 32>}, {pipeline_mode = #tpu.pipeline_mode<synchronous>, transform_indices = @transform_37, window_bounds = array<i64: 1, 32>}, {pipeline_mode = #tpu.pipeline_mode<synchronous>, transform_indices = @transform_38, window_bounds = array<i64: 32, 128>}, {pipeline_mode = #tpu.pipeline_mode<synchronous>, transform_indices = @transform_39, window_bounds = array<i64: 1, 128>}, {transform_indices = @transform_40, window_bounds = array<i64: 1, 8, 128>}]} {
    %c0 = arith.constant 0 : index
    %c0_0 = arith.constant 0 : index
    %c0_1 = arith.constant 0 : index
    %0 = vector.load %arg2[%c0, %c0_0, %c0_1] : memref<1x8x32xf32, #tpu.memory_space<vmem>>, vector<1x8x32xf32>
    %c0_2 = arith.constant 0 : index
    %c0_3 = arith.constant 0 : index
    %c0_4 = arith.constant 0 : index
    %1 = vector.load %arg3[%c0_2, %c0_3, %c0_4] : memref<1x8x32xf32, #tpu.memory_space<vmem>>, vector<1x8x32xf32>
    %2 = tpu.iota {dimensions = array<i32: 1>} : vector<1x8xi32>
    %c1_i32 = arith.constant 1 : i32
    %3 = arith.muli %arg0, %c1_i32 : i32
    %c0_i32 = arith.constant 0 : i32
    %4 = arith.addi %3, %c0_i32 : i32
    %5 = arith.index_cast %4 : i32 to index
    %6 = memref.load %arg1[%5] : memref<2xi32, #tpu.memory_space<smem>>
    %c1_i32_5 = arith.constant 1 : i32
    %7 = arith.addi %6, %c1_i32_5 : i32
    %8 = vector.broadcast %7 : i32 to vector<1x8xi32>
    %9 = arith.cmpi sge, %2, %8 : vector<1x8xi32>
    %cst = arith.constant -1.000000e+09 : f32
    %cst_6 = arith.constant 0.000000e+00 : f32
    %10 = vector.broadcast %cst : f32 to vector<1x8xf32>
    %11 = vector.broadcast %cst_6 : f32 to vector<1x8xf32>
    %12 = arith.select %9, %10, %11 : vector<1x8xi1>, vector<1x8xf32>
    %13 = vector.shape_cast %12 : vector<1x8xf32> to vector<1x1x8xf32>
    %14 = tpu.iota {dimensions = array<i32: 0>} : vector<8x8xi32>
    %15 = tpu.iota {dimensions = array<i32: 1>} : vector<8x8xi32>
    %16 = arith.cmpi sgt, %15, %14 : vector<8x8xi32>
    %cst_7 = arith.constant -1.000000e+09 : f32
    %cst_8 = arith.constant 0.000000e+00 : f32
    %17 = vector.broadcast %cst_7 : f32 to vector<8x8xf32>
    %18 = vector.broadcast %cst_8 : f32 to vector<8x8xf32>
    %19 = arith.select %16, %17, %18 : vector<8x8xi1>, vector<8x8xf32>
    %c0_9 = arith.constant 0 : index
    %c0_10 = arith.constant 0 : index
    %c0_11 = arith.constant 0 : index
    %20 = vector.load %arg4[%c0_9, %c0_10, %c0_11] : memref<2x1x32xf32, #tpu.memory_space<vmem>>, vector<1x1x32xf32>
    %21 = vector.shape_cast %20 : vector<1x1x32xf32> to vector<1x32xf32>
    %c0_12 = arith.constant 0 : index
    %c0_13 = arith.constant 0 : index
    %c0_14 = arith.constant 0 : index
    %22 = vector.load %arg5[%c0_12, %c0_13, %c0_14] : memref<2x1x32xf32, #tpu.memory_space<vmem>>, vector<1x1x32xf32>
    %23 = vector.shape_cast %22 : vector<1x1x32xf32> to vector<1x32xf32>
    %cst_15 = arith.constant dense<0.000000e+00> : vector<1x8xf32>
    %24 = vector.multi_reduction <add>, %0, %cst_15 [2] : vector<1x8x32xf32> to vector<1x8xf32>
    %25 = vector.shape_cast %24 : vector<1x8xf32> to vector<1x8x1xf32>
    %cst_16 = arith.constant 3.200000e+01 : f32
    %26 = vector.broadcast %cst_16 : f32 to vector<1x8x1xf32>
    %27 = arith.divf %25, %26 : vector<1x8x1xf32>
    %28 = vector.broadcast %27 : vector<1x8x1xf32> to vector<1x8x32xf32>
    %29 = arith.subf %0, %28 : vector<1x8x32xf32>
    %30 = arith.mulf %29, %29 : vector<1x8x32xf32>
    %cst_17 = arith.constant dense<0.000000e+00> : vector<1x8xf32>
    %31 = vector.multi_reduction <add>, %30, %cst_17 [2] : vector<1x8x32xf32> to vector<1x8xf32>
    %32 = vector.shape_cast %31 : vector<1x8xf32> to vector<1x8x1xf32>
    %cst_18 = arith.constant 3.200000e+01 : f32
    %33 = vector.broadcast %cst_18 : f32 to vector<1x8x1xf32>
    %34 = arith.divf %32, %33 : vector<1x8x1xf32>
    %35 = vector.broadcast %27 : vector<1x8x1xf32> to vector<1x8x32xf32>
    %36 = arith.subf %0, %35 : vector<1x8x32xf32>
    %cst_19 = arith.constant 9.99999974E-6 : f32
    %37 = vector.broadcast %cst_19 : f32 to vector<1x8x1xf32>
    %38 = arith.addf %34, %37 : vector<1x8x1xf32>
    %39 = math.rsqrt %38 : vector<1x8x1xf32>
    %40 = vector.broadcast %39 : vector<1x8x1xf32> to vector<1x8x32xf32>
    %41 = arith.mulf %36, %40 : vector<1x8x32xf32>
    %42 = vector.shape_cast %21 : vector<1x32xf32> to vector<1x1x32xf32>
    %43 = vector.broadcast %42 : vector<1x1x32xf32> to vector<1x8x32xf32>
    %44 = arith.mulf %41, %43 : vector<1x8x32xf32>
    %45 = vector.shape_cast %23 : vector<1x32xf32> to vector<1x1x32xf32>
    %46 = vector.broadcast %45 : vector<1x1x32xf32> to vector<1x8x32xf32>
    %47 = arith.addf %44, %46 : vector<1x8x32xf32>
    %c0_20 = arith.constant 0 : index
    %c0_21 = arith.constant 0 : index
    %c0_22 = arith.constant 0 : index
    %48 = vector.load %arg6[%c0_20, %c0_21, %c0_22] : memref<2x32x96xbf16, #tpu.memory_space<vmem>>, vector<1x32x96xbf16>
    %49 = vector.shape_cast %48 : vector<1x32x96xbf16> to vector<32x96xbf16>
    %c0_23 = arith.constant 0 : index
    %c0_24 = arith.constant 0 : index
    %c0_25 = arith.constant 0 : index
    %50 = vector.load %arg7[%c0_23, %c0_24, %c0_25] : memref<2x1x96xf32, #tpu.memory_space<vmem>>, vector<1x1x96xf32>
    %51 = vector.shape_cast %50 : vector<1x1x96xf32> to vector<1x96xf32>
    %c0_26 = arith.constant 0 : index
    %c0_27 = arith.constant 0 : index
    %c0_28 = arith.constant 0 : index
    %c0_29 = arith.constant 0 : index
    %52 = vector.load %arg8[%c0_26, %c0_27, %c0_28, %c0_29] : memref<2x4x8x32xbf16, #tpu.memory_space<vmem>>, vector<1x4x8x32xbf16>
    %53 = vector.shape_cast %52 : vector<1x4x8x32xbf16> to vector<4x8x32xbf16>
    %c0_30 = arith.constant 0 : index
    %c0_31 = arith.constant 0 : index
    %c0_32 = arith.constant 0 : index
    %54 = vector.load %arg9[%c0_30, %c0_31, %c0_32] : memref<2x1x32xf32, #tpu.memory_space<vmem>>, vector<1x1x32xf32>
    %55 = vector.shape_cast %54 : vector<1x1x32xf32> to vector<1x32xf32>
    %56 = vector.shape_cast %47 : vector<1x8x32xf32> to vector<8x32xf32>
    %57 = arith.truncf %56 : vector<8x32xf32> to vector<8x32xbf16>
    %cst_33 = arith.constant dense<0.000000e+00> : vector<8x96xf32>
    %58 = tpu.matmul %57, %49, %cst_33 {dimension_numbers = #tpu.dot_dimension_numbers<[1], [0], [0], [1], [0, 0, 1, 1], [], []>} : vector<8x32xbf16>, vector<32x96xbf16>, vector<8x96xf32> -> vector<8x96xf32>
    %59 = vector.broadcast %51 : vector<1x96xf32> to vector<8x96xf32>
    %60 = arith.addf %58, %59 : vector<8x96xf32>
    %61 = arith.truncf %60 : vector<8x96xf32> to vector<8x96xbf16>
    %62 = vector.shape_cast %61 : vector<8x96xbf16> to vector<1x8x96xbf16>
    %63 = vector.extract_strided_slice %62 {offsets = [0, 0, 0], sizes = [1, 8, 32], strides = [1, 1, 1]} : vector<1x8x96xbf16> to vector<1x8x32xbf16>
    %64 = vector.extract_strided_slice %62 {offsets = [0, 0, 32], sizes = [1, 8, 32], strides = [1, 1, 1]} : vector<1x8x96xbf16> to vector<1x8x32xbf16>
    %65 = vector.extract_strided_slice %62 {offsets = [0, 0, 64], sizes = [1, 8, 32], strides = [1, 1, 1]} : vector<1x8x96xbf16> to vector<1x8x32xbf16>
    %66 = vector.extract_strided_slice %63 {offsets = [0, 0, 0], sizes = [1, 8, 8], strides = [1, 1, 1]} : vector<1x8x32xbf16> to vector<1x8x8xbf16>
    %67 = vector.extract_strided_slice %64 {offsets = [0, 0, 0], sizes = [1, 8, 8], strides = [1, 1, 1]} : vector<1x8x32xbf16> to vector<1x8x8xbf16>
    "tpu.trace_start"() <{level = 10 : i32, message = "bqd,bkd->bqk"}> : () -> ()
    %cst_34 = arith.constant dense<0.000000e+00> : vector<1x8x8xf32>
    %68 = tpu.matmul %66, %67, %cst_34 {dimension_numbers = #tpu.dot_dimension_numbers<[2], [2], [1], [1], [0, 0, 0, 1, 1, 1], [0], [0]>} : vector<1x8x8xbf16>, vector<1x8x8xbf16>, vector<1x8x8xf32> -> vector<1x8x8xf32>
    "tpu.trace_stop"() : () -> ()
    %69 = vector.broadcast %13 : vector<1x1x8xf32> to vector<1x8x8xf32>
    %70 = arith.addf %68, %69 : vector<1x8x8xf32>
    %cst_35 = arith.constant dense<0xFF800000> : vector<1x8xf32>
    %71 = vector.multi_reduction <maximumf>, %70, %cst_35 [2] : vector<1x8x8xf32> to vector<1x8xf32>
    %72 = vector.shape_cast %71 : vector<1x8xf32> to vector<1x8x1xf32>
    %73 = vector.broadcast %72 : vector<1x8x1xf32> to vector<1x8x8xf32>
    %74 = arith.subf %70, %73 : vector<1x8x8xf32>
    %75 = math.exp %74 : vector<1x8x8xf32>
    %cst_36 = arith.constant dense<0.000000e+00> : vector<1x8xf32>
    %76 = vector.multi_reduction <add>, %75, %cst_36 [2] : vector<1x8x8xf32> to vector<1x8xf32>
    %77 = vector.shape_cast %76 : vector<1x8xf32> to vector<1x8x1xf32>
    %78 = tpu.reciprocal %77 {approx = true} : vector<1x8x1xf32> -> vector<1x8x1xf32>
    %79 = vector.broadcast %78 : vector<1x8x1xf32> to vector<1x8x8xf32>
    %80 = arith.mulf %75, %79 : vector<1x8x8xf32>
    %81 = arith.truncf %80 : vector<1x8x8xf32> to vector<1x8x8xbf16>
    %82 = vector.extract_strided_slice %65 {offsets = [0, 0, 0], sizes = [1, 8, 8], strides = [1, 1, 1]} : vector<1x8x32xbf16> to vector<1x8x8xbf16>
    "tpu.trace_start"() <{level = 10 : i32, message = "bqk,bkd->bqd"}> : () -> ()
    %cst_37 = arith.constant dense<0.000000e+00> : vector<1x8x8xf32>
    %83 = tpu.matmul %81, %82, %cst_37 {dimension_numbers = #tpu.dot_dimension_numbers<[2], [1], [1], [2], [0, 0, 0, 1, 1, 2], [0], [0]>} : vector<1x8x8xbf16>, vector<1x8x8xbf16>, vector<1x8x8xf32> -> vector<1x8x8xf32>
    "tpu.trace_stop"() : () -> ()
    %84 = arith.truncf %83 : vector<1x8x8xf32> to vector<1x8x8xbf16>
    %85 = vector.shape_cast %84 : vector<1x8x8xbf16> to vector<8x8xbf16>
    %86 = vector.extract_strided_slice %53 {offsets = [0, 0, 0], sizes = [1, 8, 32], strides = [1, 1, 1]} : vector<4x8x32xbf16> to vector<1x8x32xbf16>
    %87 = vector.shape_cast %86 : vector<1x8x32xbf16> to vector<8x32xbf16>
    %cst_38 = arith.constant dense<0.000000e+00> : vector<8x32xf32>
    %88 = tpu.matmul %85, %87, %cst_38 {dimension_numbers = #tpu.dot_dimension_numbers<[1], [0], [0], [1], [0, 0, 1, 1], [], []>} : vector<8x8xbf16>, vector<8x32xbf16>, vector<8x32xf32> -> vector<8x32xf32>
    %89 = vector.extract_strided_slice %63 {offsets = [0, 0, 8], sizes = [1, 8, 8], strides = [1, 1, 1]} : vector<1x8x32xbf16> to vector<1x8x8xbf16>
    %90 = vector.extract_strided_slice %64 {offsets = [0, 0, 8], sizes = [1, 8, 8], strides = [1, 1, 1]} : vector<1x8x32xbf16> to vector<1x8x8xbf16>
    "tpu.trace_start"() <{level = 10 : i32, message = "bqd,bkd->bqk"}> : () -> ()
    %cst_39 = arith.constant dense<0.000000e+00> : vector<1x8x8xf32>
    %91 = tpu.matmul %89, %90, %cst_39 {dimension_numbers = #tpu.dot_dimension_numbers<[2], [2], [1], [1], [0, 0, 0, 1, 1, 1], [0], [0]>} : vector<1x8x8xbf16>, vector<1x8x8xbf16>, vector<1x8x8xf32> -> vector<1x8x8xf32>
    "tpu.trace_stop"() : () -> ()
    %92 = vector.broadcast %13 : vector<1x1x8xf32> to vector<1x8x8xf32>
    %93 = arith.addf %91, %92 : vector<1x8x8xf32>
    %cst_40 = arith.constant dense<0xFF800000> : vector<1x8xf32>
    %94 = vector.multi_reduction <maximumf>, %93, %cst_40 [2] : vector<1x8x8xf32> to vector<1x8xf32>
    %95 = vector.shape_cast %94 : vector<1x8xf32> to vector<1x8x1xf32>
    %96 = vector.broadcast %95 : vector<1x8x1xf32> to vector<1x8x8xf32>
    %97 = arith.subf %93, %96 : vector<1x8x8xf32>
    %98 = math.exp %97 : vector<1x8x8xf32>
    %cst_41 = arith.constant dense<0.000000e+00> : vector<1x8xf32>
    %99 = vector.multi_reduction <add>, %98, %cst_41 [2] : vector<1x8x8xf32> to vector<1x8xf32>
    %100 = vector.shape_cast %99 : vector<1x8xf32> to vector<1x8x1xf32>
    %101 = tpu.reciprocal %100 {approx = true} : vector<1x8x1xf32> -> vector<1x8x1xf32>
    %102 = vector.broadcast %101 : vector<1x8x1xf32> to vector<1x8x8xf32>
    %103 = arith.mulf %98, %102 : vector<1x8x8xf32>
    %104 = arith.truncf %103 : vector<1x8x8xf32> to vector<1x8x8xbf16>
    %105 = vector.extract_strided_slice %65 {offsets = [0, 0, 8], sizes = [1, 8, 8], strides = [1, 1, 1]} : vector<1x8x32xbf16> to vector<1x8x8xbf16>
    "tpu.trace_start"() <{level = 10 : i32, message = "bqk,bkd->bqd"}> : () -> ()
    %cst_42 = arith.constant dense<0.000000e+00> : vector<1x8x8xf32>
    %106 = tpu.matmul %104, %105, %cst_42 {dimension_numbers = #tpu.dot_dimension_numbers<[2], [1], [1], [2], [0, 0, 0, 1, 1, 2], [0], [0]>} : vector<1x8x8xbf16>, vector<1x8x8xbf16>, vector<1x8x8xf32> -> vector<1x8x8xf32>
    "tpu.trace_stop"() : () -> ()
    %107 = arith.truncf %106 : vector<1x8x8xf32> to vector<1x8x8xbf16>
    %108 = vector.shape_cast %107 : vector<1x8x8xbf16> to vector<8x8xbf16>
    %109 = vector.extract_strided_slice %53 {offsets = [1, 0, 0], sizes = [1, 8, 32], strides = [1, 1, 1]} : vector<4x8x32xbf16> to vector<1x8x32xbf16>
    %110 = vector.shape_cast %109 : vector<1x8x32xbf16> to vector<8x32xbf16>
    %cst_43 = arith.constant dense<0.000000e+00> : vector<8x32xf32>
    %111 = tpu.matmul %108, %110, %cst_43 {dimension_numbers = #tpu.dot_dimension_numbers<[1], [0], [0], [1], [0, 0, 1, 1], [], []>} : vector<8x8xbf16>, vector<8x32xbf16>, vector<8x32xf32> -> vector<8x32xf32>
    %112 = arith.addf %88, %111 : vector<8x32xf32>
    %113 = vector.extract_strided_slice %63 {offsets = [0, 0, 16], sizes = [1, 8, 8], strides = [1, 1, 1]} : vector<1x8x32xbf16> to vector<1x8x8xbf16>
    %114 = vector.extract_strided_slice %64 {offsets = [0, 0, 16], sizes = [1, 8, 8], strides = [1, 1, 1]} : vector<1x8x32xbf16> to vector<1x8x8xbf16>
    "tpu.trace_start"() <{level = 10 : i32, message = "bqd,bkd->bqk"}> : () -> ()
    %cst_44 = arith.constant dense<0.000000e+00> : vector<1x8x8xf32>
    %115 = tpu.matmul %113, %114, %cst_44 {dimension_numbers = #tpu.dot_dimension_numbers<[2], [2], [1], [1], [0, 0, 0, 1, 1, 1], [0], [0]>} : vector<1x8x8xbf16>, vector<1x8x8xbf16>, vector<1x8x8xf32> -> vector<1x8x8xf32>
    "tpu.trace_stop"() : () -> ()
    %116 = vector.broadcast %13 : vector<1x1x8xf32> to vector<1x8x8xf32>
    %117 = arith.addf %115, %116 : vector<1x8x8xf32>
    %cst_45 = arith.constant dense<0xFF800000> : vector<1x8xf32>
    %118 = vector.multi_reduction <maximumf>, %117, %cst_45 [2] : vector<1x8x8xf32> to vector<1x8xf32>
    %119 = vector.shape_cast %118 : vector<1x8xf32> to vector<1x8x1xf32>
    %120 = vector.broadcast %119 : vector<1x8x1xf32> to vector<1x8x8xf32>
    %121 = arith.subf %117, %120 : vector<1x8x8xf32>
    %122 = math.exp %121 : vector<1x8x8xf32>
    %cst_46 = arith.constant dense<0.000000e+00> : vector<1x8xf32>
    %123 = vector.multi_reduction <add>, %122, %cst_46 [2] : vector<1x8x8xf32> to vector<1x8xf32>
    %124 = vector.shape_cast %123 : vector<1x8xf32> to vector<1x8x1xf32>
    %125 = tpu.reciprocal %124 {approx = true} : vector<1x8x1xf32> -> vector<1x8x1xf32>
    %126 = vector.broadcast %125 : vector<1x8x1xf32> to vector<1x8x8xf32>
    %127 = arith.mulf %122, %126 : vector<1x8x8xf32>
    %128 = arith.truncf %127 : vector<1x8x8xf32> to vector<1x8x8xbf16>
    %129 = vector.extract_strided_slice %65 {offsets = [0, 0, 16], sizes = [1, 8, 8], strides = [1, 1, 1]} : vector<1x8x32xbf16> to vector<1x8x8xbf16>
    "tpu.trace_start"() <{level = 10 : i32, message = "bqk,bkd->bqd"}> : () -> ()
    %cst_47 = arith.constant dense<0.000000e+00> : vector<1x8x8xf32>
    %130 = tpu.matmul %128, %129, %cst_47 {dimension_numbers = #tpu.dot_dimension_numbers<[2], [1], [1], [2], [0, 0, 0, 1, 1, 2], [0], [0]>} : vector<1x8x8xbf16>, vector<1x8x8xbf16>, vector<1x8x8xf32> -> vector<1x8x8xf32>
    "tpu.trace_stop"() : () -> ()
    %131 = arith.truncf %130 : vector<1x8x8xf32> to vector<1x8x8xbf16>
    %132 = vector.shape_cast %131 : vector<1x8x8xbf16> to vector<8x8xbf16>
    %133 = vector.extract_strided_slice %53 {offsets = [2, 0, 0], sizes = [1, 8, 32], strides = [1, 1, 1]} : vector<4x8x32xbf16> to vector<1x8x32xbf16>
    %134 = vector.shape_cast %133 : vector<1x8x32xbf16> to vector<8x32xbf16>
    %cst_48 = arith.constant dense<0.000000e+00> : vector<8x32xf32>
    %135 = tpu.matmul %132, %134, %cst_48 {dimension_numbers = #tpu.dot_dimension_numbers<[1], [0], [0], [1], [0, 0, 1, 1], [], []>} : vector<8x8xbf16>, vector<8x32xbf16>, vector<8x32xf32> -> vector<8x32xf32>
    %136 = arith.addf %112, %135 : vector<8x32xf32>
    %137 = vector.extract_strided_slice %63 {offsets = [0, 0, 24], sizes = [1, 8, 8], strides = [1, 1, 1]} : vector<1x8x32xbf16> to vector<1x8x8xbf16>
    %138 = vector.extract_strided_slice %64 {offsets = [0, 0, 24], sizes = [1, 8, 8], strides = [1, 1, 1]} : vector<1x8x32xbf16> to vector<1x8x8xbf16>
    "tpu.trace_start"() <{level = 10 : i32, message = "bqd,bkd->bqk"}> : () -> ()
    %cst_49 = arith.constant dense<0.000000e+00> : vector<1x8x8xf32>
    %139 = tpu.matmul %137, %138, %cst_49 {dimension_numbers = #tpu.dot_dimension_numbers<[2], [2], [1], [1], [0, 0, 0, 1, 1, 1], [0], [0]>} : vector<1x8x8xbf16>, vector<1x8x8xbf16>, vector<1x8x8xf32> -> vector<1x8x8xf32>
    "tpu.trace_stop"() : () -> ()
    %140 = vector.broadcast %13 : vector<1x1x8xf32> to vector<1x8x8xf32>
    %141 = arith.addf %139, %140 : vector<1x8x8xf32>
    %cst_50 = arith.constant dense<0xFF800000> : vector<1x8xf32>
    %142 = vector.multi_reduction <maximumf>, %141, %cst_50 [2] : vector<1x8x8xf32> to vector<1x8xf32>
    %143 = vector.shape_cast %142 : vector<1x8xf32> to vector<1x8x1xf32>
    %144 = vector.broadcast %143 : vector<1x8x1xf32> to vector<1x8x8xf32>
    %145 = arith.subf %141, %144 : vector<1x8x8xf32>
    %146 = math.exp %145 : vector<1x8x8xf32>
    %cst_51 = arith.constant dense<0.000000e+00> : vector<1x8xf32>
    %147 = vector.multi_reduction <add>, %146, %cst_51 [2] : vector<1x8x8xf32> to vector<1x8xf32>
    %148 = vector.shape_cast %147 : vector<1x8xf32> to vector<1x8x1xf32>
    %149 = tpu.reciprocal %148 {approx = true} : vector<1x8x1xf32> -> vector<1x8x1xf32>
    %150 = vector.broadcast %149 : vector<1x8x1xf32> to vector<1x8x8xf32>
    %151 = arith.mulf %146, %150 : vector<1x8x8xf32>
    %152 = arith.truncf %151 : vector<1x8x8xf32> to vector<1x8x8xbf16>
    %153 = vector.extract_strided_slice %65 {offsets = [0, 0, 24], sizes = [1, 8, 8], strides = [1, 1, 1]} : vector<1x8x32xbf16> to vector<1x8x8xbf16>
    "tpu.trace_start"() <{level = 10 : i32, message = "bqk,bkd->bqd"}> : () -> ()
    %cst_52 = arith.constant dense<0.000000e+00> : vector<1x8x8xf32>
    %154 = tpu.matmul %152, %153, %cst_52 {dimension_numbers = #tpu.dot_dimension_numbers<[2], [1], [1], [2], [0, 0, 0, 1, 1, 2], [0], [0]>} : vector<1x8x8xbf16>, vector<1x8x8xbf16>, vector<1x8x8xf32> -> vector<1x8x8xf32>
    "tpu.trace_stop"() : () -> ()
    %155 = arith.truncf %154 : vector<1x8x8xf32> to vector<1x8x8xbf16>
    %156 = vector.shape_cast %155 : vector<1x8x8xbf16> to vector<8x8xbf16>
    %157 = vector.extract_strided_slice %53 {offsets = [3, 0, 0], sizes = [1, 8, 32], strides = [1, 1, 1]} : vector<4x8x32xbf16> to vector<1x8x32xbf16>
    %158 = vector.shape_cast %157 : vector<1x8x32xbf16> to vector<8x32xbf16>
    %cst_53 = arith.constant dense<0.000000e+00> : vector<8x32xf32>
    %159 = tpu.matmul %156, %158, %cst_53 {dimension_numbers = #tpu.dot_dimension_numbers<[1], [0], [0], [1], [0, 0, 1, 1], [], []>} : vector<8x8xbf16>, vector<8x32xbf16>, vector<8x32xf32> -> vector<8x32xf32>
    %160 = arith.addf %136, %159 : vector<8x32xf32>
    %161 = vector.shape_cast %160 : vector<8x32xf32> to vector<1x8x32xf32>
    %162 = vector.shape_cast %55 : vector<1x32xf32> to vector<1x1x32xf32>
    %163 = vector.broadcast %162 : vector<1x1x32xf32> to vector<1x8x32xf32>
    %164 = arith.addf %161, %163 : vector<1x8x32xf32>
    %165 = arith.addf %0, %164 : vector<1x8x32xf32>
    %c0_54 = arith.constant 0 : index
    %c0_55 = arith.constant 0 : index
    %c0_56 = arith.constant 0 : index
    %166 = vector.load %arg10[%c0_54, %c0_55, %c0_56] : memref<2x1x32xf32, #tpu.memory_space<vmem>>, vector<1x1x32xf32>
    %167 = vector.shape_cast %166 : vector<1x1x32xf32> to vector<1x32xf32>
    %c0_57 = arith.constant 0 : index
    %c0_58 = arith.constant 0 : index
    %c0_59 = arith.constant 0 : index
    %168 = vector.load %arg11[%c0_57, %c0_58, %c0_59] : memref<2x1x32xf32, #tpu.memory_space<vmem>>, vector<1x1x32xf32>
    %169 = vector.shape_cast %168 : vector<1x1x32xf32> to vector<1x32xf32>
    %cst_60 = arith.constant dense<0.000000e+00> : vector<1x8xf32>
    %170 = vector.multi_reduction <add>, %165, %cst_60 [2] : vector<1x8x32xf32> to vector<1x8xf32>
    %171 = vector.shape_cast %170 : vector<1x8xf32> to vector<1x8x1xf32>
    %cst_61 = arith.constant 3.200000e+01 : f32
    %172 = vector.broadcast %cst_61 : f32 to vector<1x8x1xf32>
    %173 = arith.divf %171, %172 : vector<1x8x1xf32>
    %174 = vector.broadcast %173 : vector<1x8x1xf32> to vector<1x8x32xf32>
    %175 = arith.subf %165, %174 : vector<1x8x32xf32>
    %176 = arith.mulf %175, %175 : vector<1x8x32xf32>
    %cst_62 = arith.constant dense<0.000000e+00> : vector<1x8xf32>
    %177 = vector.multi_reduction <add>, %176, %cst_62 [2] : vector<1x8x32xf32> to vector<1x8xf32>
    %178 = vector.shape_cast %177 : vector<1x8xf32> to vector<1x8x1xf32>
    %cst_63 = arith.constant 3.200000e+01 : f32
    %179 = vector.broadcast %cst_63 : f32 to vector<1x8x1xf32>
    %180 = arith.divf %178, %179 : vector<1x8x1xf32>
    %181 = vector.broadcast %173 : vector<1x8x1xf32> to vector<1x8x32xf32>
    %182 = arith.subf %165, %181 : vector<1x8x32xf32>
    %cst_64 = arith.constant 9.99999974E-6 : f32
    %183 = vector.broadcast %cst_64 : f32 to vector<1x8x1xf32>
    %184 = arith.addf %180, %183 : vector<1x8x1xf32>
    %185 = math.rsqrt %184 : vector<1x8x1xf32>
    %186 = vector.broadcast %185 : vector<1x8x1xf32> to vector<1x8x32xf32>
    %187 = arith.mulf %182, %186 : vector<1x8x32xf32>
    %188 = vector.shape_cast %167 : vector<1x32xf32> to vector<1x1x32xf32>
    %189 = vector.broadcast %188 : vector<1x1x32xf32> to vector<1x8x32xf32>
    %190 = arith.mulf %187, %189 : vector<1x8x32xf32>
    %191 = vector.shape_cast %169 : vector<1x32xf32> to vector<1x1x32xf32>
    %192 = vector.broadcast %191 : vector<1x1x32xf32> to vector<1x8x32xf32>
    %193 = arith.addf %190, %192 : vector<1x8x32xf32>
    %c0_65 = arith.constant 0 : index
    %c0_66 = arith.constant 0 : index
    %c0_67 = arith.constant 0 : index
    %194 = vector.load %arg12[%c0_65, %c0_66, %c0_67] : memref<2x32x128xbf16, #tpu.memory_space<vmem>>, vector<1x32x128xbf16>
    %195 = vector.shape_cast %194 : vector<1x32x128xbf16> to vector<32x128xbf16>
    %c0_68 = arith.constant 0 : index
    %c0_69 = arith.constant 0 : index
    %c0_70 = arith.constant 0 : index
    %196 = vector.load %arg13[%c0_68, %c0_69, %c0_70] : memref<2x1x128xf32, #tpu.memory_space<vmem>>, vector<1x1x128xf32>
    %197 = vector.shape_cast %196 : vector<1x1x128xf32> to vector<1x128xf32>
    %c0_71 = arith.constant 0 : index
    %c0_72 = arith.constant 0 : index
    %c0_73 = arith.constant 0 : index
    %198 = vector.load %arg14[%c0_71, %c0_72, %c0_73] : memref<2x128x32xbf16, #tpu.memory_space<vmem>>, vector<1x128x32xbf16>
    %199 = vector.shape_cast %198 : vector<1x128x32xbf16> to vector<128x32xbf16>
    %c0_74 = arith.constant 0 : index
    %c0_75 = arith.constant 0 : index
    %c0_76 = arith.constant 0 : index
    %200 = vector.load %arg15[%c0_74, %c0_75, %c0_76] : memref<2x1x32xf32, #tpu.memory_space<vmem>>, vector<1x1x32xf32>
    %201 = vector.shape_cast %200 : vector<1x1x32xf32> to vector<1x32xf32>
    %202 = vector.shape_cast %193 : vector<1x8x32xf32> to vector<8x32xf32>
    %203 = arith.truncf %202 : vector<8x32xf32> to vector<8x32xbf16>
    %cst_77 = arith.constant dense<0.000000e+00> : vector<8x128xf32>
    %204 = tpu.matmul %203, %195, %cst_77 {dimension_numbers = #tpu.dot_dimension_numbers<[1], [0], [0], [1], [0, 0, 1, 1], [], []>} : vector<8x32xbf16>, vector<32x128xbf16>, vector<8x128xf32> -> vector<8x128xf32>
    %205 = vector.broadcast %197 : vector<1x128xf32> to vector<8x128xf32>
    %206 = arith.addf %204, %205 : vector<8x128xf32>
    %cst_78 = arith.constant 0.000000e+00 : f32
    %207 = vector.broadcast %cst_78 : f32 to vector<8x128xf32>
    %208 = arith.maximumf %206, %207 : vector<8x128xf32>
    %209 = arith.truncf %208 : vector<8x128xf32> to vector<8x128xbf16>
    %cst_79 = arith.constant dense<0.000000e+00> : vector<8x32xf32>
    %210 = tpu.matmul %209, %199, %cst_79 {dimension_numbers = #tpu.dot_dimension_numbers<[1], [0], [0], [1], [0, 0, 1, 1], [], []>} : vector<8x128xbf16>, vector<128x32xbf16>, vector<8x32xf32> -> vector<8x32xf32>
    %211 = vector.broadcast %201 : vector<1x32xf32> to vector<8x32xf32>
    %212 = arith.addf %210, %211 : vector<8x32xf32>
    %213 = vector.shape_cast %212 : vector<8x32xf32> to vector<1x8x32xf32>
    %214 = arith.addf %165, %213 : vector<1x8x32xf32>
    %c1 = arith.constant 1 : index
    %c0_80 = arith.constant 0 : index
    %c0_81 = arith.constant 0 : index
    %215 = vector.load %arg4[%c1, %c0_80, %c0_81] : memref<2x1x32xf32, #tpu.memory_space<vmem>>, vector<1x1x32xf32>
    %216 = vector.shape_cast %215 : vector<1x1x32xf32> to vector<1x32xf32>
    %c1_82 = arith.constant 1 : index
    %c0_83 = arith.constant 0 : index
    %c0_84 = arith.constant 0 : index
    %217 = vector.load %arg5[%c1_82, %c0_83, %c0_84] : memref<2x1x32xf32, #tpu.memory_space<vmem>>, vector<1x1x32xf32>
    %218 = vector.shape_cast %217 : vector<1x1x32xf32> to vector<1x32xf32>
    %cst_85 = arith.constant dense<0.000000e+00> : vector<1x8xf32>
    %219 = vector.multi_reduction <add>, %214, %cst_85 [2] : vector<1x8x32xf32> to vector<1x8xf32>
    %220 = vector.shape_cast %219 : vector<1x8xf32> to vector<1x8x1xf32>
    %cst_86 = arith.constant 3.200000e+01 : f32
    %221 = vector.broadcast %cst_86 : f32 to vector<1x8x1xf32>
    %222 = arith.divf %220, %221 : vector<1x8x1xf32>
    %223 = vector.broadcast %222 : vector<1x8x1xf32> to vector<1x8x32xf32>
    %224 = arith.subf %214, %223 : vector<1x8x32xf32>
    %225 = arith.mulf %224, %224 : vector<1x8x32xf32>
    %cst_87 = arith.constant dense<0.000000e+00> : vector<1x8xf32>
    %226 = vector.multi_reduction <add>, %225, %cst_87 [2] : vector<1x8x32xf32> to vector<1x8xf32>
    %227 = vector.shape_cast %226 : vector<1x8xf32> to vector<1x8x1xf32>
    %cst_88 = arith.constant 3.200000e+01 : f32
    %228 = vector.broadcast %cst_88 : f32 to vector<1x8x1xf32>
    %229 = arith.divf %227, %228 : vector<1x8x1xf32>
    %230 = vector.broadcast %222 : vector<1x8x1xf32> to vector<1x8x32xf32>
    %231 = arith.subf %214, %230 : vector<1x8x32xf32>
    %cst_89 = arith.constant 9.99999974E-6 : f32
    %232 = vector.broadcast %cst_89 : f32 to vector<1x8x1xf32>
    %233 = arith.addf %229, %232 : vector<1x8x1xf32>
    %234 = math.rsqrt %233 : vector<1x8x1xf32>
    %235 = vector.broadcast %234 : vector<1x8x1xf32> to vector<1x8x32xf32>
    %236 = arith.mulf %231, %235 : vector<1x8x32xf32>
    %237 = vector.shape_cast %216 : vector<1x32xf32> to vector<1x1x32xf32>
    %238 = vector.broadcast %237 : vector<1x1x32xf32> to vector<1x8x32xf32>
    %239 = arith.mulf %236, %238 : vector<1x8x32xf32>
    %240 = vector.shape_cast %218 : vector<1x32xf32> to vector<1x1x32xf32>
    %241 = vector.broadcast %240 : vector<1x1x32xf32> to vector<1x8x32xf32>
    %242 = arith.addf %239, %241 : vector<1x8x32xf32>
    %c1_90 = arith.constant 1 : index
    %c0_91 = arith.constant 0 : index
    %c0_92 = arith.constant 0 : index
    %243 = vector.load %arg6[%c1_90, %c0_91, %c0_92] : memref<2x32x96xbf16, #tpu.memory_space<vmem>>, vector<1x32x96xbf16>
    %244 = vector.shape_cast %243 : vector<1x32x96xbf16> to vector<32x96xbf16>
    %c1_93 = arith.constant 1 : index
    %c0_94 = arith.constant 0 : index
    %c0_95 = arith.constant 0 : index
    %245 = vector.load %arg7[%c1_93, %c0_94, %c0_95] : memref<2x1x96xf32, #tpu.memory_space<vmem>>, vector<1x1x96xf32>
    %246 = vector.shape_cast %245 : vector<1x1x96xf32> to vector<1x96xf32>
    %c1_96 = arith.constant 1 : index
    %c0_97 = arith.constant 0 : index
    %c0_98 = arith.constant 0 : index
    %c0_99 = arith.constant 0 : index
    %247 = vector.load %arg8[%c1_96, %c0_97, %c0_98, %c0_99] : memref<2x4x8x32xbf16, #tpu.memory_space<vmem>>, vector<1x4x8x32xbf16>
    %248 = vector.shape_cast %247 : vector<1x4x8x32xbf16> to vector<4x8x32xbf16>
    %c1_100 = arith.constant 1 : index
    %c0_101 = arith.constant 0 : index
    %c0_102 = arith.constant 0 : index
    %249 = vector.load %arg9[%c1_100, %c0_101, %c0_102] : memref<2x1x32xf32, #tpu.memory_space<vmem>>, vector<1x1x32xf32>
    %250 = vector.shape_cast %249 : vector<1x1x32xf32> to vector<1x32xf32>
    %251 = vector.shape_cast %242 : vector<1x8x32xf32> to vector<8x32xf32>
    %252 = arith.truncf %251 : vector<8x32xf32> to vector<8x32xbf16>
    %cst_103 = arith.constant dense<0.000000e+00> : vector<8x96xf32>
    %253 = tpu.matmul %252, %244, %cst_103 {dimension_numbers = #tpu.dot_dimension_numbers<[1], [0], [0], [1], [0, 0, 1, 1], [], []>} : vector<8x32xbf16>, vector<32x96xbf16>, vector<8x96xf32> -> vector<8x96xf32>
    %254 = vector.broadcast %246 : vector<1x96xf32> to vector<8x96xf32>
    %255 = arith.addf %253, %254 : vector<8x96xf32>
    %256 = arith.truncf %255 : vector<8x96xf32> to vector<8x96xbf16>
    %257 = vector.shape_cast %256 : vector<8x96xbf16> to vector<1x8x96xbf16>
    %258 = vector.extract_strided_slice %257 {offsets = [0, 0, 0], sizes = [1, 8, 32], strides = [1, 1, 1]} : vector<1x8x96xbf16> to vector<1x8x32xbf16>
    %259 = vector.extract_strided_slice %257 {offsets = [0, 0, 32], sizes = [1, 8, 32], strides = [1, 1, 1]} : vector<1x8x96xbf16> to vector<1x8x32xbf16>
    %260 = vector.extract_strided_slice %257 {offsets = [0, 0, 64], sizes = [1, 8, 32], strides = [1, 1, 1]} : vector<1x8x96xbf16> to vector<1x8x32xbf16>
    %261 = vector.extract_strided_slice %258 {offsets = [0, 0, 0], sizes = [1, 8, 8], strides = [1, 1, 1]} : vector<1x8x32xbf16> to vector<1x8x8xbf16>
    %262 = vector.extract_strided_slice %259 {offsets = [0, 0, 0], sizes = [1, 8, 8], strides = [1, 1, 1]} : vector<1x8x32xbf16> to vector<1x8x8xbf16>
    "tpu.trace_start"() <{level = 10 : i32, message = "bqd,bkd->bqk"}> : () -> ()
    %cst_104 = arith.constant dense<0.000000e+00> : vector<1x8x8xf32>
    %263 = tpu.matmul %261, %262, %cst_104 {dimension_numbers = #tpu.dot_dimension_numbers<[2], [2], [1], [1], [0, 0, 0, 1, 1, 1], [0], [0]>} : vector<1x8x8xbf16>, vector<1x8x8xbf16>, vector<1x8x8xf32> -> vector<1x8x8xf32>
    "tpu.trace_stop"() : () -> ()
    %264 = vector.broadcast %13 : vector<1x1x8xf32> to vector<1x8x8xf32>
    %265 = arith.addf %263, %264 : vector<1x8x8xf32>
    %cst_105 = arith.constant dense<0xFF800000> : vector<1x8xf32>
    %266 = vector.multi_reduction <maximumf>, %265, %cst_105 [2] : vector<1x8x8xf32> to vector<1x8xf32>
    %267 = vector.shape_cast %266 : vector<1x8xf32> to vector<1x8x1xf32>
    %268 = vector.broadcast %267 : vector<1x8x1xf32> to vector<1x8x8xf32>
    %269 = arith.subf %265, %268 : vector<1x8x8xf32>
    %270 = math.exp %269 : vector<1x8x8xf32>
    %cst_106 = arith.constant dense<0.000000e+00> : vector<1x8xf32>
    %271 = vector.multi_reduction <add>, %270, %cst_106 [2] : vector<1x8x8xf32> to vector<1x8xf32>
    %272 = vector.shape_cast %271 : vector<1x8xf32> to vector<1x8x1xf32>
    %273 = tpu.reciprocal %272 {approx = true} : vector<1x8x1xf32> -> vector<1x8x1xf32>
    %274 = vector.broadcast %273 : vector<1x8x1xf32> to vector<1x8x8xf32>
    %275 = arith.mulf %270, %274 : vector<1x8x8xf32>
    %276 = arith.truncf %275 : vector<1x8x8xf32> to vector<1x8x8xbf16>
    %277 = vector.extract_strided_slice %260 {offsets = [0, 0, 0], sizes = [1, 8, 8], strides = [1, 1, 1]} : vector<1x8x32xbf16> to vector<1x8x8xbf16>
    "tpu.trace_start"() <{level = 10 : i32, message = "bqk,bkd->bqd"}> : () -> ()
    %cst_107 = arith.constant dense<0.000000e+00> : vector<1x8x8xf32>
    %278 = tpu.matmul %276, %277, %cst_107 {dimension_numbers = #tpu.dot_dimension_numbers<[2], [1], [1], [2], [0, 0, 0, 1, 1, 2], [0], [0]>} : vector<1x8x8xbf16>, vector<1x8x8xbf16>, vector<1x8x8xf32> -> vector<1x8x8xf32>
    "tpu.trace_stop"() : () -> ()
    %279 = arith.truncf %278 : vector<1x8x8xf32> to vector<1x8x8xbf16>
    %280 = vector.shape_cast %279 : vector<1x8x8xbf16> to vector<8x8xbf16>
    %281 = vector.extract_strided_slice %248 {offsets = [0, 0, 0], sizes = [1, 8, 32], strides = [1, 1, 1]} : vector<4x8x32xbf16> to vector<1x8x32xbf16>
    %282 = vector.shape_cast %281 : vector<1x8x32xbf16> to vector<8x32xbf16>
    %cst_108 = arith.constant dense<0.000000e+00> : vector<8x32xf32>
    %283 = tpu.matmul %280, %282, %cst_108 {dimension_numbers = #tpu.dot_dimension_numbers<[1], [0], [0], [1], [0, 0, 1, 1], [], []>} : vector<8x8xbf16>, vector<8x32xbf16>, vector<8x32xf32> -> vector<8x32xf32>
    %284 = vector.extract_strided_slice %258 {offsets = [0, 0, 8], sizes = [1, 8, 8], strides = [1, 1, 1]} : vector<1x8x32xbf16> to vector<1x8x8xbf16>
    %285 = vector.extract_strided_slice %259 {offsets = [0, 0, 8], sizes = [1, 8, 8], strides = [1, 1, 1]} : vector<1x8x32xbf16> to vector<1x8x8xbf16>
    "tpu.trace_start"() <{level = 10 : i32, message = "bqd,bkd->bqk"}> : () -> ()
    %cst_109 = arith.constant dense<0.000000e+00> : vector<1x8x8xf32>
    %286 = tpu.matmul %284, %285, %cst_109 {dimension_numbers = #tpu.dot_dimension_numbers<[2], [2], [1], [1], [0, 0, 0, 1, 1, 1], [0], [0]>} : vector<1x8x8xbf16>, vector<1x8x8xbf16>, vector<1x8x8xf32> -> vector<1x8x8xf32>
    "tpu.trace_stop"() : () -> ()
    %287 = vector.broadcast %13 : vector<1x1x8xf32> to vector<1x8x8xf32>
    %288 = arith.addf %286, %287 : vector<1x8x8xf32>
    %cst_110 = arith.constant dense<0xFF800000> : vector<1x8xf32>
    %289 = vector.multi_reduction <maximumf>, %288, %cst_110 [2] : vector<1x8x8xf32> to vector<1x8xf32>
    %290 = vector.shape_cast %289 : vector<1x8xf32> to vector<1x8x1xf32>
    %291 = vector.broadcast %290 : vector<1x8x1xf32> to vector<1x8x8xf32>
    %292 = arith.subf %288, %291 : vector<1x8x8xf32>
    %293 = math.exp %292 : vector<1x8x8xf32>
    %cst_111 = arith.constant dense<0.000000e+00> : vector<1x8xf32>
    %294 = vector.multi_reduction <add>, %293, %cst_111 [2] : vector<1x8x8xf32> to vector<1x8xf32>
    %295 = vector.shape_cast %294 : vector<1x8xf32> to vector<1x8x1xf32>
    %296 = tpu.reciprocal %295 {approx = true} : vector<1x8x1xf32> -> vector<1x8x1xf32>
    %297 = vector.broadcast %296 : vector<1x8x1xf32> to vector<1x8x8xf32>
    %298 = arith.mulf %293, %297 : vector<1x8x8xf32>
    %299 = arith.truncf %298 : vector<1x8x8xf32> to vector<1x8x8xbf16>
    %300 = vector.extract_strided_slice %260 {offsets = [0, 0, 8], sizes = [1, 8, 8], strides = [1, 1, 1]} : vector<1x8x32xbf16> to vector<1x8x8xbf16>
    "tpu.trace_start"() <{level = 10 : i32, message = "bqk,bkd->bqd"}> : () -> ()
    %cst_112 = arith.constant dense<0.000000e+00> : vector<1x8x8xf32>
    %301 = tpu.matmul %299, %300, %cst_112 {dimension_numbers = #tpu.dot_dimension_numbers<[2], [1], [1], [2], [0, 0, 0, 1, 1, 2], [0], [0]>} : vector<1x8x8xbf16>, vector<1x8x8xbf16>, vector<1x8x8xf32> -> vector<1x8x8xf32>
    "tpu.trace_stop"() : () -> ()
    %302 = arith.truncf %301 : vector<1x8x8xf32> to vector<1x8x8xbf16>
    %303 = vector.shape_cast %302 : vector<1x8x8xbf16> to vector<8x8xbf16>
    %304 = vector.extract_strided_slice %248 {offsets = [1, 0, 0], sizes = [1, 8, 32], strides = [1, 1, 1]} : vector<4x8x32xbf16> to vector<1x8x32xbf16>
    %305 = vector.shape_cast %304 : vector<1x8x32xbf16> to vector<8x32xbf16>
    %cst_113 = arith.constant dense<0.000000e+00> : vector<8x32xf32>
    %306 = tpu.matmul %303, %305, %cst_113 {dimension_numbers = #tpu.dot_dimension_numbers<[1], [0], [0], [1], [0, 0, 1, 1], [], []>} : vector<8x8xbf16>, vector<8x32xbf16>, vector<8x32xf32> -> vector<8x32xf32>
    %307 = arith.addf %283, %306 : vector<8x32xf32>
    %308 = vector.extract_strided_slice %258 {offsets = [0, 0, 16], sizes = [1, 8, 8], strides = [1, 1, 1]} : vector<1x8x32xbf16> to vector<1x8x8xbf16>
    %309 = vector.extract_strided_slice %259 {offsets = [0, 0, 16], sizes = [1, 8, 8], strides = [1, 1, 1]} : vector<1x8x32xbf16> to vector<1x8x8xbf16>
    "tpu.trace_start"() <{level = 10 : i32, message = "bqd,bkd->bqk"}> : () -> ()
    %cst_114 = arith.constant dense<0.000000e+00> : vector<1x8x8xf32>
    %310 = tpu.matmul %308, %309, %cst_114 {dimension_numbers = #tpu.dot_dimension_numbers<[2], [2], [1], [1], [0, 0, 0, 1, 1, 1], [0], [0]>} : vector<1x8x8xbf16>, vector<1x8x8xbf16>, vector<1x8x8xf32> -> vector<1x8x8xf32>
    "tpu.trace_stop"() : () -> ()
    %311 = vector.broadcast %13 : vector<1x1x8xf32> to vector<1x8x8xf32>
    %312 = arith.addf %310, %311 : vector<1x8x8xf32>
    %cst_115 = arith.constant dense<0xFF800000> : vector<1x8xf32>
    %313 = vector.multi_reduction <maximumf>, %312, %cst_115 [2] : vector<1x8x8xf32> to vector<1x8xf32>
    %314 = vector.shape_cast %313 : vector<1x8xf32> to vector<1x8x1xf32>
    %315 = vector.broadcast %314 : vector<1x8x1xf32> to vector<1x8x8xf32>
    %316 = arith.subf %312, %315 : vector<1x8x8xf32>
    %317 = math.exp %316 : vector<1x8x8xf32>
    %cst_116 = arith.constant dense<0.000000e+00> : vector<1x8xf32>
    %318 = vector.multi_reduction <add>, %317, %cst_116 [2] : vector<1x8x8xf32> to vector<1x8xf32>
    %319 = vector.shape_cast %318 : vector<1x8xf32> to vector<1x8x1xf32>
    %320 = tpu.reciprocal %319 {approx = true} : vector<1x8x1xf32> -> vector<1x8x1xf32>
    %321 = vector.broadcast %320 : vector<1x8x1xf32> to vector<1x8x8xf32>
    %322 = arith.mulf %317, %321 : vector<1x8x8xf32>
    %323 = arith.truncf %322 : vector<1x8x8xf32> to vector<1x8x8xbf16>
    %324 = vector.extract_strided_slice %260 {offsets = [0, 0, 16], sizes = [1, 8, 8], strides = [1, 1, 1]} : vector<1x8x32xbf16> to vector<1x8x8xbf16>
    "tpu.trace_start"() <{level = 10 : i32, message = "bqk,bkd->bqd"}> : () -> ()
    %cst_117 = arith.constant dense<0.000000e+00> : vector<1x8x8xf32>
    %325 = tpu.matmul %323, %324, %cst_117 {dimension_numbers = #tpu.dot_dimension_numbers<[2], [1], [1], [2], [0, 0, 0, 1, 1, 2], [0], [0]>} : vector<1x8x8xbf16>, vector<1x8x8xbf16>, vector<1x8x8xf32> -> vector<1x8x8xf32>
    "tpu.trace_stop"() : () -> ()
    %326 = arith.truncf %325 : vector<1x8x8xf32> to vector<1x8x8xbf16>
    %327 = vector.shape_cast %326 : vector<1x8x8xbf16> to vector<8x8xbf16>
    %328 = vector.extract_strided_slice %248 {offsets = [2, 0, 0], sizes = [1, 8, 32], strides = [1, 1, 1]} : vector<4x8x32xbf16> to vector<1x8x32xbf16>
    %329 = vector.shape_cast %328 : vector<1x8x32xbf16> to vector<8x32xbf16>
    %cst_118 = arith.constant dense<0.000000e+00> : vector<8x32xf32>
    %330 = tpu.matmul %327, %329, %cst_118 {dimension_numbers = #tpu.dot_dimension_numbers<[1], [0], [0], [1], [0, 0, 1, 1], [], []>} : vector<8x8xbf16>, vector<8x32xbf16>, vector<8x32xf32> -> vector<8x32xf32>
    %331 = arith.addf %307, %330 : vector<8x32xf32>
    %332 = vector.extract_strided_slice %258 {offsets = [0, 0, 24], sizes = [1, 8, 8], strides = [1, 1, 1]} : vector<1x8x32xbf16> to vector<1x8x8xbf16>
    %333 = vector.extract_strided_slice %259 {offsets = [0, 0, 24], sizes = [1, 8, 8], strides = [1, 1, 1]} : vector<1x8x32xbf16> to vector<1x8x8xbf16>
    "tpu.trace_start"() <{level = 10 : i32, message = "bqd,bkd->bqk"}> : () -> ()
    %cst_119 = arith.constant dense<0.000000e+00> : vector<1x8x8xf32>
    %334 = tpu.matmul %332, %333, %cst_119 {dimension_numbers = #tpu.dot_dimension_numbers<[2], [2], [1], [1], [0, 0, 0, 1, 1, 1], [0], [0]>} : vector<1x8x8xbf16>, vector<1x8x8xbf16>, vector<1x8x8xf32> -> vector<1x8x8xf32>
    "tpu.trace_stop"() : () -> ()
    %335 = vector.broadcast %13 : vector<1x1x8xf32> to vector<1x8x8xf32>
    %336 = arith.addf %334, %335 : vector<1x8x8xf32>
    %cst_120 = arith.constant dense<0xFF800000> : vector<1x8xf32>
    %337 = vector.multi_reduction <maximumf>, %336, %cst_120 [2] : vector<1x8x8xf32> to vector<1x8xf32>
    %338 = vector.shape_cast %337 : vector<1x8xf32> to vector<1x8x1xf32>
    %339 = vector.broadcast %338 : vector<1x8x1xf32> to vector<1x8x8xf32>
    %340 = arith.subf %336, %339 : vector<1x8x8xf32>
    %341 = math.exp %340 : vector<1x8x8xf32>
    %cst_121 = arith.constant dense<0.000000e+00> : vector<1x8xf32>
    %342 = vector.multi_reduction <add>, %341, %cst_121 [2] : vector<1x8x8xf32> to vector<1x8xf32>
    %343 = vector.shape_cast %342 : vector<1x8xf32> to vector<1x8x1xf32>
    %344 = tpu.reciprocal %343 {approx = true} : vector<1x8x1xf32> -> vector<1x8x1xf32>
    %345 = vector.broadcast %344 : vector<1x8x1xf32> to vector<1x8x8xf32>
    %346 = arith.mulf %341, %345 : vector<1x8x8xf32>
    %347 = arith.truncf %346 : vector<1x8x8xf32> to vector<1x8x8xbf16>
    %348 = vector.extract_strided_slice %260 {offsets = [0, 0, 24], sizes = [1, 8, 8], strides = [1, 1, 1]} : vector<1x8x32xbf16> to vector<1x8x8xbf16>
    "tpu.trace_start"() <{level = 10 : i32, message = "bqk,bkd->bqd"}> : () -> ()
    %cst_122 = arith.constant dense<0.000000e+00> : vector<1x8x8xf32>
    %349 = tpu.matmul %347, %348, %cst_122 {dimension_numbers = #tpu.dot_dimension_numbers<[2], [1], [1], [2], [0, 0, 0, 1, 1, 2], [0], [0]>} : vector<1x8x8xbf16>, vector<1x8x8xbf16>, vector<1x8x8xf32> -> vector<1x8x8xf32>
    "tpu.trace_stop"() : () -> ()
    %350 = arith.truncf %349 : vector<1x8x8xf32> to vector<1x8x8xbf16>
    %351 = vector.shape_cast %350 : vector<1x8x8xbf16> to vector<8x8xbf16>
    %352 = vector.extract_strided_slice %248 {offsets = [3, 0, 0], sizes = [1, 8, 32], strides = [1, 1, 1]} : vector<4x8x32xbf16> to vector<1x8x32xbf16>
    %353 = vector.shape_cast %352 : vector<1x8x32xbf16> to vector<8x32xbf16>
    %cst_123 = arith.constant dense<0.000000e+00> : vector<8x32xf32>
    %354 = tpu.matmul %351, %353, %cst_123 {dimension_numbers = #tpu.dot_dimension_numbers<[1], [0], [0], [1], [0, 0, 1, 1], [], []>} : vector<8x8xbf16>, vector<8x32xbf16>, vector<8x32xf32> -> vector<8x32xf32>
    %355 = arith.addf %331, %354 : vector<8x32xf32>
    %356 = vector.shape_cast %355 : vector<8x32xf32> to vector<1x8x32xf32>
    %357 = vector.shape_cast %250 : vector<1x32xf32> to vector<1x1x32xf32>
    %358 = vector.broadcast %357 : vector<1x1x32xf32> to vector<1x8x32xf32>
    %359 = arith.addf %356, %358 : vector<1x8x32xf32>
    %360 = arith.addf %214, %359 : vector<1x8x32xf32>
    %c1_124 = arith.constant 1 : index
    %c0_125 = arith.constant 0 : index
    %c0_126 = arith.constant 0 : index
    %361 = vector.load %arg10[%c1_124, %c0_125, %c0_126] : memref<2x1x32xf32, #tpu.memory_space<vmem>>, vector<1x1x32xf32>
    %362 = vector.shape_cast %361 : vector<1x1x32xf32> to vector<1x32xf32>
    %c1_127 = arith.constant 1 : index
    %c0_128 = arith.constant 0 : index
    %c0_129 = arith.constant 0 : index
    %363 = vector.load %arg11[%c1_127, %c0_128, %c0_129] : memref<2x1x32xf32, #tpu.memory_space<vmem>>, vector<1x1x32xf32>
    %364 = vector.shape_cast %363 : vector<1x1x32xf32> to vector<1x32xf32>
    %cst_130 = arith.constant dense<0.000000e+00> : vector<1x8xf32>
    %365 = vector.multi_reduction <add>, %360, %cst_130 [2] : vector<1x8x32xf32> to vector<1x8xf32>
    %366 = vector.shape_cast %365 : vector<1x8xf32> to vector<1x8x1xf32>
    %cst_131 = arith.constant 3.200000e+01 : f32
    %367 = vector.broadcast %cst_131 : f32 to vector<1x8x1xf32>
    %368 = arith.divf %366, %367 : vector<1x8x1xf32>
    %369 = vector.broadcast %368 : vector<1x8x1xf32> to vector<1x8x32xf32>
    %370 = arith.subf %360, %369 : vector<1x8x32xf32>
    %371 = arith.mulf %370, %370 : vector<1x8x32xf32>
    %cst_132 = arith.constant dense<0.000000e+00> : vector<1x8xf32>
    %372 = vector.multi_reduction <add>, %371, %cst_132 [2] : vector<1x8x32xf32> to vector<1x8xf32>
    %373 = vector.shape_cast %372 : vector<1x8xf32> to vector<1x8x1xf32>
    %cst_133 = arith.constant 3.200000e+01 : f32
    %374 = vector.broadcast %cst_133 : f32 to vector<1x8x1xf32>
    %375 = arith.divf %373, %374 : vector<1x8x1xf32>
    %376 = vector.broadcast %368 : vector<1x8x1xf32> to vector<1x8x32xf32>
    %377 = arith.subf %360, %376 : vector<1x8x32xf32>
    %cst_134 = arith.constant 9.99999974E-6 : f32
    %378 = vector.broadcast %cst_134 : f32 to vector<1x8x1xf32>
    %379 = arith.addf %375, %378 : vector<1x8x1xf32>
    %380 = math.rsqrt %379 : vector<1x8x1xf32>
    %381 = vector.broadcast %380 : vector<1x8x1xf32> to vector<1x8x32xf32>
    %382 = arith.mulf %377, %381 : vector<1x8x32xf32>
    %383 = vector.shape_cast %362 : vector<1x32xf32> to vector<1x1x32xf32>
    %384 = vector.broadcast %383 : vector<1x1x32xf32> to vector<1x8x32xf32>
    %385 = arith.mulf %382, %384 : vector<1x8x32xf32>
    %386 = vector.shape_cast %364 : vector<1x32xf32> to vector<1x1x32xf32>
    %387 = vector.broadcast %386 : vector<1x1x32xf32> to vector<1x8x32xf32>
    %388 = arith.addf %385, %387 : vector<1x8x32xf32>
    %c1_135 = arith.constant 1 : index
    %c0_136 = arith.constant 0 : index
    %c0_137 = arith.constant 0 : index
    %389 = vector.load %arg12[%c1_135, %c0_136, %c0_137] : memref<2x32x128xbf16, #tpu.memory_space<vmem>>, vector<1x32x128xbf16>
    %390 = vector.shape_cast %389 : vector<1x32x128xbf16> to vector<32x128xbf16>
    %c1_138 = arith.constant 1 : index
    %c0_139 = arith.constant 0 : index
    %c0_140 = arith.constant 0 : index
    %391 = vector.load %arg13[%c1_138, %c0_139, %c0_140] : memref<2x1x128xf32, #tpu.memory_space<vmem>>, vector<1x1x128xf32>
    %392 = vector.shape_cast %391 : vector<1x1x128xf32> to vector<1x128xf32>
    %c1_141 = arith.constant 1 : index
    %c0_142 = arith.constant 0 : index
    %c0_143 = arith.constant 0 : index
    %393 = vector.load %arg14[%c1_141, %c0_142, %c0_143] : memref<2x128x32xbf16, #tpu.memory_space<vmem>>, vector<1x128x32xbf16>
    %394 = vector.shape_cast %393 : vector<1x128x32xbf16> to vector<128x32xbf16>
    %c1_144 = arith.constant 1 : index
    %c0_145 = arith.constant 0 : index
    %c0_146 = arith.constant 0 : index
    %395 = vector.load %arg15[%c1_144, %c0_145, %c0_146] : memref<2x1x32xf32, #tpu.memory_space<vmem>>, vector<1x1x32xf32>
    %396 = vector.shape_cast %395 : vector<1x1x32xf32> to vector<1x32xf32>
    %397 = vector.shape_cast %388 : vector<1x8x32xf32> to vector<8x32xf32>
    %398 = arith.truncf %397 : vector<8x32xf32> to vector<8x32xbf16>
    %cst_147 = arith.constant dense<0.000000e+00> : vector<8x128xf32>
    %399 = tpu.matmul %398, %390, %cst_147 {dimension_numbers = #tpu.dot_dimension_numbers<[1], [0], [0], [1], [0, 0, 1, 1], [], []>} : vector<8x32xbf16>, vector<32x128xbf16>, vector<8x128xf32> -> vector<8x128xf32>
    %400 = vector.broadcast %392 : vector<1x128xf32> to vector<8x128xf32>
    %401 = arith.addf %399, %400 : vector<8x128xf32>
    %cst_148 = arith.constant 0.000000e+00 : f32
    %402 = vector.broadcast %cst_148 : f32 to vector<8x128xf32>
    %403 = arith.maximumf %401, %402 : vector<8x128xf32>
    %404 = arith.truncf %403 : vector<8x128xf32> to vector<8x128xbf16>
    %cst_149 = arith.constant dense<0.000000e+00> : vector<8x32xf32>
    %405 = tpu.matmul %404, %394, %cst_149 {dimension_numbers = #tpu.dot_dimension_numbers<[1], [0], [0], [1], [0, 0, 1, 1], [], []>} : vector<8x128xbf16>, vector<128x32xbf16>, vector<8x32xf32> -> vector<8x32xf32>
    %406 = vector.broadcast %396 : vector<1x32xf32> to vector<8x32xf32>
    %407 = arith.addf %405, %406 : vector<8x32xf32>
    %408 = vector.shape_cast %407 : vector<8x32xf32> to vector<1x8x32xf32>
    %409 = arith.addf %360, %408 : vector<1x8x32xf32>
    %c0_150 = arith.constant 0 : index
    %c0_151 = arith.constant 0 : index
    %410 = vector.load %arg36[%c0_150, %c0_151] : memref<1x32xf32, #tpu.memory_space<vmem>>, vector<1x32xf32>
    %c0_152 = arith.constant 0 : index
    %c0_153 = arith.constant 0 : index
    %411 = vector.load %arg37[%c0_152, %c0_153] : memref<1x32xf32, #tpu.memory_space<vmem>>, vector<1x32xf32>
    %cst_154 = arith.constant dense<0.000000e+00> : vector<1x8xf32>
    %412 = vector.multi_reduction <add>, %409, %cst_154 [2] : vector<1x8x32xf32> to vector<1x8xf32>
    %413 = vector.shape_cast %412 : vector<1x8xf32> to vector<1x8x1xf32>
    %cst_155 = arith.constant 3.200000e+01 : f32
    %414 = vector.broadcast %cst_155 : f32 to vector<1x8x1xf32>
    %415 = arith.divf %413, %414 : vector<1x8x1xf32>
    %416 = vector.broadcast %415 : vector<1x8x1xf32> to vector<1x8x32xf32>
    %417 = arith.subf %409, %416 : vector<1x8x32xf32>
    %418 = arith.mulf %417, %417 : vector<1x8x32xf32>
    %cst_156 = arith.constant dense<0.000000e+00> : vector<1x8xf32>
    %419 = vector.multi_reduction <add>, %418, %cst_156 [2] : vector<1x8x32xf32> to vector<1x8xf32>
    %420 = vector.shape_cast %419 : vector<1x8xf32> to vector<1x8x1xf32>
    %cst_157 = arith.constant 3.200000e+01 : f32
    %421 = vector.broadcast %cst_157 : f32 to vector<1x8x1xf32>
    %422 = arith.divf %420, %421 : vector<1x8x1xf32>
    %423 = vector.broadcast %415 : vector<1x8x1xf32> to vector<1x8x32xf32>
    %424 = arith.subf %409, %423 : vector<1x8x32xf32>
    %cst_158 = arith.constant 9.99999974E-6 : f32
    %425 = vector.broadcast %cst_158 : f32 to vector<1x8x1xf32>
    %426 = arith.addf %422, %425 : vector<1x8x1xf32>
    %427 = math.rsqrt %426 : vector<1x8x1xf32>
    %428 = vector.broadcast %427 : vector<1x8x1xf32> to vector<1x8x32xf32>
    %429 = arith.mulf %424, %428 : vector<1x8x32xf32>
    %430 = vector.shape_cast %410 : vector<1x32xf32> to vector<1x1x32xf32>
    %431 = vector.broadcast %430 : vector<1x1x32xf32> to vector<1x8x32xf32>
    %432 = arith.mulf %429, %431 : vector<1x8x32xf32>
    %433 = vector.shape_cast %411 : vector<1x32xf32> to vector<1x1x32xf32>
    %434 = vector.broadcast %433 : vector<1x1x32xf32> to vector<1x8x32xf32>
    %435 = arith.addf %432, %434 : vector<1x8x32xf32>
    %436 = arith.truncf %435 : vector<1x8x32xf32> to vector<1x8x32xbf16>
    %c0_159 = arith.constant 0 : index
    %c0_160 = arith.constant 0 : index
    %c0_161 = arith.constant 0 : index
    %437 = vector.load %arg16[%c0_159, %c0_160, %c0_161] : memref<2x1x32xf32, #tpu.memory_space<vmem>>, vector<1x1x32xf32>
    %438 = vector.shape_cast %437 : vector<1x1x32xf32> to vector<1x32xf32>
    %c0_162 = arith.constant 0 : index
    %c0_163 = arith.constant 0 : index
    %c0_164 = arith.constant 0 : index
    %439 = vector.load %arg17[%c0_162, %c0_163, %c0_164] : memref<2x1x32xf32, #tpu.memory_space<vmem>>, vector<1x1x32xf32>
    %440 = vector.shape_cast %439 : vector<1x1x32xf32> to vector<1x32xf32>
    %cst_165 = arith.constant dense<0.000000e+00> : vector<1x8xf32>
    %441 = vector.multi_reduction <add>, %1, %cst_165 [2] : vector<1x8x32xf32> to vector<1x8xf32>
    %442 = vector.shape_cast %441 : vector<1x8xf32> to vector<1x8x1xf32>
    %cst_166 = arith.constant 3.200000e+01 : f32
    %443 = vector.broadcast %cst_166 : f32 to vector<1x8x1xf32>
    %444 = arith.divf %442, %443 : vector<1x8x1xf32>
    %445 = vector.broadcast %444 : vector<1x8x1xf32> to vector<1x8x32xf32>
    %446 = arith.subf %1, %445 : vector<1x8x32xf32>
    %447 = arith.mulf %446, %446 : vector<1x8x32xf32>
    %cst_167 = arith.constant dense<0.000000e+00> : vector<1x8xf32>
    %448 = vector.multi_reduction <add>, %447, %cst_167 [2] : vector<1x8x32xf32> to vector<1x8xf32>
    %449 = vector.shape_cast %448 : vector<1x8xf32> to vector<1x8x1xf32>
    %cst_168 = arith.constant 3.200000e+01 : f32
    %450 = vector.broadcast %cst_168 : f32 to vector<1x8x1xf32>
    %451 = arith.divf %449, %450 : vector<1x8x1xf32>
    %452 = vector.broadcast %444 : vector<1x8x1xf32> to vector<1x8x32xf32>
    %453 = arith.subf %1, %452 : vector<1x8x32xf32>
    %cst_169 = arith.constant 9.99999974E-6 : f32
    %454 = vector.broadcast %cst_169 : f32 to vector<1x8x1xf32>
    %455 = arith.addf %451, %454 : vector<1x8x1xf32>
    %456 = math.rsqrt %455 : vector<1x8x1xf32>
    %457 = vector.broadcast %456 : vector<1x8x1xf32> to vector<1x8x32xf32>
    %458 = arith.mulf %453, %457 : vector<1x8x32xf32>
    %459 = vector.shape_cast %438 : vector<1x32xf32> to vector<1x1x32xf32>
    %460 = vector.broadcast %459 : vector<1x1x32xf32> to vector<1x8x32xf32>
    %461 = arith.mulf %458, %460 : vector<1x8x32xf32>
    %462 = vector.shape_cast %440 : vector<1x32xf32> to vector<1x1x32xf32>
    %463 = vector.broadcast %462 : vector<1x1x32xf32> to vector<1x8x32xf32>
    %464 = arith.addf %461, %463 : vector<1x8x32xf32>
    %c0_170 = arith.constant 0 : index
    %c0_171 = arith.constant 0 : index
    %c0_172 = arith.constant 0 : index
    %465 = vector.load %arg18[%c0_170, %c0_171, %c0_172] : memref<2x32x96xbf16, #tpu.memory_space<vmem>>, vector<1x32x96xbf16>
    %466 = vector.shape_cast %465 : vector<1x32x96xbf16> to vector<32x96xbf16>
    %c0_173 = arith.constant 0 : index
    %c0_174 = arith.constant 0 : index
    %c0_175 = arith.constant 0 : index
    %467 = vector.load %arg19[%c0_173, %c0_174, %c0_175] : memref<2x1x96xf32, #tpu.memory_space<vmem>>, vector<1x1x96xf32>
    %468 = vector.shape_cast %467 : vector<1x1x96xf32> to vector<1x96xf32>
    %c0_176 = arith.constant 0 : index
    %c0_177 = arith.constant 0 : index
    %c0_178 = arith.constant 0 : index
    %c0_179 = arith.constant 0 : index
    %469 = vector.load %arg20[%c0_176, %c0_177, %c0_178, %c0_179] : memref<2x4x8x32xbf16, #tpu.memory_space<vmem>>, vector<1x4x8x32xbf16>
    %470 = vector.shape_cast %469 : vector<1x4x8x32xbf16> to vector<4x8x32xbf16>
    %c0_180 = arith.constant 0 : index
    %c0_181 = arith.constant 0 : index
    %c0_182 = arith.constant 0 : index
    %471 = vector.load %arg21[%c0_180, %c0_181, %c0_182] : memref<2x1x32xf32, #tpu.memory_space<vmem>>, vector<1x1x32xf32>
    %472 = vector.shape_cast %471 : vector<1x1x32xf32> to vector<1x32xf32>
    %473 = vector.shape_cast %464 : vector<1x8x32xf32> to vector<8x32xf32>
    %474 = arith.truncf %473 : vector<8x32xf32> to vector<8x32xbf16>
    %cst_183 = arith.constant dense<0.000000e+00> : vector<8x96xf32>
    %475 = tpu.matmul %474, %466, %cst_183 {dimension_numbers = #tpu.dot_dimension_numbers<[1], [0], [0], [1], [0, 0, 1, 1], [], []>} : vector<8x32xbf16>, vector<32x96xbf16>, vector<8x96xf32> -> vector<8x96xf32>
    %476 = vector.broadcast %468 : vector<1x96xf32> to vector<8x96xf32>
    %477 = arith.addf %475, %476 : vector<8x96xf32>
    %478 = arith.truncf %477 : vector<8x96xf32> to vector<8x96xbf16>
    %479 = vector.shape_cast %478 : vector<8x96xbf16> to vector<1x8x96xbf16>
    %480 = vector.extract_strided_slice %479 {offsets = [0, 0, 0], sizes = [1, 8, 32], strides = [1, 1, 1]} : vector<1x8x96xbf16> to vector<1x8x32xbf16>
    %481 = vector.extract_strided_slice %479 {offsets = [0, 0, 32], sizes = [1, 8, 32], strides = [1, 1, 1]} : vector<1x8x96xbf16> to vector<1x8x32xbf16>
    %482 = vector.extract_strided_slice %479 {offsets = [0, 0, 64], sizes = [1, 8, 32], strides = [1, 1, 1]} : vector<1x8x96xbf16> to vector<1x8x32xbf16>
    %483 = vector.extract_strided_slice %480 {offsets = [0, 0, 0], sizes = [1, 8, 8], strides = [1, 1, 1]} : vector<1x8x32xbf16> to vector<1x8x8xbf16>
    %484 = vector.extract_strided_slice %481 {offsets = [0, 0, 0], sizes = [1, 8, 8], strides = [1, 1, 1]} : vector<1x8x32xbf16> to vector<1x8x8xbf16>
    "tpu.trace_start"() <{level = 10 : i32, message = "bqd,bkd->bqk"}> : () -> ()
    %cst_184 = arith.constant dense<0.000000e+00> : vector<1x8x8xf32>
    %485 = tpu.matmul %483, %484, %cst_184 {dimension_numbers = #tpu.dot_dimension_numbers<[2], [2], [1], [1], [0, 0, 0, 1, 1, 1], [0], [0]>} : vector<1x8x8xbf16>, vector<1x8x8xbf16>, vector<1x8x8xf32> -> vector<1x8x8xf32>
    "tpu.trace_stop"() : () -> ()
    %486 = vector.shape_cast %19 : vector<8x8xf32> to vector<1x8x8xf32>
    %487 = arith.addf %485, %486 : vector<1x8x8xf32>
    %cst_185 = arith.constant dense<0xFF800000> : vector<1x8xf32>
    %488 = vector.multi_reduction <maximumf>, %487, %cst_185 [2] : vector<1x8x8xf32> to vector<1x8xf32>
    %489 = vector.shape_cast %488 : vector<1x8xf32> to vector<1x8x1xf32>
    %490 = vector.broadcast %489 : vector<1x8x1xf32> to vector<1x8x8xf32>
    %491 = arith.subf %487, %490 : vector<1x8x8xf32>
    %492 = math.exp %491 : vector<1x8x8xf32>
    %cst_186 = arith.constant dense<0.000000e+00> : vector<1x8xf32>
    %493 = vector.multi_reduction <add>, %492, %cst_186 [2] : vector<1x8x8xf32> to vector<1x8xf32>
    %494 = vector.shape_cast %493 : vector<1x8xf32> to vector<1x8x1xf32>
    %495 = tpu.reciprocal %494 {approx = true} : vector<1x8x1xf32> -> vector<1x8x1xf32>
    %496 = vector.broadcast %495 : vector<1x8x1xf32> to vector<1x8x8xf32>
    %497 = arith.mulf %492, %496 : vector<1x8x8xf32>
    %498 = arith.truncf %497 : vector<1x8x8xf32> to vector<1x8x8xbf16>
    %499 = vector.extract_strided_slice %482 {offsets = [0, 0, 0], sizes = [1, 8, 8], strides = [1, 1, 1]} : vector<1x8x32xbf16> to vector<1x8x8xbf16>
    "tpu.trace_start"() <{level = 10 : i32, message = "bqk,bkd->bqd"}> : () -> ()
    %cst_187 = arith.constant dense<0.000000e+00> : vector<1x8x8xf32>
    %500 = tpu.matmul %498, %499, %cst_187 {dimension_numbers = #tpu.dot_dimension_numbers<[2], [1], [1], [2], [0, 0, 0, 1, 1, 2], [0], [0]>} : vector<1x8x8xbf16>, vector<1x8x8xbf16>, vector<1x8x8xf32> -> vector<1x8x8xf32>
    "tpu.trace_stop"() : () -> ()
    %501 = arith.truncf %500 : vector<1x8x8xf32> to vector<1x8x8xbf16>
    %502 = vector.shape_cast %501 : vector<1x8x8xbf16> to vector<8x8xbf16>
    %503 = vector.extract_strided_slice %470 {offsets = [0, 0, 0], sizes = [1, 8, 32], strides = [1, 1, 1]} : vector<4x8x32xbf16> to vector<1x8x32xbf16>
    %504 = vector.shape_cast %503 : vector<1x8x32xbf16> to vector<8x32xbf16>
    %cst_188 = arith.constant dense<0.000000e+00> : vector<8x32xf32>
    %505 = tpu.matmul %502, %504, %cst_188 {dimension_numbers = #tpu.dot_dimension_numbers<[1], [0], [0], [1], [0, 0, 1, 1], [], []>} : vector<8x8xbf16>, vector<8x32xbf16>, vector<8x32xf32> -> vector<8x32xf32>
    %506 = vector.extract_strided_slice %480 {offsets = [0, 0, 8], sizes = [1, 8, 8], strides = [1, 1, 1]} : vector<1x8x32xbf16> to vector<1x8x8xbf16>
    %507 = vector.extract_strided_slice %481 {offsets = [0, 0, 8], sizes = [1, 8, 8], strides = [1, 1, 1]} : vector<1x8x32xbf16> to vector<1x8x8xbf16>
    "tpu.trace_start"() <{level = 10 : i32, message = "bqd,bkd->bqk"}> : () -> ()
    %cst_189 = arith.constant dense<0.000000e+00> : vector<1x8x8xf32>
    %508 = tpu.matmul %506, %507, %cst_189 {dimension_numbers = #tpu.dot_dimension_numbers<[2], [2], [1], [1], [0, 0, 0, 1, 1, 1], [0], [0]>} : vector<1x8x8xbf16>, vector<1x8x8xbf16>, vector<1x8x8xf32> -> vector<1x8x8xf32>
    "tpu.trace_stop"() : () -> ()
    %509 = vector.shape_cast %19 : vector<8x8xf32> to vector<1x8x8xf32>
    %510 = arith.addf %508, %509 : vector<1x8x8xf32>
    %cst_190 = arith.constant dense<0xFF800000> : vector<1x8xf32>
    %511 = vector.multi_reduction <maximumf>, %510, %cst_190 [2] : vector<1x8x8xf32> to vector<1x8xf32>
    %512 = vector.shape_cast %511 : vector<1x8xf32> to vector<1x8x1xf32>
    %513 = vector.broadcast %512 : vector<1x8x1xf32> to vector<1x8x8xf32>
    %514 = arith.subf %510, %513 : vector<1x8x8xf32>
    %515 = math.exp %514 : vector<1x8x8xf32>
    %cst_191 = arith.constant dense<0.000000e+00> : vector<1x8xf32>
    %516 = vector.multi_reduction <add>, %515, %cst_191 [2] : vector<1x8x8xf32> to vector<1x8xf32>
    %517 = vector.shape_cast %516 : vector<1x8xf32> to vector<1x8x1xf32>
    %518 = tpu.reciprocal %517 {approx = true} : vector<1x8x1xf32> -> vector<1x8x1xf32>
    %519 = vector.broadcast %518 : vector<1x8x1xf32> to vector<1x8x8xf32>
    %520 = arith.mulf %515, %519 : vector<1x8x8xf32>
    %521 = arith.truncf %520 : vector<1x8x8xf32> to vector<1x8x8xbf16>
    %522 = vector.extract_strided_slice %482 {offsets = [0, 0, 8], sizes = [1, 8, 8], strides = [1, 1, 1]} : vector<1x8x32xbf16> to vector<1x8x8xbf16>
    "tpu.trace_start"() <{level = 10 : i32, message = "bqk,bkd->bqd"}> : () -> ()
    %cst_192 = arith.constant dense<0.000000e+00> : vector<1x8x8xf32>
    %523 = tpu.matmul %521, %522, %cst_192 {dimension_numbers = #tpu.dot_dimension_numbers<[2], [1], [1], [2], [0, 0, 0, 1, 1, 2], [0], [0]>} : vector<1x8x8xbf16>, vector<1x8x8xbf16>, vector<1x8x8xf32> -> vector<1x8x8xf32>
    "tpu.trace_stop"() : () -> ()
    %524 = arith.truncf %523 : vector<1x8x8xf32> to vector<1x8x8xbf16>
    %525 = vector.shape_cast %524 : vector<1x8x8xbf16> to vector<8x8xbf16>
    %526 = vector.extract_strided_slice %470 {offsets = [1, 0, 0], sizes = [1, 8, 32], strides = [1, 1, 1]} : vector<4x8x32xbf16> to vector<1x8x32xbf16>
    %527 = vector.shape_cast %526 : vector<1x8x32xbf16> to vector<8x32xbf16>
    %cst_193 = arith.constant dense<0.000000e+00> : vector<8x32xf32>
    %528 = tpu.matmul %525, %527, %cst_193 {dimension_numbers = #tpu.dot_dimension_numbers<[1], [0], [0], [1], [0, 0, 1, 1], [], []>} : vector<8x8xbf16>, vector<8x32xbf16>, vector<8x32xf32> -> vector<8x32xf32>
    %529 = arith.addf %505, %528 : vector<8x32xf32>
    %530 = vector.extract_strided_slice %480 {offsets = [0, 0, 16], sizes = [1, 8, 8], strides = [1, 1, 1]} : vector<1x8x32xbf16> to vector<1x8x8xbf16>
    %531 = vector.extract_strided_slice %481 {offsets = [0, 0, 16], sizes = [1, 8, 8], strides = [1, 1, 1]} : vector<1x8x32xbf16> to vector<1x8x8xbf16>
    "tpu.trace_start"() <{level = 10 : i32, message = "bqd,bkd->bqk"}> : () -> ()
    %cst_194 = arith.constant dense<0.000000e+00> : vector<1x8x8xf32>
    %532 = tpu.matmul %530, %531, %cst_194 {dimension_numbers = #tpu.dot_dimension_numbers<[2], [2], [1], [1], [0, 0, 0, 1, 1, 1], [0], [0]>} : vector<1x8x8xbf16>, vector<1x8x8xbf16>, vector<1x8x8xf32> -> vector<1x8x8xf32>
    "tpu.trace_stop"() : () -> ()
    %533 = vector.shape_cast %19 : vector<8x8xf32> to vector<1x8x8xf32>
    %534 = arith.addf %532, %533 : vector<1x8x8xf32>
    %cst_195 = arith.constant dense<0xFF800000> : vector<1x8xf32>
    %535 = vector.multi_reduction <maximumf>, %534, %cst_195 [2] : vector<1x8x8xf32> to vector<1x8xf32>
    %536 = vector.shape_cast %535 : vector<1x8xf32> to vector<1x8x1xf32>
    %537 = vector.broadcast %536 : vector<1x8x1xf32> to vector<1x8x8xf32>
    %538 = arith.subf %534, %537 : vector<1x8x8xf32>
    %539 = math.exp %538 : vector<1x8x8xf32>
    %cst_196 = arith.constant dense<0.000000e+00> : vector<1x8xf32>
    %540 = vector.multi_reduction <add>, %539, %cst_196 [2] : vector<1x8x8xf32> to vector<1x8xf32>
    %541 = vector.shape_cast %540 : vector<1x8xf32> to vector<1x8x1xf32>
    %542 = tpu.reciprocal %541 {approx = true} : vector<1x8x1xf32> -> vector<1x8x1xf32>
    %543 = vector.broadcast %542 : vector<1x8x1xf32> to vector<1x8x8xf32>
    %544 = arith.mulf %539, %543 : vector<1x8x8xf32>
    %545 = arith.truncf %544 : vector<1x8x8xf32> to vector<1x8x8xbf16>
    %546 = vector.extract_strided_slice %482 {offsets = [0, 0, 16], sizes = [1, 8, 8], strides = [1, 1, 1]} : vector<1x8x32xbf16> to vector<1x8x8xbf16>
    "tpu.trace_start"() <{level = 10 : i32, message = "bqk,bkd->bqd"}> : () -> ()
    %cst_197 = arith.constant dense<0.000000e+00> : vector<1x8x8xf32>
    %547 = tpu.matmul %545, %546, %cst_197 {dimension_numbers = #tpu.dot_dimension_numbers<[2], [1], [1], [2], [0, 0, 0, 1, 1, 2], [0], [0]>} : vector<1x8x8xbf16>, vector<1x8x8xbf16>, vector<1x8x8xf32> -> vector<1x8x8xf32>
    "tpu.trace_stop"() : () -> ()
    %548 = arith.truncf %547 : vector<1x8x8xf32> to vector<1x8x8xbf16>
    %549 = vector.shape_cast %548 : vector<1x8x8xbf16> to vector<8x8xbf16>
    %550 = vector.extract_strided_slice %470 {offsets = [2, 0, 0], sizes = [1, 8, 32], strides = [1, 1, 1]} : vector<4x8x32xbf16> to vector<1x8x32xbf16>
    %551 = vector.shape_cast %550 : vector<1x8x32xbf16> to vector<8x32xbf16>
    %cst_198 = arith.constant dense<0.000000e+00> : vector<8x32xf32>
    %552 = tpu.matmul %549, %551, %cst_198 {dimension_numbers = #tpu.dot_dimension_numbers<[1], [0], [0], [1], [0, 0, 1, 1], [], []>} : vector<8x8xbf16>, vector<8x32xbf16>, vector<8x32xf32> -> vector<8x32xf32>
    %553 = arith.addf %529, %552 : vector<8x32xf32>
    %554 = vector.extract_strided_slice %480 {offsets = [0, 0, 24], sizes = [1, 8, 8], strides = [1, 1, 1]} : vector<1x8x32xbf16> to vector<1x8x8xbf16>
    %555 = vector.extract_strided_slice %481 {offsets = [0, 0, 24], sizes = [1, 8, 8], strides = [1, 1, 1]} : vector<1x8x32xbf16> to vector<1x8x8xbf16>
    "tpu.trace_start"() <{level = 10 : i32, message = "bqd,bkd->bqk"}> : () -> ()
    %cst_199 = arith.constant dense<0.000000e+00> : vector<1x8x8xf32>
    %556 = tpu.matmul %554, %555, %cst_199 {dimension_numbers = #tpu.dot_dimension_numbers<[2], [2], [1], [1], [0, 0, 0, 1, 1, 1], [0], [0]>} : vector<1x8x8xbf16>, vector<1x8x8xbf16>, vector<1x8x8xf32> -> vector<1x8x8xf32>
    "tpu.trace_stop"() : () -> ()
    %557 = vector.shape_cast %19 : vector<8x8xf32> to vector<1x8x8xf32>
    %558 = arith.addf %556, %557 : vector<1x8x8xf32>
    %cst_200 = arith.constant dense<0xFF800000> : vector<1x8xf32>
    %559 = vector.multi_reduction <maximumf>, %558, %cst_200 [2] : vector<1x8x8xf32> to vector<1x8xf32>
    %560 = vector.shape_cast %559 : vector<1x8xf32> to vector<1x8x1xf32>
    %561 = vector.broadcast %560 : vector<1x8x1xf32> to vector<1x8x8xf32>
    %562 = arith.subf %558, %561 : vector<1x8x8xf32>
    %563 = math.exp %562 : vector<1x8x8xf32>
    %cst_201 = arith.constant dense<0.000000e+00> : vector<1x8xf32>
    %564 = vector.multi_reduction <add>, %563, %cst_201 [2] : vector<1x8x8xf32> to vector<1x8xf32>
    %565 = vector.shape_cast %564 : vector<1x8xf32> to vector<1x8x1xf32>
    %566 = tpu.reciprocal %565 {approx = true} : vector<1x8x1xf32> -> vector<1x8x1xf32>
    %567 = vector.broadcast %566 : vector<1x8x1xf32> to vector<1x8x8xf32>
    %568 = arith.mulf %563, %567 : vector<1x8x8xf32>
    %569 = arith.truncf %568 : vector<1x8x8xf32> to vector<1x8x8xbf16>
    %570 = vector.extract_strided_slice %482 {offsets = [0, 0, 24], sizes = [1, 8, 8], strides = [1, 1, 1]} : vector<1x8x32xbf16> to vector<1x8x8xbf16>
    "tpu.trace_start"() <{level = 10 : i32, message = "bqk,bkd->bqd"}> : () -> ()
    %cst_202 = arith.constant dense<0.000000e+00> : vector<1x8x8xf32>
    %571 = tpu.matmul %569, %570, %cst_202 {dimension_numbers = #tpu.dot_dimension_numbers<[2], [1], [1], [2], [0, 0, 0, 1, 1, 2], [0], [0]>} : vector<1x8x8xbf16>, vector<1x8x8xbf16>, vector<1x8x8xf32> -> vector<1x8x8xf32>
    "tpu.trace_stop"() : () -> ()
    %572 = arith.truncf %571 : vector<1x8x8xf32> to vector<1x8x8xbf16>
    %573 = vector.shape_cast %572 : vector<1x8x8xbf16> to vector<8x8xbf16>
    %574 = vector.extract_strided_slice %470 {offsets = [3, 0, 0], sizes = [1, 8, 32], strides = [1, 1, 1]} : vector<4x8x32xbf16> to vector<1x8x32xbf16>
    %575 = vector.shape_cast %574 : vector<1x8x32xbf16> to vector<8x32xbf16>
    %cst_203 = arith.constant dense<0.000000e+00> : vector<8x32xf32>
    %576 = tpu.matmul %573, %575, %cst_203 {dimension_numbers = #tpu.dot_dimension_numbers<[1], [0], [0], [1], [0, 0, 1, 1], [], []>} : vector<8x8xbf16>, vector<8x32xbf16>, vector<8x32xf32> -> vector<8x32xf32>
    %577 = arith.addf %553, %576 : vector<8x32xf32>
    %578 = vector.shape_cast %577 : vector<8x32xf32> to vector<1x8x32xf32>
    %579 = vector.shape_cast %472 : vector<1x32xf32> to vector<1x1x32xf32>
    %580 = vector.broadcast %579 : vector<1x1x32xf32> to vector<1x8x32xf32>
    %581 = arith.addf %578, %580 : vector<1x8x32xf32>
    %582 = arith.addf %1, %581 : vector<1x8x32xf32>
    %c0_204 = arith.constant 0 : index
    %c0_205 = arith.constant 0 : index
    %c0_206 = arith.constant 0 : index
    %583 = vector.load %arg22[%c0_204, %c0_205, %c0_206] : memref<2x1x32xf32, #tpu.memory_space<vmem>>, vector<1x1x32xf32>
    %584 = vector.shape_cast %583 : vector<1x1x32xf32> to vector<1x32xf32>
    %c0_207 = arith.constant 0 : index
    %c0_208 = arith.constant 0 : index
    %c0_209 = arith.constant 0 : index
    %585 = vector.load %arg23[%c0_207, %c0_208, %c0_209] : memref<2x1x32xf32, #tpu.memory_space<vmem>>, vector<1x1x32xf32>
    %586 = vector.shape_cast %585 : vector<1x1x32xf32> to vector<1x32xf32>
    %cst_210 = arith.constant dense<0.000000e+00> : vector<1x8xf32>
    %587 = vector.multi_reduction <add>, %582, %cst_210 [2] : vector<1x8x32xf32> to vector<1x8xf32>
    %588 = vector.shape_cast %587 : vector<1x8xf32> to vector<1x8x1xf32>
    %cst_211 = arith.constant 3.200000e+01 : f32
    %589 = vector.broadcast %cst_211 : f32 to vector<1x8x1xf32>
    %590 = arith.divf %588, %589 : vector<1x8x1xf32>
    %591 = vector.broadcast %590 : vector<1x8x1xf32> to vector<1x8x32xf32>
    %592 = arith.subf %582, %591 : vector<1x8x32xf32>
    %593 = arith.mulf %592, %592 : vector<1x8x32xf32>
    %cst_212 = arith.constant dense<0.000000e+00> : vector<1x8xf32>
    %594 = vector.multi_reduction <add>, %593, %cst_212 [2] : vector<1x8x32xf32> to vector<1x8xf32>
    %595 = vector.shape_cast %594 : vector<1x8xf32> to vector<1x8x1xf32>
    %cst_213 = arith.constant 3.200000e+01 : f32
    %596 = vector.broadcast %cst_213 : f32 to vector<1x8x1xf32>
    %597 = arith.divf %595, %596 : vector<1x8x1xf32>
    %598 = vector.broadcast %590 : vector<1x8x1xf32> to vector<1x8x32xf32>
    %599 = arith.subf %582, %598 : vector<1x8x32xf32>
    %cst_214 = arith.constant 9.99999974E-6 : f32
    %600 = vector.broadcast %cst_214 : f32 to vector<1x8x1xf32>
    %601 = arith.addf %597, %600 : vector<1x8x1xf32>
    %602 = math.rsqrt %601 : vector<1x8x1xf32>
    %603 = vector.broadcast %602 : vector<1x8x1xf32> to vector<1x8x32xf32>
    %604 = arith.mulf %599, %603 : vector<1x8x32xf32>
    %605 = vector.shape_cast %584 : vector<1x32xf32> to vector<1x1x32xf32>
    %606 = vector.broadcast %605 : vector<1x1x32xf32> to vector<1x8x32xf32>
    %607 = arith.mulf %604, %606 : vector<1x8x32xf32>
    %608 = vector.shape_cast %586 : vector<1x32xf32> to vector<1x1x32xf32>
    %609 = vector.broadcast %608 : vector<1x1x32xf32> to vector<1x8x32xf32>
    %610 = arith.addf %607, %609 : vector<1x8x32xf32>
    %c0_215 = arith.constant 0 : index
    %c0_216 = arith.constant 0 : index
    %c0_217 = arith.constant 0 : index
    %611 = vector.load %arg24[%c0_215, %c0_216, %c0_217] : memref<2x32x32xbf16, #tpu.memory_space<vmem>>, vector<1x32x32xbf16>
    %612 = vector.shape_cast %611 : vector<1x32x32xbf16> to vector<32x32xbf16>
    %c0_218 = arith.constant 0 : index
    %c0_219 = arith.constant 0 : index
    %c0_220 = arith.constant 0 : index
    %613 = vector.load %arg25[%c0_218, %c0_219, %c0_220] : memref<2x1x32xf32, #tpu.memory_space<vmem>>, vector<1x1x32xf32>
    %614 = vector.shape_cast %613 : vector<1x1x32xf32> to vector<1x32xf32>
    %c0_221 = arith.constant 0 : index
    %c0_222 = arith.constant 0 : index
    %c0_223 = arith.constant 0 : index
    %615 = vector.load %arg26[%c0_221, %c0_222, %c0_223] : memref<2x32x64xbf16, #tpu.memory_space<vmem>>, vector<1x32x64xbf16>
    %616 = vector.shape_cast %615 : vector<1x32x64xbf16> to vector<32x64xbf16>
    %c0_224 = arith.constant 0 : index
    %c0_225 = arith.constant 0 : index
    %c0_226 = arith.constant 0 : index
    %617 = vector.load %arg27[%c0_224, %c0_225, %c0_226] : memref<2x1x64xf32, #tpu.memory_space<vmem>>, vector<1x1x64xf32>
    %618 = vector.shape_cast %617 : vector<1x1x64xf32> to vector<1x64xf32>
    %c0_227 = arith.constant 0 : index
    %c0_228 = arith.constant 0 : index
    %c0_229 = arith.constant 0 : index
    %c0_230 = arith.constant 0 : index
    %619 = vector.load %arg28[%c0_227, %c0_228, %c0_229, %c0_230] : memref<2x4x8x32xbf16, #tpu.memory_space<vmem>>, vector<1x4x8x32xbf16>
    %620 = vector.shape_cast %619 : vector<1x4x8x32xbf16> to vector<4x8x32xbf16>
    %c0_231 = arith.constant 0 : index
    %c0_232 = arith.constant 0 : index
    %c0_233 = arith.constant 0 : index
    %621 = vector.load %arg29[%c0_231, %c0_232, %c0_233] : memref<2x1x32xf32, #tpu.memory_space<vmem>>, vector<1x1x32xf32>
    %622 = vector.shape_cast %621 : vector<1x1x32xf32> to vector<1x32xf32>
    %623 = vector.shape_cast %610 : vector<1x8x32xf32> to vector<8x32xf32>
    %624 = arith.truncf %623 : vector<8x32xf32> to vector<8x32xbf16>
    %cst_234 = arith.constant dense<0.000000e+00> : vector<8x32xf32>
    %625 = tpu.matmul %624, %612, %cst_234 {dimension_numbers = #tpu.dot_dimension_numbers<[1], [0], [0], [1], [0, 0, 1, 1], [], []>} : vector<8x32xbf16>, vector<32x32xbf16>, vector<8x32xf32> -> vector<8x32xf32>
    %626 = vector.broadcast %614 : vector<1x32xf32> to vector<8x32xf32>
    %627 = arith.addf %625, %626 : vector<8x32xf32>
    %628 = arith.truncf %627 : vector<8x32xf32> to vector<8x32xbf16>
    %629 = vector.shape_cast %628 : vector<8x32xbf16> to vector<1x8x32xbf16>
    %630 = vector.shape_cast %436 : vector<1x8x32xbf16> to vector<8x32xbf16>
    %cst_235 = arith.constant dense<0.000000e+00> : vector<8x64xf32>
    %631 = tpu.matmul %630, %616, %cst_235 {dimension_numbers = #tpu.dot_dimension_numbers<[1], [0], [0], [1], [0, 0, 1, 1], [], []>} : vector<8x32xbf16>, vector<32x64xbf16>, vector<8x64xf32> -> vector<8x64xf32>
    %632 = vector.broadcast %618 : vector<1x64xf32> to vector<8x64xf32>
    %633 = arith.addf %631, %632 : vector<8x64xf32>
    %634 = arith.truncf %633 : vector<8x64xf32> to vector<8x64xbf16>
    %635 = vector.shape_cast %634 : vector<8x64xbf16> to vector<1x8x64xbf16>
    %636 = vector.extract_strided_slice %635 {offsets = [0, 0, 0], sizes = [1, 8, 32], strides = [1, 1, 1]} : vector<1x8x64xbf16> to vector<1x8x32xbf16>
    %637 = vector.extract_strided_slice %635 {offsets = [0, 0, 32], sizes = [1, 8, 32], strides = [1, 1, 1]} : vector<1x8x64xbf16> to vector<1x8x32xbf16>
    %638 = vector.extract_strided_slice %629 {offsets = [0, 0, 0], sizes = [1, 8, 8], strides = [1, 1, 1]} : vector<1x8x32xbf16> to vector<1x8x8xbf16>
    %639 = vector.extract_strided_slice %636 {offsets = [0, 0, 0], sizes = [1, 8, 8], strides = [1, 1, 1]} : vector<1x8x32xbf16> to vector<1x8x8xbf16>
    "tpu.trace_start"() <{level = 10 : i32, message = "bqd,bkd->bqk"}> : () -> ()
    %cst_236 = arith.constant dense<0.000000e+00> : vector<1x8x8xf32>
    %640 = tpu.matmul %638, %639, %cst_236 {dimension_numbers = #tpu.dot_dimension_numbers<[2], [2], [1], [1], [0, 0, 0, 1, 1, 1], [0], [0]>} : vector<1x8x8xbf16>, vector<1x8x8xbf16>, vector<1x8x8xf32> -> vector<1x8x8xf32>
    "tpu.trace_stop"() : () -> ()
    %641 = vector.broadcast %13 : vector<1x1x8xf32> to vector<1x8x8xf32>
    %642 = arith.addf %640, %641 : vector<1x8x8xf32>
    %cst_237 = arith.constant dense<0xFF800000> : vector<1x8xf32>
    %643 = vector.multi_reduction <maximumf>, %642, %cst_237 [2] : vector<1x8x8xf32> to vector<1x8xf32>
    %644 = vector.shape_cast %643 : vector<1x8xf32> to vector<1x8x1xf32>
    %645 = vector.broadcast %644 : vector<1x8x1xf32> to vector<1x8x8xf32>
    %646 = arith.subf %642, %645 : vector<1x8x8xf32>
    %647 = math.exp %646 : vector<1x8x8xf32>
    %cst_238 = arith.constant dense<0.000000e+00> : vector<1x8xf32>
    %648 = vector.multi_reduction <add>, %647, %cst_238 [2] : vector<1x8x8xf32> to vector<1x8xf32>
    %649 = vector.shape_cast %648 : vector<1x8xf32> to vector<1x8x1xf32>
    %650 = tpu.reciprocal %649 {approx = true} : vector<1x8x1xf32> -> vector<1x8x1xf32>
    %651 = vector.broadcast %650 : vector<1x8x1xf32> to vector<1x8x8xf32>
    %652 = arith.mulf %647, %651 : vector<1x8x8xf32>
    %653 = arith.truncf %652 : vector<1x8x8xf32> to vector<1x8x8xbf16>
    %654 = vector.extract_strided_slice %637 {offsets = [0, 0, 0], sizes = [1, 8, 8], strides = [1, 1, 1]} : vector<1x8x32xbf16> to vector<1x8x8xbf16>
    "tpu.trace_start"() <{level = 10 : i32, message = "bqk,bkd->bqd"}> : () -> ()
    %cst_239 = arith.constant dense<0.000000e+00> : vector<1x8x8xf32>
    %655 = tpu.matmul %653, %654, %cst_239 {dimension_numbers = #tpu.dot_dimension_numbers<[2], [1], [1], [2], [0, 0, 0, 1, 1, 2], [0], [0]>} : vector<1x8x8xbf16>, vector<1x8x8xbf16>, vector<1x8x8xf32> -> vector<1x8x8xf32>
    "tpu.trace_stop"() : () -> ()
    %656 = arith.truncf %655 : vector<1x8x8xf32> to vector<1x8x8xbf16>
    %657 = vector.shape_cast %656 : vector<1x8x8xbf16> to vector<8x8xbf16>
    %658 = vector.extract_strided_slice %620 {offsets = [0, 0, 0], sizes = [1, 8, 32], strides = [1, 1, 1]} : vector<4x8x32xbf16> to vector<1x8x32xbf16>
    %659 = vector.shape_cast %658 : vector<1x8x32xbf16> to vector<8x32xbf16>
    %cst_240 = arith.constant dense<0.000000e+00> : vector<8x32xf32>
    %660 = tpu.matmul %657, %659, %cst_240 {dimension_numbers = #tpu.dot_dimension_numbers<[1], [0], [0], [1], [0, 0, 1, 1], [], []>} : vector<8x8xbf16>, vector<8x32xbf16>, vector<8x32xf32> -> vector<8x32xf32>
    %661 = vector.extract_strided_slice %629 {offsets = [0, 0, 8], sizes = [1, 8, 8], strides = [1, 1, 1]} : vector<1x8x32xbf16> to vector<1x8x8xbf16>
    %662 = vector.extract_strided_slice %636 {offsets = [0, 0, 8], sizes = [1, 8, 8], strides = [1, 1, 1]} : vector<1x8x32xbf16> to vector<1x8x8xbf16>
    "tpu.trace_start"() <{level = 10 : i32, message = "bqd,bkd->bqk"}> : () -> ()
    %cst_241 = arith.constant dense<0.000000e+00> : vector<1x8x8xf32>
    %663 = tpu.matmul %661, %662, %cst_241 {dimension_numbers = #tpu.dot_dimension_numbers<[2], [2], [1], [1], [0, 0, 0, 1, 1, 1], [0], [0]>} : vector<1x8x8xbf16>, vector<1x8x8xbf16>, vector<1x8x8xf32> -> vector<1x8x8xf32>
    "tpu.trace_stop"() : () -> ()
    %664 = vector.broadcast %13 : vector<1x1x8xf32> to vector<1x8x8xf32>
    %665 = arith.addf %663, %664 : vector<1x8x8xf32>
    %cst_242 = arith.constant dense<0xFF800000> : vector<1x8xf32>
    %666 = vector.multi_reduction <maximumf>, %665, %cst_242 [2] : vector<1x8x8xf32> to vector<1x8xf32>
    %667 = vector.shape_cast %666 : vector<1x8xf32> to vector<1x8x1xf32>
    %668 = vector.broadcast %667 : vector<1x8x1xf32> to vector<1x8x8xf32>
    %669 = arith.subf %665, %668 : vector<1x8x8xf32>
    %670 = math.exp %669 : vector<1x8x8xf32>
    %cst_243 = arith.constant dense<0.000000e+00> : vector<1x8xf32>
    %671 = vector.multi_reduction <add>, %670, %cst_243 [2] : vector<1x8x8xf32> to vector<1x8xf32>
    %672 = vector.shape_cast %671 : vector<1x8xf32> to vector<1x8x1xf32>
    %673 = tpu.reciprocal %672 {approx = true} : vector<1x8x1xf32> -> vector<1x8x1xf32>
    %674 = vector.broadcast %673 : vector<1x8x1xf32> to vector<1x8x8xf32>
    %675 = arith.mulf %670, %674 : vector<1x8x8xf32>
    %676 = arith.truncf %675 : vector<1x8x8xf32> to vector<1x8x8xbf16>
    %677 = vector.extract_strided_slice %637 {offsets = [0, 0, 8], sizes = [1, 8, 8], strides = [1, 1, 1]} : vector<1x8x32xbf16> to vector<1x8x8xbf16>
    "tpu.trace_start"() <{level = 10 : i32, message = "bqk,bkd->bqd"}> : () -> ()
    %cst_244 = arith.constant dense<0.000000e+00> : vector<1x8x8xf32>
    %678 = tpu.matmul %676, %677, %cst_244 {dimension_numbers = #tpu.dot_dimension_numbers<[2], [1], [1], [2], [0, 0, 0, 1, 1, 2], [0], [0]>} : vector<1x8x8xbf16>, vector<1x8x8xbf16>, vector<1x8x8xf32> -> vector<1x8x8xf32>
    "tpu.trace_stop"() : () -> ()
    %679 = arith.truncf %678 : vector<1x8x8xf32> to vector<1x8x8xbf16>
    %680 = vector.shape_cast %679 : vector<1x8x8xbf16> to vector<8x8xbf16>
    %681 = vector.extract_strided_slice %620 {offsets = [1, 0, 0], sizes = [1, 8, 32], strides = [1, 1, 1]} : vector<4x8x32xbf16> to vector<1x8x32xbf16>
    %682 = vector.shape_cast %681 : vector<1x8x32xbf16> to vector<8x32xbf16>
    %cst_245 = arith.constant dense<0.000000e+00> : vector<8x32xf32>
    %683 = tpu.matmul %680, %682, %cst_245 {dimension_numbers = #tpu.dot_dimension_numbers<[1], [0], [0], [1], [0, 0, 1, 1], [], []>} : vector<8x8xbf16>, vector<8x32xbf16>, vector<8x32xf32> -> vector<8x32xf32>
    %684 = arith.addf %660, %683 : vector<8x32xf32>
    %685 = vector.extract_strided_slice %629 {offsets = [0, 0, 16], sizes = [1, 8, 8], strides = [1, 1, 1]} : vector<1x8x32xbf16> to vector<1x8x8xbf16>
    %686 = vector.extract_strided_slice %636 {offsets = [0, 0, 16], sizes = [1, 8, 8], strides = [1, 1, 1]} : vector<1x8x32xbf16> to vector<1x8x8xbf16>
    "tpu.trace_start"() <{level = 10 : i32, message = "bqd,bkd->bqk"}> : () -> ()
    %cst_246 = arith.constant dense<0.000000e+00> : vector<1x8x8xf32>
    %687 = tpu.matmul %685, %686, %cst_246 {dimension_numbers = #tpu.dot_dimension_numbers<[2], [2], [1], [1], [0, 0, 0, 1, 1, 1], [0], [0]>} : vector<1x8x8xbf16>, vector<1x8x8xbf16>, vector<1x8x8xf32> -> vector<1x8x8xf32>
    "tpu.trace_stop"() : () -> ()
    %688 = vector.broadcast %13 : vector<1x1x8xf32> to vector<1x8x8xf32>
    %689 = arith.addf %687, %688 : vector<1x8x8xf32>
    %cst_247 = arith.constant dense<0xFF800000> : vector<1x8xf32>
    %690 = vector.multi_reduction <maximumf>, %689, %cst_247 [2] : vector<1x8x8xf32> to vector<1x8xf32>
    %691 = vector.shape_cast %690 : vector<1x8xf32> to vector<1x8x1xf32>
    %692 = vector.broadcast %691 : vector<1x8x1xf32> to vector<1x8x8xf32>
    %693 = arith.subf %689, %692 : vector<1x8x8xf32>
    %694 = math.exp %693 : vector<1x8x8xf32>
    %cst_248 = arith.constant dense<0.000000e+00> : vector<1x8xf32>
    %695 = vector.multi_reduction <add>, %694, %cst_248 [2] : vector<1x8x8xf32> to vector<1x8xf32>
    %696 = vector.shape_cast %695 : vector<1x8xf32> to vector<1x8x1xf32>
    %697 = tpu.reciprocal %696 {approx = true} : vector<1x8x1xf32> -> vector<1x8x1xf32>
    %698 = vector.broadcast %697 : vector<1x8x1xf32> to vector<1x8x8xf32>
    %699 = arith.mulf %694, %698 : vector<1x8x8xf32>
    %700 = arith.truncf %699 : vector<1x8x8xf32> to vector<1x8x8xbf16>
    %701 = vector.extract_strided_slice %637 {offsets = [0, 0, 16], sizes = [1, 8, 8], strides = [1, 1, 1]} : vector<1x8x32xbf16> to vector<1x8x8xbf16>
    "tpu.trace_start"() <{level = 10 : i32, message = "bqk,bkd->bqd"}> : () -> ()
    %cst_249 = arith.constant dense<0.000000e+00> : vector<1x8x8xf32>
    %702 = tpu.matmul %700, %701, %cst_249 {dimension_numbers = #tpu.dot_dimension_numbers<[2], [1], [1], [2], [0, 0, 0, 1, 1, 2], [0], [0]>} : vector<1x8x8xbf16>, vector<1x8x8xbf16>, vector<1x8x8xf32> -> vector<1x8x8xf32>
    "tpu.trace_stop"() : () -> ()
    %703 = arith.truncf %702 : vector<1x8x8xf32> to vector<1x8x8xbf16>
    %704 = vector.shape_cast %703 : vector<1x8x8xbf16> to vector<8x8xbf16>
    %705 = vector.extract_strided_slice %620 {offsets = [2, 0, 0], sizes = [1, 8, 32], strides = [1, 1, 1]} : vector<4x8x32xbf16> to vector<1x8x32xbf16>
    %706 = vector.shape_cast %705 : vector<1x8x32xbf16> to vector<8x32xbf16>
    %cst_250 = arith.constant dense<0.000000e+00> : vector<8x32xf32>
    %707 = tpu.matmul %704, %706, %cst_250 {dimension_numbers = #tpu.dot_dimension_numbers<[1], [0], [0], [1], [0, 0, 1, 1], [], []>} : vector<8x8xbf16>, vector<8x32xbf16>, vector<8x32xf32> -> vector<8x32xf32>
    %708 = arith.addf %684, %707 : vector<8x32xf32>
    %709 = vector.extract_strided_slice %629 {offsets = [0, 0, 24], sizes = [1, 8, 8], strides = [1, 1, 1]} : vector<1x8x32xbf16> to vector<1x8x8xbf16>
    %710 = vector.extract_strided_slice %636 {offsets = [0, 0, 24], sizes = [1, 8, 8], strides = [1, 1, 1]} : vector<1x8x32xbf16> to vector<1x8x8xbf16>
    "tpu.trace_start"() <{level = 10 : i32, message = "bqd,bkd->bqk"}> : () -> ()
    %cst_251 = arith.constant dense<0.000000e+00> : vector<1x8x8xf32>
    %711 = tpu.matmul %709, %710, %cst_251 {dimension_numbers = #tpu.dot_dimension_numbers<[2], [2], [1], [1], [0, 0, 0, 1, 1, 1], [0], [0]>} : vector<1x8x8xbf16>, vector<1x8x8xbf16>, vector<1x8x8xf32> -> vector<1x8x8xf32>
    "tpu.trace_stop"() : () -> ()
    %712 = vector.broadcast %13 : vector<1x1x8xf32> to vector<1x8x8xf32>
    %713 = arith.addf %711, %712 : vector<1x8x8xf32>
    %cst_252 = arith.constant dense<0xFF800000> : vector<1x8xf32>
    %714 = vector.multi_reduction <maximumf>, %713, %cst_252 [2] : vector<1x8x8xf32> to vector<1x8xf32>
    %715 = vector.shape_cast %714 : vector<1x8xf32> to vector<1x8x1xf32>
    %716 = vector.broadcast %715 : vector<1x8x1xf32> to vector<1x8x8xf32>
    %717 = arith.subf %713, %716 : vector<1x8x8xf32>
    %718 = math.exp %717 : vector<1x8x8xf32>
    %cst_253 = arith.constant dense<0.000000e+00> : vector<1x8xf32>
    %719 = vector.multi_reduction <add>, %718, %cst_253 [2] : vector<1x8x8xf32> to vector<1x8xf32>
    %720 = vector.shape_cast %719 : vector<1x8xf32> to vector<1x8x1xf32>
    %721 = tpu.reciprocal %720 {approx = true} : vector<1x8x1xf32> -> vector<1x8x1xf32>
    %722 = vector.broadcast %721 : vector<1x8x1xf32> to vector<1x8x8xf32>
    %723 = arith.mulf %718, %722 : vector<1x8x8xf32>
    %724 = arith.truncf %723 : vector<1x8x8xf32> to vector<1x8x8xbf16>
    %725 = vector.extract_strided_slice %637 {offsets = [0, 0, 24], sizes = [1, 8, 8], strides = [1, 1, 1]} : vector<1x8x32xbf16> to vector<1x8x8xbf16>
    "tpu.trace_start"() <{level = 10 : i32, message = "bqk,bkd->bqd"}> : () -> ()
    %cst_254 = arith.constant dense<0.000000e+00> : vector<1x8x8xf32>
    %726 = tpu.matmul %724, %725, %cst_254 {dimension_numbers = #tpu.dot_dimension_numbers<[2], [1], [1], [2], [0, 0, 0, 1, 1, 2], [0], [0]>} : vector<1x8x8xbf16>, vector<1x8x8xbf16>, vector<1x8x8xf32> -> vector<1x8x8xf32>
    "tpu.trace_stop"() : () -> ()
    %727 = arith.truncf %726 : vector<1x8x8xf32> to vector<1x8x8xbf16>
    %728 = vector.shape_cast %727 : vector<1x8x8xbf16> to vector<8x8xbf16>
    %729 = vector.extract_strided_slice %620 {offsets = [3, 0, 0], sizes = [1, 8, 32], strides = [1, 1, 1]} : vector<4x8x32xbf16> to vector<1x8x32xbf16>
    %730 = vector.shape_cast %729 : vector<1x8x32xbf16> to vector<8x32xbf16>
    %cst_255 = arith.constant dense<0.000000e+00> : vector<8x32xf32>
    %731 = tpu.matmul %728, %730, %cst_255 {dimension_numbers = #tpu.dot_dimension_numbers<[1], [0], [0], [1], [0, 0, 1, 1], [], []>} : vector<8x8xbf16>, vector<8x32xbf16>, vector<8x32xf32> -> vector<8x32xf32>
    %732 = arith.addf %708, %731 : vector<8x32xf32>
    %733 = vector.shape_cast %732 : vector<8x32xf32> to vector<1x8x32xf32>
    %734 = vector.shape_cast %622 : vector<1x32xf32> to vector<1x1x32xf32>
    %735 = vector.broadcast %734 : vector<1x1x32xf32> to vector<1x8x32xf32>
    %736 = arith.addf %733, %735 : vector<1x8x32xf32>
    %737 = arith.addf %582, %736 : vector<1x8x32xf32>
    %c0_256 = arith.constant 0 : index
    %c0_257 = arith.constant 0 : index
    %c0_258 = arith.constant 0 : index
    %738 = vector.load %arg30[%c0_256, %c0_257, %c0_258] : memref<2x1x32xf32, #tpu.memory_space<vmem>>, vector<1x1x32xf32>
    %739 = vector.shape_cast %738 : vector<1x1x32xf32> to vector<1x32xf32>
    %c0_259 = arith.constant 0 : index
    %c0_260 = arith.constant 0 : index
    %c0_261 = arith.constant 0 : index
    %740 = vector.load %arg31[%c0_259, %c0_260, %c0_261] : memref<2x1x32xf32, #tpu.memory_space<vmem>>, vector<1x1x32xf32>
    %741 = vector.shape_cast %740 : vector<1x1x32xf32> to vector<1x32xf32>
    %cst_262 = arith.constant dense<0.000000e+00> : vector<1x8xf32>
    %742 = vector.multi_reduction <add>, %737, %cst_262 [2] : vector<1x8x32xf32> to vector<1x8xf32>
    %743 = vector.shape_cast %742 : vector<1x8xf32> to vector<1x8x1xf32>
    %cst_263 = arith.constant 3.200000e+01 : f32
    %744 = vector.broadcast %cst_263 : f32 to vector<1x8x1xf32>
    %745 = arith.divf %743, %744 : vector<1x8x1xf32>
    %746 = vector.broadcast %745 : vector<1x8x1xf32> to vector<1x8x32xf32>
    %747 = arith.subf %737, %746 : vector<1x8x32xf32>
    %748 = arith.mulf %747, %747 : vector<1x8x32xf32>
    %cst_264 = arith.constant dense<0.000000e+00> : vector<1x8xf32>
    %749 = vector.multi_reduction <add>, %748, %cst_264 [2] : vector<1x8x32xf32> to vector<1x8xf32>
    %750 = vector.shape_cast %749 : vector<1x8xf32> to vector<1x8x1xf32>
    %cst_265 = arith.constant 3.200000e+01 : f32
    %751 = vector.broadcast %cst_265 : f32 to vector<1x8x1xf32>
    %752 = arith.divf %750, %751 : vector<1x8x1xf32>
    %753 = vector.broadcast %745 : vector<1x8x1xf32> to vector<1x8x32xf32>
    %754 = arith.subf %737, %753 : vector<1x8x32xf32>
    %cst_266 = arith.constant 9.99999974E-6 : f32
    %755 = vector.broadcast %cst_266 : f32 to vector<1x8x1xf32>
    %756 = arith.addf %752, %755 : vector<1x8x1xf32>
    %757 = math.rsqrt %756 : vector<1x8x1xf32>
    %758 = vector.broadcast %757 : vector<1x8x1xf32> to vector<1x8x32xf32>
    %759 = arith.mulf %754, %758 : vector<1x8x32xf32>
    %760 = vector.shape_cast %739 : vector<1x32xf32> to vector<1x1x32xf32>
    %761 = vector.broadcast %760 : vector<1x1x32xf32> to vector<1x8x32xf32>
    %762 = arith.mulf %759, %761 : vector<1x8x32xf32>
    %763 = vector.shape_cast %741 : vector<1x32xf32> to vector<1x1x32xf32>
    %764 = vector.broadcast %763 : vector<1x1x32xf32> to vector<1x8x32xf32>
    %765 = arith.addf %762, %764 : vector<1x8x32xf32>
    %c0_267 = arith.constant 0 : index
    %c0_268 = arith.constant 0 : index
    %c0_269 = arith.constant 0 : index
    %766 = vector.load %arg32[%c0_267, %c0_268, %c0_269] : memref<2x32x128xbf16, #tpu.memory_space<vmem>>, vector<1x32x128xbf16>
    %767 = vector.shape_cast %766 : vector<1x32x128xbf16> to vector<32x128xbf16>
    %c0_270 = arith.constant 0 : index
    %c0_271 = arith.constant 0 : index
    %c0_272 = arith.constant 0 : index
    %768 = vector.load %arg33[%c0_270, %c0_271, %c0_272] : memref<2x1x128xf32, #tpu.memory_space<vmem>>, vector<1x1x128xf32>
    %769 = vector.shape_cast %768 : vector<1x1x128xf32> to vector<1x128xf32>
    %c0_273 = arith.constant 0 : index
    %c0_274 = arith.constant 0 : index
    %c0_275 = arith.constant 0 : index
    %770 = vector.load %arg34[%c0_273, %c0_274, %c0_275] : memref<2x128x32xbf16, #tpu.memory_space<vmem>>, vector<1x128x32xbf16>
    %771 = vector.shape_cast %770 : vector<1x128x32xbf16> to vector<128x32xbf16>
    %c0_276 = arith.constant 0 : index
    %c0_277 = arith.constant 0 : index
    %c0_278 = arith.constant 0 : index
    %772 = vector.load %arg35[%c0_276, %c0_277, %c0_278] : memref<2x1x32xf32, #tpu.memory_space<vmem>>, vector<1x1x32xf32>
    %773 = vector.shape_cast %772 : vector<1x1x32xf32> to vector<1x32xf32>
    %774 = vector.shape_cast %765 : vector<1x8x32xf32> to vector<8x32xf32>
    %775 = arith.truncf %774 : vector<8x32xf32> to vector<8x32xbf16>
    %cst_279 = arith.constant dense<0.000000e+00> : vector<8x128xf32>
    %776 = tpu.matmul %775, %767, %cst_279 {dimension_numbers = #tpu.dot_dimension_numbers<[1], [0], [0], [1], [0, 0, 1, 1], [], []>} : vector<8x32xbf16>, vector<32x128xbf16>, vector<8x128xf32> -> vector<8x128xf32>
    %777 = vector.broadcast %769 : vector<1x128xf32> to vector<8x128xf32>
    %778 = arith.addf %776, %777 : vector<8x128xf32>
    %cst_280 = arith.constant 0.000000e+00 : f32
    %779 = vector.broadcast %cst_280 : f32 to vector<8x128xf32>
    %780 = arith.maximumf %778, %779 : vector<8x128xf32>
    %781 = arith.truncf %780 : vector<8x128xf32> to vector<8x128xbf16>
    %cst_281 = arith.constant dense<0.000000e+00> : vector<8x32xf32>
    %782 = tpu.matmul %781, %771, %cst_281 {dimension_numbers = #tpu.dot_dimension_numbers<[1], [0], [0], [1], [0, 0, 1, 1], [], []>} : vector<8x128xbf16>, vector<128x32xbf16>, vector<8x32xf32> -> vector<8x32xf32>
    %783 = vector.broadcast %773 : vector<1x32xf32> to vector<8x32xf32>
    %784 = arith.addf %782, %783 : vector<8x32xf32>
    %785 = vector.shape_cast %784 : vector<8x32xf32> to vector<1x8x32xf32>
    %786 = arith.addf %737, %785 : vector<1x8x32xf32>
    %c1_282 = arith.constant 1 : index
    %c0_283 = arith.constant 0 : index
    %c0_284 = arith.constant 0 : index
    %787 = vector.load %arg16[%c1_282, %c0_283, %c0_284] : memref<2x1x32xf32, #tpu.memory_space<vmem>>, vector<1x1x32xf32>
    %788 = vector.shape_cast %787 : vector<1x1x32xf32> to vector<1x32xf32>
    %c1_285 = arith.constant 1 : index
    %c0_286 = arith.constant 0 : index
    %c0_287 = arith.constant 0 : index
    %789 = vector.load %arg17[%c1_285, %c0_286, %c0_287] : memref<2x1x32xf32, #tpu.memory_space<vmem>>, vector<1x1x32xf32>
    %790 = vector.shape_cast %789 : vector<1x1x32xf32> to vector<1x32xf32>
    %cst_288 = arith.constant dense<0.000000e+00> : vector<1x8xf32>
    %791 = vector.multi_reduction <add>, %786, %cst_288 [2] : vector<1x8x32xf32> to vector<1x8xf32>
    %792 = vector.shape_cast %791 : vector<1x8xf32> to vector<1x8x1xf32>
    %cst_289 = arith.constant 3.200000e+01 : f32
    %793 = vector.broadcast %cst_289 : f32 to vector<1x8x1xf32>
    %794 = arith.divf %792, %793 : vector<1x8x1xf32>
    %795 = vector.broadcast %794 : vector<1x8x1xf32> to vector<1x8x32xf32>
    %796 = arith.subf %786, %795 : vector<1x8x32xf32>
    %797 = arith.mulf %796, %796 : vector<1x8x32xf32>
    %cst_290 = arith.constant dense<0.000000e+00> : vector<1x8xf32>
    %798 = vector.multi_reduction <add>, %797, %cst_290 [2] : vector<1x8x32xf32> to vector<1x8xf32>
    %799 = vector.shape_cast %798 : vector<1x8xf32> to vector<1x8x1xf32>
    %cst_291 = arith.constant 3.200000e+01 : f32
    %800 = vector.broadcast %cst_291 : f32 to vector<1x8x1xf32>
    %801 = arith.divf %799, %800 : vector<1x8x1xf32>
    %802 = vector.broadcast %794 : vector<1x8x1xf32> to vector<1x8x32xf32>
    %803 = arith.subf %786, %802 : vector<1x8x32xf32>
    %cst_292 = arith.constant 9.99999974E-6 : f32
    %804 = vector.broadcast %cst_292 : f32 to vector<1x8x1xf32>
    %805 = arith.addf %801, %804 : vector<1x8x1xf32>
    %806 = math.rsqrt %805 : vector<1x8x1xf32>
    %807 = vector.broadcast %806 : vector<1x8x1xf32> to vector<1x8x32xf32>
    %808 = arith.mulf %803, %807 : vector<1x8x32xf32>
    %809 = vector.shape_cast %788 : vector<1x32xf32> to vector<1x1x32xf32>
    %810 = vector.broadcast %809 : vector<1x1x32xf32> to vector<1x8x32xf32>
    %811 = arith.mulf %808, %810 : vector<1x8x32xf32>
    %812 = vector.shape_cast %790 : vector<1x32xf32> to vector<1x1x32xf32>
    %813 = vector.broadcast %812 : vector<1x1x32xf32> to vector<1x8x32xf32>
    %814 = arith.addf %811, %813 : vector<1x8x32xf32>
    %c1_293 = arith.constant 1 : index
    %c0_294 = arith.constant 0 : index
    %c0_295 = arith.constant 0 : index
    %815 = vector.load %arg18[%c1_293, %c0_294, %c0_295] : memref<2x32x96xbf16, #tpu.memory_space<vmem>>, vector<1x32x96xbf16>
    %816 = vector.shape_cast %815 : vector<1x32x96xbf16> to vector<32x96xbf16>
    %c1_296 = arith.constant 1 : index
    %c0_297 = arith.constant 0 : index
    %c0_298 = arith.constant 0 : index
    %817 = vector.load %arg19[%c1_296, %c0_297, %c0_298] : memref<2x1x96xf32, #tpu.memory_space<vmem>>, vector<1x1x96xf32>
    %818 = vector.shape_cast %817 : vector<1x1x96xf32> to vector<1x96xf32>
    %c1_299 = arith.constant 1 : index
    %c0_300 = arith.constant 0 : index
    %c0_301 = arith.constant 0 : index
    %c0_302 = arith.constant 0 : index
    %819 = vector.load %arg20[%c1_299, %c0_300, %c0_301, %c0_302] : memref<2x4x8x32xbf16, #tpu.memory_space<vmem>>, vector<1x4x8x32xbf16>
    %820 = vector.shape_cast %819 : vector<1x4x8x32xbf16> to vector<4x8x32xbf16>
    %c1_303 = arith.constant 1 : index
    %c0_304 = arith.constant 0 : index
    %c0_305 = arith.constant 0 : index
    %821 = vector.load %arg21[%c1_303, %c0_304, %c0_305] : memref<2x1x32xf32, #tpu.memory_space<vmem>>, vector<1x1x32xf32>
    %822 = vector.shape_cast %821 : vector<1x1x32xf32> to vector<1x32xf32>
    %823 = vector.shape_cast %814 : vector<1x8x32xf32> to vector<8x32xf32>
    %824 = arith.truncf %823 : vector<8x32xf32> to vector<8x32xbf16>
    %cst_306 = arith.constant dense<0.000000e+00> : vector<8x96xf32>
    %825 = tpu.matmul %824, %816, %cst_306 {dimension_numbers = #tpu.dot_dimension_numbers<[1], [0], [0], [1], [0, 0, 1, 1], [], []>} : vector<8x32xbf16>, vector<32x96xbf16>, vector<8x96xf32> -> vector<8x96xf32>
    %826 = vector.broadcast %818 : vector<1x96xf32> to vector<8x96xf32>
    %827 = arith.addf %825, %826 : vector<8x96xf32>
    %828 = arith.truncf %827 : vector<8x96xf32> to vector<8x96xbf16>
    %829 = vector.shape_cast %828 : vector<8x96xbf16> to vector<1x8x96xbf16>
    %830 = vector.extract_strided_slice %829 {offsets = [0, 0, 0], sizes = [1, 8, 32], strides = [1, 1, 1]} : vector<1x8x96xbf16> to vector<1x8x32xbf16>
    %831 = vector.extract_strided_slice %829 {offsets = [0, 0, 32], sizes = [1, 8, 32], strides = [1, 1, 1]} : vector<1x8x96xbf16> to vector<1x8x32xbf16>
    %832 = vector.extract_strided_slice %829 {offsets = [0, 0, 64], sizes = [1, 8, 32], strides = [1, 1, 1]} : vector<1x8x96xbf16> to vector<1x8x32xbf16>
    %833 = vector.extract_strided_slice %830 {offsets = [0, 0, 0], sizes = [1, 8, 8], strides = [1, 1, 1]} : vector<1x8x32xbf16> to vector<1x8x8xbf16>
    %834 = vector.extract_strided_slice %831 {offsets = [0, 0, 0], sizes = [1, 8, 8], strides = [1, 1, 1]} : vector<1x8x32xbf16> to vector<1x8x8xbf16>
    "tpu.trace_start"() <{level = 10 : i32, message = "bqd,bkd->bqk"}> : () -> ()
    %cst_307 = arith.constant dense<0.000000e+00> : vector<1x8x8xf32>
    %835 = tpu.matmul %833, %834, %cst_307 {dimension_numbers = #tpu.dot_dimension_numbers<[2], [2], [1], [1], [0, 0, 0, 1, 1, 1], [0], [0]>} : vector<1x8x8xbf16>, vector<1x8x8xbf16>, vector<1x8x8xf32> -> vector<1x8x8xf32>
    "tpu.trace_stop"() : () -> ()
    %836 = vector.shape_cast %19 : vector<8x8xf32> to vector<1x8x8xf32>
    %837 = arith.addf %835, %836 : vector<1x8x8xf32>
    %cst_308 = arith.constant dense<0xFF800000> : vector<1x8xf32>
    %838 = vector.multi_reduction <maximumf>, %837, %cst_308 [2] : vector<1x8x8xf32> to vector<1x8xf32>
    %839 = vector.shape_cast %838 : vector<1x8xf32> to vector<1x8x1xf32>
    %840 = vector.broadcast %839 : vector<1x8x1xf32> to vector<1x8x8xf32>
    %841 = arith.subf %837, %840 : vector<1x8x8xf32>
    %842 = math.exp %841 : vector<1x8x8xf32>
    %cst_309 = arith.constant dense<0.000000e+00> : vector<1x8xf32>
    %843 = vector.multi_reduction <add>, %842, %cst_309 [2] : vector<1x8x8xf32> to vector<1x8xf32>
    %844 = vector.shape_cast %843 : vector<1x8xf32> to vector<1x8x1xf32>
    %845 = tpu.reciprocal %844 {approx = true} : vector<1x8x1xf32> -> vector<1x8x1xf32>
    %846 = vector.broadcast %845 : vector<1x8x1xf32> to vector<1x8x8xf32>
    %847 = arith.mulf %842, %846 : vector<1x8x8xf32>
    %848 = arith.truncf %847 : vector<1x8x8xf32> to vector<1x8x8xbf16>
    %849 = vector.extract_strided_slice %832 {offsets = [0, 0, 0], sizes = [1, 8, 8], strides = [1, 1, 1]} : vector<1x8x32xbf16> to vector<1x8x8xbf16>
    "tpu.trace_start"() <{level = 10 : i32, message = "bqk,bkd->bqd"}> : () -> ()
    %cst_310 = arith.constant dense<0.000000e+00> : vector<1x8x8xf32>
    %850 = tpu.matmul %848, %849, %cst_310 {dimension_numbers = #tpu.dot_dimension_numbers<[2], [1], [1], [2], [0, 0, 0, 1, 1, 2], [0], [0]>} : vector<1x8x8xbf16>, vector<1x8x8xbf16>, vector<1x8x8xf32> -> vector<1x8x8xf32>
    "tpu.trace_stop"() : () -> ()
    %851 = arith.truncf %850 : vector<1x8x8xf32> to vector<1x8x8xbf16>
    %852 = vector.shape_cast %851 : vector<1x8x8xbf16> to vector<8x8xbf16>
    %853 = vector.extract_strided_slice %820 {offsets = [0, 0, 0], sizes = [1, 8, 32], strides = [1, 1, 1]} : vector<4x8x32xbf16> to vector<1x8x32xbf16>
    %854 = vector.shape_cast %853 : vector<1x8x32xbf16> to vector<8x32xbf16>
    %cst_311 = arith.constant dense<0.000000e+00> : vector<8x32xf32>
    %855 = tpu.matmul %852, %854, %cst_311 {dimension_numbers = #tpu.dot_dimension_numbers<[1], [0], [0], [1], [0, 0, 1, 1], [], []>} : vector<8x8xbf16>, vector<8x32xbf16>, vector<8x32xf32> -> vector<8x32xf32>
    %856 = vector.extract_strided_slice %830 {offsets = [0, 0, 8], sizes = [1, 8, 8], strides = [1, 1, 1]} : vector<1x8x32xbf16> to vector<1x8x8xbf16>
    %857 = vector.extract_strided_slice %831 {offsets = [0, 0, 8], sizes = [1, 8, 8], strides = [1, 1, 1]} : vector<1x8x32xbf16> to vector<1x8x8xbf16>
    "tpu.trace_start"() <{level = 10 : i32, message = "bqd,bkd->bqk"}> : () -> ()
    %cst_312 = arith.constant dense<0.000000e+00> : vector<1x8x8xf32>
    %858 = tpu.matmul %856, %857, %cst_312 {dimension_numbers = #tpu.dot_dimension_numbers<[2], [2], [1], [1], [0, 0, 0, 1, 1, 1], [0], [0]>} : vector<1x8x8xbf16>, vector<1x8x8xbf16>, vector<1x8x8xf32> -> vector<1x8x8xf32>
    "tpu.trace_stop"() : () -> ()
    %859 = vector.shape_cast %19 : vector<8x8xf32> to vector<1x8x8xf32>
    %860 = arith.addf %858, %859 : vector<1x8x8xf32>
    %cst_313 = arith.constant dense<0xFF800000> : vector<1x8xf32>
    %861 = vector.multi_reduction <maximumf>, %860, %cst_313 [2] : vector<1x8x8xf32> to vector<1x8xf32>
    %862 = vector.shape_cast %861 : vector<1x8xf32> to vector<1x8x1xf32>
    %863 = vector.broadcast %862 : vector<1x8x1xf32> to vector<1x8x8xf32>
    %864 = arith.subf %860, %863 : vector<1x8x8xf32>
    %865 = math.exp %864 : vector<1x8x8xf32>
    %cst_314 = arith.constant dense<0.000000e+00> : vector<1x8xf32>
    %866 = vector.multi_reduction <add>, %865, %cst_314 [2] : vector<1x8x8xf32> to vector<1x8xf32>
    %867 = vector.shape_cast %866 : vector<1x8xf32> to vector<1x8x1xf32>
    %868 = tpu.reciprocal %867 {approx = true} : vector<1x8x1xf32> -> vector<1x8x1xf32>
    %869 = vector.broadcast %868 : vector<1x8x1xf32> to vector<1x8x8xf32>
    %870 = arith.mulf %865, %869 : vector<1x8x8xf32>
    %871 = arith.truncf %870 : vector<1x8x8xf32> to vector<1x8x8xbf16>
    %872 = vector.extract_strided_slice %832 {offsets = [0, 0, 8], sizes = [1, 8, 8], strides = [1, 1, 1]} : vector<1x8x32xbf16> to vector<1x8x8xbf16>
    "tpu.trace_start"() <{level = 10 : i32, message = "bqk,bkd->bqd"}> : () -> ()
    %cst_315 = arith.constant dense<0.000000e+00> : vector<1x8x8xf32>
    %873 = tpu.matmul %871, %872, %cst_315 {dimension_numbers = #tpu.dot_dimension_numbers<[2], [1], [1], [2], [0, 0, 0, 1, 1, 2], [0], [0]>} : vector<1x8x8xbf16>, vector<1x8x8xbf16>, vector<1x8x8xf32> -> vector<1x8x8xf32>
    "tpu.trace_stop"() : () -> ()
    %874 = arith.truncf %873 : vector<1x8x8xf32> to vector<1x8x8xbf16>
    %875 = vector.shape_cast %874 : vector<1x8x8xbf16> to vector<8x8xbf16>
    %876 = vector.extract_strided_slice %820 {offsets = [1, 0, 0], sizes = [1, 8, 32], strides = [1, 1, 1]} : vector<4x8x32xbf16> to vector<1x8x32xbf16>
    %877 = vector.shape_cast %876 : vector<1x8x32xbf16> to vector<8x32xbf16>
    %cst_316 = arith.constant dense<0.000000e+00> : vector<8x32xf32>
    %878 = tpu.matmul %875, %877, %cst_316 {dimension_numbers = #tpu.dot_dimension_numbers<[1], [0], [0], [1], [0, 0, 1, 1], [], []>} : vector<8x8xbf16>, vector<8x32xbf16>, vector<8x32xf32> -> vector<8x32xf32>
    %879 = arith.addf %855, %878 : vector<8x32xf32>
    %880 = vector.extract_strided_slice %830 {offsets = [0, 0, 16], sizes = [1, 8, 8], strides = [1, 1, 1]} : vector<1x8x32xbf16> to vector<1x8x8xbf16>
    %881 = vector.extract_strided_slice %831 {offsets = [0, 0, 16], sizes = [1, 8, 8], strides = [1, 1, 1]} : vector<1x8x32xbf16> to vector<1x8x8xbf16>
    "tpu.trace_start"() <{level = 10 : i32, message = "bqd,bkd->bqk"}> : () -> ()
    %cst_317 = arith.constant dense<0.000000e+00> : vector<1x8x8xf32>
    %882 = tpu.matmul %880, %881, %cst_317 {dimension_numbers = #tpu.dot_dimension_numbers<[2], [2], [1], [1], [0, 0, 0, 1, 1, 1], [0], [0]>} : vector<1x8x8xbf16>, vector<1x8x8xbf16>, vector<1x8x8xf32> -> vector<1x8x8xf32>
    "tpu.trace_stop"() : () -> ()
    %883 = vector.shape_cast %19 : vector<8x8xf32> to vector<1x8x8xf32>
    %884 = arith.addf %882, %883 : vector<1x8x8xf32>
    %cst_318 = arith.constant dense<0xFF800000> : vector<1x8xf32>
    %885 = vector.multi_reduction <maximumf>, %884, %cst_318 [2] : vector<1x8x8xf32> to vector<1x8xf32>
    %886 = vector.shape_cast %885 : vector<1x8xf32> to vector<1x8x1xf32>
    %887 = vector.broadcast %886 : vector<1x8x1xf32> to vector<1x8x8xf32>
    %888 = arith.subf %884, %887 : vector<1x8x8xf32>
    %889 = math.exp %888 : vector<1x8x8xf32>
    %cst_319 = arith.constant dense<0.000000e+00> : vector<1x8xf32>
    %890 = vector.multi_reduction <add>, %889, %cst_319 [2] : vector<1x8x8xf32> to vector<1x8xf32>
    %891 = vector.shape_cast %890 : vector<1x8xf32> to vector<1x8x1xf32>
    %892 = tpu.reciprocal %891 {approx = true} : vector<1x8x1xf32> -> vector<1x8x1xf32>
    %893 = vector.broadcast %892 : vector<1x8x1xf32> to vector<1x8x8xf32>
    %894 = arith.mulf %889, %893 : vector<1x8x8xf32>
    %895 = arith.truncf %894 : vector<1x8x8xf32> to vector<1x8x8xbf16>
    %896 = vector.extract_strided_slice %832 {offsets = [0, 0, 16], sizes = [1, 8, 8], strides = [1, 1, 1]} : vector<1x8x32xbf16> to vector<1x8x8xbf16>
    "tpu.trace_start"() <{level = 10 : i32, message = "bqk,bkd->bqd"}> : () -> ()
    %cst_320 = arith.constant dense<0.000000e+00> : vector<1x8x8xf32>
    %897 = tpu.matmul %895, %896, %cst_320 {dimension_numbers = #tpu.dot_dimension_numbers<[2], [1], [1], [2], [0, 0, 0, 1, 1, 2], [0], [0]>} : vector<1x8x8xbf16>, vector<1x8x8xbf16>, vector<1x8x8xf32> -> vector<1x8x8xf32>
    "tpu.trace_stop"() : () -> ()
    %898 = arith.truncf %897 : vector<1x8x8xf32> to vector<1x8x8xbf16>
    %899 = vector.shape_cast %898 : vector<1x8x8xbf16> to vector<8x8xbf16>
    %900 = vector.extract_strided_slice %820 {offsets = [2, 0, 0], sizes = [1, 8, 32], strides = [1, 1, 1]} : vector<4x8x32xbf16> to vector<1x8x32xbf16>
    %901 = vector.shape_cast %900 : vector<1x8x32xbf16> to vector<8x32xbf16>
    %cst_321 = arith.constant dense<0.000000e+00> : vector<8x32xf32>
    %902 = tpu.matmul %899, %901, %cst_321 {dimension_numbers = #tpu.dot_dimension_numbers<[1], [0], [0], [1], [0, 0, 1, 1], [], []>} : vector<8x8xbf16>, vector<8x32xbf16>, vector<8x32xf32> -> vector<8x32xf32>
    %903 = arith.addf %879, %902 : vector<8x32xf32>
    %904 = vector.extract_strided_slice %830 {offsets = [0, 0, 24], sizes = [1, 8, 8], strides = [1, 1, 1]} : vector<1x8x32xbf16> to vector<1x8x8xbf16>
    %905 = vector.extract_strided_slice %831 {offsets = [0, 0, 24], sizes = [1, 8, 8], strides = [1, 1, 1]} : vector<1x8x32xbf16> to vector<1x8x8xbf16>
    "tpu.trace_start"() <{level = 10 : i32, message = "bqd,bkd->bqk"}> : () -> ()
    %cst_322 = arith.constant dense<0.000000e+00> : vector<1x8x8xf32>
    %906 = tpu.matmul %904, %905, %cst_322 {dimension_numbers = #tpu.dot_dimension_numbers<[2], [2], [1], [1], [0, 0, 0, 1, 1, 1], [0], [0]>} : vector<1x8x8xbf16>, vector<1x8x8xbf16>, vector<1x8x8xf32> -> vector<1x8x8xf32>
    "tpu.trace_stop"() : () -> ()
    %907 = vector.shape_cast %19 : vector<8x8xf32> to vector<1x8x8xf32>
    %908 = arith.addf %906, %907 : vector<1x8x8xf32>
    %cst_323 = arith.constant dense<0xFF800000> : vector<1x8xf32>
    %909 = vector.multi_reduction <maximumf>, %908, %cst_323 [2] : vector<1x8x8xf32> to vector<1x8xf32>
    %910 = vector.shape_cast %909 : vector<1x8xf32> to vector<1x8x1xf32>
    %911 = vector.broadcast %910 : vector<1x8x1xf32> to vector<1x8x8xf32>
    %912 = arith.subf %908, %911 : vector<1x8x8xf32>
    %913 = math.exp %912 : vector<1x8x8xf32>
    %cst_324 = arith.constant dense<0.000000e+00> : vector<1x8xf32>
    %914 = vector.multi_reduction <add>, %913, %cst_324 [2] : vector<1x8x8xf32> to vector<1x8xf32>
    %915 = vector.shape_cast %914 : vector<1x8xf32> to vector<1x8x1xf32>
    %916 = tpu.reciprocal %915 {approx = true} : vector<1x8x1xf32> -> vector<1x8x1xf32>
    %917 = vector.broadcast %916 : vector<1x8x1xf32> to vector<1x8x8xf32>
    %918 = arith.mulf %913, %917 : vector<1x8x8xf32>
    %919 = arith.truncf %918 : vector<1x8x8xf32> to vector<1x8x8xbf16>
    %920 = vector.extract_strided_slice %832 {offsets = [0, 0, 24], sizes = [1, 8, 8], strides = [1, 1, 1]} : vector<1x8x32xbf16> to vector<1x8x8xbf16>
    "tpu.trace_start"() <{level = 10 : i32, message = "bqk,bkd->bqd"}> : () -> ()
    %cst_325 = arith.constant dense<0.000000e+00> : vector<1x8x8xf32>
    %921 = tpu.matmul %919, %920, %cst_325 {dimension_numbers = #tpu.dot_dimension_numbers<[2], [1], [1], [2], [0, 0, 0, 1, 1, 2], [0], [0]>} : vector<1x8x8xbf16>, vector<1x8x8xbf16>, vector<1x8x8xf32> -> vector<1x8x8xf32>
    "tpu.trace_stop"() : () -> ()
    %922 = arith.truncf %921 : vector<1x8x8xf32> to vector<1x8x8xbf16>
    %923 = vector.shape_cast %922 : vector<1x8x8xbf16> to vector<8x8xbf16>
    %924 = vector.extract_strided_slice %820 {offsets = [3, 0, 0], sizes = [1, 8, 32], strides = [1, 1, 1]} : vector<4x8x32xbf16> to vector<1x8x32xbf16>
    %925 = vector.shape_cast %924 : vector<1x8x32xbf16> to vector<8x32xbf16>
    %cst_326 = arith.constant dense<0.000000e+00> : vector<8x32xf32>
    %926 = tpu.matmul %923, %925, %cst_326 {dimension_numbers = #tpu.dot_dimension_numbers<[1], [0], [0], [1], [0, 0, 1, 1], [], []>} : vector<8x8xbf16>, vector<8x32xbf16>, vector<8x32xf32> -> vector<8x32xf32>
    %927 = arith.addf %903, %926 : vector<8x32xf32>
    %928 = vector.shape_cast %927 : vector<8x32xf32> to vector<1x8x32xf32>
    %929 = vector.shape_cast %822 : vector<1x32xf32> to vector<1x1x32xf32>
    %930 = vector.broadcast %929 : vector<1x1x32xf32> to vector<1x8x32xf32>
    %931 = arith.addf %928, %930 : vector<1x8x32xf32>
    %932 = arith.addf %786, %931 : vector<1x8x32xf32>
    %c1_327 = arith.constant 1 : index
    %c0_328 = arith.constant 0 : index
    %c0_329 = arith.constant 0 : index
    %933 = vector.load %arg22[%c1_327, %c0_328, %c0_329] : memref<2x1x32xf32, #tpu.memory_space<vmem>>, vector<1x1x32xf32>
    %934 = vector.shape_cast %933 : vector<1x1x32xf32> to vector<1x32xf32>
    %c1_330 = arith.constant 1 : index
    %c0_331 = arith.constant 0 : index
    %c0_332 = arith.constant 0 : index
    %935 = vector.load %arg23[%c1_330, %c0_331, %c0_332] : memref<2x1x32xf32, #tpu.memory_space<vmem>>, vector<1x1x32xf32>
    %936 = vector.shape_cast %935 : vector<1x1x32xf32> to vector<1x32xf32>
    %cst_333 = arith.constant dense<0.000000e+00> : vector<1x8xf32>
    %937 = vector.multi_reduction <add>, %932, %cst_333 [2] : vector<1x8x32xf32> to vector<1x8xf32>
    %938 = vector.shape_cast %937 : vector<1x8xf32> to vector<1x8x1xf32>
    %cst_334 = arith.constant 3.200000e+01 : f32
    %939 = vector.broadcast %cst_334 : f32 to vector<1x8x1xf32>
    %940 = arith.divf %938, %939 : vector<1x8x1xf32>
    %941 = vector.broadcast %940 : vector<1x8x1xf32> to vector<1x8x32xf32>
    %942 = arith.subf %932, %941 : vector<1x8x32xf32>
    %943 = arith.mulf %942, %942 : vector<1x8x32xf32>
    %cst_335 = arith.constant dense<0.000000e+00> : vector<1x8xf32>
    %944 = vector.multi_reduction <add>, %943, %cst_335 [2] : vector<1x8x32xf32> to vector<1x8xf32>
    %945 = vector.shape_cast %944 : vector<1x8xf32> to vector<1x8x1xf32>
    %cst_336 = arith.constant 3.200000e+01 : f32
    %946 = vector.broadcast %cst_336 : f32 to vector<1x8x1xf32>
    %947 = arith.divf %945, %946 : vector<1x8x1xf32>
    %948 = vector.broadcast %940 : vector<1x8x1xf32> to vector<1x8x32xf32>
    %949 = arith.subf %932, %948 : vector<1x8x32xf32>
    %cst_337 = arith.constant 9.99999974E-6 : f32
    %950 = vector.broadcast %cst_337 : f32 to vector<1x8x1xf32>
    %951 = arith.addf %947, %950 : vector<1x8x1xf32>
    %952 = math.rsqrt %951 : vector<1x8x1xf32>
    %953 = vector.broadcast %952 : vector<1x8x1xf32> to vector<1x8x32xf32>
    %954 = arith.mulf %949, %953 : vector<1x8x32xf32>
    %955 = vector.shape_cast %934 : vector<1x32xf32> to vector<1x1x32xf32>
    %956 = vector.broadcast %955 : vector<1x1x32xf32> to vector<1x8x32xf32>
    %957 = arith.mulf %954, %956 : vector<1x8x32xf32>
    %958 = vector.shape_cast %936 : vector<1x32xf32> to vector<1x1x32xf32>
    %959 = vector.broadcast %958 : vector<1x1x32xf32> to vector<1x8x32xf32>
    %960 = arith.addf %957, %959 : vector<1x8x32xf32>
    %c1_338 = arith.constant 1 : index
    %c0_339 = arith.constant 0 : index
    %c0_340 = arith.constant 0 : index
    %961 = vector.load %arg24[%c1_338, %c0_339, %c0_340] : memref<2x32x32xbf16, #tpu.memory_space<vmem>>, vector<1x32x32xbf16>
    %962 = vector.shape_cast %961 : vector<1x32x32xbf16> to vector<32x32xbf16>
    %c1_341 = arith.constant 1 : index
    %c0_342 = arith.constant 0 : index
    %c0_343 = arith.constant 0 : index
    %963 = vector.load %arg25[%c1_341, %c0_342, %c0_343] : memref<2x1x32xf32, #tpu.memory_space<vmem>>, vector<1x1x32xf32>
    %964 = vector.shape_cast %963 : vector<1x1x32xf32> to vector<1x32xf32>
    %c1_344 = arith.constant 1 : index
    %c0_345 = arith.constant 0 : index
    %c0_346 = arith.constant 0 : index
    %965 = vector.load %arg26[%c1_344, %c0_345, %c0_346] : memref<2x32x64xbf16, #tpu.memory_space<vmem>>, vector<1x32x64xbf16>
    %966 = vector.shape_cast %965 : vector<1x32x64xbf16> to vector<32x64xbf16>
    %c1_347 = arith.constant 1 : index
    %c0_348 = arith.constant 0 : index
    %c0_349 = arith.constant 0 : index
    %967 = vector.load %arg27[%c1_347, %c0_348, %c0_349] : memref<2x1x64xf32, #tpu.memory_space<vmem>>, vector<1x1x64xf32>
    %968 = vector.shape_cast %967 : vector<1x1x64xf32> to vector<1x64xf32>
    %c1_350 = arith.constant 1 : index
    %c0_351 = arith.constant 0 : index
    %c0_352 = arith.constant 0 : index
    %c0_353 = arith.constant 0 : index
    %969 = vector.load %arg28[%c1_350, %c0_351, %c0_352, %c0_353] : memref<2x4x8x32xbf16, #tpu.memory_space<vmem>>, vector<1x4x8x32xbf16>
    %970 = vector.shape_cast %969 : vector<1x4x8x32xbf16> to vector<4x8x32xbf16>
    %c1_354 = arith.constant 1 : index
    %c0_355 = arith.constant 0 : index
    %c0_356 = arith.constant 0 : index
    %971 = vector.load %arg29[%c1_354, %c0_355, %c0_356] : memref<2x1x32xf32, #tpu.memory_space<vmem>>, vector<1x1x32xf32>
    %972 = vector.shape_cast %971 : vector<1x1x32xf32> to vector<1x32xf32>
    %973 = vector.shape_cast %960 : vector<1x8x32xf32> to vector<8x32xf32>
    %974 = arith.truncf %973 : vector<8x32xf32> to vector<8x32xbf16>
    %cst_357 = arith.constant dense<0.000000e+00> : vector<8x32xf32>
    %975 = tpu.matmul %974, %962, %cst_357 {dimension_numbers = #tpu.dot_dimension_numbers<[1], [0], [0], [1], [0, 0, 1, 1], [], []>} : vector<8x32xbf16>, vector<32x32xbf16>, vector<8x32xf32> -> vector<8x32xf32>
    %976 = vector.broadcast %964 : vector<1x32xf32> to vector<8x32xf32>
    %977 = arith.addf %975, %976 : vector<8x32xf32>
    %978 = arith.truncf %977 : vector<8x32xf32> to vector<8x32xbf16>
    %979 = vector.shape_cast %978 : vector<8x32xbf16> to vector<1x8x32xbf16>
    %980 = vector.shape_cast %436 : vector<1x8x32xbf16> to vector<8x32xbf16>
    %cst_358 = arith.constant dense<0.000000e+00> : vector<8x64xf32>
    %981 = tpu.matmul %980, %966, %cst_358 {dimension_numbers = #tpu.dot_dimension_numbers<[1], [0], [0], [1], [0, 0, 1, 1], [], []>} : vector<8x32xbf16>, vector<32x64xbf16>, vector<8x64xf32> -> vector<8x64xf32>
    %982 = vector.broadcast %968 : vector<1x64xf32> to vector<8x64xf32>
    %983 = arith.addf %981, %982 : vector<8x64xf32>
    %984 = arith.truncf %983 : vector<8x64xf32> to vector<8x64xbf16>
    %985 = vector.shape_cast %984 : vector<8x64xbf16> to vector<1x8x64xbf16>
    %986 = vector.extract_strided_slice %985 {offsets = [0, 0, 0], sizes = [1, 8, 32], strides = [1, 1, 1]} : vector<1x8x64xbf16> to vector<1x8x32xbf16>
    %987 = vector.extract_strided_slice %985 {offsets = [0, 0, 32], sizes = [1, 8, 32], strides = [1, 1, 1]} : vector<1x8x64xbf16> to vector<1x8x32xbf16>
    %988 = vector.extract_strided_slice %979 {offsets = [0, 0, 0], sizes = [1, 8, 8], strides = [1, 1, 1]} : vector<1x8x32xbf16> to vector<1x8x8xbf16>
    %989 = vector.extract_strided_slice %986 {offsets = [0, 0, 0], sizes = [1, 8, 8], strides = [1, 1, 1]} : vector<1x8x32xbf16> to vector<1x8x8xbf16>
    "tpu.trace_start"() <{level = 10 : i32, message = "bqd,bkd->bqk"}> : () -> ()
    %cst_359 = arith.constant dense<0.000000e+00> : vector<1x8x8xf32>
    %990 = tpu.matmul %988, %989, %cst_359 {dimension_numbers = #tpu.dot_dimension_numbers<[2], [2], [1], [1], [0, 0, 0, 1, 1, 1], [0], [0]>} : vector<1x8x8xbf16>, vector<1x8x8xbf16>, vector<1x8x8xf32> -> vector<1x8x8xf32>
    "tpu.trace_stop"() : () -> ()
    %991 = vector.broadcast %13 : vector<1x1x8xf32> to vector<1x8x8xf32>
    %992 = arith.addf %990, %991 : vector<1x8x8xf32>
    %cst_360 = arith.constant dense<0xFF800000> : vector<1x8xf32>
    %993 = vector.multi_reduction <maximumf>, %992, %cst_360 [2] : vector<1x8x8xf32> to vector<1x8xf32>
    %994 = vector.shape_cast %993 : vector<1x8xf32> to vector<1x8x1xf32>
    %995 = vector.broadcast %994 : vector<1x8x1xf32> to vector<1x8x8xf32>
    %996 = arith.subf %992, %995 : vector<1x8x8xf32>
    %997 = math.exp %996 : vector<1x8x8xf32>
    %cst_361 = arith.constant dense<0.000000e+00> : vector<1x8xf32>
    %998 = vector.multi_reduction <add>, %997, %cst_361 [2] : vector<1x8x8xf32> to vector<1x8xf32>
    %999 = vector.shape_cast %998 : vector<1x8xf32> to vector<1x8x1xf32>
    %1000 = tpu.reciprocal %999 {approx = true} : vector<1x8x1xf32> -> vector<1x8x1xf32>
    %1001 = vector.broadcast %1000 : vector<1x8x1xf32> to vector<1x8x8xf32>
    %1002 = arith.mulf %997, %1001 : vector<1x8x8xf32>
    %1003 = arith.truncf %1002 : vector<1x8x8xf32> to vector<1x8x8xbf16>
    %1004 = vector.extract_strided_slice %987 {offsets = [0, 0, 0], sizes = [1, 8, 8], strides = [1, 1, 1]} : vector<1x8x32xbf16> to vector<1x8x8xbf16>
    "tpu.trace_start"() <{level = 10 : i32, message = "bqk,bkd->bqd"}> : () -> ()
    %cst_362 = arith.constant dense<0.000000e+00> : vector<1x8x8xf32>
    %1005 = tpu.matmul %1003, %1004, %cst_362 {dimension_numbers = #tpu.dot_dimension_numbers<[2], [1], [1], [2], [0, 0, 0, 1, 1, 2], [0], [0]>} : vector<1x8x8xbf16>, vector<1x8x8xbf16>, vector<1x8x8xf32> -> vector<1x8x8xf32>
    "tpu.trace_stop"() : () -> ()
    %1006 = arith.truncf %1005 : vector<1x8x8xf32> to vector<1x8x8xbf16>
    %1007 = vector.shape_cast %1006 : vector<1x8x8xbf16> to vector<8x8xbf16>
    %1008 = vector.extract_strided_slice %970 {offsets = [0, 0, 0], sizes = [1, 8, 32], strides = [1, 1, 1]} : vector<4x8x32xbf16> to vector<1x8x32xbf16>
    %1009 = vector.shape_cast %1008 : vector<1x8x32xbf16> to vector<8x32xbf16>
    %cst_363 = arith.constant dense<0.000000e+00> : vector<8x32xf32>
    %1010 = tpu.matmul %1007, %1009, %cst_363 {dimension_numbers = #tpu.dot_dimension_numbers<[1], [0], [0], [1], [0, 0, 1, 1], [], []>} : vector<8x8xbf16>, vector<8x32xbf16>, vector<8x32xf32> -> vector<8x32xf32>
    %1011 = vector.extract_strided_slice %979 {offsets = [0, 0, 8], sizes = [1, 8, 8], strides = [1, 1, 1]} : vector<1x8x32xbf16> to vector<1x8x8xbf16>
    %1012 = vector.extract_strided_slice %986 {offsets = [0, 0, 8], sizes = [1, 8, 8], strides = [1, 1, 1]} : vector<1x8x32xbf16> to vector<1x8x8xbf16>
    "tpu.trace_start"() <{level = 10 : i32, message = "bqd,bkd->bqk"}> : () -> ()
    %cst_364 = arith.constant dense<0.000000e+00> : vector<1x8x8xf32>
    %1013 = tpu.matmul %1011, %1012, %cst_364 {dimension_numbers = #tpu.dot_dimension_numbers<[2], [2], [1], [1], [0, 0, 0, 1, 1, 1], [0], [0]>} : vector<1x8x8xbf16>, vector<1x8x8xbf16>, vector<1x8x8xf32> -> vector<1x8x8xf32>
    "tpu.trace_stop"() : () -> ()
    %1014 = vector.broadcast %13 : vector<1x1x8xf32> to vector<1x8x8xf32>
    %1015 = arith.addf %1013, %1014 : vector<1x8x8xf32>
    %cst_365 = arith.constant dense<0xFF800000> : vector<1x8xf32>
    %1016 = vector.multi_reduction <maximumf>, %1015, %cst_365 [2] : vector<1x8x8xf32> to vector<1x8xf32>
    %1017 = vector.shape_cast %1016 : vector<1x8xf32> to vector<1x8x1xf32>
    %1018 = vector.broadcast %1017 : vector<1x8x1xf32> to vector<1x8x8xf32>
    %1019 = arith.subf %1015, %1018 : vector<1x8x8xf32>
    %1020 = math.exp %1019 : vector<1x8x8xf32>
    %cst_366 = arith.constant dense<0.000000e+00> : vector<1x8xf32>
    %1021 = vector.multi_reduction <add>, %1020, %cst_366 [2] : vector<1x8x8xf32> to vector<1x8xf32>
    %1022 = vector.shape_cast %1021 : vector<1x8xf32> to vector<1x8x1xf32>
    %1023 = tpu.reciprocal %1022 {approx = true} : vector<1x8x1xf32> -> vector<1x8x1xf32>
    %1024 = vector.broadcast %1023 : vector<1x8x1xf32> to vector<1x8x8xf32>
    %1025 = arith.mulf %1020, %1024 : vector<1x8x8xf32>
    %1026 = arith.truncf %1025 : vector<1x8x8xf32> to vector<1x8x8xbf16>
    %1027 = vector.extract_strided_slice %987 {offsets = [0, 0, 8], sizes = [1, 8, 8], strides = [1, 1, 1]} : vector<1x8x32xbf16> to vector<1x8x8xbf16>
    "tpu.trace_start"() <{level = 10 : i32, message = "bqk,bkd->bqd"}> : () -> ()
    %cst_367 = arith.constant dense<0.000000e+00> : vector<1x8x8xf32>
    %1028 = tpu.matmul %1026, %1027, %cst_367 {dimension_numbers = #tpu.dot_dimension_numbers<[2], [1], [1], [2], [0, 0, 0, 1, 1, 2], [0], [0]>} : vector<1x8x8xbf16>, vector<1x8x8xbf16>, vector<1x8x8xf32> -> vector<1x8x8xf32>
    "tpu.trace_stop"() : () -> ()
    %1029 = arith.truncf %1028 : vector<1x8x8xf32> to vector<1x8x8xbf16>
    %1030 = vector.shape_cast %1029 : vector<1x8x8xbf16> to vector<8x8xbf16>
    %1031 = vector.extract_strided_slice %970 {offsets = [1, 0, 0], sizes = [1, 8, 32], strides = [1, 1, 1]} : vector<4x8x32xbf16> to vector<1x8x32xbf16>
    %1032 = vector.shape_cast %1031 : vector<1x8x32xbf16> to vector<8x32xbf16>
    %cst_368 = arith.constant dense<0.000000e+00> : vector<8x32xf32>
    %1033 = tpu.matmul %1030, %1032, %cst_368 {dimension_numbers = #tpu.dot_dimension_numbers<[1], [0], [0], [1], [0, 0, 1, 1], [], []>} : vector<8x8xbf16>, vector<8x32xbf16>, vector<8x32xf32> -> vector<8x32xf32>
    %1034 = arith.addf %1010, %1033 : vector<8x32xf32>
    %1035 = vector.extract_strided_slice %979 {offsets = [0, 0, 16], sizes = [1, 8, 8], strides = [1, 1, 1]} : vector<1x8x32xbf16> to vector<1x8x8xbf16>
    %1036 = vector.extract_strided_slice %986 {offsets = [0, 0, 16], sizes = [1, 8, 8], strides = [1, 1, 1]} : vector<1x8x32xbf16> to vector<1x8x8xbf16>
    "tpu.trace_start"() <{level = 10 : i32, message = "bqd,bkd->bqk"}> : () -> ()
    %cst_369 = arith.constant dense<0.000000e+00> : vector<1x8x8xf32>
    %1037 = tpu.matmul %1035, %1036, %cst_369 {dimension_numbers = #tpu.dot_dimension_numbers<[2], [2], [1], [1], [0, 0, 0, 1, 1, 1], [0], [0]>} : vector<1x8x8xbf16>, vector<1x8x8xbf16>, vector<1x8x8xf32> -> vector<1x8x8xf32>
    "tpu.trace_stop"() : () -> ()
    %1038 = vector.broadcast %13 : vector<1x1x8xf32> to vector<1x8x8xf32>
    %1039 = arith.addf %1037, %1038 : vector<1x8x8xf32>
    %cst_370 = arith.constant dense<0xFF800000> : vector<1x8xf32>
    %1040 = vector.multi_reduction <maximumf>, %1039, %cst_370 [2] : vector<1x8x8xf32> to vector<1x8xf32>
    %1041 = vector.shape_cast %1040 : vector<1x8xf32> to vector<1x8x1xf32>
    %1042 = vector.broadcast %1041 : vector<1x8x1xf32> to vector<1x8x8xf32>
    %1043 = arith.subf %1039, %1042 : vector<1x8x8xf32>
    %1044 = math.exp %1043 : vector<1x8x8xf32>
    %cst_371 = arith.constant dense<0.000000e+00> : vector<1x8xf32>
    %1045 = vector.multi_reduction <add>, %1044, %cst_371 [2] : vector<1x8x8xf32> to vector<1x8xf32>
    %1046 = vector.shape_cast %1045 : vector<1x8xf32> to vector<1x8x1xf32>
    %1047 = tpu.reciprocal %1046 {approx = true} : vector<1x8x1xf32> -> vector<1x8x1xf32>
    %1048 = vector.broadcast %1047 : vector<1x8x1xf32> to vector<1x8x8xf32>
    %1049 = arith.mulf %1044, %1048 : vector<1x8x8xf32>
    %1050 = arith.truncf %1049 : vector<1x8x8xf32> to vector<1x8x8xbf16>
    %1051 = vector.extract_strided_slice %987 {offsets = [0, 0, 16], sizes = [1, 8, 8], strides = [1, 1, 1]} : vector<1x8x32xbf16> to vector<1x8x8xbf16>
    "tpu.trace_start"() <{level = 10 : i32, message = "bqk,bkd->bqd"}> : () -> ()
    %cst_372 = arith.constant dense<0.000000e+00> : vector<1x8x8xf32>
    %1052 = tpu.matmul %1050, %1051, %cst_372 {dimension_numbers = #tpu.dot_dimension_numbers<[2], [1], [1], [2], [0, 0, 0, 1, 1, 2], [0], [0]>} : vector<1x8x8xbf16>, vector<1x8x8xbf16>, vector<1x8x8xf32> -> vector<1x8x8xf32>
    "tpu.trace_stop"() : () -> ()
    %1053 = arith.truncf %1052 : vector<1x8x8xf32> to vector<1x8x8xbf16>
    %1054 = vector.shape_cast %1053 : vector<1x8x8xbf16> to vector<8x8xbf16>
    %1055 = vector.extract_strided_slice %970 {offsets = [2, 0, 0], sizes = [1, 8, 32], strides = [1, 1, 1]} : vector<4x8x32xbf16> to vector<1x8x32xbf16>
    %1056 = vector.shape_cast %1055 : vector<1x8x32xbf16> to vector<8x32xbf16>
    %cst_373 = arith.constant dense<0.000000e+00> : vector<8x32xf32>
    %1057 = tpu.matmul %1054, %1056, %cst_373 {dimension_numbers = #tpu.dot_dimension_numbers<[1], [0], [0], [1], [0, 0, 1, 1], [], []>} : vector<8x8xbf16>, vector<8x32xbf16>, vector<8x32xf32> -> vector<8x32xf32>
    %1058 = arith.addf %1034, %1057 : vector<8x32xf32>
    %1059 = vector.extract_strided_slice %979 {offsets = [0, 0, 24], sizes = [1, 8, 8], strides = [1, 1, 1]} : vector<1x8x32xbf16> to vector<1x8x8xbf16>
    %1060 = vector.extract_strided_slice %986 {offsets = [0, 0, 24], sizes = [1, 8, 8], strides = [1, 1, 1]} : vector<1x8x32xbf16> to vector<1x8x8xbf16>
    "tpu.trace_start"() <{level = 10 : i32, message = "bqd,bkd->bqk"}> : () -> ()
    %cst_374 = arith.constant dense<0.000000e+00> : vector<1x8x8xf32>
    %1061 = tpu.matmul %1059, %1060, %cst_374 {dimension_numbers = #tpu.dot_dimension_numbers<[2], [2], [1], [1], [0, 0, 0, 1, 1, 1], [0], [0]>} : vector<1x8x8xbf16>, vector<1x8x8xbf16>, vector<1x8x8xf32> -> vector<1x8x8xf32>
    "tpu.trace_stop"() : () -> ()
    %1062 = vector.broadcast %13 : vector<1x1x8xf32> to vector<1x8x8xf32>
    %1063 = arith.addf %1061, %1062 : vector<1x8x8xf32>
    %cst_375 = arith.constant dense<0xFF800000> : vector<1x8xf32>
    %1064 = vector.multi_reduction <maximumf>, %1063, %cst_375 [2] : vector<1x8x8xf32> to vector<1x8xf32>
    %1065 = vector.shape_cast %1064 : vector<1x8xf32> to vector<1x8x1xf32>
    %1066 = vector.broadcast %1065 : vector<1x8x1xf32> to vector<1x8x8xf32>
    %1067 = arith.subf %1063, %1066 : vector<1x8x8xf32>
    %1068 = math.exp %1067 : vector<1x8x8xf32>
    %cst_376 = arith.constant dense<0.000000e+00> : vector<1x8xf32>
    %1069 = vector.multi_reduction <add>, %1068, %cst_376 [2] : vector<1x8x8xf32> to vector<1x8xf32>
    %1070 = vector.shape_cast %1069 : vector<1x8xf32> to vector<1x8x1xf32>
    %1071 = tpu.reciprocal %1070 {approx = true} : vector<1x8x1xf32> -> vector<1x8x1xf32>
    %1072 = vector.broadcast %1071 : vector<1x8x1xf32> to vector<1x8x8xf32>
    %1073 = arith.mulf %1068, %1072 : vector<1x8x8xf32>
    %1074 = arith.truncf %1073 : vector<1x8x8xf32> to vector<1x8x8xbf16>
    %1075 = vector.extract_strided_slice %987 {offsets = [0, 0, 24], sizes = [1, 8, 8], strides = [1, 1, 1]} : vector<1x8x32xbf16> to vector<1x8x8xbf16>
    "tpu.trace_start"() <{level = 10 : i32, message = "bqk,bkd->bqd"}> : () -> ()
    %cst_377 = arith.constant dense<0.000000e+00> : vector<1x8x8xf32>
    %1076 = tpu.matmul %1074, %1075, %cst_377 {dimension_numbers = #tpu.dot_dimension_numbers<[2], [1], [1], [2], [0, 0, 0, 1, 1, 2], [0], [0]>} : vector<1x8x8xbf16>, vector<1x8x8xbf16>, vector<1x8x8xf32> -> vector<1x8x8xf32>
    "tpu.trace_stop"() : () -> ()
    %1077 = arith.truncf %1076 : vector<1x8x8xf32> to vector<1x8x8xbf16>
    %1078 = vector.shape_cast %1077 : vector<1x8x8xbf16> to vector<8x8xbf16>
    %1079 = vector.extract_strided_slice %970 {offsets = [3, 0, 0], sizes = [1, 8, 32], strides = [1, 1, 1]} : vector<4x8x32xbf16> to vector<1x8x32xbf16>
    %1080 = vector.shape_cast %1079 : vector<1x8x32xbf16> to vector<8x32xbf16>
    %cst_378 = arith.constant dense<0.000000e+00> : vector<8x32xf32>
    %1081 = tpu.matmul %1078, %1080, %cst_378 {dimension_numbers = #tpu.dot_dimension_numbers<[1], [0], [0], [1], [0, 0, 1, 1], [], []>} : vector<8x8xbf16>, vector<8x32xbf16>, vector<8x32xf32> -> vector<8x32xf32>
    %1082 = arith.addf %1058, %1081 : vector<8x32xf32>
    %1083 = vector.shape_cast %1082 : vector<8x32xf32> to vector<1x8x32xf32>
    %1084 = vector.shape_cast %972 : vector<1x32xf32> to vector<1x1x32xf32>
    %1085 = vector.broadcast %1084 : vector<1x1x32xf32> to vector<1x8x32xf32>
    %1086 = arith.addf %1083, %1085 : vector<1x8x32xf32>
    %1087 = arith.addf %932, %1086 : vector<1x8x32xf32>
    %c1_379 = arith.constant 1 : index
    %c0_380 = arith.constant 0 : index
    %c0_381 = arith.constant 0 : index
    %1088 = vector.load %arg30[%c1_379, %c0_380, %c0_381] : memref<2x1x32xf32, #tpu.memory_space<vmem>>, vector<1x1x32xf32>
    %1089 = vector.shape_cast %1088 : vector<1x1x32xf32> to vector<1x32xf32>
    %c1_382 = arith.constant 1 : index
    %c0_383 = arith.constant 0 : index
    %c0_384 = arith.constant 0 : index
    %1090 = vector.load %arg31[%c1_382, %c0_383, %c0_384] : memref<2x1x32xf32, #tpu.memory_space<vmem>>, vector<1x1x32xf32>
    %1091 = vector.shape_cast %1090 : vector<1x1x32xf32> to vector<1x32xf32>
    %cst_385 = arith.constant dense<0.000000e+00> : vector<1x8xf32>
    %1092 = vector.multi_reduction <add>, %1087, %cst_385 [2] : vector<1x8x32xf32> to vector<1x8xf32>
    %1093 = vector.shape_cast %1092 : vector<1x8xf32> to vector<1x8x1xf32>
    %cst_386 = arith.constant 3.200000e+01 : f32
    %1094 = vector.broadcast %cst_386 : f32 to vector<1x8x1xf32>
    %1095 = arith.divf %1093, %1094 : vector<1x8x1xf32>
    %1096 = vector.broadcast %1095 : vector<1x8x1xf32> to vector<1x8x32xf32>
    %1097 = arith.subf %1087, %1096 : vector<1x8x32xf32>
    %1098 = arith.mulf %1097, %1097 : vector<1x8x32xf32>
    %cst_387 = arith.constant dense<0.000000e+00> : vector<1x8xf32>
    %1099 = vector.multi_reduction <add>, %1098, %cst_387 [2] : vector<1x8x32xf32> to vector<1x8xf32>
    %1100 = vector.shape_cast %1099 : vector<1x8xf32> to vector<1x8x1xf32>
    %cst_388 = arith.constant 3.200000e+01 : f32
    %1101 = vector.broadcast %cst_388 : f32 to vector<1x8x1xf32>
    %1102 = arith.divf %1100, %1101 : vector<1x8x1xf32>
    %1103 = vector.broadcast %1095 : vector<1x8x1xf32> to vector<1x8x32xf32>
    %1104 = arith.subf %1087, %1103 : vector<1x8x32xf32>
    %cst_389 = arith.constant 9.99999974E-6 : f32
    %1105 = vector.broadcast %cst_389 : f32 to vector<1x8x1xf32>
    %1106 = arith.addf %1102, %1105 : vector<1x8x1xf32>
    %1107 = math.rsqrt %1106 : vector<1x8x1xf32>
    %1108 = vector.broadcast %1107 : vector<1x8x1xf32> to vector<1x8x32xf32>
    %1109 = arith.mulf %1104, %1108 : vector<1x8x32xf32>
    %1110 = vector.shape_cast %1089 : vector<1x32xf32> to vector<1x1x32xf32>
    %1111 = vector.broadcast %1110 : vector<1x1x32xf32> to vector<1x8x32xf32>
    %1112 = arith.mulf %1109, %1111 : vector<1x8x32xf32>
    %1113 = vector.shape_cast %1091 : vector<1x32xf32> to vector<1x1x32xf32>
    %1114 = vector.broadcast %1113 : vector<1x1x32xf32> to vector<1x8x32xf32>
    %1115 = arith.addf %1112, %1114 : vector<1x8x32xf32>
    %c1_390 = arith.constant 1 : index
    %c0_391 = arith.constant 0 : index
    %c0_392 = arith.constant 0 : index
    %1116 = vector.load %arg32[%c1_390, %c0_391, %c0_392] : memref<2x32x128xbf16, #tpu.memory_space<vmem>>, vector<1x32x128xbf16>
    %1117 = vector.shape_cast %1116 : vector<1x32x128xbf16> to vector<32x128xbf16>
    %c1_393 = arith.constant 1 : index
    %c0_394 = arith.constant 0 : index
    %c0_395 = arith.constant 0 : index
    %1118 = vector.load %arg33[%c1_393, %c0_394, %c0_395] : memref<2x1x128xf32, #tpu.memory_space<vmem>>, vector<1x1x128xf32>
    %1119 = vector.shape_cast %1118 : vector<1x1x128xf32> to vector<1x128xf32>
    %c1_396 = arith.constant 1 : index
    %c0_397 = arith.constant 0 : index
    %c0_398 = arith.constant 0 : index
    %1120 = vector.load %arg34[%c1_396, %c0_397, %c0_398] : memref<2x128x32xbf16, #tpu.memory_space<vmem>>, vector<1x128x32xbf16>
    %1121 = vector.shape_cast %1120 : vector<1x128x32xbf16> to vector<128x32xbf16>
    %c1_399 = arith.constant 1 : index
    %c0_400 = arith.constant 0 : index
    %c0_401 = arith.constant 0 : index
    %1122 = vector.load %arg35[%c1_399, %c0_400, %c0_401] : memref<2x1x32xf32, #tpu.memory_space<vmem>>, vector<1x1x32xf32>
    %1123 = vector.shape_cast %1122 : vector<1x1x32xf32> to vector<1x32xf32>
    %1124 = vector.shape_cast %1115 : vector<1x8x32xf32> to vector<8x32xf32>
    %1125 = arith.truncf %1124 : vector<8x32xf32> to vector<8x32xbf16>
    %cst_402 = arith.constant dense<0.000000e+00> : vector<8x128xf32>
    %1126 = tpu.matmul %1125, %1117, %cst_402 {dimension_numbers = #tpu.dot_dimension_numbers<[1], [0], [0], [1], [0, 0, 1, 1], [], []>} : vector<8x32xbf16>, vector<32x128xbf16>, vector<8x128xf32> -> vector<8x128xf32>
    %1127 = vector.broadcast %1119 : vector<1x128xf32> to vector<8x128xf32>
    %1128 = arith.addf %1126, %1127 : vector<8x128xf32>
    %cst_403 = arith.constant 0.000000e+00 : f32
    %1129 = vector.broadcast %cst_403 : f32 to vector<8x128xf32>
    %1130 = arith.maximumf %1128, %1129 : vector<8x128xf32>
    %1131 = arith.truncf %1130 : vector<8x128xf32> to vector<8x128xbf16>
    %cst_404 = arith.constant dense<0.000000e+00> : vector<8x32xf32>
    %1132 = tpu.matmul %1131, %1121, %cst_404 {dimension_numbers = #tpu.dot_dimension_numbers<[1], [0], [0], [1], [0, 0, 1, 1], [], []>} : vector<8x128xbf16>, vector<128x32xbf16>, vector<8x32xf32> -> vector<8x32xf32>
    %1133 = vector.broadcast %1123 : vector<1x32xf32> to vector<8x32xf32>
    %1134 = arith.addf %1132, %1133 : vector<8x32xf32>
    %1135 = vector.shape_cast %1134 : vector<8x32xf32> to vector<1x8x32xf32>
    %1136 = arith.addf %1087, %1135 : vector<1x8x32xf32>
    %c0_405 = arith.constant 0 : index
    %c0_406 = arith.constant 0 : index
    %1137 = vector.load %arg38[%c0_405, %c0_406] : memref<1x32xf32, #tpu.memory_space<vmem>>, vector<1x32xf32>
    %c0_407 = arith.constant 0 : index
    %c0_408 = arith.constant 0 : index
    %1138 = vector.load %arg39[%c0_407, %c0_408] : memref<1x32xf32, #tpu.memory_space<vmem>>, vector<1x32xf32>
    %cst_409 = arith.constant dense<0.000000e+00> : vector<1x8xf32>
    %1139 = vector.multi_reduction <add>, %1136, %cst_409 [2] : vector<1x8x32xf32> to vector<1x8xf32>
    %1140 = vector.shape_cast %1139 : vector<1x8xf32> to vector<1x8x1xf32>
    %cst_410 = arith.constant 3.200000e+01 : f32
    %1141 = vector.broadcast %cst_410 : f32 to vector<1x8x1xf32>
    %1142 = arith.divf %1140, %1141 : vector<1x8x1xf32>
    %1143 = vector.broadcast %1142 : vector<1x8x1xf32> to vector<1x8x32xf32>
    %1144 = arith.subf %1136, %1143 : vector<1x8x32xf32>
    %1145 = arith.mulf %1144, %1144 : vector<1x8x32xf32>
    %cst_411 = arith.constant dense<0.000000e+00> : vector<1x8xf32>
    %1146 = vector.multi_reduction <add>, %1145, %cst_411 [2] : vector<1x8x32xf32> to vector<1x8xf32>
    %1147 = vector.shape_cast %1146 : vector<1x8xf32> to vector<1x8x1xf32>
    %cst_412 = arith.constant 3.200000e+01 : f32
    %1148 = vector.broadcast %cst_412 : f32 to vector<1x8x1xf32>
    %1149 = arith.divf %1147, %1148 : vector<1x8x1xf32>
    %1150 = vector.broadcast %1142 : vector<1x8x1xf32> to vector<1x8x32xf32>
    %1151 = arith.subf %1136, %1150 : vector<1x8x32xf32>
    %cst_413 = arith.constant 9.99999974E-6 : f32
    %1152 = vector.broadcast %cst_413 : f32 to vector<1x8x1xf32>
    %1153 = arith.addf %1149, %1152 : vector<1x8x1xf32>
    %1154 = math.rsqrt %1153 : vector<1x8x1xf32>
    %1155 = vector.broadcast %1154 : vector<1x8x1xf32> to vector<1x8x32xf32>
    %1156 = arith.mulf %1151, %1155 : vector<1x8x32xf32>
    %1157 = vector.shape_cast %1137 : vector<1x32xf32> to vector<1x1x32xf32>
    %1158 = vector.broadcast %1157 : vector<1x1x32xf32> to vector<1x8x32xf32>
    %1159 = arith.mulf %1156, %1158 : vector<1x8x32xf32>
    %1160 = vector.shape_cast %1138 : vector<1x32xf32> to vector<1x1x32xf32>
    %1161 = vector.broadcast %1160 : vector<1x1x32xf32> to vector<1x8x32xf32>
    %1162 = arith.addf %1159, %1161 : vector<1x8x32xf32>
    %1163 = vector.shape_cast %1162 : vector<1x8x32xf32> to vector<8x32xf32>
    %1164 = arith.truncf %1163 : vector<8x32xf32> to vector<8x32xbf16>
    %c0_414 = arith.constant 0 : index
    %c0_415 = arith.constant 0 : index
    %1165 = vector.load %arg40[%c0_414, %c0_415] : memref<32x128xbf16, #tpu.memory_space<vmem>>, vector<32x128xbf16>
    %cst_416 = arith.constant dense<0.000000e+00> : vector<8x128xf32>
    %1166 = tpu.matmul %1164, %1165, %cst_416 {dimension_numbers = #tpu.dot_dimension_numbers<[1], [0], [0], [1], [0, 0, 1, 1], [], []>} : vector<8x32xbf16>, vector<32x128xbf16>, vector<8x128xf32> -> vector<8x128xf32>
    %c0_417 = arith.constant 0 : index
    %c0_418 = arith.constant 0 : index
    %1167 = vector.load %arg41[%c0_417, %c0_418] : memref<1x128xf32, #tpu.memory_space<vmem>>, vector<1x128xf32>
    %1168 = vector.broadcast %1167 : vector<1x128xf32> to vector<8x128xf32>
    %1169 = arith.addf %1166, %1168 : vector<8x128xf32>
    %cst_419 = arith.constant 1.000000e+00 : f32
    %1170 = vector.broadcast %cst_419 : f32 to vector<8x128xf32>
    %1171 = arith.mulf %1169, %1170 : vector<8x128xf32>
    %cst_420 = arith.constant dense<0xFF800000> : vector<8xf32>
    %1172 = vector.multi_reduction <maximumf>, %1171, %cst_420 [1] : vector<8x128xf32> to vector<8xf32>
    %1173 = vector.shape_cast %1172 : vector<8xf32> to vector<8x1xf32>
    %1174 = vector.broadcast %1173 : vector<8x1xf32> to vector<8x128xf32>
    %1175 = arith.subf %1171, %1174 : vector<8x128xf32>
    %1176 = math.exp %1175 : vector<8x128xf32>
    %cst_421 = arith.constant dense<0.000000e+00> : vector<8xf32>
    %1177 = vector.multi_reduction <add>, %1176, %cst_421 [1] : vector<8x128xf32> to vector<8xf32>
    %1178 = vector.shape_cast %1177 : vector<8xf32> to vector<8x1xf32>
    %1179 = math.log %1178 : vector<8x1xf32>
    %1180 = arith.addf %1173, %1179 : vector<8x1xf32>
    %1181 = vector.broadcast %1180 : vector<8x1xf32> to vector<8x128xf32>
    %1182 = arith.subf %1171, %1181 : vector<8x128xf32>
    %1183 = vector.shape_cast %1182 : vector<8x128xf32> to vector<1x8x128xf32>
    %c0_422 = arith.constant 0 : index
    %c0_423 = arith.constant 0 : index
    %c0_424 = arith.constant 0 : index
    %1184 = vector.load %arg42[%c0_422, %c0_423, %c0_424] : memref<1x8x128xf32, #tpu.memory_space<vmem>>, vector<1x8x128xf32>
    tpu.vector_store %arg42[%c0_422, %c0_423, %c0_424], %1183 {strides = array<i32>} : memref<1x8x128xf32, #tpu.memory_space<vmem>>, vector<1x8x128xf32>,
    return
  }
  func.func @transform_0(%arg0: i32, %arg1: memref<2xi32, #tpu.memory_space<smem>>) -> (i32, i32, i32) {
    %c0_i32 = arith.constant 0 : i32
    %c0_i32_0 = arith.constant 0 : i32
    %c0_i32_1 = arith.constant 0 : i32
    return %arg0, %c0_i32, %c0_i32_0 : i32, i32, i32
  }
  func.func @transform_1(%arg0: i32, %arg1: memref<2xi32, #tpu.memory_space<smem>>) -> (i32, i32, i32) {
    %c0_i32 = arith.constant 0 : i32
    %c0_i32_0 = arith.constant 0 : i32
    %c0_i32_1 = arith.constant 0 : i32
    return %arg0, %c0_i32, %c0_i32_0 : i32, i32, i32
  }
  func.func @transform_2(%arg0: i32, %arg1: memref<2xi32, #tpu.memory_space<smem>>) -> (i32, i32, i32) {
    %c0_i32 = arith.constant 0 : i32
    %c0_i32_0 = arith.constant 0 : i32
    %c0_i32_1 = arith.constant 0 : i32
    %c0_i32_2 = arith.constant 0 : i32
    return %c0_i32, %c0_i32_0, %c0_i32_1 : i32, i32, i32
  }
  func.func @transform_3(%arg0: i32, %arg1: memref<2xi32, #tpu.memory_space<smem>>) -> (i32, i32, i32) {
    %c0_i32 = arith.constant 0 : i32
    %c0_i32_0 = arith.constant 0 : i32
    %c0_i32_1 = arith.constant 0 : i32
    %c0_i32_2 = arith.constant 0 : i32
    return %c0_i32, %c0_i32_0, %c0_i32_1 : i32, i32, i32
  }
  func.func @transform_4(%arg0: i32, %arg1: memref<2xi32, #tpu.memory_space<smem>>) -> (i32, i32, i32) {
    %c0_i32 = arith.constant 0 : i32
    %c0_i32_0 = arith.constant 0 : i32
    %c0_i32_1 = arith.constant 0 : i32
    %c0_i32_2 = arith.constant 0 : i32
    return %c0_i32, %c0_i32_0, %c0_i32_1 : i32, i32, i32
  }
  func.func @transform_5(%arg0: i32, %arg1: memref<2xi32, #tpu.memory_space<smem>>) -> (i32, i32, i32) {
    %c0_i32 = arith.constant 0 : i32
    %c0_i32_0 = arith.constant 0 : i32
    %c0_i32_1 = arith.constant 0 : i32
    %c0_i32_2 = arith.constant 0 : i32
    return %c0_i32, %c0_i32_0, %c0_i32_1 : i32, i32, i32
  }
  func.func @transform_6(%arg0: i32, %arg1: memref<2xi32, #tpu.memory_space<smem>>) -> (i32, i32, i32, i32) {
    %c0_i32 = arith.constant 0 : i32
    %c0_i32_0 = arith.constant 0 : i32
    %c0_i32_1 = arith.constant 0 : i32
    %c0_i32_2 = arith.constant 0 : i32
    %c0_i32_3 = arith.constant 0 : i32
    return %c0_i32, %c0_i32_0, %c0_i32_1, %c0_i32_2 : i32, i32, i32, i32
  }
  func.func @transform_7(%arg0: i32, %arg1: memref<2xi32, #tpu.memory_space<smem>>) -> (i32, i32, i32) {
    %c0_i32 = arith.constant 0 : i32
    %c0_i32_0 = arith.constant 0 : i32
    %c0_i32_1 = arith.constant 0 : i32
    %c0_i32_2 = arith.constant 0 : i32
    return %c0_i32, %c0_i32_0, %c0_i32_1 : i32, i32, i32
  }
  func.func @transform_8(%arg0: i32, %arg1: memref<2xi32, #tpu.memory_space<smem>>) -> (i32, i32, i32) {
    %c0_i32 = arith.constant 0 : i32
    %c0_i32_0 = arith.constant 0 : i32
    %c0_i32_1 = arith.constant 0 : i32
    %c0_i32_2 = arith.constant 0 : i32
    return %c0_i32, %c0_i32_0, %c0_i32_1 : i32, i32, i32
  }
  func.func @transform_9(%arg0: i32, %arg1: memref<2xi32, #tpu.memory_space<smem>>) -> (i32, i32, i32) {
    %c0_i32 = arith.constant 0 : i32
    %c0_i32_0 = arith.constant 0 : i32
    %c0_i32_1 = arith.constant 0 : i32
    %c0_i32_2 = arith.constant 0 : i32
    return %c0_i32, %c0_i32_0, %c0_i32_1 : i32, i32, i32
  }
  func.func @transform_10(%arg0: i32, %arg1: memref<2xi32, #tpu.memory_space<smem>>) -> (i32, i32, i32) {
    %c0_i32 = arith.constant 0 : i32
    %c0_i32_0 = arith.constant 0 : i32
    %c0_i32_1 = arith.constant 0 : i32
    %c0_i32_2 = arith.constant 0 : i32
    return %c0_i32, %c0_i32_0, %c0_i32_1 : i32, i32, i32
  }
  func.func @transform_11(%arg0: i32, %arg1: memref<2xi32, #tpu.memory_space<smem>>) -> (i32, i32, i32) {
    %c0_i32 = arith.constant 0 : i32
    %c0_i32_0 = arith.constant 0 : i32
    %c0_i32_1 = arith.constant 0 : i32
    %c0_i32_2 = arith.constant 0 : i32
    return %c0_i32, %c0_i32_0, %c0_i32_1 : i32, i32, i32
  }
  func.func @transform_12(%arg0: i32, %arg1: memref<2xi32, #tpu.memory_space<smem>>) -> (i32, i32, i32) {
    %c0_i32 = arith.constant 0 : i32
    %c0_i32_0 = arith.constant 0 : i32
    %c0_i32_1 = arith.constant 0 : i32
    %c0_i32_2 = arith.constant 0 : i32
    return %c0_i32, %c0_i32_0, %c0_i32_1 : i32, i32, i32
  }
  func.func @transform_13(%arg0: i32, %arg1: memref<2xi32, #tpu.memory_space<smem>>) -> (i32, i32, i32) {
    %c0_i32 = arith.constant 0 : i32
    %c0_i32_0 = arith.constant 0 : i32
    %c0_i32_1 = arith.constant 0 : i32
    %c0_i32_2 = arith.constant 0 : i32
    return %c0_i32, %c0_i32_0, %c0_i32_1 : i32, i32, i32
  }
  func.func @transform_14(%arg0: i32, %arg1: memref<2xi32, #tpu.memory_space<smem>>) -> (i32, i32, i32) {
    %c0_i32 = arith.constant 0 : i32
    %c0_i32_0 = arith.constant 0 : i32
    %c0_i32_1 = arith.constant 0 : i32
    %c0_i32_2 = arith.constant 0 : i32
    return %c0_i32, %c0_i32_0, %c0_i32_1 : i32, i32, i32
  }
  func.func @transform_15(%arg0: i32, %arg1: memref<2xi32, #tpu.memory_space<smem>>) -> (i32, i32, i32) {
    %c0_i32 = arith.constant 0 : i32
    %c0_i32_0 = arith.constant 0 : i32
    %c0_i32_1 = arith.constant 0 : i32
    %c0_i32_2 = arith.constant 0 : i32
    return %c0_i32, %c0_i32_0, %c0_i32_1 : i32, i32, i32
  }
  func.func @transform_16(%arg0: i32, %arg1: memref<2xi32, #tpu.memory_space<smem>>) -> (i32, i32, i32) {
    %c0_i32 = arith.constant 0 : i32
    %c0_i32_0 = arith.constant 0 : i32
    %c0_i32_1 = arith.constant 0 : i32
    %c0_i32_2 = arith.constant 0 : i32
    return %c0_i32, %c0_i32_0, %c0_i32_1 : i32, i32, i32
  }
  func.func @transform_17(%arg0: i32, %arg1: memref<2xi32, #tpu.memory_space<smem>>) -> (i32, i32, i32) {
    %c0_i32 = arith.constant 0 : i32
    %c0_i32_0 = arith.constant 0 : i32
    %c0_i32_1 = arith.constant 0 : i32
    %c0_i32_2 = arith.constant 0 : i32
    return %c0_i32, %c0_i32_0, %c0_i32_1 : i32, i32, i32
  }
  func.func @transform_18(%arg0: i32, %arg1: memref<2xi32, #tpu.memory_space<smem>>) -> (i32, i32, i32, i32) {
    %c0_i32 = arith.constant 0 : i32
    %c0_i32_0 = arith.constant 0 : i32
    %c0_i32_1 = arith.constant 0 : i32
    %c0_i32_2 = arith.constant 0 : i32
    %c0_i32_3 = arith.constant 0 : i32
    return %c0_i32, %c0_i32_0, %c0_i32_1, %c0_i32_2 : i32, i32, i32, i32
  }
  func.func @transform_19(%arg0: i32, %arg1: memref<2xi32, #tpu.memory_space<smem>>) -> (i32, i32, i32) {
    %c0_i32 = arith.constant 0 : i32
    %c0_i32_0 = arith.constant 0 : i32
    %c0_i32_1 = arith.constant 0 : i32
    %c0_i32_2 = arith.constant 0 : i32
    return %c0_i32, %c0_i32_0, %c0_i32_1 : i32, i32, i32
  }
  func.func @transform_20(%arg0: i32, %arg1: memref<2xi32, #tpu.memory_space<smem>>) -> (i32, i32, i32) {
    %c0_i32 = arith.constant 0 : i32
    %c0_i32_0 = arith.constant 0 : i32
    %c0_i32_1 = arith.constant 0 : i32
    %c0_i32_2 = arith.constant 0 : i32
    return %c0_i32, %c0_i32_0, %c0_i32_1 : i32, i32, i32
  }
  func.func @transform_21(%arg0: i32, %arg1: memref<2xi32, #tpu.memory_space<smem>>) -> (i32, i32, i32) {
    %c0_i32 = arith.constant 0 : i32
    %c0_i32_0 = arith.constant 0 : i32
    %c0_i32_1 = arith.constant 0 : i32
    %c0_i32_2 = arith.constant 0 : i32
    return %c0_i32, %c0_i32_0, %c0_i32_1 : i32, i32, i32
  }
  func.func @transform_22(%arg0: i32, %arg1: memref<2xi32, #tpu.memory_space<smem>>) -> (i32, i32, i32) {
    %c0_i32 = arith.constant 0 : i32
    %c0_i32_0 = arith.constant 0 : i32
    %c0_i32_1 = arith.constant 0 : i32
    %c0_i32_2 = arith.constant 0 : i32
    return %c0_i32, %c0_i32_0, %c0_i32_1 : i32, i32, i32
  }
  func.func @transform_23(%arg0: i32, %arg1: memref<2xi32, #tpu.memory_space<smem>>) -> (i32, i32, i32) {
    %c0_i32 = arith.constant 0 : i32
    %c0_i32_0 = arith.constant 0 : i32
    %c0_i32_1 = arith.constant 0 : i32
    %c0_i32_2 = arith.constant 0 : i32
    return %c0_i32, %c0_i32_0, %c0_i32_1 : i32, i32, i32
  }
  func.func @transform_24(%arg0: i32, %arg1: memref<2xi32, #tpu.memory_space<smem>>) -> (i32, i32, i32) {
    %c0_i32 = arith.constant 0 : i32
    %c0_i32_0 = arith.constant 0 : i32
    %c0_i32_1 = arith.constant 0 : i32
    %c0_i32_2 = arith.constant 0 : i32
    return %c0_i32, %c0_i32_0, %c0_i32_1 : i32, i32, i32
  }
  func.func @transform_25(%arg0: i32, %arg1: memref<2xi32, #tpu.memory_space<smem>>) -> (i32, i32, i32) {
    %c0_i32 = arith.constant 0 : i32
    %c0_i32_0 = arith.constant 0 : i32
    %c0_i32_1 = arith.constant 0 : i32
    %c0_i32_2 = arith.constant 0 : i32
    return %c0_i32, %c0_i32_0, %c0_i32_1 : i32, i32, i32
  }
  func.func @transform_26(%arg0: i32, %arg1: memref<2xi32, #tpu.memory_space<smem>>) -> (i32, i32, i32, i32) {
    %c0_i32 = arith.constant 0 : i32
    %c0_i32_0 = arith.constant 0 : i32
    %c0_i32_1 = arith.constant 0 : i32
    %c0_i32_2 = arith.constant 0 : i32
    %c0_i32_3 = arith.constant 0 : i32
    return %c0_i32, %c0_i32_0, %c0_i32_1, %c0_i32_2 : i32, i32, i32, i32
  }
  func.func @transform_27(%arg0: i32, %arg1: memref<2xi32, #tpu.memory_space<smem>>) -> (i32, i32, i32) {
    %c0_i32 = arith.constant 0 : i32
    %c0_i32_0 = arith.constant 0 : i32
    %c0_i32_1 = arith.constant 0 : i32
    %c0_i32_2 = arith.constant 0 : i32
    return %c0_i32, %c0_i32_0, %c0_i32_1 : i32, i32, i32
  }
  func.func @transform_28(%arg0: i32, %arg1: memref<2xi32, #tpu.memory_space<smem>>) -> (i32, i32, i32) {
    %c0_i32 = arith.constant 0 : i32
    %c0_i32_0 = arith.constant 0 : i32
    %c0_i32_1 = arith.constant 0 : i32
    %c0_i32_2 = arith.constant 0 : i32
    return %c0_i32, %c0_i32_0, %c0_i32_1 : i32, i32, i32
  }
  func.func @transform_29(%arg0: i32, %arg1: memref<2xi32, #tpu.memory_space<smem>>) -> (i32, i32, i32) {
    %c0_i32 = arith.constant 0 : i32
    %c0_i32_0 = arith.constant 0 : i32
    %c0_i32_1 = arith.constant 0 : i32
    %c0_i32_2 = arith.constant 0 : i32
    return %c0_i32, %c0_i32_0, %c0_i32_1 : i32, i32, i32
  }
  func.func @transform_30(%arg0: i32, %arg1: memref<2xi32, #tpu.memory_space<smem>>) -> (i32, i32, i32) {
    %c0_i32 = arith.constant 0 : i32
    %c0_i32_0 = arith.constant 0 : i32
    %c0_i32_1 = arith.constant 0 : i32
    %c0_i32_2 = arith.constant 0 : i32
    return %c0_i32, %c0_i32_0, %c0_i32_1 : i32, i32, i32
  }
  func.func @transform_31(%arg0: i32, %arg1: memref<2xi32, #tpu.memory_space<smem>>) -> (i32, i32, i32) {
    %c0_i32 = arith.constant 0 : i32
    %c0_i32_0 = arith.constant 0 : i32
    %c0_i32_1 = arith.constant 0 : i32
    %c0_i32_2 = arith.constant 0 : i32
    return %c0_i32, %c0_i32_0, %c0_i32_1 : i32, i32, i32
  }
  func.func @transform_32(%arg0: i32, %arg1: memref<2xi32, #tpu.memory_space<smem>>) -> (i32, i32, i32) {
    %c0_i32 = arith.constant 0 : i32
    %c0_i32_0 = arith.constant 0 : i32
    %c0_i32_1 = arith.constant 0 : i32
    %c0_i32_2 = arith.constant 0 : i32
    return %c0_i32, %c0_i32_0, %c0_i32_1 : i32, i32, i32
  }
  func.func @transform_33(%arg0: i32, %arg1: memref<2xi32, #tpu.memory_space<smem>>) -> (i32, i32, i32) {
    %c0_i32 = arith.constant 0 : i32
    %c0_i32_0 = arith.constant 0 : i32
    %c0_i32_1 = arith.constant 0 : i32
    %c0_i32_2 = arith.constant 0 : i32
    return %c0_i32, %c0_i32_0, %c0_i32_1 : i32, i32, i32
  }
  func.func @transform_34(%arg0: i32, %arg1: memref<2xi32, #tpu.memory_space<smem>>) -> (i32, i32) {
    %c0_i32 = arith.constant 0 : i32
    %c0_i32_0 = arith.constant 0 : i32
    %c0_i32_1 = arith.constant 0 : i32
    return %c0_i32, %c0_i32_0 : i32, i32
  }
  func.func @transform_35(%arg0: i32, %arg1: memref<2xi32, #tpu.memory_space<smem>>) -> (i32, i32) {
    %c0_i32 = arith.constant 0 : i32
    %c0_i32_0 = arith.constant 0 : i32
    %c0_i32_1 = arith.constant 0 : i32
    return %c0_i32, %c0_i32_0 : i32, i32
  }
  func.func @transform_36(%arg0: i32, %arg1: memref<2xi32, #tpu.memory_space<smem>>) -> (i32, i32) {
    %c0_i32 = arith.constant 0 : i32
    %c0_i32_0 = arith.constant 0 : i32
    %c0_i32_1 = arith.constant 0 : i32
    return %c0_i32, %c0_i32_0 : i32, i32
  }
  func.func @transform_37(%arg0: i32, %arg1: memref<2xi32, #tpu.memory_space<smem>>) -> (i32, i32) {
    %c0_i32 = arith.constant 0 : i32
    %c0_i32_0 = arith.constant 0 : i32
    %c0_i32_1 = arith.constant 0 : i32
    return %c0_i32, %c0_i32_0 : i32, i32
  }
  func.func @transform_38(%arg0: i32, %arg1: memref<2xi32, #tpu.memory_space<smem>>) -> (i32, i32) {
    %c0_i32 = arith.constant 0 : i32
    %c0_i32_0 = arith.constant 0 : i32
    %c0_i32_1 = arith.constant 0 : i32
    return %c0_i32, %c0_i32_0 : i32, i32
  }
  func.func @transform_39(%arg0: i32, %arg1: memref<2xi32, #tpu.memory_space<smem>>) -> (i32, i32) {
    %c0_i32 = arith.constant 0 : i32
    %c0_i32_0 = arith.constant 0 : i32
    %c0_i32_1 = arith.constant 0 : i32
    return %c0_i32, %c0_i32_0 : i32, i32
  }
  func.func @transform_40(%arg0: i32, %arg1: memref<2xi32, #tpu.memory_space<smem>>) -> (i32, i32, i32) {
    %c0_i32 = arith.constant 0 : i32
    %c0_i32_0 = arith.constant 0 : i32
    %c0_i32_1 = arith.constant 0 : i32
    return %arg0, %c0_i32, %c0_i32_0 : i32, i32, i32
  }
}

</mosaic_0001>

<llo_original>
// kernel: _lambda_.1
$region0: #{_lambda_.1}
  #allocation0 [shape = 'u32[]', space=smem, size = 0x4, offset = 0x4, fixed_abs, tag = 'smem constant byte address 0x4 - core index']
  #allocation1 [shape = 'u32[144,128]{1,0:T(1,128)}', space=vmem, size = 0x12000, scoped, tag = 'internal scratch']
  #allocation2 [shape = 's32[1]{0}', space=sflag, size = 0x4, scoped, tag = 'scoped memory for _lambda_.1']
  #allocation3 [shape = 'u8[512]{0}', space=smem, size = 0x200, scoped, tag = 'prefetched SMEM operand 0']
  %s0 = inlined_call_operand.smem [shape: u32[42], index: -1, kind: input, shape index: {}]
  %s1 = sld [smem:[%s0]]
  %s2 = scalar_lea.smem %s0, 1
  %s3 = sld [smem:[%s2]]
  %s4 = scalar_lea.smem %s0, 2
  %s5 = sld [smem:[%s4]]
  %s6 = scalar_lea.smem %s0, 3
  %s7 = sld [smem:[%s6]]
  %s8 = scalar_lea.smem %s0, 4
  %s9 = sld [smem:[%s8]]
  %s10 = scalar_lea.smem %s0, 5
  %s11 = sld [smem:[%s10]]
  %s12 = scalar_lea.smem %s0, 6
  %s13 = sld [smem:[%s12]]
  %s14 = scalar_lea.smem %s0, 7
  %s15 = sld [smem:[%s14]]
  %s16 = scalar_lea.smem %s0, 8
  %s17 = sld [smem:[%s16]]
  %s18 = scalar_lea.smem %s0, 9
  %s19 = sld [smem:[%s18]]
  %s20 = scalar_lea.smem %s0, 10
  %s21 = sld [smem:[%s20]]
  %s22 = scalar_lea.smem %s0, 11
  %s23 = sld [smem:[%s22]]
  %s24 = scalar_lea.smem %s0, 12
  %s25 = sld [smem:[%s24]]
  %s26 = scalar_lea.smem %s0, 13
  %s27 = sld [smem:[%s26]]
  %s28 = scalar_lea.smem %s0, 14
  %s29 = sld [smem:[%s28]]
  %s30 = scalar_lea.smem %s0, 15
  %s31 = sld [smem:[%s30]]
  %s32 = scalar_lea.smem %s0, 16
  %s33 = sld [smem:[%s32]]
  %s34 = scalar_lea.smem %s0, 17
  %s35 = sld [smem:[%s34]]
  %s36 = scalar_lea.smem %s0, 18
  %s37 = sld [smem:[%s36]]
  %s38 = scalar_lea.smem %s0, 19
  %s39 = sld [smem:[%s38]]
  %s40 = scalar_lea.smem %s0, 20
  %s41 = sld [smem:[%s40]]
  %s42 = scalar_lea.smem %s0, 21
  %s43 = sld [smem:[%s42]]
  %s44 = scalar_lea.smem %s0, 22
  %s45 = sld [smem:[%s44]]
  %s46 = scalar_lea.smem %s0, 23
  %s47 = sld [smem:[%s46]]
  %s48 = scalar_lea.smem %s0, 24
  %s49 = sld [smem:[%s48]]
  %s50 = scalar_lea.smem %s0, 25
  %s51 = sld [smem:[%s50]]
  %s52 = scalar_lea.smem %s0, 26
  %s53 = sld [smem:[%s52]]
  %s54 = scalar_lea.smem %s0, 27
  %s55 = sld [smem:[%s54]]
  %s56 = scalar_lea.smem %s0, 28
  %s57 = sld [smem:[%s56]]
  %s58 = scalar_lea.smem %s0, 29
  %s59 = sld [smem:[%s58]]
  %s60 = scalar_lea.smem %s0, 30
  %s61 = sld [smem:[%s60]]
  %s62 = scalar_lea.smem %s0, 31
  %s63 = sld [smem:[%s62]]
  %s64 = scalar_lea.smem %s0, 32
  %s65 = sld [smem:[%s64]]
  %s66 = scalar_lea.smem %s0, 33
  %s67 = sld [smem:[%s66]]
  %s68 = scalar_lea.smem %s0, 34
  %s69 = sld [smem:[%s68]]
  %s70 = scalar_lea.smem %s0, 35
  %s71 = sld [smem:[%s70]]
  %s72 = scalar_lea.smem %s0, 36
  %s73 = sld [smem:[%s72]]
  %s74 = scalar_lea.smem %s0, 37
  %s75 = sld [smem:[%s74]]
  %s76 = scalar_lea.smem %s0, 38
  %s77 = sld [smem:[%s76]]
  %s78 = scalar_lea.smem %s0, 39
  %s79 = sld [smem:[%s78]]
  %s80 = scalar_lea.smem %s0, 40
  %s81 = sld [smem:[%s80]]
  %s82 = scalar_lea.smem %s0, 41
  %s83 = sld [smem:[%s82]]
  %s84 = sld [smem:[#allocation0]]
  $region193: #{_lambda_.1} parent=0
    _
  %s86 = ssub.s32 1, %s84
  %s87 = scalar_select 0, %s86, %s84
  %s88 = sshll.u32 %s1, 4
  %s89 = int_to_ptr.vmem [resolvable:$true] %s88
  %91 = dma.vmem_to_smem %s89, 16, [#allocation3], [#allocation2]
  %92 = dma.done [#allocation2], 16
  %93 = sfence
  loop: start=0, step=1, limit=4
  $region2: #{_lambda_.1} parent=0 // loop_pre_header
    _
  $region3: #{_lambda_.1} parent=0 // loop_header
    %s95 = sphi 0, %s99
    %p96 = scmp.ge.s32.totalorder %s95, 4
    %s105 = sphi 0, %s107
    %s108 = sphi 0, %s105
    %s109 = sphi 0, %s108
    %s125 = sphi 0, %s109
    %s131 = sphi 0, %s133
    %s134 = sphi 0, %s131
    %s135 = sphi 0, %s134
    %s151 = sphi 0, %s135
    %s155 = sphi 0, %s155
    %s157 = sphi 0, %s155
    %s158 = sphi 0, %s157
    %s172 = sphi 0, %s158
    %s176 = sphi 0, %s176
    %s178 = sphi 0, %s176
    %s179 = sphi 0, %s178
    %s193 = sphi 0, %s179
    %s197 = sphi 0, %s197
    %s199 = sphi 0, %s197
    %s200 = sphi 0, %s199
    %s214 = sphi 0, %s200
    %s218 = sphi 0, %s218
    %s220 = sphi 0, %s218
    %s221 = sphi 0, %s220
    %s235 = sphi 0, %s221
    %s239 = sphi 0, %s239
    %s241 = sphi 0, %s239
    %s242 = sphi 0, %s241
    %s256 = sphi 0, %s242
    %s260 = sphi 0, %s260
    %s262 = sphi 0, %s260
    %s263 = sphi 0, %s262
    %s277 = sphi 0, %s263
    %s281 = sphi 0, %s281
    %s283 = sphi 0, %s281
    %s284 = sphi 0, %s283
    %s298 = sphi 0, %s284
    %s302 = sphi 0, %s302
    %s304 = sphi 0, %s302
    %s305 = sphi 0, %s304
    %s319 = sphi 0, %s305
    %s323 = sphi 0, %s323
    %s325 = sphi 0, %s323
    %s326 = sphi 0, %s325
    %s340 = sphi 0, %s326
    %s344 = sphi 0, %s344
    %s346 = sphi 0, %s344
    %s347 = sphi 0, %s346
    %s361 = sphi 0, %s347
    %s365 = sphi 0, %s365
    %s367 = sphi 0, %s365
    %s368 = sphi 0, %s367
    %s382 = sphi 0, %s368
    %s386 = sphi 0, %s386
    %s388 = sphi 0, %s386
    %s389 = sphi 0, %s388
    %s403 = sphi 0, %s389
    %s407 = sphi 0, %s407
    %s409 = sphi 0, %s407
    %s410 = sphi 0, %s409
    %s424 = sphi 0, %s410
    %s428 = sphi 0, %s428
    %s430 = sphi 0, %s428
    %s431 = sphi 0, %s430
    %s445 = sphi 0, %s431
    %s449 = sphi 0, %s449
    %s451 = sphi 0, %s449
    %s452 = sphi 0, %s451
    %s466 = sphi 0, %s452
    %s470 = sphi 0, %s470
    %s472 = sphi 0, %s470
    %s473 = sphi 0, %s472
    %s487 = sphi 0, %s473
    %s491 = sphi 0, %s491
    %s493 = sphi 0, %s491
    %s494 = sphi 0, %s493
    %s508 = sphi 0, %s494
    %s512 = sphi 0, %s512
    %s514 = sphi 0, %s512
    %s515 = sphi 0, %s514
    %s529 = sphi 0, %s515
    %s533 = sphi 0, %s533
    %s535 = sphi 0, %s533
    %s536 = sphi 0, %s535
    %s550 = sphi 0, %s536
    %s554 = sphi 0, %s554
    %s556 = sphi 0, %s554
    %s557 = sphi 0, %s556
    %s571 = sphi 0, %s557
    %s575 = sphi 0, %s575
    %s577 = sphi 0, %s575
    %s578 = sphi 0, %s577
    %s592 = sphi 0, %s578
    %s596 = sphi 0, %s596
    %s598 = sphi 0, %s596
    %s599 = sphi 0, %s598
    %s613 = sphi 0, %s599
    %s617 = sphi 0, %s617
    %s619 = sphi 0, %s617
    %s620 = sphi 0, %s619
    %s634 = sphi 0, %s620
    %s638 = sphi 0, %s638
    %s640 = sphi 0, %s638
    %s641 = sphi 0, %s640
    %s655 = sphi 0, %s641
    %s659 = sphi 0, %s659
    %s661 = sphi 0, %s659
    %s662 = sphi 0, %s661
    %s676 = sphi 0, %s662
    %s680 = sphi 0, %s680
    %s682 = sphi 0, %s680
    %s683 = sphi 0, %s682
    %s697 = sphi 0, %s683
    %s701 = sphi 0, %s701
    %s703 = sphi 0, %s701
    %s704 = sphi 0, %s703
    %s718 = sphi 0, %s704
    %s722 = sphi 0, %s722
    %s724 = sphi 0, %s722
    %s725 = sphi 0, %s724
    %s739 = sphi 0, %s725
    %s743 = sphi 0, %s743
    %s745 = sphi 0, %s743
    %s746 = sphi 0, %s745
    %s760 = sphi 0, %s746
    %s764 = sphi 0, %s764
    %s766 = sphi 0, %s764
    %s767 = sphi 0, %s766
    %s781 = sphi 0, %s767
    %s785 = sphi 0, %s785
    %s787 = sphi 0, %s785
    %s788 = sphi 0, %s787
    %s802 = sphi 0, %s788
    %s806 = sphi 0, %s806
    %s808 = sphi 0, %s806
    %s809 = sphi 0, %s808
    %s823 = sphi 0, %s809
    %s827 = sphi 0, %s827
    %s829 = sphi 0, %s827
    %s830 = sphi 0, %s829
    %s844 = sphi 0, %s830
    %s848 = sphi 0, %s848
    %s850 = sphi 0, %s848
    %s851 = sphi 0, %s850
    %s865 = sphi 0, %s851
    %s869 = sphi 0, %s869
    %s871 = sphi 0, %s869
    %s872 = sphi 0, %s871
    %s886 = sphi 0, %s872
    %s890 = sphi 0, %s890
    %s892 = sphi 0, %s890
    %s893 = sphi 0, %s892
    %s907 = sphi 0, %s893
    %s911 = sphi 0, %s911
    %s913 = sphi 0, %s911
    %s914 = sphi 0, %s913
    %s928 = sphi 0, %s914
    %s932 = sphi 0, %s932
    %s934 = sphi 0, %s932
    %s935 = sphi 0, %s934
    %s949 = sphi 0, %s935
    %s955 = sphi 0, %s957
    %s958 = sphi 0, %s955
    %s959 = sphi 0, %s958
    %s975 = sphi 0, %s959
  $region4: #{_lambda_.1} parent=0 // loop_header_branch
    %98 = sbr.rel (%p96) target = $region8
  $region5: #{_lambda_.1} parent=0 // loop_body
    %s100 = ssub.s32 %s95, 1
    %s101 = ssub.s32 %s95, 2
    %s102 = sadd.s32 %s95, 1
    %s103 = ssub.s32 %s95, %s102
    %p104 = scmp.eq.s32.totalorder %s103, 0
    %s106 = sadd.s32 %s105, 1
    %s107 = scalar_select %p104, %s105, %s106
    %p110 = pneg %p104
    %p111 = scmp.eq.s32.totalorder %s95, 1
    %p112 = por %p110, %p111
    %p113 = scmp.ne.s32.totalorder %s105, %s108
    %p114 = scmp.eq.s32.totalorder %s95, 0
    %p115 = por %p113, %p114
    %p116 = scmp.ne.s32.totalorder %s105, %s108
    %p117 = scmp.eq.s32.totalorder %s100, 1
    %p118 = por %p116, %p117
    %p119 = scmp.ne.s32.totalorder %s108, %s109
    %p120 = scmp.eq.s32.totalorder %s100, 0
    %p121 = por %p119, %p120
    %p122 = scmp.ne.s32.totalorder %s108, %s109
    %p123 = scmp.eq.s32.totalorder %s101, 1
    %p124 = por %p122, %p123
    %p126 = scmp.ne.s32.totalorder %s109, %s125
    %p127 = scmp.eq.s32.totalorder %s101, 0
    %p128 = por %p126, %p127
    %s129 = ssub.s32 %s95, %s102
    %p130 = scmp.eq.s32.totalorder %s129, 0
    %s132 = sadd.s32 %s131, 1
    %s133 = scalar_select %p130, %s131, %s132
    %p136 = pneg %p130
    %p137 = scmp.eq.s32.totalorder %s95, 1
    %p138 = por %p136, %p137
    %p139 = scmp.ne.s32.totalorder %s131, %s134
    %p140 = scmp.eq.s32.totalorder %s95, 0
    %p141 = por %p139, %p140
    %p142 = scmp.ne.s32.totalorder %s131, %s134
    %p143 = scmp.eq.s32.totalorder %s100, 1
    %p144 = por %p142, %p143
    %p145 = scmp.ne.s32.totalorder %s134, %s135
    %p146 = scmp.eq.s32.totalorder %s100, 0
    %p147 = por %p145, %p146
    %p148 = scmp.ne.s32.totalorder %s134, %s135
    %p149 = scmp.eq.s32.totalorder %s101, 1
    %p150 = por %p148, %p149
    %p152 = scmp.ne.s32.totalorder %s135, %s151
    %p153 = scmp.eq.s32.totalorder %s101, 0
    %p154 = por %p152, %p153
    %s156 = sadd.s32 %s155, 1
    %p159 = scmp.eq.s32.totalorder %s95, 1
    %p160 = scmp.ne.s32.totalorder %s155, %s157
    %p161 = scmp.eq.s32.totalorder %s95, 0
    %p162 = por %p160, %p161
    %p163 = scmp.ne.s32.totalorder %s155, %s157
    %p164 = scmp.eq.s32.totalorder %s100, 1
    %p165 = por %p163, %p164
    %p166 = scmp.ne.s32.totalorder %s157, %s158
    %p167 = scmp.eq.s32.totalorder %s100, 0
    %p168 = por %p166, %p167
    %p169 = scmp.ne.s32.totalorder %s157, %s158
    %p170 = scmp.eq.s32.totalorder %s101, 1
    %p171 = por %p169, %p170
    %p173 = scmp.ne.s32.totalorder %s158, %s172
    %p174 = scmp.eq.s32.totalorder %s101, 0
    %p175 = por %p173, %p174
    %s177 = sadd.s32 %s176, 1
    %p180 = scmp.eq.s32.totalorder %s95, 1
    %p181 = scmp.ne.s32.totalorder %s176, %s178
    %p182 = scmp.eq.s32.totalorder %s95, 0
    %p183 = por %p181, %p182
    %p184 = scmp.ne.s32.totalorder %s176, %s178
    %p185 = scmp.eq.s32.totalorder %s100, 1
    %p186 = por %p184, %p185
    %p187 = scmp.ne.s32.totalorder %s178, %s179
    %p188 = scmp.eq.s32.totalorder %s100, 0
    %p189 = por %p187, %p188
    %p190 = scmp.ne.s32.totalorder %s178, %s179
    %p191 = scmp.eq.s32.totalorder %s101, 1
    %p192 = por %p190, %p191
    %p194 = scmp.ne.s32.totalorder %s179, %s193
    %p195 = scmp.eq.s32.totalorder %s101, 0
    %p196 = por %p194, %p195
    %s198 = sadd.s32 %s197, 1
    %p201 = scmp.eq.s32.totalorder %s95, 1
    %p202 = scmp.ne.s32.totalorder %s197, %s199
    %p203 = scmp.eq.s32.totalorder %s95, 0
    %p204 = por %p202, %p203
    %p205 = scmp.ne.s32.totalorder %s197, %s199
    %p206 = scmp.eq.s32.totalorder %s100, 1
    %p207 = por %p205, %p206
    %p208 = scmp.ne.s32.totalorder %s199, %s200
    %p209 = scmp.eq.s32.totalorder %s100, 0
    %p210 = por %p208, %p209
    %p211 = scmp.ne.s32.totalorder %s199, %s200
    %p212 = scmp.eq.s32.totalorder %s101, 1
    %p213 = por %p211, %p212
    %p215 = scmp.ne.s32.totalorder %s200, %s214
    %p216 = scmp.eq.s32.totalorder %s101, 0
    %p217 = por %p215, %p216
    %s219 = sadd.s32 %s218, 1
    %p222 = scmp.eq.s32.totalorder %s95, 1
    %p223 = scmp.ne.s32.totalorder %s218, %s220
    %p224 = scmp.eq.s32.totalorder %s95, 0
    %p225 = por %p223, %p224
    %p226 = scmp.ne.s32.totalorder %s218, %s220
    %p227 = scmp.eq.s32.totalorder %s100, 1
    %p228 = por %p226, %p227
    %p229 = scmp.ne.s32.totalorder %s220, %s221
    %p230 = scmp.eq.s32.totalorder %s100, 0
    %p231 = por %p229, %p230
    %p232 = scmp.ne.s32.totalorder %s220, %s221
    %p233 = scmp.eq.s32.totalorder %s101, 1
    %p234 = por %p232, %p233
    %p236 = scmp.ne.s32.totalorder %s221, %s235
    %p237 = scmp.eq.s32.totalorder %s101, 0
    %p238 = por %p236, %p237
    %s240 = sadd.s32 %s239, 1
    %p243 = scmp.eq.s32.totalorder %s95, 1
    %p244 = scmp.ne.s32.totalorder %s239, %s241
    %p245 = scmp.eq.s32.totalorder %s95, 0
    %p246 = por %p244, %p245
    %p247 = scmp.ne.s32.totalorder %s239, %s241
    %p248 = scmp.eq.s32.totalorder %s100, 1
    %p249 = por %p247, %p248
    %p250 = scmp.ne.s32.totalorder %s241, %s242
    %p251 = scmp.eq.s32.totalorder %s100, 0
    %p252 = por %p250, %p251
    %p253 = scmp.ne.s32.totalorder %s241, %s242
    %p254 = scmp.eq.s32.totalorder %s101, 1
    %p255 = por %p253, %p254
    %p257 = scmp.ne.s32.totalorder %s242, %s256
    %p258 = scmp.eq.s32.totalorder %s101, 0
    %p259 = por %p257, %p258
    %s261 = sadd.s32 %s260, 1
    %p264 = scmp.eq.s32.totalorder %s95, 1
    %p265 = scmp.ne.s32.totalorder %s260, %s262
    %p266 = scmp.eq.s32.totalorder %s95, 0
    %p267 = por %p265, %p266
    %p268 = scmp.ne.s32.totalorder %s260, %s262
    %p269 = scmp.eq.s32.totalorder %s100, 1
    %p270 = por %p268, %p269
    %p271 = scmp.ne.s32.totalorder %s262, %s263
    %p272 = scmp.eq.s32.totalorder %s100, 0
    %p273 = por %p271, %p272
    %p274 = scmp.ne.s32.totalorder %s262, %s263
    %p275 = scmp.eq.s32.totalorder %s101, 1
    %p276 = por %p274, %p275
    %p278 = scmp.ne.s32.totalorder %s263, %s277
    %p279 = scmp.eq.s32.totalorder %s101, 0
    %p280 = por %p278, %p279
    %s282 = sadd.s32 %s281, 1
    %p285 = scmp.eq.s32.totalorder %s95, 1
    %p286 = scmp.ne.s32.totalorder %s281, %s283
    %p287 = scmp.eq.s32.totalorder %s95, 0
    %p288 = por %p286, %p287
    %p289 = scmp.ne.s32.totalorder %s281, %s283
    %p290 = scmp.eq.s32.totalorder %s100, 1
    %p291 = por %p289, %p290
    %p292 = scmp.ne.s32.totalorder %s283, %s284
    %p293 = scmp.eq.s32.totalorder %s100, 0
    %p294 = por %p292, %p293
    %p295 = scmp.ne.s32.totalorder %s283, %s284
    %p296 = scmp.eq.s32.totalorder %s101, 1
    %p297 = por %p295, %p296
    %p299 = scmp.ne.s32.totalorder %s284, %s298
    %p300 = scmp.eq.s32.totalorder %s101, 0
    %p301 = por %p299, %p300
    %s303 = sadd.s32 %s302, 1
    %p306 = scmp.eq.s32.totalorder %s95, 1
    %p307 = scmp.ne.s32.totalorder %s302, %s304
    %p308 = scmp.eq.s32.totalorder %s95, 0
    %p309 = por %p307, %p308
    %p310 = scmp.ne.s32.totalorder %s302, %s304
    %p311 = scmp.eq.s32.totalorder %s100, 1
    %p312 = por %p310, %p311
    %p313 = scmp.ne.s32.totalorder %s304, %s305
    %p314 = scmp.eq.s32.totalorder %s100, 0
    %p315 = por %p313, %p314
    %p316 = scmp.ne.s32.totalorder %s304, %s305
    %p317 = scmp.eq.s32.totalorder %s101, 1
    %p318 = por %p316, %p317
    %p320 = scmp.ne.s32.totalorder %s305, %s319
    %p321 = scmp.eq.s32.totalorder %s101, 0
    %p322 = por %p320, %p321
    %s324 = sadd.s32 %s323, 1
    %p327 = scmp.eq.s32.totalorder %s95, 1
    %p328 = scmp.ne.s32.totalorder %s323, %s325
    %p329 = scmp.eq.s32.totalorder %s95, 0
    %p330 = por %p328, %p329
    %p331 = scmp.ne.s32.totalorder %s323, %s325
    %p332 = scmp.eq.s32.totalorder %s100, 1
    %p333 = por %p331, %p332
    %p334 = scmp.ne.s32.totalorder %s325, %s326
    %p335 = scmp.eq.s32.totalorder %s100, 0
    %p336 = por %p334, %p335
    %p337 = scmp.ne.s32.totalorder %s325, %s326
    %p338 = scmp.eq.s32.totalorder %s101, 1
    %p339 = por %p337, %p338
    %p341 = scmp.ne.s32.totalorder %s326, %s340
    %p342 = scmp.eq.s32.totalorder %s101, 0
    %p343 = por %p341, %p342
    %s345 = sadd.s32 %s344, 1
    %p348 = scmp.eq.s32.totalorder %s95, 1
    %p349 = scmp.ne.s32.totalorder %s344, %s346
    %p350 = scmp.eq.s32.totalorder %s95, 0
    %p351 = por %p349, %p350
    %p352 = scmp.ne.s32.totalorder %s344, %s346
    %p353 = scmp.eq.s32.totalorder %s100, 1
    %p354 = por %p352, %p353
    %p355 = scmp.ne.s32.totalorder %s346, %s347
    %p356 = scmp.eq.s32.totalorder %s100, 0
    %p357 = por %p355, %p356
    %p358 = scmp.ne.s32.totalorder %s346, %s347
    %p359 = scmp.eq.s32.totalorder %s101, 1
    %p360 = por %p358, %p359
    %p362 = scmp.ne.s32.totalorder %s347, %s361
    %p363 = scmp.eq.s32.totalorder %s101, 0
    %p364 = por %p362, %p363
    %s366 = sadd.s32 %s365, 1
    %p369 = scmp.eq.s32.totalorder %s95, 1
    %p370 = scmp.ne.s32.totalorder %s365, %s367
    %p371 = scmp.eq.s32.totalorder %s95, 0
    %p372 = por %p370, %p371
    %p373 = scmp.ne.s32.totalorder %s365, %s367
    %p374 = scmp.eq.s32.totalorder %s100, 1
    %p375 = por %p373, %p374
    %p376 = scmp.ne.s32.totalorder %s367, %s368
    %p377 = scmp.eq.s32.totalorder %s100, 0
    %p378 = por %p376, %p377
    %p379 = scmp.ne.s32.totalorder %s367, %s368
    %p380 = scmp.eq.s32.totalorder %s101, 1
    %p381 = por %p379, %p380
    %p383 = scmp.ne.s32.totalorder %s368, %s382
    %p384 = scmp.eq.s32.totalorder %s101, 0
    %p385 = por %p383, %p384
    %s387 = sadd.s32 %s386, 1
    %p390 = scmp.eq.s32.totalorder %s95, 1
    %p391 = scmp.ne.s32.totalorder %s386, %s388
    %p392 = scmp.eq.s32.totalorder %s95, 0
    %p393 = por %p391, %p392
    %p394 = scmp.ne.s32.totalorder %s386, %s388
    %p395 = scmp.eq.s32.totalorder %s100, 1
    %p396 = por %p394, %p395
    %p397 = scmp.ne.s32.totalorder %s388, %s389
    %p398 = scmp.eq.s32.totalorder %s100, 0
    %p399 = por %p397, %p398
    %p400 = scmp.ne.s32.totalorder %s388, %s389
    %p401 = scmp.eq.s32.totalorder %s101, 1
    %p402 = por %p400, %p401
    %p404 = scmp.ne.s32.totalorder %s389, %s403
    %p405 = scmp.eq.s32.totalorder %s101, 0
    %p406 = por %p404, %p405
    %s408 = sadd.s32 %s407, 1
    %p411 = scmp.eq.s32.totalorder %s95, 1
    %p412 = scmp.ne.s32.totalorder %s407, %s409
    %p413 = scmp.eq.s32.totalorder %s95, 0
    %p414 = por %p412, %p413
    %p415 = scmp.ne.s32.totalorder %s407, %s409
    %p416 = scmp.eq.s32.totalorder %s100, 1
    %p417 = por %p415, %p416
    %p418 = scmp.ne.s32.totalorder %s409, %s410
    %p419 = scmp.eq.s32.totalorder %s100, 0
    %p420 = por %p418, %p419
    %p421 = scmp.ne.s32.totalorder %s409, %s410
    %p422 = scmp.eq.s32.totalorder %s101, 1
    %p423 = por %p421, %p422
    %p425 = scmp.ne.s32.totalorder %s410, %s424
    %p426 = scmp.eq.s32.totalorder %s101, 0
    %p427 = por %p425, %p426
    %s429 = sadd.s32 %s428, 1
    %p432 = scmp.eq.s32.totalorder %s95, 1
    %p433 = scmp.ne.s32.totalorder %s428, %s430
    %p434 = scmp.eq.s32.totalorder %s95, 0
    %p435 = por %p433, %p434
    %p436 = scmp.ne.s32.totalorder %s428, %s430
    %p437 = scmp.eq.s32.totalorder %s100, 1
    %p438 = por %p436, %p437
    %p439 = scmp.ne.s32.totalorder %s430, %s431
    %p440 = scmp.eq.s32.totalorder %s100, 0
    %p441 = por %p439, %p440
    %p442 = scmp.ne.s32.totalorder %s430, %s431
    %p443 = scmp.eq.s32.totalorder %s101, 1
    %p444 = por %p442, %p443
    %p446 = scmp.ne.s32.totalorder %s431, %s445
    %p447 = scmp.eq.s32.totalorder %s101, 0
    %p448 = por %p446, %p447
    %s450 = sadd.s32 %s449, 1
    %p453 = scmp.eq.s32.totalorder %s95, 1
    %p454 = scmp.ne.s32.totalorder %s449, %s451
    %p455 = scmp.eq.s32.totalorder %s95, 0
    %p456 = por %p454, %p455
    %p457 = scmp.ne.s32.totalorder %s449, %s451
    %p458 = scmp.eq.s32.totalorder %s100, 1
    %p459 = por %p457, %p458
    %p460 = scmp.ne.s32.totalorder %s451, %s452
    %p461 = scmp.eq.s32.totalorder %s100, 0
    %p462 = por %p460, %p461
    %p463 = scmp.ne.s32.totalorder %s451, %s452
    %p464 = scmp.eq.s32.totalorder %s101, 1
    %p465 = por %p463, %p464
    %p467 = scmp.ne.s32.totalorder %s452, %s466
    %p468 = scmp.eq.s32.totalorder %s101, 0
    %p469 = por %p467, %p468
    %s471 = sadd.s32 %s470, 1
    %p474 = scmp.eq.s32.totalorder %s95, 1
    %p475 = scmp.ne.s32.totalorder %s470, %s472
    %p476 = scmp.eq.s32.totalorder %s95, 0
    %p477 = por %p475, %p476
    %p478 = scmp.ne.s32.totalorder %s470, %s472
    %p479 = scmp.eq.s32.totalorder %s100, 1
    %p480 = por %p478, %p479
    %p481 = scmp.ne.s32.totalorder %s472, %s473
    %p482 = scmp.eq.s32.totalorder %s100, 0
    %p483 = por %p481, %p482
    %p484 = scmp.ne.s32.totalorder %s472, %s473
    %p485 = scmp.eq.s32.totalorder %s101, 1
    %p486 = por %p484, %p485
    %p488 = scmp.ne.s32.totalorder %s473, %s487
    %p489 = scmp.eq.s32.totalorder %s101, 0
    %p490 = por %p488, %p489
    %s492 = sadd.s32 %s491, 1
    %p495 = scmp.eq.s32.totalorder %s95, 1
    %p496 = scmp.ne.s32.totalorder %s491, %s493
    %p497 = scmp.eq.s32.totalorder %s95, 0
    %p498 = por %p496, %p497
    %p499 = scmp.ne.s32.totalorder %s491, %s493
    %p500 = scmp.eq.s32.totalorder %s100, 1
    %p501 = por %p499, %p500
    %p502 = scmp.ne.s32.totalorder %s493, %s494
    %p503 = scmp.eq.s32.totalorder %s100, 0
    %p504 = por %p502, %p503
    %p505 = scmp.ne.s32.totalorder %s493, %s494
    %p506 = scmp.eq.s32.totalorder %s101, 1
    %p507 = por %p505, %p506
    %p509 = scmp.ne.s32.totalorder %s494, %s508
    %p510 = scmp.eq.s32.totalorder %s101, 0
    %p511 = por %p509, %p510
    %s513 = sadd.s32 %s512, 1
    %p516 = scmp.eq.s32.totalorder %s95, 1
    %p517 = scmp.ne.s32.totalorder %s512, %s514
    %p518 = scmp.eq.s32.totalorder %s95, 0
    %p519 = por %p517, %p518
    %p520 = scmp.ne.s32.totalorder %s512, %s514
    %p521 = scmp.eq.s32.totalorder %s100, 1
    %p522 = por %p520, %p521
    %p523 = scmp.ne.s32.totalorder %s514, %s515
    %p524 = scmp.eq.s32.totalorder %s100, 0
    %p525 = por %p523, %p524
    %p526 = scmp.ne.s32.totalorder %s514, %s515
    %p527 = scmp.eq.s32.totalorder %s101, 1
    %p528 = por %p526, %p527
    %p530 = scmp.ne.s32.totalorder %s515, %s529
    %p531 = scmp.eq.s32.totalorder %s101, 0
    %p532 = por %p530, %p531
    %s534 = sadd.s32 %s533, 1
    %p537 = scmp.eq.s32.totalorder %s95, 1
    %p538 = scmp.ne.s32.totalorder %s533, %s535
    %p539 = scmp.eq.s32.totalorder %s95, 0
    %p540 = por %p538, %p539
    %p541 = scmp.ne.s32.totalorder %s533, %s535
    %p542 = scmp.eq.s32.totalorder %s100, 1
    %p543 = por %p541, %p542
    %p544 = scmp.ne.s32.totalorder %s535, %s536
    %p545 = scmp.eq.s32.totalorder %s100, 0
    %p546 = por %p544, %p545
    %p547 = scmp.ne.s32.totalorder %s535, %s536
    %p548 = scmp.eq.s32.totalorder %s101, 1
    %p549 = por %p547, %p548
    %p551 = scmp.ne.s32.totalorder %s536, %s550
    %p552 = scmp.eq.s32.totalorder %s101, 0
    %p553 = por %p551, %p552
    %s555 = sadd.s32 %s554, 1
    %p558 = scmp.eq.s32.totalorder %s95, 1
    %p559 = scmp.ne.s32.totalorder %s554, %s556
    %p560 = scmp.eq.s32.totalorder %s95, 0
    %p561 = por %p559, %p560
    %p562 = scmp.ne.s32.totalorder %s554, %s556
    %p563 = scmp.eq.s32.totalorder %s100, 1
    %p564 = por %p562, %p563
    %p565 = scmp.ne.s32.totalorder %s556, %s557
    %p566 = scmp.eq.s32.totalorder %s100, 0
    %p567 = por %p565, %p566
    %p568 = scmp.ne.s32.totalorder %s556, %s557
    %p569 = scmp.eq.s32.totalorder %s101, 1
    %p570 = por %p568, %p569
    %p572 = scmp.ne.s32.totalorder %s557, %s571
    %p573 = scmp.eq.s32.totalorder %s101, 0
    %p574 = por %p572, %p573
    %s576 = sadd.s32 %s575, 1
    %p579 = scmp.eq.s32.totalorder %s95, 1
    %p580 = scmp.ne.s32.totalorder %s575, %s577
    %p581 = scmp.eq.s32.totalorder %s95, 0
    %p582 = por %p580, %p581
    %p583 = scmp.ne.s32.totalorder %s575, %s577
    %p584 = scmp.eq.s32.totalorder %s100, 1
    %p585 = por %p583, %p584
    %p586 = scmp.ne.s32.totalorder %s577, %s578
    %p587 = scmp.eq.s32.totalorder %s100, 0
    %p588 = por %p586, %p587
    %p589 = scmp.ne.s32.totalorder %s577, %s578
    %p590 = scmp.eq.s32.totalorder %s101, 1
    %p591 = por %p589, %p590
    %p593 = scmp.ne.s32.totalorder %s578, %s592
    %p594 = scmp.eq.s32.totalorder %s101, 0
    %p595 = por %p593, %p594
    %s597 = sadd.s32 %s596, 1
    %p600 = scmp.eq.s32.totalorder %s95, 1
    %p601 = scmp.ne.s32.totalorder %s596, %s598
    %p602 = scmp.eq.s32.totalorder %s95, 0
    %p603 = por %p601, %p602
    %p604 = scmp.ne.s32.totalorder %s596, %s598
    %p605 = scmp.eq.s32.totalorder %s100, 1
    %p606 = por %p604, %p605
    %p607 = scmp.ne.s32.totalorder %s598, %s599
    %p608 = scmp.eq.s32.totalorder %s100, 0
    %p609 = por %p607, %p608
    %p610 = scmp.ne.s32.totalorder %s598, %s599
    %p611 = scmp.eq.s32.totalorder %s101, 1
    %p612 = por %p610, %p611
    %p614 = scmp.ne.s32.totalorder %s599, %s613
    %p615 = scmp.eq.s32.totalorder %s101, 0
    %p616 = por %p614, %p615
    %s618 = sadd.s32 %s617, 1
    %p621 = scmp.eq.s32.totalorder %s95, 1
    %p622 = scmp.ne.s32.totalorder %s617, %s619
    %p623 = scmp.eq.s32.totalorder %s95, 0
    %p624 = por %p622, %p623
    %p625 = scmp.ne.s32.totalorder %s617, %s619
    %p626 = scmp.eq.s32.totalorder %s100, 1
    %p627 = por %p625, %p626
    %p628 = scmp.ne.s32.totalorder %s619, %s620
    %p629 = scmp.eq.s32.totalorder %s100, 0
    %p630 = por %p628, %p629
    %p631 = scmp.ne.s32.totalorder %s619, %s620
    %p632 = scmp.eq.s32.totalorder %s101, 1
    %p633 = por %p631, %p632
    %p635 = scmp.ne.s32.totalorder %s620, %s634
    %p636 = scmp.eq.s32.totalorder %s101, 0
    %p637 = por %p635, %p636
    %s639 = sadd.s32 %s638, 1
    %p642 = scmp.eq.s32.totalorder %s95, 1
    %p643 = scmp.ne.s32.totalorder %s638, %s640
    %p644 = scmp.eq.s32.totalorder %s95, 0
    %p645 = por %p643, %p644
    %p646 = scmp.ne.s32.totalorder %s638, %s640
    %p647 = scmp.eq.s32.totalorder %s100, 1
    %p648 = por %p646, %p647
    %p649 = scmp.ne.s32.totalorder %s640, %s641
    %p650 = scmp.eq.s32.totalorder %s100, 0
    %p651 = por %p649, %p650
    %p652 = scmp.ne.s32.totalorder %s640, %s641
    %p653 = scmp.eq.s32.totalorder %s101, 1
    %p654 = por %p652, %p653
    %p656 = scmp.ne.s32.totalorder %s641, %s655
    %p657 = scmp.eq.s32.totalorder %s101, 0
    %p658 = por %p656, %p657
    %s660 = sadd.s32 %s659, 1
    %p663 = scmp.eq.s32.totalorder %s95, 1
    %p664 = scmp.ne.s32.totalorder %s659, %s661
    %p665 = scmp.eq.s32.totalorder %s95, 0
    %p666 = por %p664, %p665
    %p667 = scmp.ne.s32.totalorder %s659, %s661
    %p668 = scmp.eq.s32.totalorder %s100, 1
    %p669 = por %p667, %p668
    %p670 = scmp.ne.s32.totalorder %s661, %s662
    %p671 = scmp.eq.s32.totalorder %s100, 0
    %p672 = por %p670, %p671
    %p673 = scmp.ne.s32.totalorder %s661, %s662
    %p674 = scmp.eq.s32.totalorder %s101, 1
    %p675 = por %p673, %p674
    %p677 = scmp.ne.s32.totalorder %s662, %s676
    %p678 = scmp.eq.s32.totalorder %s101, 0
    %p679 = por %p677, %p678
    %s681 = sadd.s32 %s680, 1
    %p684 = scmp.eq.s32.totalorder %s95, 1
    %p685 = scmp.ne.s32.totalorder %s680, %s682
    %p686 = scmp.eq.s32.totalorder %s95, 0
    %p687 = por %p685, %p686
    %p688 = scmp.ne.s32.totalorder %s680, %s682
    %p689 = scmp.eq.s32.totalorder %s100, 1
    %p690 = por %p688, %p689
    %p691 = scmp.ne.s32.totalorder %s682, %s683
    %p692 = scmp.eq.s32.totalorder %s100, 0
    %p693 = por %p691, %p692
    %p694 = scmp.ne.s32.totalorder %s682, %s683
    %p695 = scmp.eq.s32.totalorder %s101, 1
    %p696 = por %p694, %p695
    %p698 = scmp.ne.s32.totalorder %s683, %s697
    %p699 = scmp.eq.s32.totalorder %s101, 0
    %p700 = por %p698, %p699
    %s702 = sadd.s32 %s701, 1
    %p705 = scmp.eq.s32.totalorder %s95, 1
    %p706 = scmp.ne.s32.totalorder %s701, %s703
    %p707 = scmp.eq.s32.totalorder %s95, 0
    %p708 = por %p706, %p707
    %p709 = scmp.ne.s32.totalorder %s701, %s703
    %p710 = scmp.eq.s32.totalorder %s100, 1
    %p711 = por %p709, %p710
    %p712 = scmp.ne.s32.totalorder %s703, %s704
    %p713 = scmp.eq.s32.totalorder %s100, 0
    %p714 = por %p712, %p713
    %p715 = scmp.ne.s32.totalorder %s703, %s704
    %p716 = scmp.eq.s32.totalorder %s101, 1
    %p717 = por %p715, %p716
    %p719 = scmp.ne.s32.totalorder %s704, %s718
    %p720 = scmp.eq.s32.totalorder %s101, 0
    %p721 = por %p719, %p720
    %s723 = sadd.s32 %s722, 1
    %p726 = scmp.eq.s32.totalorder %s95, 1
    %p727 = scmp.ne.s32.totalorder %s722, %s724
    %p728 = scmp.eq.s32.totalorder %s95, 0
    %p729 = por %p727, %p728
    %p730 = scmp.ne.s32.totalorder %s722, %s724
    %p731 = scmp.eq.s32.totalorder %s100, 1
    %p732 = por %p730, %p731
    %p733 = scmp.ne.s32.totalorder %s724, %s725
    %p734 = scmp.eq.s32.totalorder %s100, 0
    %p735 = por %p733, %p734
    %p736 = scmp.ne.s32.totalorder %s724, %s725
    %p737 = scmp.eq.s32.totalorder %s101, 1
    %p738 = por %p736, %p737
    %p740 = scmp.ne.s32.totalorder %s725, %s739
    %p741 = scmp.eq.s32.totalorder %s101, 0
    %p742 = por %p740, %p741
    %s744 = sadd.s32 %s743, 1
    %p747 = scmp.eq.s32.totalorder %s95, 1
    %p748 = scmp.ne.s32.totalorder %s743, %s745
    %p749 = scmp.eq.s32.totalorder %s95, 0
    %p750 = por %p748, %p749
    %p751 = scmp.ne.s32.totalorder %s743, %s745
    %p752 = scmp.eq.s32.totalorder %s100, 1
    %p753 = por %p751, %p752
    %p754 = scmp.ne.s32.totalorder %s745, %s746
    %p755 = scmp.eq.s32.totalorder %s100, 0
    %p756 = por %p754, %p755
    %p757 = scmp.ne.s32.totalorder %s745, %s746
    %p758 = scmp.eq.s32.totalorder %s101, 1
    %p759 = por %p757, %p758
    %p761 = scmp.ne.s32.totalorder %s746, %s760
    %p762 = scmp.eq.s32.totalorder %s101, 0
    %p763 = por %p761, %p762
    %s765 = sadd.s32 %s764, 1
    %p768 = scmp.eq.s32.totalorder %s95, 1
    %p769 = scmp.ne.s32.totalorder %s764, %s766
    %p770 = scmp.eq.s32.totalorder %s95, 0
    %p771 = por %p769, %p770
    %p772 = scmp.ne.s32.totalorder %s764, %s766
    %p773 = scmp.eq.s32.totalorder %s100, 1
    %p774 = por %p772, %p773
    %p775 = scmp.ne.s32.totalorder %s766, %s767
    %p776 = scmp.eq.s32.totalorder %s100, 0
    %p777 = por %p775, %p776
    %p778 = scmp.ne.s32.totalorder %s766, %s767
    %p779 = scmp.eq.s32.totalorder %s101, 1
    %p780 = por %p778, %p779
    %p782 = scmp.ne.s32.totalorder %s767, %s781
    %p783 = scmp.eq.s32.totalorder %s101, 0
    %p784 = por %p782, %p783
    %s786 = sadd.s32 %s785, 1
    %p789 = scmp.eq.s32.totalorder %s95, 1
    %p790 = scmp.ne.s32.totalorder %s785, %s787
    %p791 = scmp.eq.s32.totalorder %s95, 0
    %p792 = por %p790, %p791
    %p793 = scmp.ne.s32.totalorder %s785, %s787
    %p794 = scmp.eq.s32.totalorder %s100, 1
    %p795 = por %p793, %p794
    %p796 = scmp.ne.s32.totalorder %s787, %s788
    %p797 = scmp.eq.s32.totalorder %s100, 0
    %p798 = por %p796, %p797
    %p799 = scmp.ne.s32.totalorder %s787, %s788
    %p800 = scmp.eq.s32.totalorder %s101, 1
    %p801 = por %p799, %p800
    %p803 = scmp.ne.s32.totalorder %s788, %s802
    %p804 = scmp.eq.s32.totalorder %s101, 0
    %p805 = por %p803, %p804
    %s807 = sadd.s32 %s806, 1
    %p810 = scmp.eq.s32.totalorder %s95, 1
    %p811 = scmp.ne.s32.totalorder %s806, %s808
    %p812 = scmp.eq.s32.totalorder %s95, 0
    %p813 = por %p811, %p812
    %p814 = scmp.ne.s32.totalorder %s806, %s808
    %p815 = scmp.eq.s32.totalorder %s100, 1
    %p816 = por %p814, %p815
    %p817 = scmp.ne.s32.totalorder %s808, %s809
    %p818 = scmp.eq.s32.totalorder %s100, 0
    %p819 = por %p817, %p818
    %p820 = scmp.ne.s32.totalorder %s808, %s809
    %p821 = scmp.eq.s32.totalorder %s101, 1
    %p822 = por %p820, %p821
    %p824 = scmp.ne.s32.totalorder %s809, %s823
    %p825 = scmp.eq.s32.totalorder %s101, 0
    %p826 = por %p824, %p825
    %s828 = sadd.s32 %s827, 1
    %p831 = scmp.eq.s32.totalorder %s95, 1
    %p832 = scmp.ne.s32.totalorder %s827, %s829
    %p833 = scmp.eq.s32.totalorder %s95, 0
    %p834 = por %p832, %p833
    %p835 = scmp.ne.s32.totalorder %s827, %s829
    %p836 = scmp.eq.s32.totalorder %s100, 1
    %p837 = por %p835, %p836
    %p838 = scmp.ne.s32.totalorder %s829, %s830
    %p839 = scmp.eq.s32.totalorder %s100, 0
    %p840 = por %p838, %p839
    %p841 = scmp.ne.s32.totalorder %s829, %s830
    %p842 = scmp.eq.s32.totalorder %s101, 1
    %p843 = por %p841, %p842
    %p845 = scmp.ne.s32.totalorder %s830, %s844
    %p846 = scmp.eq.s32.totalorder %s101, 0
    %p847 = por %p845, %p846
    %s849 = sadd.s32 %s848, 1
    %p852 = scmp.eq.s32.totalorder %s95, 1
    %p853 = scmp.ne.s32.totalorder %s848, %s850
    %p854 = scmp.eq.s32.totalorder %s95, 0
    %p855 = por %p853, %p854
    %p856 = scmp.ne.s32.totalorder %s848, %s850
    %p857 = scmp.eq.s32.totalorder %s100, 1
    %p858 = por %p856, %p857
    %p859 = scmp.ne.s32.totalorder %s850, %s851
    %p860 = scmp.eq.s32.totalorder %s100, 0
    %p861 = por %p859, %p860
    %p862 = scmp.ne.s32.totalorder %s850, %s851
    %p863 = scmp.eq.s32.totalorder %s101, 1
    %p864 = por %p862, %p863
    %p866 = scmp.ne.s32.totalorder %s851, %s865
    %p867 = scmp.eq.s32.totalorder %s101, 0
    %p868 = por %p866, %p867
    %s870 = sadd.s32 %s869, 1
    %p873 = scmp.eq.s32.totalorder %s95, 1
    %p874 = scmp.ne.s32.totalorder %s869, %s871
    %p875 = scmp.eq.s32.totalorder %s95, 0
    %p876 = por %p874, %p875
    %p877 = scmp.ne.s32.totalorder %s869, %s871
    %p878 = scmp.eq.s32.totalorder %s100, 1
    %p879 = por %p877, %p878
    %p880 = scmp.ne.s32.totalorder %s871, %s872
    %p881 = scmp.eq.s32.totalorder %s100, 0
    %p882 = por %p880, %p881
    %p883 = scmp.ne.s32.totalorder %s871, %s872
    %p884 = scmp.eq.s32.totalorder %s101, 1
    %p885 = por %p883, %p884
    %p887 = scmp.ne.s32.totalorder %s872, %s886
    %p888 = scmp.eq.s32.totalorder %s101, 0
    %p889 = por %p887, %p888
    %s891 = sadd.s32 %s890, 1
    %p894 = scmp.eq.s32.totalorder %s95, 1
    %p895 = scmp.ne.s32.totalorder %s890, %s892
    %p896 = scmp.eq.s32.totalorder %s95, 0
    %p897 = por %p895, %p896
    %p898 = scmp.ne.s32.totalorder %s890, %s892
    %p899 = scmp.eq.s32.totalorder %s100, 1
    %p900 = por %p898, %p899
    %p901 = scmp.ne.s32.totalorder %s892, %s893
    %p902 = scmp.eq.s32.totalorder %s100, 0
    %p903 = por %p901, %p902
    %p904 = scmp.ne.s32.totalorder %s892, %s893
    %p905 = scmp.eq.s32.totalorder %s101, 1
    %p906 = por %p904, %p905
    %p908 = scmp.ne.s32.totalorder %s893, %s907
    %p909 = scmp.eq.s32.totalorder %s101, 0
    %p910 = por %p908, %p909
    %s912 = sadd.s32 %s911, 1
    %p915 = scmp.eq.s32.totalorder %s95, 1
    %p916 = scmp.ne.s32.totalorder %s911, %s913
    %p917 = scmp.eq.s32.totalorder %s95, 0
    %p918 = por %p916, %p917
    %p919 = scmp.ne.s32.totalorder %s911, %s913
    %p920 = scmp.eq.s32.totalorder %s100, 1
    %p921 = por %p919, %p920
    %p922 = scmp.ne.s32.totalorder %s913, %s914
    %p923 = scmp.eq.s32.totalorder %s100, 0
    %p924 = por %p922, %p923
    %p925 = scmp.ne.s32.totalorder %s913, %s914
    %p926 = scmp.eq.s32.totalorder %s101, 1
    %p927 = por %p925, %p926
    %p929 = scmp.ne.s32.totalorder %s914, %s928
    %p930 = scmp.eq.s32.totalorder %s101, 0
    %p931 = por %p929, %p930
    %s933 = sadd.s32 %s932, 1
    %p936 = scmp.eq.s32.totalorder %s95, 1
    %p937 = scmp.ne.s32.totalorder %s932, %s934
    %p938 = scmp.eq.s32.totalorder %s95, 0
    %p939 = por %p937, %p938
    %p940 = scmp.ne.s32.totalorder %s932, %s934
    %p941 = scmp.eq.s32.totalorder %s100, 1
    %p942 = por %p940, %p941
    %p943 = scmp.ne.s32.totalorder %s934, %s935
    %p944 = scmp.eq.s32.totalorder %s100, 0
    %p945 = por %p943, %p944
    %p946 = scmp.ne.s32.totalorder %s934, %s935
    %p947 = scmp.eq.s32.totalorder %s101, 1
    %p948 = por %p946, %p947
    %p950 = scmp.ne.s32.totalorder %s935, %s949
    %p951 = scmp.eq.s32.totalorder %s101, 0
    %p952 = por %p950, %p951
    %s953 = ssub.s32 %s95, %s102
    %p954 = scmp.eq.s32.totalorder %s953, 0
    %s956 = sadd.s32 %s955, 1
    %s957 = scalar_select %p954, %s955, %s956
    %p960 = pneg %p954
    %p961 = scmp.eq.s32.totalorder %s95, 1
    %p962 = por %p960, %p961
    %p963 = scmp.ne.s32.totalorder %s955, %s958
    %p964 = scmp.eq.s32.totalorder %s95, 0
    %p965 = por %p963, %p964
    %p966 = scmp.ne.s32.totalorder %s955, %s958
    %p967 = scmp.eq.s32.totalorder %s100, 1
    %p968 = por %p966, %p967
    %p969 = scmp.ne.s32.totalorder %s958, %s959
    %p970 = scmp.eq.s32.totalorder %s100, 0
    %p971 = por %p969, %p970
    %p972 = scmp.ne.s32.totalorder %s958, %s959
    %p973 = scmp.eq.s32.totalorder %s101, 1
    %p974 = por %p972, %p973
    %p976 = scmp.ne.s32.totalorder %s959, %s975
    %p977 = scmp.eq.s32.totalorder %s101, 0
    %p978 = por %p976, %p977
    %p979 = scmp.le.s32.totalorder 1, %s95
    %p980 = scmp.lt.s32.totalorder %s95, 3
    %p981 = pnand %p979, %p980
    %p982 = pneg %p981
    // Predicated region
    $region9: #{_lambda_.1} parent=5 // pred_check
      _
    $region10: #{_lambda_.1} parent=5 // pred_check_branch
      %984 = sbr.rel (%p981) target = $region12
    $region11: #{_lambda_.1} parent=5 // pred_region
      %s985 = ssub.s32 %s95, 1
      // Predicated region
      $region13: #{_lambda_.1} parent=11 // pred_check
        %p986 = pneg %p168
      $region14: #{_lambda_.1} parent=11 // pred_check_branch
        %988 = sbr.rel (%p986) target = $region16
      $region15: #{_lambda_.1} parent=11 // pred_region
        _
      $region16: #{_lambda_.1} parent=11 // pred_fallthru
        _
      // Predicated region
      $region17: #{_lambda_.1} parent=11 // pred_check
        %p989 = pneg %p189
      $region18: #{_lambda_.1} parent=11 // pred_check_branch
        %991 = sbr.rel (%p989) target = $region20
      $region19: #{_lambda_.1} parent=11 // pred_region
        _
      $region20: #{_lambda_.1} parent=11 // pred_fallthru
        _
      // Predicated region
      $region21: #{_lambda_.1} parent=11 // pred_check
        %p992 = pneg %p210
      $region22: #{_lambda_.1} parent=11 // pred_check_branch
        %994 = sbr.rel (%p992) target = $region24
      $region23: #{_lambda_.1} parent=11 // pred_region
        _
      $region24: #{_lambda_.1} parent=11 // pred_fallthru
        _
      // Predicated region
      $region25: #{_lambda_.1} parent=11 // pred_check
        %p995 = pneg %p231
      $region26: #{_lambda_.1} parent=11 // pred_check_branch
        %997 = sbr.rel (%p995) target = $region28
      $region27: #{_lambda_.1} parent=11 // pred_region
        _
      $region28: #{_lambda_.1} parent=11 // pred_fallthru
        _
      // Predicated region
      $region29: #{_lambda_.1} parent=11 // pred_check
        %p998 = pneg %p252
      $region30: #{_lambda_.1} parent=11 // pred_check_branch
        %1000 = sbr.rel (%p998) target = $region32
      $region31: #{_lambda_.1} parent=11 // pred_region
        _
      $region32: #{_lambda_.1} parent=11 // pred_fallthru
        _
      // Predicated region
      $region33: #{_lambda_.1} parent=11 // pred_check
        %p1001 = pneg %p273
      $region34: #{_lambda_.1} parent=11 // pred_check_branch
        %1003 = sbr.rel (%p1001) target = $region36
      $region35: #{_lambda_.1} parent=11 // pred_region
        _
      $region36: #{_lambda_.1} parent=11 // pred_fallthru
        _
      // Predicated region
      $region37: #{_lambda_.1} parent=11 // pred_check
        %p1004 = pneg %p294
      $region38: #{_lambda_.1} parent=11 // pred_check_branch
        %1006 = sbr.rel (%p1004) target = $region40
      $region39: #{_lambda_.1} parent=11 // pred_region
        _
      $region40: #{_lambda_.1} parent=11 // pred_fallthru
        _
      // Predicated region
      $region41: #{_lambda_.1} parent=11 // pred_check
        %p1007 = pneg %p315
      $region42: #{_lambda_.1} parent=11 // pred_check_branch
        %1009 = sbr.rel (%p1007) target = $region44
      $region43: #{_lambda_.1} parent=11 // pred_region
        _
      $region44: #{_lambda_.1} parent=11 // pred_fallthru
        _
      // Predicated region
      $region45: #{_lambda_.1} parent=11 // pred_check
        %p1010 = pneg %p336
      $region46: #{_lambda_.1} parent=11 // pred_check_branch
        %1012 = sbr.rel (%p1010) target = $region48
      $region47: #{_lambda_.1} parent=11 // pred_region
        _
      $region48: #{_lambda_.1} parent=11 // pred_fallthru
        _
      // Predicated region
      $region49: #{_lambda_.1} parent=11 // pred_check
        %p1013 = pneg %p357
      $region50: #{_lambda_.1} parent=11 // pred_check_branch
        %1015 = sbr.rel (%p1013) target = $region52
      $region51: #{_lambda_.1} parent=11 // pred_region
        _
      $region52: #{_lambda_.1} parent=11 // pred_fallthru
        _
      // Predicated region
      $region53: #{_lambda_.1} parent=11 // pred_check
        %p1016 = pneg %p378
      $region54: #{_lambda_.1} parent=11 // pred_check_branch
        %1018 = sbr.rel (%p1016) target = $region56
      $region55: #{_lambda_.1} parent=11 // pred_region
        _
      $region56: #{_lambda_.1} parent=11 // pred_fallthru
        _
      // Predicated region
      $region57: #{_lambda_.1} parent=11 // pred_check
        %p1019 = pneg %p399
      $region58: #{_lambda_.1} parent=11 // pred_check_branch
        %1021 = sbr.rel (%p1019) target = $region60
      $region59: #{_lambda_.1} parent=11 // pred_region
        _
      $region60: #{_lambda_.1} parent=11 // pred_fallthru
        _
      // Predicated region
      $region61: #{_lambda_.1} parent=11 // pred_check
        %p1022 = pneg %p420
      $region62: #{_lambda_.1} parent=11 // pred_check_branch
        %1024 = sbr.rel (%p1022) target = $region64
      $region63: #{_lambda_.1} parent=11 // pred_region
        _
      $region64: #{_lambda_.1} parent=11 // pred_fallthru
        _
      // Predicated region
      $region65: #{_lambda_.1} parent=11 // pred_check
        %p1025 = pneg %p441
      $region66: #{_lambda_.1} parent=11 // pred_check_branch
        %1027 = sbr.rel (%p1025) target = $region68
      $region67: #{_lambda_.1} parent=11 // pred_region
        _
      $region68: #{_lambda_.1} parent=11 // pred_fallthru
        _
      // Predicated region
      $region69: #{_lambda_.1} parent=11 // pred_check
        %p1028 = pneg %p462
      $region70: #{_lambda_.1} parent=11 // pred_check_branch
        %1030 = sbr.rel (%p1028) target = $region72
      $region71: #{_lambda_.1} parent=11 // pred_region
        _
      $region72: #{_lambda_.1} parent=11 // pred_fallthru
        _
      // Predicated region
      $region73: #{_lambda_.1} parent=11 // pred_check
        %p1031 = pneg %p483
      $region74: #{_lambda_.1} parent=11 // pred_check_branch
        %1033 = sbr.rel (%p1031) target = $region76
      $region75: #{_lambda_.1} parent=11 // pred_region
        _
      $region76: #{_lambda_.1} parent=11 // pred_fallthru
        _
      // Predicated region
      $region77: #{_lambda_.1} parent=11 // pred_check
        %p1034 = pneg %p504
      $region78: #{_lambda_.1} parent=11 // pred_check_branch
        %1036 = sbr.rel (%p1034) target = $region80
      $region79: #{_lambda_.1} parent=11 // pred_region
        _
      $region80: #{_lambda_.1} parent=11 // pred_fallthru
        _
      // Predicated region
      $region81: #{_lambda_.1} parent=11 // pred_check
        %p1037 = pneg %p525
      $region82: #{_lambda_.1} parent=11 // pred_check_branch
        %1039 = sbr.rel (%p1037) target = $region84
      $region83: #{_lambda_.1} parent=11 // pred_region
        _
      $region84: #{_lambda_.1} parent=11 // pred_fallthru
        _
      // Predicated region
      $region85: #{_lambda_.1} parent=11 // pred_check
        %p1040 = pneg %p546
      $region86: #{_lambda_.1} parent=11 // pred_check_branch
        %1042 = sbr.rel (%p1040) target = $region88
      $region87: #{_lambda_.1} parent=11 // pred_region
        _
      $region88: #{_lambda_.1} parent=11 // pred_fallthru
        _
      // Predicated region
      $region89: #{_lambda_.1} parent=11 // pred_check
        %p1043 = pneg %p567
      $region90: #{_lambda_.1} parent=11 // pred_check_branch
        %1045 = sbr.rel (%p1043) target = $region92
      $region91: #{_lambda_.1} parent=11 // pred_region
        _
      $region92: #{_lambda_.1} parent=11 // pred_fallthru
        _
      // Predicated region
      $region93: #{_lambda_.1} parent=11 // pred_check
        %p1046 = pneg %p588
      $region94: #{_lambda_.1} parent=11 // pred_check_branch
        %1048 = sbr.rel (%p1046) target = $region96
      $region95: #{_lambda_.1} parent=11 // pred_region
        _
      $region96: #{_lambda_.1} parent=11 // pred_fallthru
        _
      // Predicated region
      $region97: #{_lambda_.1} parent=11 // pred_check
        %p1049 = pneg %p609
      $region98: #{_lambda_.1} parent=11 // pred_check_branch
        %1051 = sbr.rel (%p1049) target = $region100
      $region99: #{_lambda_.1} parent=11 // pred_region
        _
      $region100: #{_lambda_.1} parent=11 // pred_fallthru
        _
      // Predicated region
      $region101: #{_lambda_.1} parent=11 // pred_check
        %p1052 = pneg %p630
      $region102: #{_lambda_.1} parent=11 // pred_check_branch
        %1054 = sbr.rel (%p1052) target = $region104
      $region103: #{_lambda_.1} parent=11 // pred_region
        _
      $region104: #{_lambda_.1} parent=11 // pred_fallthru
        _
      // Predicated region
      $region105: #{_lambda_.1} parent=11 // pred_check
        %p1055 = pneg %p651
      $region106: #{_lambda_.1} parent=11 // pred_check_branch
        %1057 = sbr.rel (%p1055) target = $region108
      $region107: #{_lambda_.1} parent=11 // pred_region
        _
      $region108: #{_lambda_.1} parent=11 // pred_fallthru
        _
      // Predicated region
      $region109: #{_lambda_.1} parent=11 // pred_check
        %p1058 = pneg %p672
      $region110: #{_lambda_.1} parent=11 // pred_check_branch
        %1060 = sbr.rel (%p1058) target = $region112
      $region111: #{_lambda_.1} parent=11 // pred_region
        _
      $region112: #{_lambda_.1} parent=11 // pred_fallthru
        _
      // Predicated region
      $region113: #{_lambda_.1} parent=11 // pred_check
        %p1061 = pneg %p693
      $region114: #{_lambda_.1} parent=11 // pred_check_branch
        %1063 = sbr.rel (%p1061) target = $region116
      $region115: #{_lambda_.1} parent=11 // pred_region
        _
      $region116: #{_lambda_.1} parent=11 // pred_fallthru
        _
      // Predicated region
      $region117: #{_lambda_.1} parent=11 // pred_check
        %p1064 = pneg %p714
      $region118: #{_lambda_.1} parent=11 // pred_check_branch
        %1066 = sbr.rel (%p1064) target = $region120
      $region119: #{_lambda_.1} parent=11 // pred_region
        _
      $region120: #{_lambda_.1} parent=11 // pred_fallthru
        _
      // Predicated region
      $region121: #{_lambda_.1} parent=11 // pred_check
        %p1067 = pneg %p735
      $region122: #{_lambda_.1} parent=11 // pred_check_branch
        %1069 = sbr.rel (%p1067) target = $region124
      $region123: #{_lambda_.1} parent=11 // pred_region
        _
      $region124: #{_lambda_.1} parent=11 // pred_fallthru
        _
      // Predicated region
      $region125: #{_lambda_.1} parent=11 // pred_check
        %p1070 = pneg %p756
      $region126: #{_lambda_.1} parent=11 // pred_check_branch
        %1072 = sbr.rel (%p1070) target = $region128
      $region127: #{_lambda_.1} parent=11 // pred_region
        _
      $region128: #{_lambda_.1} parent=11 // pred_fallthru
        _
      // Predicated region
      $region129: #{_lambda_.1} parent=11 // pred_check
        %p1073 = pneg %p777
      $region130: #{_lambda_.1} parent=11 // pred_check_branch
        %1075 = sbr.rel (%p1073) target = $region132
      $region131: #{_lambda_.1} parent=11 // pred_region
        _
      $region132: #{_lambda_.1} parent=11 // pred_fallthru
        _
      // Predicated region
      $region133: #{_lambda_.1} parent=11 // pred_check
        %p1076 = pneg %p798
      $region134: #{_lambda_.1} parent=11 // pred_check_branch
        %1078 = sbr.rel (%p1076) target = $region136
      $region135: #{_lambda_.1} parent=11 // pred_region
        _
      $region136: #{_lambda_.1} parent=11 // pred_fallthru
        _
      // Predicated region
      $region137: #{_lambda_.1} parent=11 // pred_check
        %p1079 = pneg %p819
      $region138: #{_lambda_.1} parent=11 // pred_check_branch
        %1081 = sbr.rel (%p1079) target = $region140
      $region139: #{_lambda_.1} parent=11 // pred_region
        _
      $region140: #{_lambda_.1} parent=11 // pred_fallthru
        _
      // Predicated region
      $region141: #{_lambda_.1} parent=11 // pred_check
        %p1082 = pneg %p840
      $region142: #{_lambda_.1} parent=11 // pred_check_branch
        %1084 = sbr.rel (%p1082) target = $region144
      $region143: #{_lambda_.1} parent=11 // pred_region
        _
      $region144: #{_lambda_.1} parent=11 // pred_fallthru
        _
      // Predicated region
      $region145: #{_lambda_.1} parent=11 // pred_check
        %p1085 = pneg %p861
      $region146: #{_lambda_.1} parent=11 // pred_check_branch
        %1087 = sbr.rel (%p1085) target = $region148
      $region147: #{_lambda_.1} parent=11 // pred_region
        _
      $region148: #{_lambda_.1} parent=11 // pred_fallthru
        _
      // Predicated region
      $region149: #{_lambda_.1} parent=11 // pred_check
        %p1088 = pneg %p882
      $region150: #{_lambda_.1} parent=11 // pred_check_branch
        %1090 = sbr.rel (%p1088) target = $region152
      $region151: #{_lambda_.1} parent=11 // pred_region
        _
      $region152: #{_lambda_.1} parent=11 // pred_fallthru
        _
      // Predicated region
      $region153: #{_lambda_.1} parent=11 // pred_check
        %p1091 = pneg %p903
      $region154: #{_lambda_.1} parent=11 // pred_check_branch
        %1093 = sbr.rel (%p1091) target = $region156
      $region155: #{_lambda_.1} parent=11 // pred_region
        _
      $region156: #{_lambda_.1} parent=11 // pred_fallthru
        _
      // Predicated region
      $region157: #{_lambda_.1} parent=11 // pred_check
        %p1094 = pneg %p924
      $region158: #{_lambda_.1} parent=11 // pred_check_branch
        %1096 = sbr.rel (%p1094) target = $region160
      $region159: #{_lambda_.1} parent=11 // pred_region
        _
      $region160: #{_lambda_.1} parent=11 // pred_fallthru
        _
      // Predicated region
      $region161: #{_lambda_.1} parent=11 // pred_check
        %p1097 = pneg %p945
      $region162: #{_lambda_.1} parent=11 // pred_check_branch
        %1099 = sbr.rel (%p1097) target = $region164
      $region163: #{_lambda_.1} parent=11 // pred_region
        _
      $region164: #{_lambda_.1} parent=11 // pred_fallthru
        _
    $region12: #{_lambda_.1} parent=5 // pred_fallthru
      _
    %p1100 = scmp.lt.s32.totalorder %s95, 2
    // Predicated region
    $region165: #{_lambda_.1} parent=5 // pred_check
      %p1101 = pneg %p1100
    $region166: #{_lambda_.1} parent=5 // pred_check_branch
      %1103 = sbr.rel (%p1101) target = $region168
    $region167: #{_lambda_.1} parent=5 // pred_region
      // Predicated region
      $region169: #{_lambda_.1} parent=167 // pred_check
        %p1104 = pneg %p115
      $region170: #{_lambda_.1} parent=167 // pred_check_branch
        %1106 = sbr.rel (%p1104) target = $region172
      $region171: #{_lambda_.1} parent=167 // pred_region
        %p1107 = scmp.lt.s32.totalorder %s95, 1
        %s1108 = scalar_select %p1107, %s95, 1
        %s1109 = smul.addr %s1108, 8
        %s1110 = scalar_lea.vmem %s3, %s1109
      $region172: #{_lambda_.1} parent=167 // pred_fallthru
        _
      // Predicated region
      $region173: #{_lambda_.1} parent=167 // pred_check
        %p1111 = pneg %p141
      $region174: #{_lambda_.1} parent=167 // pred_check_branch
        %1113 = sbr.rel (%p1111) target = $region176
      $region175: #{_lambda_.1} parent=167 // pred_region
        %p1114 = scmp.lt.s32.totalorder %s95, 1
        %s1115 = scalar_select %p1114, %s95, 1
        %s1116 = smul.addr %s1115, 8
        %s1117 = scalar_lea.vmem %s5, %s1116
      $region176: #{_lambda_.1} parent=167 // pred_fallthru
        _
    $region168: #{_lambda_.1} parent=5 // pred_fallthru
      _
    %p1118 = scmp.le.s32.totalorder 1, %s95
    %p1119 = scmp.lt.s32.totalorder %s95, 3
    %p1120 = pnand %p1118, %p1119
    %p1121 = pneg %p1120
    // Predicated region
    $region177: #{_lambda_.1} parent=5 // pred_check
      _
    $region178: #{_lambda_.1} parent=5 // pred_check_branch
      %1123 = sbr.rel (%p1120) target = $region180
    $region179: #{_lambda_.1} parent=5 // pred_region
      %s1124 = ssub.s32 %s95, 1
      %p1125 = scmp.lt.s32.totalorder %s100, 1
      %s1126 = scalar_select %p1125, %s100, 1
      %s1127 = smul.addr %s1126, 8
      %s1128 = scalar_lea.vmem %s3, %s1127
      %p1129 = pneg %p121
      %p1130 = pneg %p118
      %p1131 = scmp.lt.s32.totalorder %s100, 1
      %s1132 = scalar_select %p1131, %s100, 1
      %s1133 = smul.addr %s1132, 8
      %s1134 = scalar_lea.vmem %s5, %s1133
      %p1135 = pneg %p147
      %p1136 = pneg %p144
      %p1137 = pneg %p168
      %p1138 = pneg %p165
      %p1139 = pneg %p189
      %p1140 = pneg %p186
      %p1141 = pneg %p210
      %p1142 = pneg %p207
      %p1143 = pneg %p231
      %p1144 = pneg %p228
      %p1145 = pneg %p252
      %p1146 = pneg %p249
      %p1147 = pneg %p273
      %p1148 = pneg %p270
      %p1149 = pneg %p294
      %p1150 = pneg %p291
      %p1151 = pneg %p315
      %p1152 = pneg %p312
      %p1153 = pneg %p336
      %p1154 = pneg %p333
      %p1155 = pneg %p357
      %p1156 = pneg %p354
      %p1157 = pneg %p378
      %p1158 = pneg %p375
      %p1159 = pneg %p399
      %p1160 = pneg %p396
      %p1161 = pneg %p420
      %p1162 = pneg %p417
      %p1163 = pneg %p441
      %p1164 = pneg %p438
      %p1165 = pneg %p462
      %p1166 = pneg %p459
      %p1167 = pneg %p483
      %p1168 = pneg %p480
      %p1169 = pneg %p504
      %p1170 = pneg %p501
      %p1171 = pneg %p525
      %p1172 = pneg %p522
      %p1173 = pneg %p546
      %p1174 = pneg %p543
      %p1175 = pneg %p567
      %p1176 = pneg %p564
      %p1177 = pneg %p588
      %p1178 = pneg %p585
      %p1179 = pneg %p609
      %p1180 = pneg %p606
      %p1181 = pneg %p630
      %p1182 = pneg %p627
      %p1183 = pneg %p651
      %p1184 = pneg %p648
      %p1185 = pneg %p672
      %p1186 = pneg %p669
      %p1187 = pneg %p693
      %p1188 = pneg %p690
      %p1189 = pneg %p714
      %p1190 = pneg %p711
      %p1191 = pneg %p735
      %p1192 = pneg %p732
      %p1193 = pneg %p756
      %p1194 = pneg %p753
      %p1195 = pneg %p777
      %p1196 = pneg %p774
      %p1197 = pneg %p798
      %p1198 = pneg %p795
      %p1199 = pneg %p819
      %p1200 = pneg %p816
      %p1201 = pneg %p840
      %p1202 = pneg %p837
      %p1203 = pneg %p861
      %p1204 = pneg %p858
      %p1205 = pneg %p882
      %p1206 = pneg %p879
      %p1207 = pneg %p903
      %p1208 = pneg %p900
      %p1209 = pneg %p924
      %p1210 = pneg %p921
      %p1211 = pneg %p945
      %p1212 = pneg %p942
      %p1213 = pneg %p971
      %p1214 = pneg %p968
      %p1215 = scmp.lt.s32.totalorder %s100, 1
      %s1216 = scalar_select %p1215, %s100, 1
      %s1217 = smul.addr %s1216, 8
      %s1218 = scalar_lea.vmem %s83, %s1217
      %p1219 = scmp.lt.s32.totalorder %s100, 1
      %s1220 = scalar_select %p1219, %s100, 1
      %s1221 = smul.addr %s1220, 8
      %s1222 = scalar_lea.vmem %s3, %s1221
      %p1223 = scmp.lt.s32.totalorder %s100, 1
      %s1224 = scalar_select %p1223, %s100, 1
      %s1225 = smul.addr %s1224, 8
      %s1226 = scalar_lea.vmem %s5, %s1225
      %p1227 = scmp.lt.s32.totalorder %s100, 1
      %s1228 = scalar_select %p1227, %s100, 1
      %s1229 = smul.addr %s1228, 8
      %s1230 = scalar_lea.vmem %s83, %s1229
      %v1232 = vld [vmem:[%s1222] sm:$0xff]
      %v1233 = vld [vmem:[%s1226] sm:$0xff]
      %v1234 = vlaneseq
      %v1235 = vand.u32 %v1234, 127
      %s1236 = sld [smem:[#allocation3 + %s100]]
      %s1237 = sadd.s32 %s1236, 1
      %v1238 = vstv %s1237
      %vm1239 = vcmp.ge.s32.totalorder %v1235, %v1238
      %v1240 = vsel %vm1239, -1e+09, 0.0
      %v1241 = vlaneseq
      %v1242 = vshrl.u32 %v1241, 7
      %vm1243 = vcmp.gt.s32.totalorder %v1235, %v1242
      %v1244 = vsel %vm1243, -1e+09, 0.0
      %v1245 = vld [vmem:[%s7] sm:$0x1]
      %v1246 = vld [vmem:[%s9] sm:$0x1]
      %vm1247 = vcmask 261120
      %v1248 = vsel %vm1247, %v1232, 0.0
      %1249 = vadd.xlane.f32.xlu0 %v1248
      %v1250 = vpop.xlane.xlu0 %1249
      %v1251 = vrcp.pop 32.0
      %v1252 = vmul.f32 %v1250, %v1251
      %v1253 = vsub.f32 %v1232, %v1252
      %v1254 = vmul.f32 %v1253, %v1253
      %v1255 = vsel %vm1247, %v1254, 0.0
      %1256 = vadd.xlane.f32.xlu0 %v1255
      %v1257 = vpop.xlane.xlu0 %1256
      %v1258 = vmul.f32 %v1257, %v1251
      %v1259 = vadd.f32 %v1258, 1e-05
      %v1260 = vrsqrt.pop %v1259
      %v1261 = vmul.f32 %v1253, %v1260
      %v1263 = vlaneseq
      %v1264 = vshrl.u32 %v1263, 7
      %v1265 = vsub.s32 0, %v1264
      %v1266 = vrot.slane %v1245, %v1265
      %v1268 = vmul.f32 %v1261, %v1266
      %v1270 = vlaneseq
      %v1271 = vshrl.u32 %v1270, 7
      %v1272 = vsub.s32 0, %v1271
      %v1273 = vrot.slane %v1246, %v1272
      %v1275 = vadd.f32 %v1268, %v1273
      %v1276 = vld [vmem:[%s11] sm:$0xf]
      %v1277 = vld [vmem:[%s11 + $0x4] sm:$0xf]
      %v1278 = vld [vmem:[%s11 + $0x8] sm:$0xf]
      %v1279 = vld [vmem:[%s11 + $0xc] sm:$0xf]
      %v1280 = vld [vmem:[%s13] sm:$0x1]
      %v1281 = vld [vmem:[%s15] sm:$0xf]
      %v1282 = vld [vmem:[%s15 + $0x4] sm:$0xf]
      %v1283 = vld [vmem:[%s15 + $0x8] sm:$0xf]
      %v1284 = vld [vmem:[%s15 + $0xc] sm:$0xf]
      %v1285 = vld [vmem:[%s17] sm:$0x1]
      %v1286 = vpack.c.bf16 %v1275, %v1275
      %v1288 = vlaneseq
      %v1289 = vshrl.u32 %v1288, 7
      %v1290 = vsub.s32 0, %v1289
      %v1291 = vrot.slane %v1280, %v1290
      %v1297 = vunpack.c.l.b16 %v1276
      %v1298 = vunpack.c.l.b16 %v1277
      %v1299 = vunpack.c.l.b16 %v1278
      %v1300 = vunpack.c.l.b16 %v1279
      %v1301 = vpack.c.b16 %v1298, %v1297
      %v1302 = vpack.c.b16 %v1300, %v1299
      %v1306 = vsel %vm1247, %v1286, 0
      %1308 = vmatprep.subr.bf16.mxu0 0
      %1309 = vmatpush1.bf16.msra.mxu0 %v1301
      %1310 = vmatprep.subr.bf16.mxu0 0
      %1311 = vmatpush1.bf16.msra.mxu0 %v1302
      %1312 = vmatprep.subr.bf16.mxu0 0
      %1313 = vmatpush1.bf16.msra.mxu0 0
      %1314 = vmatprep.subr.bf16.mxu0 0
      %1315 = vmatpush1.bf16.msra.mxu0 0
      %1316 = vmatprep.subr.bf16.mxu0 0
      %1317 = vmatpush1.bf16.msra.mxu0 0
      %1318 = vmatprep.subr.bf16.mxu0 0
      %1319 = vmatpush1.bf16.msra.mxu0 0
      %1320 = vmatprep.subr.bf16.mxu0 0
      %1321 = vmatpush1.bf16.msra.mxu0 0
      %1322 = vmatprep.subr.bf16.mxu0 0
      %1323 = vmatpush1.bf16.msra.mxu0 0
      %1324 = vmatprep.subr.bf16.mxu0 0
      %1325 = vmatpush1.bf16.msra.mxu0 0
      %1326 = vmatprep.subr.bf16.mxu0 0
      %1327 = vmatpush1.bf16.msra.mxu0 0
      %1328 = vmatprep.subr.bf16.mxu0 0
      %1329 = vmatpush1.bf16.msra.mxu0 0
      %1330 = vmatprep.subr.bf16.mxu0 0
      %1331 = vmatpush1.bf16.msra.mxu0 0
      %1332 = vmatprep.subr.bf16.mxu0 0
      %1333 = vmatpush1.bf16.msra.mxu0 0
      %1334 = vmatprep.subr.bf16.mxu0 0
      %1335 = vmatpush1.bf16.msra.mxu0 0
      %1336 = vmatprep.subr.bf16.mxu0 0
      %1337 = vmatpush1.bf16.msra.mxu0 0
      %1338 = vmatprep.subr.bf16.mxu0 0
      %1339 = vmatpush1.bf16.msra.mxu0 0
      %1340 = vmatprep.mubr.bf16.mxu0 0
      %1341 = vmatmul.mubr.bf16.gmra.mrb[0].mxu0 %v1306
      %v1342 = vpop.f32.mrb[0].mxu0
      %v1343 = vadd.f32 %v1291, %v1342
      %v1344 = vpop.f32.mrb[0].mxu0
      %v1345 = vpop.f32.mrb[0].mxu0
      %v1346 = vpop.f32.mrb[0].mxu0
      %1347 = vdwg.mxu0
      %v1348 = vpack.c.bf16 %v1343, %v1343
      %1350 = vrot.lane.b32.xlu0 %v1348, 96
      %v1351 = vpop.permute.xlu0 %1350
      %vm1352 = vcmask 64512
      %v1354 = vsel %vm1352, %v1348, 0
      %v1357 = vsel %vm1352, %v1351, 0
      %1359 = vmatprep.subr.bf16.mxu0 0
      %1360 = vmatpush1.bf16.xpose.msra.mxu0 %v1357
      %1361 = vmatprep.subr.bf16.mxu0 0
      %1362 = vmatpush1.bf16.xpose.msra.mxu0 0
      %1363 = vmatprep.subr.bf16.mxu0 0
      %1364 = vmatpush1.bf16.xpose.msra.mxu0 0
      %1365 = vmatprep.subr.bf16.mxu0 0
      %1366 = vmatpush1.bf16.xpose.msra.mxu0 0
      %1367 = vmatprep.subr.bf16.mxu0 0
      %1368 = vmatpush1.bf16.xpose.msra.mxu0 0
      %1369 = vmatprep.subr.bf16.mxu0 0
      %1370 = vmatpush1.bf16.xpose.msra.mxu0 0
      %1371 = vmatprep.subr.bf16.mxu0 0
      %1372 = vmatpush1.bf16.xpose.msra.mxu0 0
      %1373 = vmatprep.subr.bf16.mxu0 0
      %1374 = vmatpush1.bf16.xpose.msra.mxu0 0
      %1375 = vmatprep.subr.bf16.mxu0 0
      %1376 = vmatpush1.bf16.xpose.msra.mxu0 0
      %1377 = vmatprep.subr.bf16.mxu0 0
      %1378 = vmatpush1.bf16.xpose.msra.mxu0 0
      %1379 = vmatprep.subr.bf16.mxu0 0
      %1380 = vmatpush1.bf16.xpose.msra.mxu0 0
      %1381 = vmatprep.subr.bf16.mxu0 0
      %1382 = vmatpush1.bf16.xpose.msra.mxu0 0
      %1383 = vmatprep.subr.bf16.mxu0 0
      %1384 = vmatpush1.bf16.xpose.msra.mxu0 0
      %1385 = vmatprep.subr.bf16.mxu0 0
      %1386 = vmatpush1.bf16.xpose.msra.mxu0 0
      %1387 = vmatprep.subr.bf16.mxu0 0
      %1388 = vmatpush1.bf16.xpose.msra.mxu0 0
      %1389 = vmatprep.subr.bf16.mxu0 0
      %1390 = vmatpush1.bf16.xpose.msra.mxu0 0
      %1391 = vmatprep.mubr.bf16.mxu0 0
      %1392 = vmatmul.mubr.bf16.gmra.mrb[0].mxu0 %v1354
      %v1393 = vpop.f32.mrb[0].mxu0
      %v1394 = vadd.f32 %v1240, %v1393
      %v1395 = vpop.f32.mrb[0].mxu0
      %v1396 = vpop.f32.mrb[0].mxu0
      %v1397 = vpop.f32.mrb[0].mxu0
      %1398 = vdwg.mxu0
      %v1399 = vsel %vm1352, %v1394, -inf
      %1400 = vmax.xlane.f32.xlu0 %v1399
      %v1401 = vpop.xlane.xlu0 %1400
      %v1402 = vsub.f32 %v1394, %v1401
      %v1403 = vmul.f32 %v1402, 1.442695
      %v1404 = vpow.pop %v1403
      %v1405 = vsel %vm1352, %v1404, 0.0
      %1406 = vadd.xlane.f32.xlu0 %v1405
      %v1407 = vpop.xlane.xlu0 %1406
      %v1408 = vrcp.pop %v1407
      %v1409 = vmul.f32 %v1404, %v1408
      %v1410 = vpack.c.bf16 %v1409, %v1409
      %1411 = vrot.lane.b32.xlu0 %v1348, 64
      %v1412 = vpop.permute.xlu0 %1411
      %v1414 = vsel %vm1352, %v1410, 0
      %vm1416 = vcmask 1043456
      %v1418 = vsel %vm1416, %v1412, 0
      %1420 = vmatprep.subr.bf16.mxu0 0
      %1421 = vmatpush1.bf16.msra.mxu0 %v1418
      %1422 = vmatprep.subr.bf16.mxu0 0
      %1423 = vmatpush1.bf16.msra.mxu0 0
      %1424 = vmatprep.subr.bf16.mxu0 0
      %1425 = vmatpush1.bf16.msra.mxu0 0
      %1426 = vmatprep.subr.bf16.mxu0 0
      %1427 = vmatpush1.bf16.msra.mxu0 0
      %1428 = vmatprep.subr.bf16.mxu0 0
      %1429 = vmatpush1.bf16.msra.mxu0 0
      %1430 = vmatprep.subr.bf16.mxu0 0
      %1431 = vmatpush1.bf16.msra.mxu0 0
      %1432 = vmatprep.subr.bf16.mxu0 0
      %1433 = vmatpush1.bf16.msra.mxu0 0
      %1434 = vmatprep.subr.bf16.mxu0 0
      %1435 = vmatpush1.bf16.msra.mxu0 0
      %1436 = vmatprep.subr.bf16.mxu0 0
      %1437 = vmatpush1.bf16.msra.mxu0 0
      %1438 = vmatprep.subr.bf16.mxu0 0
      %1439 = vmatpush1.bf16.msra.mxu0 0
      %1440 = vmatprep.subr.bf16.mxu0 0
      %1441 = vmatpush1.bf16.msra.mxu0 0
      %1442 = vmatprep.subr.bf16.mxu0 0
      %1443 = vmatpush1.bf16.msra.mxu0 0
      %1444 = vmatprep.subr.bf16.mxu0 0
      %1445 = vmatpush1.bf16.msra.mxu0 0
      %1446 = vmatprep.subr.bf16.mxu0 0
      %1447 = vmatpush1.bf16.msra.mxu0 0
      %1448 = vmatprep.subr.bf16.mxu0 0
      %1449 = vmatpush1.bf16.msra.mxu0 0
      %1450 = vmatprep.subr.bf16.mxu0 0
      %1451 = vmatpush1.bf16.msra.mxu0 0
      %1452 = vmatprep.mubr.bf16.mxu0 0
      %1453 = vmatmul.mubr.bf16.gmra.mrb[0].mxu0 %v1414
      %v1454 = vpop.f32.mrb[0].mxu0
      %v1455 = vadd.f32 0.0, %v1454
      %v1456 = vpop.f32.mrb[0].mxu0
      %v1457 = vpop.f32.mrb[0].mxu0
      %v1458 = vpop.f32.mrb[0].mxu0
      %1459 = vdwg.mxu0
      %v1460 = vpack.c.bf16 %v1455, %v1455
      %1461 = vrot.lane.b32.xlu0 %v1348, 120
      %v1462 = vpop.permute.xlu0 %1461
      %1463 = vrot.lane.b32.xlu0 %v1348, 88
      %v1464 = vpop.permute.xlu0 %1463
      %v1466 = vsel %vm1352, %v1462, 0
      %v1469 = vsel %vm1352, %v1464, 0
      %1471 = vmatprep.subr.bf16.mxu0 0
      %1472 = vmatpush1.bf16.xpose.msra.mxu0 %v1469
      %1473 = vmatprep.subr.bf16.mxu0 0
      %1474 = vmatpush1.bf16.xpose.msra.mxu0 0
      %1475 = vmatprep.subr.bf16.mxu0 0
      %1476 = vmatpush1.bf16.xpose.msra.mxu0 0
      %1477 = vmatprep.subr.bf16.mxu0 0
      %1478 = vmatpush1.bf16.xpose.msra.mxu0 0
      %1479 = vmatprep.subr.bf16.mxu0 0
      %1480 = vmatpush1.bf16.xpose.msra.mxu0 0
      %1481 = vmatprep.subr.bf16.mxu0 0
      %1482 = vmatpush1.bf16.xpose.msra.mxu0 0
      %1483 = vmatprep.subr.bf16.mxu0 0
      %1484 = vmatpush1.bf16.xpose.msra.mxu0 0
      %1485 = vmatprep.subr.bf16.mxu0 0
      %1486 = vmatpush1.bf16.xpose.msra.mxu0 0
      %1487 = vmatprep.subr.bf16.mxu0 0
      %1488 = vmatpush1.bf16.xpose.msra.mxu0 0
      %1489 = vmatprep.subr.bf16.mxu0 0
      %1490 = vmatpush1.bf16.xpose.msra.mxu0 0
      %1491 = vmatprep.subr.bf16.mxu0 0
      %1492 = vmatpush1.bf16.xpose.msra.mxu0 0
      %1493 = vmatprep.subr.bf16.mxu0 0
      %1494 = vmatpush1.bf16.xpose.msra.mxu0 0
      %1495 = vmatprep.subr.bf16.mxu0 0
      %1496 = vmatpush1.bf16.xpose.msra.mxu0 0
      %1497 = vmatprep.subr.bf16.mxu0 0
      %1498 = vmatpush1.bf16.xpose.msra.mxu0 0
      %1499 = vmatprep.subr.bf16.mxu0 0
      %1500 = vmatpush1.bf16.xpose.msra.mxu0 0
      %1501 = vmatprep.subr.bf16.mxu0 0
      %1502 = vmatpush1.bf16.xpose.msra.mxu0 0
      %1503 = vmatprep.mubr.bf16.mxu0 0
      %1504 = vmatmul.mubr.bf16.gmra.mrb[0].mxu0 %v1466
      %v1505 = vpop.f32.mrb[0].mxu0
      %v1506 = vadd.f32 %v1240, %v1505
      %v1507 = vpop.f32.mrb[0].mxu0
      %v1508 = vpop.f32.mrb[0].mxu0
      %v1509 = vpop.f32.mrb[0].mxu0
      %1510 = vdwg.mxu0
      %v1511 = vsel %vm1352, %v1506, -inf
      %1512 = vmax.xlane.f32.xlu0 %v1511
      %v1513 = vpop.xlane.xlu0 %1512
      %v1514 = vsub.f32 %v1506, %v1513
      %v1515 = vmul.f32 %v1514, 1.442695
      %v1516 = vpow.pop %v1515
      %v1517 = vsel %vm1352, %v1516, 0.0
      %1518 = vadd.xlane.f32.xlu0 %v1517
      %v1519 = vpop.xlane.xlu0 %1518
      %v1520 = vrcp.pop %v1519
      %v1521 = vmul.f32 %v1516, %v1520
      %v1522 = vpack.c.bf16 %v1521, %v1521
      %1523 = vrot.lane.b32.xlu0 %v1348, 56
      %v1524 = vpop.permute.xlu0 %1523
      %v1526 = vsel %vm1352, %v1522, 0
      %v1529 = vsel %vm1416, %v1524, 0
      %1531 = vmatprep.subr.bf16.mxu0 0
      %1532 = vmatpush1.bf16.msra.mxu0 %v1529
      %1533 = vmatprep.subr.bf16.mxu0 0
      %1534 = vmatpush1.bf16.msra.mxu0 0
      %1535 = vmatprep.subr.bf16.mxu0 0
      %1536 = vmatpush1.bf16.msra.mxu0 0
      %1537 = vmatprep.subr.bf16.mxu0 0
      %1538 = vmatpush1.bf16.msra.mxu0 0
      %1539 = vmatprep.subr.bf16.mxu0 0
      %1540 = vmatpush1.bf16.msra.mxu0 0
      %1541 = vmatprep.subr.bf16.mxu0 0
      %1542 = vmatpush1.bf16.msra.mxu0 0
      %1543 = vmatprep.subr.bf16.mxu0 0
      %1544 = vmatpush1.bf16.msra.mxu0 0
      %1545 = vmatprep.subr.bf16.mxu0 0
      %1546 = vmatpush1.bf16.msra.mxu0 0
      %1547 = vmatprep.subr.bf16.mxu0 0
      %1548 = vmatpush1.bf16.msra.mxu0 0
      %1549 = vmatprep.subr.bf16.mxu0 0
      %1550 = vmatpush1.bf16.msra.mxu0 0
      %1551 = vmatprep.subr.bf16.mxu0 0
      %1552 = vmatpush1.bf16.msra.mxu0 0
      %1553 = vmatprep.subr.bf16.mxu0 0
      %1554 = vmatpush1.bf16.msra.mxu0 0
      %1555 = vmatprep.subr.bf16.mxu0 0
      %1556 = vmatpush1.bf16.msra.mxu0 0
      %1557 = vmatprep.subr.bf16.mxu0 0
      %1558 = vmatpush1.bf16.msra.mxu0 0
      %1559 = vmatprep.subr.bf16.mxu0 0
      %1560 = vmatpush1.bf16.msra.mxu0 0
      %1561 = vmatprep.subr.bf16.mxu0 0
      %1562 = vmatpush1.bf16.msra.mxu0 0
      %1563 = vmatprep.mubr.bf16.mxu0 0
      %1564 = vmatmul.mubr.bf16.gmra.mrb[0].mxu0 %v1526
      %v1565 = vpop.f32.mrb[0].mxu0
      %v1566 = vadd.f32 0.0, %v1565
      %v1567 = vpop.f32.mrb[0].mxu0
      %v1568 = vpop.f32.mrb[0].mxu0
      %v1569 = vpop.f32.mrb[0].mxu0
      %1570 = vdwg.mxu0
      %v1571 = vpack.c.bf16 %v1566, %v1566
      %v1573 = vsel %vm1352, %v1571, 0
      %v1576 = vsel %vm1416, %v1282, 0
      %1578 = vmatprep.subr.bf16.mxu0 0
      %1579 = vmatpush1.bf16.msra.mxu0 %v1576
      %1580 = vmatprep.subr.bf16.mxu0 0
      %1581 = vmatpush1.bf16.msra.mxu0 0
      %1582 = vmatprep.subr.bf16.mxu0 0
      %1583 = vmatpush1.bf16.msra.mxu0 0
      %1584 = vmatprep.subr.bf16.mxu0 0
      %1585 = vmatpush1.bf16.msra.mxu0 0
      %1586 = vmatprep.subr.bf16.mxu0 0
      %1587 = vmatpush1.bf16.msra.mxu0 0
      %1588 = vmatprep.subr.bf16.mxu0 0
      %1589 = vmatpush1.bf16.msra.mxu0 0
      %1590 = vmatprep.subr.bf16.mxu0 0
      %1591 = vmatpush1.bf16.msra.mxu0 0
      %1592 = vmatprep.subr.bf16.mxu0 0
      %1593 = vmatpush1.bf16.msra.mxu0 0
      %1594 = vmatprep.subr.bf16.mxu0 0
      %1595 = vmatpush1.bf16.msra.mxu0 0
      %1596 = vmatprep.subr.bf16.mxu0 0
      %1597 = vmatpush1.bf16.msra.mxu0 0
      %1598 = vmatprep.subr.bf16.mxu0 0
      %1599 = vmatpush1.bf16.msra.mxu0 0
      %1600 = vmatprep.subr.bf16.mxu0 0
      %1601 = vmatpush1.bf16.msra.mxu0 0
      %1602 = vmatprep.subr.bf16.mxu0 0
      %1603 = vmatpush1.bf16.msra.mxu0 0
      %1604 = vmatprep.subr.bf16.mxu0 0
      %1605 = vmatpush1.bf16.msra.mxu0 0
      %1606 = vmatprep.subr.bf16.mxu0 0
      %1607 = vmatpush1.bf16.msra.mxu0 0
      %1608 = vmatprep.subr.bf16.mxu0 0
      %1609 = vmatpush1.bf16.msra.mxu0 0
      %1610 = vmatprep.mubr.bf16.mxu0 0
      %1611 = vmatmul.mubr.bf16.gmra.mrb[0].mxu0 %v1573
      %v1612 = vpop.f32.mrb[0].mxu0
      %v1613 = vadd.f32 0.0, %v1612
      %v1614 = vpop.f32.mrb[0].mxu0
      %v1615 = vpop.f32.mrb[0].mxu0
      %v1616 = vpop.f32.mrb[0].mxu0
      %1617 = vdwg.mxu0
      %v1619 = vsel %vm1352, %v1460, 0
      %v1622 = vsel %vm1416, %v1281, 0
      %1624 = vmatprep.subr.bf16.mxu0 0
      %1625 = vmatpush1.bf16.msra.mxu0 %v1622
      %1626 = vmatprep.subr.bf16.mxu0 0
      %1627 = vmatpush1.bf16.msra.mxu0 0
      %1628 = vmatprep.subr.bf16.mxu0 0
      %1629 = vmatpush1.bf16.msra.mxu0 0
      %1630 = vmatprep.subr.bf16.mxu0 0
      %1631 = vmatpush1.bf16.msra.mxu0 0
      %1632 = vmatprep.subr.bf16.mxu0 0
      %1633 = vmatpush1.bf16.msra.mxu0 0
      %1634 = vmatprep.subr.bf16.mxu0 0
      %1635 = vmatpush1.bf16.msra.mxu0 0
      %1636 = vmatprep.subr.bf16.mxu0 0
      %1637 = vmatpush1.bf16.msra.mxu0 0
      %1638 = vmatprep.subr.bf16.mxu0 0
      %1639 = vmatpush1.bf16.msra.mxu0 0
      %1640 = vmatprep.subr.bf16.mxu0 0
      %1641 = vmatpush1.bf16.msra.mxu0 0
      %1642 = vmatprep.subr.bf16.mxu0 0
      %1643 = vmatpush1.bf16.msra.mxu0 0
      %1644 = vmatprep.subr.bf16.mxu0 0
      %1645 = vmatpush1.bf16.msra.mxu0 0
      %1646 = vmatprep.subr.bf16.mxu0 0
      %1647 = vmatpush1.bf16.msra.mxu0 0
      %1648 = vmatprep.subr.bf16.mxu0 0
      %1649 = vmatpush1.bf16.msra.mxu0 0
      %1650 = vmatprep.subr.bf16.mxu0 0
      %1651 = vmatpush1.bf16.msra.mxu0 0
      %1652 = vmatprep.subr.bf16.mxu0 0
      %1653 = vmatpush1.bf16.msra.mxu0 0
      %1654 = vmatprep.subr.bf16.mxu0 0
      %1655 = vmatpush1.bf16.msra.mxu0 0
      %1656 = vmatprep.mubr.bf16.mxu0 0
      %1657 = vmatmul.mubr.bf16.gmra.mrb[0].mxu0 %v1619
      %v1658 = vpop.f32.mrb[0].mxu0
      %v1659 = vadd.f32 %v1613, %v1658
      %v1660 = vpop.f32.mrb[0].mxu0
      %v1661 = vpop.f32.mrb[0].mxu0
      %v1662 = vpop.f32.mrb[0].mxu0
      %1663 = vdwg.mxu0
      %1664 = vrot.lane.b32.xlu0 %v1348, 112
      %v1665 = vpop.permute.xlu0 %1664
      %1666 = vrot.lane.b32.xlu0 %v1348, 80
      %v1667 = vpop.permute.xlu0 %1666
      %v1669 = vsel %vm1352, %v1665, 0
      %v1672 = vsel %vm1352, %v1667, 0
      %1674 = vmatprep.subr.bf16.mxu0 0
      %1675 = vmatpush1.bf16.xpose.msra.mxu0 %v1672
      %1676 = vmatprep.subr.bf16.mxu0 0
      %1677 = vmatpush1.bf16.xpose.msra.mxu0 0
      %1678 = vmatprep.subr.bf16.mxu0 0
      %1679 = vmatpush1.bf16.xpose.msra.mxu0 0
      %1680 = vmatprep.subr.bf16.mxu0 0
      %1681 = vmatpush1.bf16.xpose.msra.mxu0 0
      %1682 = vmatprep.subr.bf16.mxu0 0
      %1683 = vmatpush1.bf16.xpose.msra.mxu0 0
      %1684 = vmatprep.subr.bf16.mxu0 0
      %1685 = vmatpush1.bf16.xpose.msra.mxu0 0
      %1686 = vmatprep.subr.bf16.mxu0 0
      %1687 = vmatpush1.bf16.xpose.msra.mxu0 0
      %1688 = vmatprep.subr.bf16.mxu0 0
      %1689 = vmatpush1.bf16.xpose.msra.mxu0 0
      %1690 = vmatprep.subr.bf16.mxu0 0
      %1691 = vmatpush1.bf16.xpose.msra.mxu0 0
      %1692 = vmatprep.subr.bf16.mxu0 0
      %1693 = vmatpush1.bf16.xpose.msra.mxu0 0
      %1694 = vmatprep.subr.bf16.mxu0 0
      %1695 = vmatpush1.bf16.xpose.msra.mxu0 0
      %1696 = vmatprep.subr.bf16.mxu0 0
      %1697 = vmatpush1.bf16.xpose.msra.mxu0 0
      %1698 = vmatprep.subr.bf16.mxu0 0
      %1699 = vmatpush1.bf16.xpose.msra.mxu0 0
      %1700 = vmatprep.subr.bf16.mxu0 0
      %1701 = vmatpush1.bf16.xpose.msra.mxu0 0
      %1702 = vmatprep.subr.bf16.mxu0 0
      %1703 = vmatpush1.bf16.xpose.msra.mxu0 0
      %1704 = vmatprep.subr.bf16.mxu0 0
      %1705 = vmatpush1.bf16.xpose.msra.mxu0 0
      %1706 = vmatprep.mubr.bf16.mxu0 0
      %1707 = vmatmul.mubr.bf16.gmra.mrb[0].mxu0 %v1669
      %v1708 = vpop.f32.mrb[0].mxu0
      %v1709 = vadd.f32 %v1240, %v1708
      %v1710 = vpop.f32.mrb[0].mxu0
      %v1711 = vpop.f32.mrb[0].mxu0
      %v1712 = vpop.f32.mrb[0].mxu0
      %1713 = vdwg.mxu0
      %v1714 = vsel %vm1352, %v1709, -inf
      %1715 = vmax.xlane.f32.xlu0 %v1714
      %v1716 = vpop.xlane.xlu0 %1715
      %v1717 = vsub.f32 %v1709, %v1716
      %v1718 = vmul.f32 %v1717, 1.442695
      %v1719 = vpow.pop %v1718
      %v1720 = vsel %vm1352, %v1719, 0.0
      %1721 = vadd.xlane.f32.xlu0 %v1720
      %v1722 = vpop.xlane.xlu0 %1721
      %v1723 = vrcp.pop %v1722
      %v1724 = vmul.f32 %v1719, %v1723
      %v1725 = vpack.c.bf16 %v1724, %v1724
      %1726 = vrot.lane.b32.xlu0 %v1348, 48
      %v1727 = vpop.permute.xlu0 %1726
      %v1729 = vsel %vm1352, %v1725, 0
      %v1732 = vsel %vm1416, %v1727, 0
      %1734 = vmatprep.subr.bf16.mxu0 0
      %1735 = vmatpush1.bf16.msra.mxu0 %v1732
      %1736 = vmatprep.subr.bf16.mxu0 0
      %1737 = vmatpush1.bf16.msra.mxu0 0
      %1738 = vmatprep.subr.bf16.mxu0 0
      %1739 = vmatpush1.bf16.msra.mxu0 0
      %1740 = vmatprep.subr.bf16.mxu0 0
      %1741 = vmatpush1.bf16.msra.mxu0 0
      %1742 = vmatprep.subr.bf16.mxu0 0
      %1743 = vmatpush1.bf16.msra.mxu0 0
      %1744 = vmatprep.subr.bf16.mxu0 0
      %1745 = vmatpush1.bf16.msra.mxu0 0
      %1746 = vmatprep.subr.bf16.mxu0 0
      %1747 = vmatpush1.bf16.msra.mxu0 0
      %1748 = vmatprep.subr.bf16.mxu0 0
      %1749 = vmatpush1.bf16.msra.mxu0 0
      %1750 = vmatprep.subr.bf16.mxu0 0
      %1751 = vmatpush1.bf16.msra.mxu0 0
      %1752 = vmatprep.subr.bf16.mxu0 0
      %1753 = vmatpush1.bf16.msra.mxu0 0
      %1754 = vmatprep.subr.bf16.mxu0 0
      %1755 = vmatpush1.bf16.msra.mxu0 0
      %1756 = vmatprep.subr.bf16.mxu0 0
      %1757 = vmatpush1.bf16.msra.mxu0 0
      %1758 = vmatprep.subr.bf16.mxu0 0
      %1759 = vmatpush1.bf16.msra.mxu0 0
      %1760 = vmatprep.subr.bf16.mxu0 0
      %1761 = vmatpush1.bf16.msra.mxu0 0
      %1762 = vmatprep.subr.bf16.mxu0 0
      %1763 = vmatpush1.bf16.msra.mxu0 0
      %1764 = vmatprep.subr.bf16.mxu0 0
      %1765 = vmatpush1.bf16.msra.mxu0 0
      %1766 = vmatprep.mubr.bf16.mxu0 0
      %1767 = vmatmul.mubr.bf16.gmra.mrb[0].mxu0 %v1729
      %v1768 = vpop.f32.mrb[0].mxu0
      %v1769 = vadd.f32 0.0, %v1768
      %v1770 = vpop.f32.mrb[0].mxu0
      %v1771 = vpop.f32.mrb[0].mxu0
      %v1772 = vpop.f32.mrb[0].mxu0
      %1773 = vdwg.mxu0
      %v1774 = vpack.c.bf16 %v1769, %v1769
      %v1776 = vsel %vm1352, %v1774, 0
      %v1779 = vsel %vm1416, %v1283, 0
      %1781 = vmatprep.subr.bf16.mxu0 0
      %1782 = vmatpush1.bf16.msra.mxu0 %v1779
      %1783 = vmatprep.subr.bf16.mxu0 0
      %1784 = vmatpush1.bf16.msra.mxu0 0
      %1785 = vmatprep.subr.bf16.mxu0 0
      %1786 = vmatpush1.bf16.msra.mxu0 0
      %1787 = vmatprep.subr.bf16.mxu0 0
      %1788 = vmatpush1.bf16.msra.mxu0 0
      %1789 = vmatprep.subr.bf16.mxu0 0
      %1790 = vmatpush1.bf16.msra.mxu0 0
      %1791 = vmatprep.subr.bf16.mxu0 0
      %1792 = vmatpush1.bf16.msra.mxu0 0
      %1793 = vmatprep.subr.bf16.mxu0 0
      %1794 = vmatpush1.bf16.msra.mxu0 0
      %1795 = vmatprep.subr.bf16.mxu0 0
      %1796 = vmatpush1.bf16.msra.mxu0 0
      %1797 = vmatprep.subr.bf16.mxu0 0
      %1798 = vmatpush1.bf16.msra.mxu0 0
      %1799 = vmatprep.subr.bf16.mxu0 0
      %1800 = vmatpush1.bf16.msra.mxu0 0
      %1801 = vmatprep.subr.bf16.mxu0 0
      %1802 = vmatpush1.bf16.msra.mxu0 0
      %1803 = vmatprep.subr.bf16.mxu0 0
      %1804 = vmatpush1.bf16.msra.mxu0 0
      %1805 = vmatprep.subr.bf16.mxu0 0
      %1806 = vmatpush1.bf16.msra.mxu0 0
      %1807 = vmatprep.subr.bf16.mxu0 0
      %1808 = vmatpush1.bf16.msra.mxu0 0
      %1809 = vmatprep.subr.bf16.mxu0 0
      %1810 = vmatpush1.bf16.msra.mxu0 0
      %1811 = vmatprep.subr.bf16.mxu0 0
      %1812 = vmatpush1.bf16.msra.mxu0 0
      %1813 = vmatprep.mubr.bf16.mxu0 0
      %1814 = vmatmul.mubr.bf16.gmra.mrb[0].mxu0 %v1776
      %v1815 = vpop.f32.mrb[0].mxu0
      %v1816 = vadd.f32 0.0, %v1815
      %v1817 = vpop.f32.mrb[0].mxu0
      %v1818 = vpop.f32.mrb[0].mxu0
      %v1819 = vpop.f32.mrb[0].mxu0
      %1820 = vdwg.mxu0
      %v1821 = vadd.f32 %v1659, %v1816
      %1822 = vrot.lane.b32.xlu0 %v1348, 104
      %v1823 = vpop.permute.xlu0 %1822
      %1824 = vrot.lane.b32.xlu0 %v1348, 72
      %v1825 = vpop.permute.xlu0 %1824
      %v1827 = vsel %vm1352, %v1823, 0
      %v1830 = vsel %vm1352, %v1825, 0
      %1832 = vmatprep.subr.bf16.mxu0 0
      %1833 = vmatpush1.bf16.xpose.msra.mxu0 %v1830
      %1834 = vmatprep.subr.bf16.mxu0 0
      %1835 = vmatpush1.bf16.xpose.msra.mxu0 0
      %1836 = vmatprep.subr.bf16.mxu0 0
      %1837 = vmatpush1.bf16.xpose.msra.mxu0 0
      %1838 = vmatprep.subr.bf16.mxu0 0
      %1839 = vmatpush1.bf16.xpose.msra.mxu0 0
      %1840 = vmatprep.subr.bf16.mxu0 0
      %1841 = vmatpush1.bf16.xpose.msra.mxu0 0
      %1842 = vmatprep.subr.bf16.mxu0 0
      %1843 = vmatpush1.bf16.xpose.msra.mxu0 0
      %1844 = vmatprep.subr.bf16.mxu0 0
      %1845 = vmatpush1.bf16.xpose.msra.mxu0 0
      %1846 = vmatprep.subr.bf16.mxu0 0
      %1847 = vmatpush1.bf16.xpose.msra.mxu0 0
      %1848 = vmatprep.subr.bf16.mxu0 0
      %1849 = vmatpush1.bf16.xpose.msra.mxu0 0
      %1850 = vmatprep.subr.bf16.mxu0 0
      %1851 = vmatpush1.bf16.xpose.msra.mxu0 0
      %1852 = vmatprep.subr.bf16.mxu0 0
      %1853 = vmatpush1.bf16.xpose.msra.mxu0 0
      %1854 = vmatprep.subr.bf16.mxu0 0
      %1855 = vmatpush1.bf16.xpose.msra.mxu0 0
      %1856 = vmatprep.subr.bf16.mxu0 0
      %1857 = vmatpush1.bf16.xpose.msra.mxu0 0
      %1858 = vmatprep.subr.bf16.mxu0 0
      %1859 = vmatpush1.bf16.xpose.msra.mxu0 0
      %1860 = vmatprep.subr.bf16.mxu0 0
      %1861 = vmatpush1.bf16.xpose.msra.mxu0 0
      %1862 = vmatprep.subr.bf16.mxu0 0
      %1863 = vmatpush1.bf16.xpose.msra.mxu0 0
      %1864 = vmatprep.mubr.bf16.mxu0 0
      %1865 = vmatmul.mubr.bf16.gmra.mrb[0].mxu0 %v1827
      %v1866 = vpop.f32.mrb[0].mxu0
      %v1867 = vadd.f32 %v1240, %v1866
      %v1868 = vpop.f32.mrb[0].mxu0
      %v1869 = vpop.f32.mrb[0].mxu0
      %v1870 = vpop.f32.mrb[0].mxu0
      %1871 = vdwg.mxu0
      %v1872 = vsel %vm1352, %v1867, -inf
      %1873 = vmax.xlane.f32.xlu0 %v1872
      %v1874 = vpop.xlane.xlu0 %1873
      %v1875 = vsub.f32 %v1867, %v1874
      %v1876 = vmul.f32 %v1875, 1.442695
      %v1877 = vpow.pop %v1876
      %v1878 = vsel %vm1352, %v1877, 0.0
      %1879 = vadd.xlane.f32.xlu0 %v1878
      %v1880 = vpop.xlane.xlu0 %1879
      %v1881 = vrcp.pop %v1880
      %v1882 = vmul.f32 %v1877, %v1881
      %v1883 = vpack.c.bf16 %v1882, %v1882
      %1884 = vrot.lane.b32.xlu0 %v1348, 40
      %v1885 = vpop.permute.xlu0 %1884
      %v1887 = vsel %vm1352, %v1883, 0
      %v1890 = vsel %vm1416, %v1885, 0
      %1892 = vmatprep.subr.bf16.mxu0 0
      %1893 = vmatpush1.bf16.msra.mxu0 %v1890
      %1894 = vmatprep.subr.bf16.mxu0 0
      %1895 = vmatpush1.bf16.msra.mxu0 0
      %1896 = vmatprep.subr.bf16.mxu0 0
      %1897 = vmatpush1.bf16.msra.mxu0 0
      %1898 = vmatprep.subr.bf16.mxu0 0
      %1899 = vmatpush1.bf16.msra.mxu0 0
      %1900 = vmatprep.subr.bf16.mxu0 0
      %1901 = vmatpush1.bf16.msra.mxu0 0
      %1902 = vmatprep.subr.bf16.mxu0 0
      %1903 = vmatpush1.bf16.msra.mxu0 0
      %1904 = vmatprep.subr.bf16.mxu0 0
      %1905 = vmatpush1.bf16.msra.mxu0 0
      %1906 = vmatprep.subr.bf16.mxu0 0
      %1907 = vmatpush1.bf16.msra.mxu0 0
      %1908 = vmatprep.subr.bf16.mxu0 0
      %1909 = vmatpush1.bf16.msra.mxu0 0
      %1910 = vmatprep.subr.bf16.mxu0 0
      %1911 = vmatpush1.bf16.msra.mxu0 0
      %1912 = vmatprep.subr.bf16.mxu0 0
      %1913 = vmatpush1.bf16.msra.mxu0 0
      %1914 = vmatprep.subr.bf16.mxu0 0
      %1915 = vmatpush1.bf16.msra.mxu0 0
      %1916 = vmatprep.subr.bf16.mxu0 0
      %1917 = vmatpush1.bf16.msra.mxu0 0
      %1918 = vmatprep.subr.bf16.mxu0 0
      %1919 = vmatpush1.bf16.msra.mxu0 0
      %1920 = vmatprep.subr.bf16.mxu0 0
      %1921 = vmatpush1.bf16.msra.mxu0 0
      %1922 = vmatprep.subr.bf16.mxu0 0
      %1923 = vmatpush1.bf16.msra.mxu0 0
      %1924 = vmatprep.mubr.bf16.mxu0 0
      %1925 = vmatmul.mubr.bf16.gmra.mrb[0].mxu0 %v1887
      %v1926 = vpop.f32.mrb[0].mxu0
      %v1927 = vadd.f32 0.0, %v1926
      %v1928 = vpop.f32.mrb[0].mxu0
      %v1929 = vpop.f32.mrb[0].mxu0
      %v1930 = vpop.f32.mrb[0].mxu0
      %1931 = vdwg.mxu0
      %v1932 = vpack.c.bf16 %v1927, %v1927
      %v1934 = vsel %vm1352, %v1932, 0
      %v1937 = vsel %vm1416, %v1284, 0
      %1939 = vmatprep.subr.bf16.mxu0 0
      %1940 = vmatpush1.bf16.msra.mxu0 %v1937
      %1941 = vmatprep.subr.bf16.mxu0 0
      %1942 = vmatpush1.bf16.msra.mxu0 0
      %1943 = vmatprep.subr.bf16.mxu0 0
      %1944 = vmatpush1.bf16.msra.mxu0 0
      %1945 = vmatprep.subr.bf16.mxu0 0
      %1946 = vmatpush1.bf16.msra.mxu0 0
      %1947 = vmatprep.subr.bf16.mxu0 0
      %1948 = vmatpush1.bf16.msra.mxu0 0
      %1949 = vmatprep.subr.bf16.mxu0 0
      %1950 = vmatpush1.bf16.msra.mxu0 0
      %1951 = vmatprep.subr.bf16.mxu0 0
      %1952 = vmatpush1.bf16.msra.mxu0 0
      %1953 = vmatprep.subr.bf16.mxu0 0
      %1954 = vmatpush1.bf16.msra.mxu0 0
      %1955 = vmatprep.subr.bf16.mxu0 0
      %1956 = vmatpush1.bf16.msra.mxu0 0
      %1957 = vmatprep.subr.bf16.mxu0 0
      %1958 = vmatpush1.bf16.msra.mxu0 0
      %1959 = vmatprep.subr.bf16.mxu0 0
      %1960 = vmatpush1.bf16.msra.mxu0 0
      %1961 = vmatprep.subr.bf16.mxu0 0
      %1962 = vmatpush1.bf16.msra.mxu0 0
      %1963 = vmatprep.subr.bf16.mxu0 0
      %1964 = vmatpush1.bf16.msra.mxu0 0
      %1965 = vmatprep.subr.bf16.mxu0 0
      %1966 = vmatpush1.bf16.msra.mxu0 0
      %1967 = vmatprep.subr.bf16.mxu0 0
      %1968 = vmatpush1.bf16.msra.mxu0 0
      %1969 = vmatprep.subr.bf16.mxu0 0
      %1970 = vmatpush1.bf16.msra.mxu0 0
      %1971 = vmatprep.mubr.bf16.mxu0 0
      %1972 = vmatmul.mubr.bf16.gmra.mrb[0].mxu0 %v1934
      %v1973 = vpop.f32.mrb[0].mxu0
      %v1974 = vadd.f32 0.0, %v1973
      %v1975 = vpop.f32.mrb[0].mxu0
      %v1976 = vpop.f32.mrb[0].mxu0
      %v1977 = vpop.f32.mrb[0].mxu0
      %1978 = vdwg.mxu0
      %v1979 = vadd.f32 %v1821, %v1974
      %v1981 = vlaneseq
      %v1982 = vshrl.u32 %v1981, 7
      %v1983 = vsub.s32 0, %v1982
      %v1984 = vrot.slane %v1285, %v1983
      %v1986 = vadd.f32 %v1979, %v1984
      %v1987 = vadd.f32 %v1232, %v1986
      %v1988 = vld [vmem:[%s19] sm:$0x1]
      %v1989 = vld [vmem:[%s21] sm:$0x1]
      %v1990 = vsel %vm1247, %v1987, 0.0
      %1991 = vadd.xlane.f32.xlu0 %v1990
      %v1992 = vpop.xlane.xlu0 %1991
      %v1993 = vmul.f32 %v1992, %v1251
      %v1994 = vsub.f32 %v1987, %v1993
      %v1995 = vmul.f32 %v1994, %v1994
      %v1996 = vsel %vm1247, %v1995, 0.0
      %1997 = vadd.xlane.f32.xlu0 %v1996
      %v1998 = vpop.xlane.xlu0 %1997
      %v1999 = vmul.f32 %v1998, %v1251
      %v2000 = vadd.f32 %v1999, 1e-05
      %v2001 = vrsqrt.pop %v2000
      %v2002 = vmul.f32 %v1994, %v2001
      %v2004 = vlaneseq
      %v2005 = vshrl.u32 %v2004, 7
      %v2006 = vsub.s32 0, %v2005
      %v2007 = vrot.slane %v1988, %v2006
      %v2009 = vmul.f32 %v2002, %v2007
      %v2011 = vlaneseq
      %v2012 = vshrl.u32 %v2011, 7
      %v2013 = vsub.s32 0, %v2012
      %v2014 = vrot.slane %v1989, %v2013
      %v2016 = vadd.f32 %v2009, %v2014
      %v2017 = vld [vmem:[%s23] sm:$0xf]
      %v2018 = vld [vmem:[%s23 + $0x4] sm:$0xf]
      %v2019 = vld [vmem:[%s23 + $0x8] sm:$0xf]
      %v2020 = vld [vmem:[%s23 + $0xc] sm:$0xf]
      %v2021 = vld [vmem:[%s25] sm:$0x1]
      %v2022 = vld [vmem:[%s27] sm:$0xf]
      %v2023 = vld [vmem:[%s27 + $0x4] sm:$0xf]
      %v2024 = vld [vmem:[%s27 + $0x8] sm:$0xf]
      %v2025 = vld [vmem:[%s27 + $0xc] sm:$0xf]
      %v2026 = vld [vmem:[%s27 + $0x10] sm:$0xf]
      %v2027 = vld [vmem:[%s27 + $0x14] sm:$0xf]
      %v2028 = vld [vmem:[%s27 + $0x18] sm:$0xf]
      %v2029 = vld [vmem:[%s27 + $0x1c] sm:$0xf]
      %v2030 = vld [vmem:[%s27 + $0x20] sm:$0xf]
      %v2031 = vld [vmem:[%s27 + $0x24] sm:$0xf]
      %v2032 = vld [vmem:[%s27 + $0x28] sm:$0xf]
      %v2033 = vld [vmem:[%s27 + $0x2c] sm:$0xf]
      %v2034 = vld [vmem:[%s27 + $0x30] sm:$0xf]
      %v2035 = vld [vmem:[%s27 + $0x34] sm:$0xf]
      %v2036 = vld [vmem:[%s27 + $0x38] sm:$0xf]
      %v2037 = vld [vmem:[%s27 + $0x3c] sm:$0xf]
      %v2038 = vld [vmem:[%s29] sm:$0x1]
      %v2039 = vpack.c.bf16 %v2016, %v2016
      %v2041 = vlaneseq
      %v2042 = vshrl.u32 %v2041, 7
      %v2043 = vsub.s32 0, %v2042
      %v2044 = vrot.slane %v2021, %v2043
      %v2050 = vunpack.c.l.b16 %v2017
      %v2051 = vunpack.c.l.b16 %v2018
      %v2052 = vunpack.c.l.b16 %v2019
      %v2053 = vunpack.c.l.b16 %v2020
      %v2054 = vpack.c.b16 %v2051, %v2050
      %v2055 = vpack.c.b16 %v2053, %v2052
      %v2059 = vsel %vm1247, %v2039, 0
      %2061 = vmatprep.subr.bf16.mxu0 0
      %2062 = vmatpush1.bf16.msra.mxu0 %v2054
      %2063 = vmatprep.subr.bf16.mxu0 0
      %2064 = vmatpush1.bf16.msra.mxu0 %v2055
      %2065 = vmatprep.subr.bf16.mxu0 0
      %2066 = vmatpush1.bf16.msra.mxu0 0
      %2067 = vmatprep.subr.bf16.mxu0 0
      %2068 = vmatpush1.bf16.msra.mxu0 0
      %2069 = vmatprep.subr.bf16.mxu0 0
      %2070 = vmatpush1.bf16.msra.mxu0 0
      %2071 = vmatprep.subr.bf16.mxu0 0
      %2072 = vmatpush1.bf16.msra.mxu0 0
      %2073 = vmatprep.subr.bf16.mxu0 0
      %2074 = vmatpush1.bf16.msra.mxu0 0
      %2075 = vmatprep.subr.bf16.mxu0 0
      %2076 = vmatpush1.bf16.msra.mxu0 0
      %2077 = vmatprep.subr.bf16.mxu0 0
      %2078 = vmatpush1.bf16.msra.mxu0 0
      %2079 = vmatprep.subr.bf16.mxu0 0
      %2080 = vmatpush1.bf16.msra.mxu0 0
      %2081 = vmatprep.subr.bf16.mxu0 0
      %2082 = vmatpush1.bf16.msra.mxu0 0
      %2083 = vmatprep.subr.bf16.mxu0 0
      %2084 = vmatpush1.bf16.msra.mxu0 0
      %2085 = vmatprep.subr.bf16.mxu0 0
      %2086 = vmatpush1.bf16.msra.mxu0 0
      %2087 = vmatprep.subr.bf16.mxu0 0
      %2088 = vmatpush1.bf16.msra.mxu0 0
      %2089 = vmatprep.subr.bf16.mxu0 0
      %2090 = vmatpush1.bf16.msra.mxu0 0
      %2091 = vmatprep.subr.bf16.mxu0 0
      %2092 = vmatpush1.bf16.msra.mxu0 0
      %2093 = vmatprep.mubr.bf16.mxu0 0
      %2094 = vmatmul.mubr.bf16.gmra.mrb[0].mxu0 %v2059
      %v2095 = vpop.f32.mrb[0].mxu0
      %v2096 = vadd.f32 %v2044, %v2095
      %v2097 = vpop.f32.mrb[0].mxu0
      %v2098 = vpop.f32.mrb[0].mxu0
      %v2099 = vpop.f32.mrb[0].mxu0
      %2100 = vdwg.mxu0
      %v2101 = vmax.f32 %v2096, 0.0
      %v2102 = vpack.c.bf16 %v2101, %v2101
      %v2104 = vlaneseq
      %v2105 = vshrl.u32 %v2104, 7
      %v2106 = vsub.s32 0, %v2105
      %v2107 = vrot.slane %v2038, %v2106
      %v2125 = vunpack.c.l.b16 %v2022
      %v2126 = vunpack.c.l.b16 %v2023
      %v2127 = vunpack.c.l.b16 %v2024
      %v2128 = vunpack.c.l.b16 %v2025
      %v2129 = vunpack.c.l.b16 %v2026
      %v2130 = vunpack.c.l.b16 %v2027
      %v2131 = vunpack.c.l.b16 %v2028
      %v2132 = vunpack.c.l.b16 %v2029
      %v2133 = vunpack.c.l.b16 %v2030
      %v2134 = vunpack.c.l.b16 %v2031
      %v2135 = vunpack.c.l.b16 %v2032
      %v2136 = vunpack.c.l.b16 %v2033
      %v2137 = vunpack.c.l.b16 %v2034
      %v2138 = vunpack.c.l.b16 %v2035
      %v2139 = vunpack.c.l.b16 %v2036
      %v2140 = vunpack.c.l.b16 %v2037
      %v2141 = vpack.c.b16 %v2126, %v2125
      %v2142 = vpack.c.b16 %v2128, %v2127
      %v2143 = vpack.c.b16 %v2130, %v2129
      %v2144 = vpack.c.b16 %v2132, %v2131
      %v2145 = vpack.c.b16 %v2134, %v2133
      %v2146 = vpack.c.b16 %v2136, %v2135
      %v2147 = vpack.c.b16 %v2138, %v2137
      %v2148 = vpack.c.b16 %v2140, %v2139
      %2157 = vmatprep.subr.bf16.mxu0 0
      %2158 = vmatpush1.bf16.msra.mxu0 %v2141
      %2159 = vmatprep.subr.bf16.mxu0 0
      %2160 = vmatpush1.bf16.msra.mxu0 %v2142
      %2161 = vmatprep.subr.bf16.mxu0 0
      %2162 = vmatpush1.bf16.msra.mxu0 %v2143
      %2163 = vmatprep.subr.bf16.mxu0 0
      %2164 = vmatpush1.bf16.msra.mxu0 %v2144
      %2165 = vmatprep.subr.bf16.mxu0 0
      %2166 = vmatpush1.bf16.msra.mxu0 %v2145
      %2167 = vmatprep.subr.bf16.mxu0 0
      %2168 = vmatpush1.bf16.msra.mxu0 %v2146
      %2169 = vmatprep.subr.bf16.mxu0 0
      %2170 = vmatpush1.bf16.msra.mxu0 %v2147
      %2171 = vmatprep.subr.bf16.mxu0 0
      %2172 = vmatpush1.bf16.msra.mxu0 %v2148
      %2173 = vmatprep.subr.bf16.mxu0 0
      %2174 = vmatpush1.bf16.msra.mxu0 0
      %2175 = vmatprep.subr.bf16.mxu0 0
      %2176 = vmatpush1.bf16.msra.mxu0 0
      %2177 = vmatprep.subr.bf16.mxu0 0
      %2178 = vmatpush1.bf16.msra.mxu0 0
      %2179 = vmatprep.subr.bf16.mxu0 0
      %2180 = vmatpush1.bf16.msra.mxu0 0
      %2181 = vmatprep.subr.bf16.mxu0 0
      %2182 = vmatpush1.bf16.msra.mxu0 0
      %2183 = vmatprep.subr.bf16.mxu0 0
      %2184 = vmatpush1.bf16.msra.mxu0 0
      %2185 = vmatprep.subr.bf16.mxu0 0
      %2186 = vmatpush1.bf16.msra.mxu0 0
      %2187 = vmatprep.subr.bf16.mxu0 0
      %2188 = vmatpush1.bf16.msra.mxu0 0
      %2189 = vmatprep.mubr.bf16.mxu0 0
      %2190 = vmatmul.mubr.bf16.gmra.mrb[0].mxu0 %v2102
      %v2191 = vpop.f32.mrb[0].mxu0
      %v2192 = vadd.f32 %v2107, %v2191
      %v2193 = vpop.f32.mrb[0].mxu0
      %v2194 = vpop.f32.mrb[0].mxu0
      %v2195 = vpop.f32.mrb[0].mxu0
      %2196 = vdwg.mxu0
      %v2197 = vadd.f32 %v1987, %v2192
      %s2198 = scalar_lea.vmem %s7, 1
      %v2199 = vld [vmem:[%s2198] sm:$0x1]
      %s2200 = scalar_lea.vmem %s9, 1
      %v2201 = vld [vmem:[%s2200] sm:$0x1]
      %v2202 = vsel %vm1247, %v2197, 0.0
      %2203 = vadd.xlane.f32.xlu0 %v2202
      %v2204 = vpop.xlane.xlu0 %2203
      %v2205 = vmul.f32 %v2204, %v1251
      %v2206 = vsub.f32 %v2197, %v2205
      %v2207 = vmul.f32 %v2206, %v2206
      %v2208 = vsel %vm1247, %v2207, 0.0
      %2209 = vadd.xlane.f32.xlu0 %v2208
      %v2210 = vpop.xlane.xlu0 %2209
      %v2211 = vmul.f32 %v2210, %v1251
      %v2212 = vadd.f32 %v2211, 1e-05
      %v2213 = vrsqrt.pop %v2212
      %v2214 = vmul.f32 %v2206, %v2213
      %v2216 = vlaneseq
      %v2217 = vshrl.u32 %v2216, 7
      %v2218 = vsub.s32 0, %v2217
      %v2219 = vrot.slane %v2199, %v2218
      %v2221 = vmul.f32 %v2214, %v2219
      %v2223 = vlaneseq
      %v2224 = vshrl.u32 %v2223, 7
      %v2225 = vsub.s32 0, %v2224
      %v2226 = vrot.slane %v2201, %v2225
      %v2228 = vadd.f32 %v2221, %v2226
      %s2229 = scalar_lea.vmem %s11, 16
      %v2230 = vld [vmem:[%s2229] sm:$0xf]
      %v2231 = vld [vmem:[%s2229 + $0x4] sm:$0xf]
      %v2232 = vld [vmem:[%s2229 + $0x8] sm:$0xf]
      %v2233 = vld [vmem:[%s2229 + $0xc] sm:$0xf]
      %s2234 = scalar_lea.vmem %s13, 1
      %v2235 = vld [vmem:[%s2234] sm:$0x1]
      %s2236 = scalar_lea.vmem %s15, 16
      %v2237 = vld [vmem:[%s2236] sm:$0xf]
      %v2238 = vld [vmem:[%s2236 + $0x4] sm:$0xf]
      %v2239 = vld [vmem:[%s2236 + $0x8] sm:$0xf]
      %v2240 = vld [vmem:[%s2236 + $0xc] sm:$0xf]
      %s2241 = scalar_lea.vmem %s17, 1
      %v2242 = vld [vmem:[%s2241] sm:$0x1]
      %v2243 = vpack.c.bf16 %v2228, %v2228
      %v2245 = vlaneseq
      %v2246 = vshrl.u32 %v2245, 7
      %v2247 = vsub.s32 0, %v2246
      %v2248 = vrot.slane %v2235, %v2247
      %v2254 = vunpack.c.l.b16 %v2230
      %v2255 = vunpack.c.l.b16 %v2231
      %v2256 = vunpack.c.l.b16 %v2232
      %v2257 = vunpack.c.l.b16 %v2233
      %v2258 = vpack.c.b16 %v2255, %v2254
      %v2259 = vpack.c.b16 %v2257, %v2256
      %v2263 = vsel %vm1247, %v2243, 0
      %2265 = vmatprep.subr.bf16.mxu0 0
      %2266 = vmatpush1.bf16.msra.mxu0 %v2258
      %2267 = vmatprep.subr.bf16.mxu0 0
      %2268 = vmatpush1.bf16.msra.mxu0 %v2259
      %2269 = vmatprep.subr.bf16.mxu0 0
      %2270 = vmatpush1.bf16.msra.mxu0 0
      %2271 = vmatprep.subr.bf16.mxu0 0
      %2272 = vmatpush1.bf16.msra.mxu0 0
      %2273 = vmatprep.subr.bf16.mxu0 0
      %2274 = vmatpush1.bf16.msra.mxu0 0
      %2275 = vmatprep.subr.bf16.mxu0 0
      %2276 = vmatpush1.bf16.msra.mxu0 0
      %2277 = vmatprep.subr.bf16.mxu0 0
      %2278 = vmatpush1.bf16.msra.mxu0 0
      %2279 = vmatprep.subr.bf16.mxu0 0
      %2280 = vmatpush1.bf16.msra.mxu0 0
      %2281 = vmatprep.subr.bf16.mxu0 0
      %2282 = vmatpush1.bf16.msra.mxu0 0
      %2283 = vmatprep.subr.bf16.mxu0 0
      %2284 = vmatpush1.bf16.msra.mxu0 0
      %2285 = vmatprep.subr.bf16.mxu0 0
      %2286 = vmatpush1.bf16.msra.mxu0 0
      %2287 = vmatprep.subr.bf16.mxu0 0
      %2288 = vmatpush1.bf16.msra.mxu0 0
      %2289 = vmatprep.subr.bf16.mxu0 0
      %2290 = vmatpush1.bf16.msra.mxu0 0
      %2291 = vmatprep.subr.bf16.mxu0 0
      %2292 = vmatpush1.bf16.msra.mxu0 0
      %2293 = vmatprep.subr.bf16.mxu0 0
      %2294 = vmatpush1.bf16.msra.mxu0 0
      %2295 = vmatprep.subr.bf16.mxu0 0
      %2296 = vmatpush1.bf16.msra.mxu0 0
      %2297 = vmatprep.mubr.bf16.mxu0 0
      %2298 = vmatmul.mubr.bf16.gmra.mrb[0].mxu0 %v2263
      %v2299 = vpop.f32.mrb[0].mxu0
      %v2300 = vadd.f32 %v2248, %v2299
      %v2301 = vpop.f32.mrb[0].mxu0
      %v2302 = vpop.f32.mrb[0].mxu0
      %v2303 = vpop.f32.mrb[0].mxu0
      %2304 = vdwg.mxu0
      %v2305 = vpack.c.bf16 %v2300, %v2300
      %2307 = vrot.lane.b32.xlu0 %v2305, 96
      %v2308 = vpop.permute.xlu0 %2307
      %v2310 = vsel %vm1352, %v2305, 0
      %v2313 = vsel %vm1352, %v2308, 0
      %2315 = vmatprep.subr.bf16.mxu0 0
      %2316 = vmatpush1.bf16.xpose.msra.mxu0 %v2313
      %2317 = vmatprep.subr.bf16.mxu0 0
      %2318 = vmatpush1.bf16.xpose.msra.mxu0 0
      %2319 = vmatprep.subr.bf16.mxu0 0
      %2320 = vmatpush1.bf16.xpose.msra.mxu0 0
      %2321 = vmatprep.subr.bf16.mxu0 0
      %2322 = vmatpush1.bf16.xpose.msra.mxu0 0
      %2323 = vmatprep.subr.bf16.mxu0 0
      %2324 = vmatpush1.bf16.xpose.msra.mxu0 0
      %2325 = vmatprep.subr.bf16.mxu0 0
      %2326 = vmatpush1.bf16.xpose.msra.mxu0 0
      %2327 = vmatprep.subr.bf16.mxu0 0
      %2328 = vmatpush1.bf16.xpose.msra.mxu0 0
      %2329 = vmatprep.subr.bf16.mxu0 0
      %2330 = vmatpush1.bf16.xpose.msra.mxu0 0
      %2331 = vmatprep.subr.bf16.mxu0 0
      %2332 = vmatpush1.bf16.xpose.msra.mxu0 0
      %2333 = vmatprep.subr.bf16.mxu0 0
      %2334 = vmatpush1.bf16.xpose.msra.mxu0 0
      %2335 = vmatprep.subr.bf16.mxu0 0
      %2336 = vmatpush1.bf16.xpose.msra.mxu0 0
      %2337 = vmatprep.subr.bf16.mxu0 0
      %2338 = vmatpush1.bf16.xpose.msra.mxu0 0
      %2339 = vmatprep.subr.bf16.mxu0 0
      %2340 = vmatpush1.bf16.xpose.msra.mxu0 0
      %2341 = vmatprep.subr.bf16.mxu0 0
      %2342 = vmatpush1.bf16.xpose.msra.mxu0 0
      %2343 = vmatprep.subr.bf16.mxu0 0
      %2344 = vmatpush1.bf16.xpose.msra.mxu0 0
      %2345 = vmatprep.subr.bf16.mxu0 0
      %2346 = vmatpush1.bf16.xpose.msra.mxu0 0
      %2347 = vmatprep.mubr.bf16.mxu0 0
      %2348 = vmatmul.mubr.bf16.gmra.mrb[0].mxu0 %v2310
      %v2349 = vpop.f32.mrb[0].mxu0
      %v2350 = vadd.f32 %v1240, %v2349
      %v2351 = vpop.f32.mrb[0].mxu0
      %v2352 = vpop.f32.mrb[0].mxu0
      %v2353 = vpop.f32.mrb[0].mxu0
      %2354 = vdwg.mxu0
      %v2355 = vsel %vm1352, %v2350, -inf
      %2356 = vmax.xlane.f32.xlu0 %v2355
      %v2357 = vpop.xlane.xlu0 %2356
      %v2358 = vsub.f32 %v2350, %v2357
      %v2359 = vmul.f32 %v2358, 1.442695
      %v2360 = vpow.pop %v2359
      %v2361 = vsel %vm1352, %v2360, 0.0
      %2362 = vadd.xlane.f32.xlu0 %v2361
      %v2363 = vpop.xlane.xlu0 %2362
      %v2364 = vrcp.pop %v2363
      %v2365 = vmul.f32 %v2360, %v2364
      %v2366 = vpack.c.bf16 %v2365, %v2365
      %2367 = vrot.lane.b32.xlu0 %v2305, 64
      %v2368 = vpop.permute.xlu0 %2367
      %v2370 = vsel %vm1352, %v2366, 0
      %v2373 = vsel %vm1416, %v2368, 0
      %2375 = vmatprep.subr.bf16.mxu0 0
      %2376 = vmatpush1.bf16.msra.mxu0 %v2373
      %2377 = vmatprep.subr.bf16.mxu0 0
      %2378 = vmatpush1.bf16.msra.mxu0 0
      %2379 = vmatprep.subr.bf16.mxu0 0
      %2380 = vmatpush1.bf16.msra.mxu0 0
      %2381 = vmatprep.subr.bf16.mxu0 0
      %2382 = vmatpush1.bf16.msra.mxu0 0
      %2383 = vmatprep.subr.bf16.mxu0 0
      %2384 = vmatpush1.bf16.msra.mxu0 0
      %2385 = vmatprep.subr.bf16.mxu0 0
      %2386 = vmatpush1.bf16.msra.mxu0 0
      %2387 = vmatprep.subr.bf16.mxu0 0
      %2388 = vmatpush1.bf16.msra.mxu0 0
      %2389 = vmatprep.subr.bf16.mxu0 0
      %2390 = vmatpush1.bf16.msra.mxu0 0
      %2391 = vmatprep.subr.bf16.mxu0 0
      %2392 = vmatpush1.bf16.msra.mxu0 0
      %2393 = vmatprep.subr.bf16.mxu0 0
      %2394 = vmatpush1.bf16.msra.mxu0 0
      %2395 = vmatprep.subr.bf16.mxu0 0
      %2396 = vmatpush1.bf16.msra.mxu0 0
      %2397 = vmatprep.subr.bf16.mxu0 0
      %2398 = vmatpush1.bf16.msra.mxu0 0
      %2399 = vmatprep.subr.bf16.mxu0 0
      %2400 = vmatpush1.bf16.msra.mxu0 0
      %2401 = vmatprep.subr.bf16.mxu0 0
      %2402 = vmatpush1.bf16.msra.mxu0 0
      %2403 = vmatprep.subr.bf16.mxu0 0
      %2404 = vmatpush1.bf16.msra.mxu0 0
      %2405 = vmatprep.subr.bf16.mxu0 0
      %2406 = vmatpush1.bf16.msra.mxu0 0
      %2407 = vmatprep.mubr.bf16.mxu0 0
      %2408 = vmatmul.mubr.bf16.gmra.mrb[0].mxu0 %v2370
      %v2409 = vpop.f32.mrb[0].mxu0
      %v2410 = vadd.f32 0.0, %v2409
      %v2411 = vpop.f32.mrb[0].mxu0
      %v2412 = vpop.f32.mrb[0].mxu0
      %v2413 = vpop.f32.mrb[0].mxu0
      %2414 = vdwg.mxu0
      %v2415 = vpack.c.bf16 %v2410, %v2410
      %2416 = vrot.lane.b32.xlu0 %v2305, 120
      %v2417 = vpop.permute.xlu0 %2416
      %2418 = vrot.lane.b32.xlu0 %v2305, 88
      %v2419 = vpop.permute.xlu0 %2418
      %v2421 = vsel %vm1352, %v2417, 0
      %v2424 = vsel %vm1352, %v2419, 0
      %2426 = vmatprep.subr.bf16.mxu0 0
      %2427 = vmatpush1.bf16.xpose.msra.mxu0 %v2424
      %2428 = vmatprep.subr.bf16.mxu0 0
      %2429 = vmatpush1.bf16.xpose.msra.mxu0 0
      %2430 = vmatprep.subr.bf16.mxu0 0
      %2431 = vmatpush1.bf16.xpose.msra.mxu0 0
      %2432 = vmatprep.subr.bf16.mxu0 0
      %2433 = vmatpush1.bf16.xpose.msra.mxu0 0
      %2434 = vmatprep.subr.bf16.mxu0 0
      %2435 = vmatpush1.bf16.xpose.msra.mxu0 0
      %2436 = vmatprep.subr.bf16.mxu0 0
      %2437 = vmatpush1.bf16.xpose.msra.mxu0 0
      %2438 = vmatprep.subr.bf16.mxu0 0
      %2439 = vmatpush1.bf16.xpose.msra.mxu0 0
      %2440 = vmatprep.subr.bf16.mxu0 0
      %2441 = vmatpush1.bf16.xpose.msra.mxu0 0
      %2442 = vmatprep.subr.bf16.mxu0 0
      %2443 = vmatpush1.bf16.xpose.msra.mxu0 0
      %2444 = vmatprep.subr.bf16.mxu0 0
      %2445 = vmatpush1.bf16.xpose.msra.mxu0 0
      %2446 = vmatprep.subr.bf16.mxu0 0
      %2447 = vmatpush1.bf16.xpose.msra.mxu0 0
      %2448 = vmatprep.subr.bf16.mxu0 0
      %2449 = vmatpush1.bf16.xpose.msra.mxu0 0
      %2450 = vmatprep.subr.bf16.mxu0 0
      %2451 = vmatpush1.bf16.xpose.msra.mxu0 0
      %2452 = vmatprep.subr.bf16.mxu0 0
      %2453 = vmatpush1.bf16.xpose.msra.mxu0 0
      %2454 = vmatprep.subr.bf16.mxu0 0
      %2455 = vmatpush1.bf16.xpose.msra.mxu0 0
      %2456 = vmatprep.subr.bf16.mxu0 0
      %2457 = vmatpush1.bf16.xpose.msra.mxu0 0
      %2458 = vmatprep.mubr.bf16.mxu0 0
      %2459 = vmatmul.mubr.bf16.gmra.mrb[0].mxu0 %v2421
      %v2460 = vpop.f32.mrb[0].mxu0
      %v2461 = vadd.f32 %v1240, %v2460
      %v2462 = vpop.f32.mrb[0].mxu0
      %v2463 = vpop.f32.mrb[0].mxu0
      %v2464 = vpop.f32.mrb[0].mxu0
      %2465 = vdwg.mxu0
      %v2466 = vsel %vm1352, %v2461, -inf
      %2467 = vmax.xlane.f32.xlu0 %v2466
      %v2468 = vpop.xlane.xlu0 %2467
      %v2469 = vsub.f32 %v2461, %v2468
      %v2470 = vmul.f32 %v2469, 1.442695
      %v2471 = vpow.pop %v2470
      %v2472 = vsel %vm1352, %v2471, 0.0
      %2473 = vadd.xlane.f32.xlu0 %v2472
      %v2474 = vpop.xlane.xlu0 %2473
      %v2475 = vrcp.pop %v2474
      %v2476 = vmul.f32 %v2471, %v2475
      %v2477 = vpack.c.bf16 %v2476, %v2476
      %2478 = vrot.lane.b32.xlu0 %v2305, 56
      %v2479 = vpop.permute.xlu0 %2478
      %v2481 = vsel %vm1352, %v2477, 0
      %v2484 = vsel %vm1416, %v2479, 0
      %2486 = vmatprep.subr.bf16.mxu0 0
      %2487 = vmatpush1.bf16.msra.mxu0 %v2484
      %2488 = vmatprep.subr.bf16.mxu0 0
      %2489 = vmatpush1.bf16.msra.mxu0 0
      %2490 = vmatprep.subr.bf16.mxu0 0
      %2491 = vmatpush1.bf16.msra.mxu0 0
      %2492 = vmatprep.subr.bf16.mxu0 0
      %2493 = vmatpush1.bf16.msra.mxu0 0
      %2494 = vmatprep.subr.bf16.mxu0 0
      %2495 = vmatpush1.bf16.msra.mxu0 0
      %2496 = vmatprep.subr.bf16.mxu0 0
      %2497 = vmatpush1.bf16.msra.mxu0 0
      %2498 = vmatprep.subr.bf16.mxu0 0
      %2499 = vmatpush1.bf16.msra.mxu0 0
      %2500 = vmatprep.subr.bf16.mxu0 0
      %2501 = vmatpush1.bf16.msra.mxu0 0
      %2502 = vmatprep.subr.bf16.mxu0 0
      %2503 = vmatpush1.bf16.msra.mxu0 0
      %2504 = vmatprep.subr.bf16.mxu0 0
      %2505 = vmatpush1.bf16.msra.mxu0 0
      %2506 = vmatprep.subr.bf16.mxu0 0
      %2507 = vmatpush1.bf16.msra.mxu0 0
      %2508 = vmatprep.subr.bf16.mxu0 0
      %2509 = vmatpush1.bf16.msra.mxu0 0
      %2510 = vmatprep.subr.bf16.mxu0 0
      %2511 = vmatpush1.bf16.msra.mxu0 0
      %2512 = vmatprep.subr.bf16.mxu0 0
      %2513 = vmatpush1.bf16.msra.mxu0 0
      %2514 = vmatprep.subr.bf16.mxu0 0
      %2515 = vmatpush1.bf16.msra.mxu0 0
      %2516 = vmatprep.subr.bf16.mxu0 0
      %2517 = vmatpush1.bf16.msra.mxu0 0
      %2518 = vmatprep.mubr.bf16.mxu0 0
      %2519 = vmatmul.mubr.bf16.gmra.mrb[0].mxu0 %v2481
      %v2520 = vpop.f32.mrb[0].mxu0
      %v2521 = vadd.f32 0.0, %v2520
      %v2522 = vpop.f32.mrb[0].mxu0
      %v2523 = vpop.f32.mrb[0].mxu0
      %v2524 = vpop.f32.mrb[0].mxu0
      %2525 = vdwg.mxu0
      %v2526 = vpack.c.bf16 %v2521, %v2521
      %v2528 = vsel %vm1352, %v2526, 0
      %v2531 = vsel %vm1416, %v2238, 0
      %2533 = vmatprep.subr.bf16.mxu0 0
      %2534 = vmatpush1.bf16.msra.mxu0 %v2531
      %2535 = vmatprep.subr.bf16.mxu0 0
      %2536 = vmatpush1.bf16.msra.mxu0 0
      %2537 = vmatprep.subr.bf16.mxu0 0
      %2538 = vmatpush1.bf16.msra.mxu0 0
      %2539 = vmatprep.subr.bf16.mxu0 0
      %2540 = vmatpush1.bf16.msra.mxu0 0
      %2541 = vmatprep.subr.bf16.mxu0 0
      %2542 = vmatpush1.bf16.msra.mxu0 0
      %2543 = vmatprep.subr.bf16.mxu0 0
      %2544 = vmatpush1.bf16.msra.mxu0 0
      %2545 = vmatprep.subr.bf16.mxu0 0
      %2546 = vmatpush1.bf16.msra.mxu0 0
      %2547 = vmatprep.subr.bf16.mxu0 0
      %2548 = vmatpush1.bf16.msra.mxu0 0
      %2549 = vmatprep.subr.bf16.mxu0 0
      %2550 = vmatpush1.bf16.msra.mxu0 0
      %2551 = vmatprep.subr.bf16.mxu0 0
      %2552 = vmatpush1.bf16.msra.mxu0 0
      %2553 = vmatprep.subr.bf16.mxu0 0
      %2554 = vmatpush1.bf16.msra.mxu0 0
      %2555 = vmatprep.subr.bf16.mxu0 0
      %2556 = vmatpush1.bf16.msra.mxu0 0
      %2557 = vmatprep.subr.bf16.mxu0 0
      %2558 = vmatpush1.bf16.msra.mxu0 0
      %2559 = vmatprep.subr.bf16.mxu0 0
      %2560 = vmatpush1.bf16.msra.mxu0 0
      %2561 = vmatprep.subr.bf16.mxu0 0
      %2562 = vmatpush1.bf16.msra.mxu0 0
      %2563 = vmatprep.subr.bf16.mxu0 0
      %2564 = vmatpush1.bf16.msra.mxu0 0
      %2565 = vmatprep.mubr.bf16.mxu0 0
      %2566 = vmatmul.mubr.bf16.gmra.mrb[0].mxu0 %v2528
      %v2567 = vpop.f32.mrb[0].mxu0
      %v2568 = vadd.f32 0.0, %v2567
      %v2569 = vpop.f32.mrb[0].mxu0
      %v2570 = vpop.f32.mrb[0].mxu0
      %v2571 = vpop.f32.mrb[0].mxu0
      %2572 = vdwg.mxu0
      %v2574 = vsel %vm1352, %v2415, 0
      %v2577 = vsel %vm1416, %v2237, 0
      %2579 = vmatprep.subr.bf16.mxu0 0
      %2580 = vmatpush1.bf16.msra.mxu0 %v2577
      %2581 = vmatprep.subr.bf16.mxu0 0
      %2582 = vmatpush1.bf16.msra.mxu0 0
      %2583 = vmatprep.subr.bf16.mxu0 0
      %2584 = vmatpush1.bf16.msra.mxu0 0
      %2585 = vmatprep.subr.bf16.mxu0 0
      %2586 = vmatpush1.bf16.msra.mxu0 0
      %2587 = vmatprep.subr.bf16.mxu0 0
      %2588 = vmatpush1.bf16.msra.mxu0 0
      %2589 = vmatprep.subr.bf16.mxu0 0
      %2590 = vmatpush1.bf16.msra.mxu0 0
      %2591 = vmatprep.subr.bf16.mxu0 0
      %2592 = vmatpush1.bf16.msra.mxu0 0
      %2593 = vmatprep.subr.bf16.mxu0 0
      %2594 = vmatpush1.bf16.msra.mxu0 0
      %2595 = vmatprep.subr.bf16.mxu0 0
      %2596 = vmatpush1.bf16.msra.mxu0 0
      %2597 = vmatprep.subr.bf16.mxu0 0
      %2598 = vmatpush1.bf16.msra.mxu0 0
      %2599 = vmatprep.subr.bf16.mxu0 0
      %2600 = vmatpush1.bf16.msra.mxu0 0
      %2601 = vmatprep.subr.bf16.mxu0 0
      %2602 = vmatpush1.bf16.msra.mxu0 0
      %2603 = vmatprep.subr.bf16.mxu0 0
      %2604 = vmatpush1.bf16.msra.mxu0 0
      %2605 = vmatprep.subr.bf16.mxu0 0
      %2606 = vmatpush1.bf16.msra.mxu0 0
      %2607 = vmatprep.subr.bf16.mxu0 0
      %2608 = vmatpush1.bf16.msra.mxu0 0
      %2609 = vmatprep.subr.bf16.mxu0 0
      %2610 = vmatpush1.bf16.msra.mxu0 0
      %2611 = vmatprep.mubr.bf16.mxu0 0
      %2612 = vmatmul.mubr.bf16.gmra.mrb[0].mxu0 %v2574
      %v2613 = vpop.f32.mrb[0].mxu0
      %v2614 = vadd.f32 %v2568, %v2613
      %v2615 = vpop.f32.mrb[0].mxu0
      %v2616 = vpop.f32.mrb[0].mxu0
      %v2617 = vpop.f32.mrb[0].mxu0
      %2618 = vdwg.mxu0
      %2619 = vrot.lane.b32.xlu0 %v2305, 112
      %v2620 = vpop.permute.xlu0 %2619
      %2621 = vrot.lane.b32.xlu0 %v2305, 80
      %v2622 = vpop.permute.xlu0 %2621
      %v2624 = vsel %vm1352, %v2620, 0
      %v2627 = vsel %vm1352, %v2622, 0
      %2629 = vmatprep.subr.bf16.mxu0 0
      %2630 = vmatpush1.bf16.xpose.msra.mxu0 %v2627
      %2631 = vmatprep.subr.bf16.mxu0 0
      %2632 = vmatpush1.bf16.xpose.msra.mxu0 0
      %2633 = vmatprep.subr.bf16.mxu0 0
      %2634 = vmatpush1.bf16.xpose.msra.mxu0 0
      %2635 = vmatprep.subr.bf16.mxu0 0
      %2636 = vmatpush1.bf16.xpose.msra.mxu0 0
      %2637 = vmatprep.subr.bf16.mxu0 0
      %2638 = vmatpush1.bf16.xpose.msra.mxu0 0
      %2639 = vmatprep.subr.bf16.mxu0 0
      %2640 = vmatpush1.bf16.xpose.msra.mxu0 0
      %2641 = vmatprep.subr.bf16.mxu0 0
      %2642 = vmatpush1.bf16.xpose.msra.mxu0 0
      %2643 = vmatprep.subr.bf16.mxu0 0
      %2644 = vmatpush1.bf16.xpose.msra.mxu0 0
      %2645 = vmatprep.subr.bf16.mxu0 0
      %2646 = vmatpush1.bf16.xpose.msra.mxu0 0
      %2647 = vmatprep.subr.bf16.mxu0 0
      %2648 = vmatpush1.bf16.xpose.msra.mxu0 0
      %2649 = vmatprep.subr.bf16.mxu0 0
      %2650 = vmatpush1.bf16.xpose.msra.mxu0 0
      %2651 = vmatprep.subr.bf16.mxu0 0
      %2652 = vmatpush1.bf16.xpose.msra.mxu0 0
      %2653 = vmatprep.subr.bf16.mxu0 0
      %2654 = vmatpush1.bf16.xpose.msra.mxu0 0
      %2655 = vmatprep.subr.bf16.mxu0 0
      %2656 = vmatpush1.bf16.xpose.msra.mxu0 0
      %2657 = vmatprep.subr.bf16.mxu0 0
      %2658 = vmatpush1.bf16.xpose.msra.mxu0 0
      %2659 = vmatprep.subr.bf16.mxu0 0
      %2660 = vmatpush1.bf16.xpose.msra.mxu0 0
      %2661 = vmatprep.mubr.bf16.mxu0 0
      %2662 = vmatmul.mubr.bf16.gmra.mrb[0].mxu0 %v2624
      %v2663 = vpop.f32.mrb[0].mxu0
      %v2664 = vadd.f32 %v1240, %v2663
      %v2665 = vpop.f32.mrb[0].mxu0
      %v2666 = vpop.f32.mrb[0].mxu0
      %v2667 = vpop.f32.mrb[0].mxu0
      %2668 = vdwg.mxu0
      %v2669 = vsel %vm1352, %v2664, -inf
      %2670 = vmax.xlane.f32.xlu0 %v2669
      %v2671 = vpop.xlane.xlu0 %2670
      %v2672 = vsub.f32 %v2664, %v2671
      %v2673 = vmul.f32 %v2672, 1.442695
      %v2674 = vpow.pop %v2673
      %v2675 = vsel %vm1352, %v2674, 0.0
      %2676 = vadd.xlane.f32.xlu0 %v2675
      %v2677 = vpop.xlane.xlu0 %2676
      %v2678 = vrcp.pop %v2677
      %v2679 = vmul.f32 %v2674, %v2678
      %v2680 = vpack.c.bf16 %v2679, %v2679
      %2681 = vrot.lane.b32.xlu0 %v2305, 48
      %v2682 = vpop.permute.xlu0 %2681
      %v2684 = vsel %vm1352, %v2680, 0
      %v2687 = vsel %vm1416, %v2682, 0
      %2689 = vmatprep.subr.bf16.mxu0 0
      %2690 = vmatpush1.bf16.msra.mxu0 %v2687
      %2691 = vmatprep.subr.bf16.mxu0 0
      %2692 = vmatpush1.bf16.msra.mxu0 0
      %2693 = vmatprep.subr.bf16.mxu0 0
      %2694 = vmatpush1.bf16.msra.mxu0 0
      %2695 = vmatprep.subr.bf16.mxu0 0
      %2696 = vmatpush1.bf16.msra.mxu0 0
      %2697 = vmatprep.subr.bf16.mxu0 0
      %2698 = vmatpush1.bf16.msra.mxu0 0
      %2699 = vmatprep.subr.bf16.mxu0 0
      %2700 = vmatpush1.bf16.msra.mxu0 0
      %2701 = vmatprep.subr.bf16.mxu0 0
      %2702 = vmatpush1.bf16.msra.mxu0 0
      %2703 = vmatprep.subr.bf16.mxu0 0
      %2704 = vmatpush1.bf16.msra.mxu0 0
      %2705 = vmatprep.subr.bf16.mxu0 0
      %2706 = vmatpush1.bf16.msra.mxu0 0
      %2707 = vmatprep.subr.bf16.mxu0 0
      %2708 = vmatpush1.bf16.msra.mxu0 0
      %2709 = vmatprep.subr.bf16.mxu0 0
      %2710 = vmatpush1.bf16.msra.mxu0 0
      %2711 = vmatprep.subr.bf16.mxu0 0
      %2712 = vmatpush1.bf16.msra.mxu0 0
      %2713 = vmatprep.subr.bf16.mxu0 0
      %2714 = vmatpush1.bf16.msra.mxu0 0
      %2715 = vmatprep.subr.bf16.mxu0 0
      %2716 = vmatpush1.bf16.msra.mxu0 0
      %2717 = vmatprep.subr.bf16.mxu0 0
      %2718 = vmatpush1.bf16.msra.mxu0 0
      %2719 = vmatprep.subr.bf16.mxu0 0
      %2720 = vmatpush1.bf16.msra.mxu0 0
      %2721 = vmatprep.mubr.bf16.mxu0 0
      %2722 = vmatmul.mubr.bf16.gmra.mrb[0].mxu0 %v2684
      %v2723 = vpop.f32.mrb[0].mxu0
      %v2724 = vadd.f32 0.0, %v2723
      %v2725 = vpop.f32.mrb[0].mxu0
      %v2726 = vpop.f32.mrb[0].mxu0
      %v2727 = vpop.f32.mrb[0].mxu0
      %2728 = vdwg.mxu0
      %v2729 = vpack.c.bf16 %v2724, %v2724
      %v2731 = vsel %vm1352, %v2729, 0
      %v2734 = vsel %vm1416, %v2239, 0
      %2736 = vmatprep.subr.bf16.mxu0 0
      %2737 = vmatpush1.bf16.msra.mxu0 %v2734
      %2738 = vmatprep.subr.bf16.mxu0 0
      %2739 = vmatpush1.bf16.msra.mxu0 0
      %2740 = vmatprep.subr.bf16.mxu0 0
      %2741 = vmatpush1.bf16.msra.mxu0 0
      %2742 = vmatprep.subr.bf16.mxu0 0
      %2743 = vmatpush1.bf16.msra.mxu0 0
      %2744 = vmatprep.subr.bf16.mxu0 0
      %2745 = vmatpush1.bf16.msra.mxu0 0
      %2746 = vmatprep.subr.bf16.mxu0 0
      %2747 = vmatpush1.bf16.msra.mxu0 0
      %2748 = vmatprep.subr.bf16.mxu0 0
      %2749 = vmatpush1.bf16.msra.mxu0 0
      %2750 = vmatprep.subr.bf16.mxu0 0
      %2751 = vmatpush1.bf16.msra.mxu0 0
      %2752 = vmatprep.subr.bf16.mxu0 0
      %2753 = vmatpush1.bf16.msra.mxu0 0
      %2754 = vmatprep.subr.bf16.mxu0 0
      %2755 = vmatpush1.bf16.msra.mxu0 0
      %2756 = vmatprep.subr.bf16.mxu0 0
      %2757 = vmatpush1.bf16.msra.mxu0 0
      %2758 = vmatprep.subr.bf16.mxu0 0
      %2759 = vmatpush1.bf16.msra.mxu0 0
      %2760 = vmatprep.subr.bf16.mxu0 0
      %2761 = vmatpush1.bf16.msra.mxu0 0
      %2762 = vmatprep.subr.bf16.mxu0 0
      %2763 = vmatpush1.bf16.msra.mxu0 0
      %2764 = vmatprep.subr.bf16.mxu0 0
      %2765 = vmatpush1.bf16.msra.mxu0 0
      %2766 = vmatprep.subr.bf16.mxu0 0
      %2767 = vmatpush1.bf16.msra.mxu0 0
      %2768 = vmatprep.mubr.bf16.mxu0 0
      %2769 = vmatmul.mubr.bf16.gmra.mrb[0].mxu0 %v2731
      %v2770 = vpop.f32.mrb[0].mxu0
      %v2771 = vadd.f32 0.0, %v2770
      %v2772 = vpop.f32.mrb[0].mxu0
      %v2773 = vpop.f32.mrb[0].mxu0
      %v2774 = vpop.f32.mrb[0].mxu0
      %2775 = vdwg.mxu0
      %v2776 = vadd.f32 %v2614, %v2771
      %2777 = vrot.lane.b32.xlu0 %v2305, 104
      %v2778 = vpop.permute.xlu0 %2777
      %2779 = vrot.lane.b32.xlu0 %v2305, 72
      %v2780 = vpop.permute.xlu0 %2779
      %v2782 = vsel %vm1352, %v2778, 0
      %v2785 = vsel %vm1352, %v2780, 0
      %2787 = vmatprep.subr.bf16.mxu0 0
      %2788 = vmatpush1.bf16.xpose.msra.mxu0 %v2785
      %2789 = vmatprep.subr.bf16.mxu0 0
      %2790 = vmatpush1.bf16.xpose.msra.mxu0 0
      %2791 = vmatprep.subr.bf16.mxu0 0
      %2792 = vmatpush1.bf16.xpose.msra.mxu0 0
      %2793 = vmatprep.subr.bf16.mxu0 0
      %2794 = vmatpush1.bf16.xpose.msra.mxu0 0
      %2795 = vmatprep.subr.bf16.mxu0 0
      %2796 = vmatpush1.bf16.xpose.msra.mxu0 0
      %2797 = vmatprep.subr.bf16.mxu0 0
      %2798 = vmatpush1.bf16.xpose.msra.mxu0 0
      %2799 = vmatprep.subr.bf16.mxu0 0
      %2800 = vmatpush1.bf16.xpose.msra.mxu0 0
      %2801 = vmatprep.subr.bf16.mxu0 0
      %2802 = vmatpush1.bf16.xpose.msra.mxu0 0
      %2803 = vmatprep.subr.bf16.mxu0 0
      %2804 = vmatpush1.bf16.xpose.msra.mxu0 0
      %2805 = vmatprep.subr.bf16.mxu0 0
      %2806 = vmatpush1.bf16.xpose.msra.mxu0 0
      %2807 = vmatprep.subr.bf16.mxu0 0
      %2808 = vmatpush1.bf16.xpose.msra.mxu0 0
      %2809 = vmatprep.subr.bf16.mxu0 0
      %2810 = vmatpush1.bf16.xpose.msra.mxu0 0
      %2811 = vmatprep.subr.bf16.mxu0 0
      %2812 = vmatpush1.bf16.xpose.msra.mxu0 0
      %2813 = vmatprep.subr.bf16.mxu0 0
      %2814 = vmatpush1.bf16.xpose.msra.mxu0 0
      %2815 = vmatprep.subr.bf16.mxu0 0
      %2816 = vmatpush1.bf16.xpose.msra.mxu0 0
      %2817 = vmatprep.subr.bf16.mxu0 0
      %2818 = vmatpush1.bf16.xpose.msra.mxu0 0
      %2819 = vmatprep.mubr.bf16.mxu0 0
      %2820 = vmatmul.mubr.bf16.gmra.mrb[0].mxu0 %v2782
      %v2821 = vpop.f32.mrb[0].mxu0
      %v2822 = vadd.f32 %v1240, %v2821
      %v2823 = vpop.f32.mrb[0].mxu0
      %v2824 = vpop.f32.mrb[0].mxu0
      %v2825 = vpop.f32.mrb[0].mxu0
      %2826 = vdwg.mxu0
      %v2827 = vsel %vm1352, %v2822, -inf
      %2828 = vmax.xlane.f32.xlu0 %v2827
      %v2829 = vpop.xlane.xlu0 %2828
      %v2830 = vsub.f32 %v2822, %v2829
      %v2831 = vmul.f32 %v2830, 1.442695
      %v2832 = vpow.pop %v2831
      %v2833 = vsel %vm1352, %v2832, 0.0
      %2834 = vadd.xlane.f32.xlu0 %v2833
      %v2835 = vpop.xlane.xlu0 %2834
      %v2836 = vrcp.pop %v2835
      %v2837 = vmul.f32 %v2832, %v2836
      %v2838 = vpack.c.bf16 %v2837, %v2837
      %2839 = vrot.lane.b32.xlu0 %v2305, 40
      %v2840 = vpop.permute.xlu0 %2839
      %v2842 = vsel %vm1352, %v2838, 0
      %v2845 = vsel %vm1416, %v2840, 0
      %2847 = vmatprep.subr.bf16.mxu0 0
      %2848 = vmatpush1.bf16.msra.mxu0 %v2845
      %2849 = vmatprep.subr.bf16.mxu0 0
      %2850 = vmatpush1.bf16.msra.mxu0 0
      %2851 = vmatprep.subr.bf16.mxu0 0
      %2852 = vmatpush1.bf16.msra.mxu0 0
      %2853 = vmatprep.subr.bf16.mxu0 0
      %2854 = vmatpush1.bf16.msra.mxu0 0
      %2855 = vmatprep.subr.bf16.mxu0 0
      %2856 = vmatpush1.bf16.msra.mxu0 0
      %2857 = vmatprep.subr.bf16.mxu0 0
      %2858 = vmatpush1.bf16.msra.mxu0 0
      %2859 = vmatprep.subr.bf16.mxu0 0
      %2860 = vmatpush1.bf16.msra.mxu0 0
      %2861 = vmatprep.subr.bf16.mxu0 0
      %2862 = vmatpush1.bf16.msra.mxu0 0
      %2863 = vmatprep.subr.bf16.mxu0 0
      %2864 = vmatpush1.bf16.msra.mxu0 0
      %2865 = vmatprep.subr.bf16.mxu0 0
      %2866 = vmatpush1.bf16.msra.mxu0 0
      %2867 = vmatprep.subr.bf16.mxu0 0
      %2868 = vmatpush1.bf16.msra.mxu0 0
      %2869 = vmatprep.subr.bf16.mxu0 0
      %2870 = vmatpush1.bf16.msra.mxu0 0
      %2871 = vmatprep.subr.bf16.mxu0 0
      %2872 = vmatpush1.bf16.msra.mxu0 0
      %2873 = vmatprep.subr.bf16.mxu0 0
      %2874 = vmatpush1.bf16.msra.mxu0 0
      %2875 = vmatprep.subr.bf16.mxu0 0
      %2876 = vmatpush1.bf16.msra.mxu0 0
      %2877 = vmatprep.subr.bf16.mxu0 0
      %2878 = vmatpush1.bf16.msra.mxu0 0
      %2879 = vmatprep.mubr.bf16.mxu0 0
      %2880 = vmatmul.mubr.bf16.gmra.mrb[0].mxu0 %v2842
      %v2881 = vpop.f32.mrb[0].mxu0
      %v2882 = vadd.f32 0.0, %v2881
      %v2883 = vpop.f32.mrb[0].mxu0
      %v2884 = vpop.f32.mrb[0].mxu0
      %v2885 = vpop.f32.mrb[0].mxu0
      %2886 = vdwg.mxu0
      %v2887 = vpack.c.bf16 %v2882, %v2882
      %v2889 = vsel %vm1352, %v2887, 0
      %v2892 = vsel %vm1416, %v2240, 0
      %2894 = vmatprep.subr.bf16.mxu0 0
      %2895 = vmatpush1.bf16.msra.mxu0 %v2892
      %2896 = vmatprep.subr.bf16.mxu0 0
      %2897 = vmatpush1.bf16.msra.mxu0 0
      %2898 = vmatprep.subr.bf16.mxu0 0
      %2899 = vmatpush1.bf16.msra.mxu0 0
      %2900 = vmatprep.subr.bf16.mxu0 0
      %2901 = vmatpush1.bf16.msra.mxu0 0
      %2902 = vmatprep.subr.bf16.mxu0 0
      %2903 = vmatpush1.bf16.msra.mxu0 0
      %2904 = vmatprep.subr.bf16.mxu0 0
      %2905 = vmatpush1.bf16.msra.mxu0 0
      %2906 = vmatprep.subr.bf16.mxu0 0
      %2907 = vmatpush1.bf16.msra.mxu0 0
      %2908 = vmatprep.subr.bf16.mxu0 0
      %2909 = vmatpush1.bf16.msra.mxu0 0
      %2910 = vmatprep.subr.bf16.mxu0 0
      %2911 = vmatpush1.bf16.msra.mxu0 0
      %2912 = vmatprep.subr.bf16.mxu0 0
      %2913 = vmatpush1.bf16.msra.mxu0 0
      %2914 = vmatprep.subr.bf16.mxu0 0
      %2915 = vmatpush1.bf16.msra.mxu0 0
      %2916 = vmatprep.subr.bf16.mxu0 0
      %2917 = vmatpush1.bf16.msra.mxu0 0
      %2918 = vmatprep.subr.bf16.mxu0 0
      %2919 = vmatpush1.bf16.msra.mxu0 0
      %2920 = vmatprep.subr.bf16.mxu0 0
      %2921 = vmatpush1.bf16.msra.mxu0 0
      %2922 = vmatprep.subr.bf16.mxu0 0
      %2923 = vmatpush1.bf16.msra.mxu0 0
      %2924 = vmatprep.subr.bf16.mxu0 0
      %2925 = vmatpush1.bf16.msra.mxu0 0
      %2926 = vmatprep.mubr.bf16.mxu0 0
      %2927 = vmatmul.mubr.bf16.gmra.mrb[0].mxu0 %v2889
      %v2928 = vpop.f32.mrb[0].mxu0
      %v2929 = vadd.f32 0.0, %v2928
      %v2930 = vpop.f32.mrb[0].mxu0
      %v2931 = vpop.f32.mrb[0].mxu0
      %v2932 = vpop.f32.mrb[0].mxu0
      %2933 = vdwg.mxu0
      %v2934 = vadd.f32 %v2776, %v2929
      %v2936 = vlaneseq
      %v2937 = vshrl.u32 %v2936, 7
      %v2938 = vsub.s32 0, %v2937
      %v2939 = vrot.slane %v2242, %v2938
      %v2941 = vadd.f32 %v2934, %v2939
      %v2942 = vadd.f32 %v2197, %v2941
      %s2943 = scalar_lea.vmem %s19, 1
      %v2944 = vld [vmem:[%s2943] sm:$0x1]
      %s2945 = scalar_lea.vmem %s21, 1
      %v2946 = vld [vmem:[%s2945] sm:$0x1]
      %v2947 = vsel %vm1247, %v2942, 0.0
      %2948 = vadd.xlane.f32.xlu0 %v2947
      %v2949 = vpop.xlane.xlu0 %2948
      %v2950 = vmul.f32 %v2949, %v1251
      %v2951 = vsub.f32 %v2942, %v2950
      %v2952 = vmul.f32 %v2951, %v2951
      %v2953 = vsel %vm1247, %v2952, 0.0
      %2954 = vadd.xlane.f32.xlu0 %v2953
      %v2955 = vpop.xlane.xlu0 %2954
      %v2956 = vmul.f32 %v2955, %v1251
      %v2957 = vadd.f32 %v2956, 1e-05
      %v2958 = vrsqrt.pop %v2957
      %v2959 = vmul.f32 %v2951, %v2958
      %v2961 = vlaneseq
      %v2962 = vshrl.u32 %v2961, 7
      %v2963 = vsub.s32 0, %v2962
      %v2964 = vrot.slane %v2944, %v2963
      %v2966 = vmul.f32 %v2959, %v2964
      %v2968 = vlaneseq
      %v2969 = vshrl.u32 %v2968, 7
      %v2970 = vsub.s32 0, %v2969
      %v2971 = vrot.slane %v2946, %v2970
      %v2973 = vadd.f32 %v2966, %v2971
      %s2974 = scalar_lea.vmem %s23, 16
      %v2975 = vld [vmem:[%s2974] sm:$0xf]
      %v2976 = vld [vmem:[%s2974 + $0x4] sm:$0xf]
      %v2977 = vld [vmem:[%s2974 + $0x8] sm:$0xf]
      %v2978 = vld [vmem:[%s2974 + $0xc] sm:$0xf]
      %s2979 = scalar_lea.vmem %s25, 1
      %v2980 = vld [vmem:[%s2979] sm:$0x1]
      %s2981 = scalar_lea.vmem %s27, 64
      %v2982 = vld [vmem:[%s2981] sm:$0xf]
      %v2983 = vld [vmem:[%s2981 + $0x4] sm:$0xf]
      %v2984 = vld [vmem:[%s2981 + $0x8] sm:$0xf]
      %v2985 = vld [vmem:[%s2981 + $0xc] sm:$0xf]
      %v2986 = vld [vmem:[%s2981 + $0x10] sm:$0xf]
      %v2987 = vld [vmem:[%s2981 + $0x14] sm:$0xf]
      %v2988 = vld [vmem:[%s2981 + $0x18] sm:$0xf]
      %v2989 = vld [vmem:[%s2981 + $0x1c] sm:$0xf]
      %v2990 = vld [vmem:[%s2981 + $0x20] sm:$0xf]
      %v2991 = vld [vmem:[%s2981 + $0x24] sm:$0xf]
      %v2992 = vld [vmem:[%s2981 + $0x28] sm:$0xf]
      %v2993 = vld [vmem:[%s2981 + $0x2c] sm:$0xf]
      %v2994 = vld [vmem:[%s2981 + $0x30] sm:$0xf]
      %v2995 = vld [vmem:[%s2981 + $0x34] sm:$0xf]
      %v2996 = vld [vmem:[%s2981 + $0x38] sm:$0xf]
      %v2997 = vld [vmem:[%s2981 + $0x3c] sm:$0xf]
      %s2998 = scalar_lea.vmem %s29, 1
      %v2999 = vld [vmem:[%s2998] sm:$0x1]
      %v3000 = vpack.c.bf16 %v2973, %v2973
      %v3002 = vlaneseq
      %v3003 = vshrl.u32 %v3002, 7
      %v3004 = vsub.s32 0, %v3003
      %v3005 = vrot.slane %v2980, %v3004
      %v3011 = vunpack.c.l.b16 %v2975
      %v3012 = vunpack.c.l.b16 %v2976
      %v3013 = vunpack.c.l.b16 %v2977
      %v3014 = vunpack.c.l.b16 %v2978
      %v3015 = vpack.c.b16 %v3012, %v3011
      %v3016 = vpack.c.b16 %v3014, %v3013
      %v3020 = vsel %vm1247, %v3000, 0
      %3022 = vmatprep.subr.bf16.mxu0 0
      %3023 = vmatpush1.bf16.msra.mxu0 %v3015
      %3024 = vmatprep.subr.bf16.mxu0 0
      %3025 = vmatpush1.bf16.msra.mxu0 %v3016
      %3026 = vmatprep.subr.bf16.mxu0 0
      %3027 = vmatpush1.bf16.msra.mxu0 0
      %3028 = vmatprep.subr.bf16.mxu0 0
      %3029 = vmatpush1.bf16.msra.mxu0 0
      %3030 = vmatprep.subr.bf16.mxu0 0
      %3031 = vmatpush1.bf16.msra.mxu0 0
      %3032 = vmatprep.subr.bf16.mxu0 0
      %3033 = vmatpush1.bf16.msra.mxu0 0
      %3034 = vmatprep.subr.bf16.mxu0 0
      %3035 = vmatpush1.bf16.msra.mxu0 0
      %3036 = vmatprep.subr.bf16.mxu0 0
      %3037 = vmatpush1.bf16.msra.mxu0 0
      %3038 = vmatprep.subr.bf16.mxu0 0
      %3039 = vmatpush1.bf16.msra.mxu0 0
      %3040 = vmatprep.subr.bf16.mxu0 0
      %3041 = vmatpush1.bf16.msra.mxu0 0
      %3042 = vmatprep.subr.bf16.mxu0 0
      %3043 = vmatpush1.bf16.msra.mxu0 0
      %3044 = vmatprep.subr.bf16.mxu0 0
      %3045 = vmatpush1.bf16.msra.mxu0 0
      %3046 = vmatprep.subr.bf16.mxu0 0
      %3047 = vmatpush1.bf16.msra.mxu0 0
      %3048 = vmatprep.subr.bf16.mxu0 0
      %3049 = vmatpush1.bf16.msra.mxu0 0
      %3050 = vmatprep.subr.bf16.mxu0 0
      %3051 = vmatpush1.bf16.msra.mxu0 0
      %3052 = vmatprep.subr.bf16.mxu0 0
      %3053 = vmatpush1.bf16.msra.mxu0 0
      %3054 = vmatprep.mubr.bf16.mxu0 0
      %3055 = vmatmul.mubr.bf16.gmra.mrb[0].mxu0 %v3020
      %v3056 = vpop.f32.mrb[0].mxu0
      %v3057 = vadd.f32 %v3005, %v3056
      %v3058 = vpop.f32.mrb[0].mxu0
      %v3059 = vpop.f32.mrb[0].mxu0
      %v3060 = vpop.f32.mrb[0].mxu0
      %3061 = vdwg.mxu0
      %v3062 = vmax.f32 %v3057, 0.0
      %v3063 = vpack.c.bf16 %v3062, %v3062
      %v3065 = vlaneseq
      %v3066 = vshrl.u32 %v3065, 7
      %v3067 = vsub.s32 0, %v3066
      %v3068 = vrot.slane %v2999, %v3067
      %v3086 = vunpack.c.l.b16 %v2982
      %v3087 = vunpack.c.l.b16 %v2983
      %v3088 = vunpack.c.l.b16 %v2984
      %v3089 = vunpack.c.l.b16 %v2985
      %v3090 = vunpack.c.l.b16 %v2986
      %v3091 = vunpack.c.l.b16 %v2987
      %v3092 = vunpack.c.l.b16 %v2988
      %v3093 = vunpack.c.l.b16 %v2989
      %v3094 = vunpack.c.l.b16 %v2990
      %v3095 = vunpack.c.l.b16 %v2991
      %v3096 = vunpack.c.l.b16 %v2992
      %v3097 = vunpack.c.l.b16 %v2993
      %v3098 = vunpack.c.l.b16 %v2994
      %v3099 = vunpack.c.l.b16 %v2995
      %v3100 = vunpack.c.l.b16 %v2996
      %v3101 = vunpack.c.l.b16 %v2997
      %v3102 = vpack.c.b16 %v3087, %v3086
      %v3103 = vpack.c.b16 %v3089, %v3088
      %v3104 = vpack.c.b16 %v3091, %v3090
      %v3105 = vpack.c.b16 %v3093, %v3092
      %v3106 = vpack.c.b16 %v3095, %v3094
      %v3107 = vpack.c.b16 %v3097, %v3096
      %v3108 = vpack.c.b16 %v3099, %v3098
      %v3109 = vpack.c.b16 %v3101, %v3100
      %3118 = vmatprep.subr.bf16.mxu0 0
      %3119 = vmatpush1.bf16.msra.mxu0 %v3102
      %3120 = vmatprep.subr.bf16.mxu0 0
      %3121 = vmatpush1.bf16.msra.mxu0 %v3103
      %3122 = vmatprep.subr.bf16.mxu0 0
      %3123 = vmatpush1.bf16.msra.mxu0 %v3104
      %3124 = vmatprep.subr.bf16.mxu0 0
      %3125 = vmatpush1.bf16.msra.mxu0 %v3105
      %3126 = vmatprep.subr.bf16.mxu0 0
      %3127 = vmatpush1.bf16.msra.mxu0 %v3106
      %3128 = vmatprep.subr.bf16.mxu0 0
      %3129 = vmatpush1.bf16.msra.mxu0 %v3107
      %3130 = vmatprep.subr.bf16.mxu0 0
      %3131 = vmatpush1.bf16.msra.mxu0 %v3108
      %3132 = vmatprep.subr.bf16.mxu0 0
      %3133 = vmatpush1.bf16.msra.mxu0 %v3109
      %3134 = vmatprep.subr.bf16.mxu0 0
      %3135 = vmatpush1.bf16.msra.mxu0 0
      %3136 = vmatprep.subr.bf16.mxu0 0
      %3137 = vmatpush1.bf16.msra.mxu0 0
      %3138 = vmatprep.subr.bf16.mxu0 0
      %3139 = vmatpush1.bf16.msra.mxu0 0
      %3140 = vmatprep.subr.bf16.mxu0 0
      %3141 = vmatpush1.bf16.msra.mxu0 0
      %3142 = vmatprep.subr.bf16.mxu0 0
      %3143 = vmatpush1.bf16.msra.mxu0 0
      %3144 = vmatprep.subr.bf16.mxu0 0
      %3145 = vmatpush1.bf16.msra.mxu0 0
      %3146 = vmatprep.subr.bf16.mxu0 0
      %3147 = vmatpush1.bf16.msra.mxu0 0
      %3148 = vmatprep.subr.bf16.mxu0 0
      %3149 = vmatpush1.bf16.msra.mxu0 0
      %3150 = vmatprep.mubr.bf16.mxu0 0
      %3151 = vmatmul.mubr.bf16.gmra.mrb[0].mxu0 %v3063
      %v3152 = vpop.f32.mrb[0].mxu0
      %v3153 = vadd.f32 %v3068, %v3152
      %v3154 = vpop.f32.mrb[0].mxu0
      %v3155 = vpop.f32.mrb[0].mxu0
      %v3156 = vpop.f32.mrb[0].mxu0
      %3157 = vdwg.mxu0
      %v3158 = vadd.f32 %v2942, %v3153
      %v3159 = vld [vmem:[%s71] sm:$0x1]
      %v3160 = vld [vmem:[%s73] sm:$0x1]
      %v3161 = vsel %vm1247, %v3158, 0.0
      %3162 = vadd.xlane.f32.xlu0 %v3161
      %v3163 = vpop.xlane.xlu0 %3162
      %v3164 = vmul.f32 %v3163, %v1251
      %v3165 = vsub.f32 %v3158, %v3164
      %v3166 = vmul.f32 %v3165, %v3165
      %v3167 = vsel %vm1247, %v3166, 0.0
      %3168 = vadd.xlane.f32.xlu0 %v3167
      %v3169 = vpop.xlane.xlu0 %3168
      %v3170 = vmul.f32 %v3169, %v1251
      %v3171 = vadd.f32 %v3170, 1e-05
      %v3172 = vrsqrt.pop %v3171
      %v3173 = vmul.f32 %v3165, %v3172
      %v3175 = vlaneseq
      %v3176 = vshrl.u32 %v3175, 7
      %v3177 = vsub.s32 0, %v3176
      %v3178 = vrot.slane %v3159, %v3177
      %v3180 = vmul.f32 %v3173, %v3178
      %v3182 = vlaneseq
      %v3183 = vshrl.u32 %v3182, 7
      %v3184 = vsub.s32 0, %v3183
      %v3185 = vrot.slane %v3160, %v3184
      %v3187 = vadd.f32 %v3180, %v3185
      %v3188 = vpack.c.bf16 %v3187, %v3187
      %v3189 = vld [vmem:[%s31] sm:$0x1]
      %v3190 = vld [vmem:[%s33] sm:$0x1]
      %v3191 = vsel %vm1247, %v1233, 0.0
      %3192 = vadd.xlane.f32.xlu0 %v3191
      %v3193 = vpop.xlane.xlu0 %3192
      %v3194 = vmul.f32 %v3193, %v1251
      %v3195 = vsub.f32 %v1233, %v3194
      %v3196 = vmul.f32 %v3195, %v3195
      %v3197 = vsel %vm1247, %v3196, 0.0
      %3198 = vadd.xlane.f32.xlu0 %v3197
      %v3199 = vpop.xlane.xlu0 %3198
      %v3200 = vmul.f32 %v3199, %v1251
      %v3201 = vadd.f32 %v3200, 1e-05
      %v3202 = vrsqrt.pop %v3201
      %v3203 = vmul.f32 %v3195, %v3202
      %v3205 = vlaneseq
      %v3206 = vshrl.u32 %v3205, 7
      %v3207 = vsub.s32 0, %v3206
      %v3208 = vrot.slane %v3189, %v3207
      %v3210 = vmul.f32 %v3203, %v3208
      %v3212 = vlaneseq
      %v3213 = vshrl.u32 %v3212, 7
      %v3214 = vsub.s32 0, %v3213
      %v3215 = vrot.slane %v3190, %v3214
      %v3217 = vadd.f32 %v3210, %v3215
      %v3218 = vld [vmem:[%s35] sm:$0xf]
      %v3219 = vld [vmem:[%s35 + $0x4] sm:$0xf]
      %v3220 = vld [vmem:[%s35 + $0x8] sm:$0xf]
      %v3221 = vld [vmem:[%s35 + $0xc] sm:$0xf]
      %v3222 = vld [vmem:[%s37] sm:$0x1]
      %v3223 = vld [vmem:[%s39] sm:$0xf]
      %v3224 = vld [vmem:[%s39 + $0x4] sm:$0xf]
      %v3225 = vld [vmem:[%s39 + $0x8] sm:$0xf]
      %v3226 = vld [vmem:[%s39 + $0xc] sm:$0xf]
      %v3227 = vld [vmem:[%s41] sm:$0x1]
      %v3228 = vpack.c.bf16 %v3217, %v3217
      %v3230 = vlaneseq
      %v3231 = vshrl.u32 %v3230, 7
      %v3232 = vsub.s32 0, %v3231
      %v3233 = vrot.slane %v3222, %v3232
      %v3239 = vunpack.c.l.b16 %v3218
      %v3240 = vunpack.c.l.b16 %v3219
      %v3241 = vunpack.c.l.b16 %v3220
      %v3242 = vunpack.c.l.b16 %v3221
      %v3243 = vpack.c.b16 %v3240, %v3239
      %v3244 = vpack.c.b16 %v3242, %v3241
      %v3248 = vsel %vm1247, %v3228, 0
      %3250 = vmatprep.subr.bf16.mxu0 0
      %3251 = vmatpush1.bf16.msra.mxu0 %v3243
      %3252 = vmatprep.subr.bf16.mxu0 0
      %3253 = vmatpush1.bf16.msra.mxu0 %v3244
      %3254 = vmatprep.subr.bf16.mxu0 0
      %3255 = vmatpush1.bf16.msra.mxu0 0
      %3256 = vmatprep.subr.bf16.mxu0 0
      %3257 = vmatpush1.bf16.msra.mxu0 0
      %3258 = vmatprep.subr.bf16.mxu0 0
      %3259 = vmatpush1.bf16.msra.mxu0 0
      %3260 = vmatprep.subr.bf16.mxu0 0
      %3261 = vmatpush1.bf16.msra.mxu0 0
      %3262 = vmatprep.subr.bf16.mxu0 0
      %3263 = vmatpush1.bf16.msra.mxu0 0
      %3264 = vmatprep.subr.bf16.mxu0 0
      %3265 = vmatpush1.bf16.msra.mxu0 0
      %3266 = vmatprep.subr.bf16.mxu0 0
      %3267 = vmatpush1.bf16.msra.mxu0 0
      %3268 = vmatprep.subr.bf16.mxu0 0
      %3269 = vmatpush1.bf16.msra.mxu0 0
      %3270 = vmatprep.subr.bf16.mxu0 0
      %3271 = vmatpush1.bf16.msra.mxu0 0
      %3272 = vmatprep.subr.bf16.mxu0 0
      %3273 = vmatpush1.bf16.msra.mxu0 0
      %3274 = vmatprep.subr.bf16.mxu0 0
      %3275 = vmatpush1.bf16.msra.mxu0 0
      %3276 = vmatprep.subr.bf16.mxu0 0
      %3277 = vmatpush1.bf16.msra.mxu0 0
      %3278 = vmatprep.subr.bf16.mxu0 0
      %3279 = vmatpush1.bf16.msra.mxu0 0
      %3280 = vmatprep.subr.bf16.mxu0 0
      %3281 = vmatpush1.bf16.msra.mxu0 0
      %3282 = vmatprep.mubr.bf16.mxu0 0
      %3283 = vmatmul.mubr.bf16.gmra.mrb[0].mxu0 %v3248
      %v3284 = vpop.f32.mrb[0].mxu0
      %v3285 = vadd.f32 %v3233, %v3284
      %v3286 = vpop.f32.mrb[0].mxu0
      %v3287 = vpop.f32.mrb[0].mxu0
      %v3288 = vpop.f32.mrb[0].mxu0
      %3289 = vdwg.mxu0
      %v3290 = vpack.c.bf16 %v3285, %v3285
      %3292 = vrot.lane.b32.xlu0 %v3290, 96
      %v3293 = vpop.permute.xlu0 %3292
      %v3295 = vsel %vm1352, %v3290, 0
      %v3298 = vsel %vm1352, %v3293, 0
      %3300 = vmatprep.subr.bf16.mxu0 0
      %3301 = vmatpush1.bf16.xpose.msra.mxu0 %v3298
      %3302 = vmatprep.subr.bf16.mxu0 0
      %3303 = vmatpush1.bf16.xpose.msra.mxu0 0
      %3304 = vmatprep.subr.bf16.mxu0 0
      %3305 = vmatpush1.bf16.xpose.msra.mxu0 0
      %3306 = vmatprep.subr.bf16.mxu0 0
      %3307 = vmatpush1.bf16.xpose.msra.mxu0 0
      %3308 = vmatprep.subr.bf16.mxu0 0
      %3309 = vmatpush1.bf16.xpose.msra.mxu0 0
      %3310 = vmatprep.subr.bf16.mxu0 0
      %3311 = vmatpush1.bf16.xpose.msra.mxu0 0
      %3312 = vmatprep.subr.bf16.mxu0 0
      %3313 = vmatpush1.bf16.xpose.msra.mxu0 0
      %3314 = vmatprep.subr.bf16.mxu0 0
      %3315 = vmatpush1.bf16.xpose.msra.mxu0 0
      %3316 = vmatprep.subr.bf16.mxu0 0
      %3317 = vmatpush1.bf16.xpose.msra.mxu0 0
      %3318 = vmatprep.subr.bf16.mxu0 0
      %3319 = vmatpush1.bf16.xpose.msra.mxu0 0
      %3320 = vmatprep.subr.bf16.mxu0 0
      %3321 = vmatpush1.bf16.xpose.msra.mxu0 0
      %3322 = vmatprep.subr.bf16.mxu0 0
      %3323 = vmatpush1.bf16.xpose.msra.mxu0 0
      %3324 = vmatprep.subr.bf16.mxu0 0
      %3325 = vmatpush1.bf16.xpose.msra.mxu0 0
      %3326 = vmatprep.subr.bf16.mxu0 0
      %3327 = vmatpush1.bf16.xpose.msra.mxu0 0
      %3328 = vmatprep.subr.bf16.mxu0 0
      %3329 = vmatpush1.bf16.xpose.msra.mxu0 0
      %3330 = vmatprep.subr.bf16.mxu0 0
      %3331 = vmatpush1.bf16.xpose.msra.mxu0 0
      %3332 = vmatprep.mubr.bf16.mxu0 0
      %3333 = vmatmul.mubr.bf16.gmra.mrb[0].mxu0 %v3295
      %v3334 = vpop.f32.mrb[0].mxu0
      %v3335 = vadd.f32 %v1244, %v3334
      %v3336 = vpop.f32.mrb[0].mxu0
      %v3337 = vpop.f32.mrb[0].mxu0
      %v3338 = vpop.f32.mrb[0].mxu0
      %3339 = vdwg.mxu0
      %v3340 = vsel %vm1352, %v3335, -inf
      %3341 = vmax.xlane.f32.xlu0 %v3340
      %v3342 = vpop.xlane.xlu0 %3341
      %v3343 = vsub.f32 %v3335, %v3342
      %v3344 = vmul.f32 %v3343, 1.442695
      %v3345 = vpow.pop %v3344
      %v3346 = vsel %vm1352, %v3345, 0.0
      %3347 = vadd.xlane.f32.xlu0 %v3346
      %v3348 = vpop.xlane.xlu0 %3347
      %v3349 = vrcp.pop %v3348
      %v3350 = vmul.f32 %v3345, %v3349
      %v3351 = vpack.c.bf16 %v3350, %v3350
      %3352 = vrot.lane.b32.xlu0 %v3290, 64
      %v3353 = vpop.permute.xlu0 %3352
      %v3355 = vsel %vm1352, %v3351, 0
      %v3358 = vsel %vm1416, %v3353, 0
      %3360 = vmatprep.subr.bf16.mxu0 0
      %3361 = vmatpush1.bf16.msra.mxu0 %v3358
      %3362 = vmatprep.subr.bf16.mxu0 0
      %3363 = vmatpush1.bf16.msra.mxu0 0
      %3364 = vmatprep.subr.bf16.mxu0 0
      %3365 = vmatpush1.bf16.msra.mxu0 0
      %3366 = vmatprep.subr.bf16.mxu0 0
      %3367 = vmatpush1.bf16.msra.mxu0 0
      %3368 = vmatprep.subr.bf16.mxu0 0
      %3369 = vmatpush1.bf16.msra.mxu0 0
      %3370 = vmatprep.subr.bf16.mxu0 0
      %3371 = vmatpush1.bf16.msra.mxu0 0
      %3372 = vmatprep.subr.bf16.mxu0 0
      %3373 = vmatpush1.bf16.msra.mxu0 0
      %3374 = vmatprep.subr.bf16.mxu0 0
      %3375 = vmatpush1.bf16.msra.mxu0 0
      %3376 = vmatprep.subr.bf16.mxu0 0
      %3377 = vmatpush1.bf16.msra.mxu0 0
      %3378 = vmatprep.subr.bf16.mxu0 0
      %3379 = vmatpush1.bf16.msra.mxu0 0
      %3380 = vmatprep.subr.bf16.mxu0 0
      %3381 = vmatpush1.bf16.msra.mxu0 0
      %3382 = vmatprep.subr.bf16.mxu0 0
      %3383 = vmatpush1.bf16.msra.mxu0 0
      %3384 = vmatprep.subr.bf16.mxu0 0
      %3385 = vmatpush1.bf16.msra.mxu0 0
      %3386 = vmatprep.subr.bf16.mxu0 0
      %3387 = vmatpush1.bf16.msra.mxu0 0
      %3388 = vmatprep.subr.bf16.mxu0 0
      %3389 = vmatpush1.bf16.msra.mxu0 0
      %3390 = vmatprep.subr.bf16.mxu0 0
      %3391 = vmatpush1.bf16.msra.mxu0 0
      %3392 = vmatprep.mubr.bf16.mxu0 0
      %3393 = vmatmul.mubr.bf16.gmra.mrb[0].mxu0 %v3355
      %v3394 = vpop.f32.mrb[0].mxu0
      %v3395 = vadd.f32 0.0, %v3394
      %v3396 = vpop.f32.mrb[0].mxu0
      %v3397 = vpop.f32.mrb[0].mxu0
      %v3398 = vpop.f32.mrb[0].mxu0
      %3399 = vdwg.mxu0
      %v3400 = vpack.c.bf16 %v3395, %v3395
      %3401 = vrot.lane.b32.xlu0 %v3290, 120
      %v3402 = vpop.permute.xlu0 %3401
      %3403 = vrot.lane.b32.xlu0 %v3290, 88
      %v3404 = vpop.permute.xlu0 %3403
      %v3406 = vsel %vm1352, %v3402, 0
      %v3409 = vsel %vm1352, %v3404, 0
      %3411 = vmatprep.subr.bf16.mxu0 0
      %3412 = vmatpush1.bf16.xpose.msra.mxu0 %v3409
      %3413 = vmatprep.subr.bf16.mxu0 0
      %3414 = vmatpush1.bf16.xpose.msra.mxu0 0
      %3415 = vmatprep.subr.bf16.mxu0 0
      %3416 = vmatpush1.bf16.xpose.msra.mxu0 0
      %3417 = vmatprep.subr.bf16.mxu0 0
      %3418 = vmatpush1.bf16.xpose.msra.mxu0 0
      %3419 = vmatprep.subr.bf16.mxu0 0
      %3420 = vmatpush1.bf16.xpose.msra.mxu0 0
      %3421 = vmatprep.subr.bf16.mxu0 0
      %3422 = vmatpush1.bf16.xpose.msra.mxu0 0
      %3423 = vmatprep.subr.bf16.mxu0 0
      %3424 = vmatpush1.bf16.xpose.msra.mxu0 0
      %3425 = vmatprep.subr.bf16.mxu0 0
      %3426 = vmatpush1.bf16.xpose.msra.mxu0 0
      %3427 = vmatprep.subr.bf16.mxu0 0
      %3428 = vmatpush1.bf16.xpose.msra.mxu0 0
      %3429 = vmatprep.subr.bf16.mxu0 0
      %3430 = vmatpush1.bf16.xpose.msra.mxu0 0
      %3431 = vmatprep.subr.bf16.mxu0 0
      %3432 = vmatpush1.bf16.xpose.msra.mxu0 0
      %3433 = vmatprep.subr.bf16.mxu0 0
      %3434 = vmatpush1.bf16.xpose.msra.mxu0 0
      %3435 = vmatprep.subr.bf16.mxu0 0
      %3436 = vmatpush1.bf16.xpose.msra.mxu0 0
      %3437 = vmatprep.subr.bf16.mxu0 0
      %3438 = vmatpush1.bf16.xpose.msra.mxu0 0
      %3439 = vmatprep.subr.bf16.mxu0 0
      %3440 = vmatpush1.bf16.xpose.msra.mxu0 0
      %3441 = vmatprep.subr.bf16.mxu0 0
      %3442 = vmatpush1.bf16.xpose.msra.mxu0 0
      %3443 = vmatprep.mubr.bf16.mxu0 0
      %3444 = vmatmul.mubr.bf16.gmra.mrb[0].mxu0 %v3406
      %v3445 = vpop.f32.mrb[0].mxu0
      %v3446 = vadd.f32 %v1244, %v3445
      %v3447 = vpop.f32.mrb[0].mxu0
      %v3448 = vpop.f32.mrb[0].mxu0
      %v3449 = vpop.f32.mrb[0].mxu0
      %3450 = vdwg.mxu0
      %v3451 = vsel %vm1352, %v3446, -inf
      %3452 = vmax.xlane.f32.xlu0 %v3451
      %v3453 = vpop.xlane.xlu0 %3452
      %v3454 = vsub.f32 %v3446, %v3453
      %v3455 = vmul.f32 %v3454, 1.442695
      %v3456 = vpow.pop %v3455
      %v3457 = vsel %vm1352, %v3456, 0.0
      %3458 = vadd.xlane.f32.xlu0 %v3457
      %v3459 = vpop.xlane.xlu0 %3458
      %v3460 = vrcp.pop %v3459
      %v3461 = vmul.f32 %v3456, %v3460
      %v3462 = vpack.c.bf16 %v3461, %v3461
      %3463 = vrot.lane.b32.xlu0 %v3290, 56
      %v3464 = vpop.permute.xlu0 %3463
      %v3466 = vsel %vm1352, %v3462, 0
      %v3469 = vsel %vm1416, %v3464, 0
      %3471 = vmatprep.subr.bf16.mxu0 0
      %3472 = vmatpush1.bf16.msra.mxu0 %v3469
      %3473 = vmatprep.subr.bf16.mxu0 0
      %3474 = vmatpush1.bf16.msra.mxu0 0
      %3475 = vmatprep.subr.bf16.mxu0 0
      %3476 = vmatpush1.bf16.msra.mxu0 0
      %3477 = vmatprep.subr.bf16.mxu0 0
      %3478 = vmatpush1.bf16.msra.mxu0 0
      %3479 = vmatprep.subr.bf16.mxu0 0
      %3480 = vmatpush1.bf16.msra.mxu0 0
      %3481 = vmatprep.subr.bf16.mxu0 0
      %3482 = vmatpush1.bf16.msra.mxu0 0
      %3483 = vmatprep.subr.bf16.mxu0 0
      %3484 = vmatpush1.bf16.msra.mxu0 0
      %3485 = vmatprep.subr.bf16.mxu0 0
      %3486 = vmatpush1.bf16.msra.mxu0 0
      %3487 = vmatprep.subr.bf16.mxu0 0
      %3488 = vmatpush1.bf16.msra.mxu0 0
      %3489 = vmatprep.subr.bf16.mxu0 0
      %3490 = vmatpush1.bf16.msra.mxu0 0
      %3491 = vmatprep.subr.bf16.mxu0 0
      %3492 = vmatpush1.bf16.msra.mxu0 0
      %3493 = vmatprep.subr.bf16.mxu0 0
      %3494 = vmatpush1.bf16.msra.mxu0 0
      %3495 = vmatprep.subr.bf16.mxu0 0
      %3496 = vmatpush1.bf16.msra.mxu0 0
      %3497 = vmatprep.subr.bf16.mxu0 0
      %3498 = vmatpush1.bf16.msra.mxu0 0
      %3499 = vmatprep.subr.bf16.mxu0 0
      %3500 = vmatpush1.bf16.msra.mxu0 0
      %3501 = vmatprep.subr.bf16.mxu0 0
      %3502 = vmatpush1.bf16.msra.mxu0 0
      %3503 = vmatprep.mubr.bf16.mxu0 0
      %3504 = vmatmul.mubr.bf16.gmra.mrb[0].mxu0 %v3466
      %v3505 = vpop.f32.mrb[0].mxu0
      %v3506 = vadd.f32 0.0, %v3505
      %v3507 = vpop.f32.mrb[0].mxu0
      %v3508 = vpop.f32.mrb[0].mxu0
      %v3509 = vpop.f32.mrb[0].mxu0
      %3510 = vdwg.mxu0
      %v3511 = vpack.c.bf16 %v3506, %v3506
      %v3513 = vsel %vm1352, %v3511, 0
      %v3516 = vsel %vm1416, %v3224, 0
      %3518 = vmatprep.subr.bf16.mxu0 0
      %3519 = vmatpush1.bf16.msra.mxu0 %v3516
      %3520 = vmatprep.subr.bf16.mxu0 0
      %3521 = vmatpush1.bf16.msra.mxu0 0
      %3522 = vmatprep.subr.bf16.mxu0 0
      %3523 = vmatpush1.bf16.msra.mxu0 0
      %3524 = vmatprep.subr.bf16.mxu0 0
      %3525 = vmatpush1.bf16.msra.mxu0 0
      %3526 = vmatprep.subr.bf16.mxu0 0
      %3527 = vmatpush1.bf16.msra.mxu0 0
      %3528 = vmatprep.subr.bf16.mxu0 0
      %3529 = vmatpush1.bf16.msra.mxu0 0
      %3530 = vmatprep.subr.bf16.mxu0 0
      %3531 = vmatpush1.bf16.msra.mxu0 0
      %3532 = vmatprep.subr.bf16.mxu0 0
      %3533 = vmatpush1.bf16.msra.mxu0 0
      %3534 = vmatprep.subr.bf16.mxu0 0
      %3535 = vmatpush1.bf16.msra.mxu0 0
      %3536 = vmatprep.subr.bf16.mxu0 0
      %3537 = vmatpush1.bf16.msra.mxu0 0
      %3538 = vmatprep.subr.bf16.mxu0 0
      %3539 = vmatpush1.bf16.msra.mxu0 0
      %3540 = vmatprep.subr.bf16.mxu0 0
      %3541 = vmatpush1.bf16.msra.mxu0 0
      %3542 = vmatprep.subr.bf16.mxu0 0
      %3543 = vmatpush1.bf16.msra.mxu0 0
      %3544 = vmatprep.subr.bf16.mxu0 0
      %3545 = vmatpush1.bf16.msra.mxu0 0
      %3546 = vmatprep.subr.bf16.mxu0 0
      %3547 = vmatpush1.bf16.msra.mxu0 0
      %3548 = vmatprep.subr.bf16.mxu0 0
      %3549 = vmatpush1.bf16.msra.mxu0 0
      %3550 = vmatprep.mubr.bf16.mxu0 0
      %3551 = vmatmul.mubr.bf16.gmra.mrb[0].mxu0 %v3513
      %v3552 = vpop.f32.mrb[0].mxu0
      %v3553 = vadd.f32 0.0, %v3552
      %v3554 = vpop.f32.mrb[0].mxu0
      %v3555 = vpop.f32.mrb[0].mxu0
      %v3556 = vpop.f32.mrb[0].mxu0
      %3557 = vdwg.mxu0
      %v3559 = vsel %vm1352, %v3400, 0
      %v3562 = vsel %vm1416, %v3223, 0
      %3564 = vmatprep.subr.bf16.mxu0 0
      %3565 = vmatpush1.bf16.msra.mxu0 %v3562
      %3566 = vmatprep.subr.bf16.mxu0 0
      %3567 = vmatpush1.bf16.msra.mxu0 0
      %3568 = vmatprep.subr.bf16.mxu0 0
      %3569 = vmatpush1.bf16.msra.mxu0 0
      %3570 = vmatprep.subr.bf16.mxu0 0
      %3571 = vmatpush1.bf16.msra.mxu0 0
      %3572 = vmatprep.subr.bf16.mxu0 0
      %3573 = vmatpush1.bf16.msra.mxu0 0
      %3574 = vmatprep.subr.bf16.mxu0 0
      %3575 = vmatpush1.bf16.msra.mxu0 0
      %3576 = vmatprep.subr.bf16.mxu0 0
      %3577 = vmatpush1.bf16.msra.mxu0 0
      %3578 = vmatprep.subr.bf16.mxu0 0
      %3579 = vmatpush1.bf16.msra.mxu0 0
      %3580 = vmatprep.subr.bf16.mxu0 0
      %3581 = vmatpush1.bf16.msra.mxu0 0
      %3582 = vmatprep.subr.bf16.mxu0 0
      %3583 = vmatpush1.bf16.msra.mxu0 0
      %3584 = vmatprep.subr.bf16.mxu0 0
      %3585 = vmatpush1.bf16.msra.mxu0 0
      %3586 = vmatprep.subr.bf16.mxu0 0
      %3587 = vmatpush1.bf16.msra.mxu0 0
      %3588 = vmatprep.subr.bf16.mxu0 0
      %3589 = vmatpush1.bf16.msra.mxu0 0
      %3590 = vmatprep.subr.bf16.mxu0 0
      %3591 = vmatpush1.bf16.msra.mxu0 0
      %3592 = vmatprep.subr.bf16.mxu0 0
      %3593 = vmatpush1.bf16.msra.mxu0 0
      %3594 = vmatprep.subr.bf16.mxu0 0
      %3595 = vmatpush1.bf16.msra.mxu0 0
      %3596 = vmatprep.mubr.bf16.mxu0 0
      %3597 = vmatmul.mubr.bf16.gmra.mrb[0].mxu0 %v3559
      %v3598 = vpop.f32.mrb[0].mxu0
      %v3599 = vadd.f32 %v3553, %v3598
      %v3600 = vpop.f32.mrb[0].mxu0
      %v3601 = vpop.f32.mrb[0].mxu0
      %v3602 = vpop.f32.mrb[0].mxu0
      %3603 = vdwg.mxu0
      %3604 = vrot.lane.b32.xlu0 %v3290, 112
      %v3605 = vpop.permute.xlu0 %3604
      %3606 = vrot.lane.b32.xlu0 %v3290, 80
      %v3607 = vpop.permute.xlu0 %3606
      %v3609 = vsel %vm1352, %v3605, 0
      %v3612 = vsel %vm1352, %v3607, 0
      %3614 = vmatprep.subr.bf16.mxu0 0
      %3615 = vmatpush1.bf16.xpose.msra.mxu0 %v3612
      %3616 = vmatprep.subr.bf16.mxu0 0
      %3617 = vmatpush1.bf16.xpose.msra.mxu0 0
      %3618 = vmatprep.subr.bf16.mxu0 0
      %3619 = vmatpush1.bf16.xpose.msra.mxu0 0
      %3620 = vmatprep.subr.bf16.mxu0 0
      %3621 = vmatpush1.bf16.xpose.msra.mxu0 0
      %3622 = vmatprep.subr.bf16.mxu0 0
      %3623 = vmatpush1.bf16.xpose.msra.mxu0 0
      %3624 = vmatprep.subr.bf16.mxu0 0
      %3625 = vmatpush1.bf16.xpose.msra.mxu0 0
      %3626 = vmatprep.subr.bf16.mxu0 0
      %3627 = vmatpush1.bf16.xpose.msra.mxu0 0
      %3628 = vmatprep.subr.bf16.mxu0 0
      %3629 = vmatpush1.bf16.xpose.msra.mxu0 0
      %3630 = vmatprep.subr.bf16.mxu0 0
      %3631 = vmatpush1.bf16.xpose.msra.mxu0 0
      %3632 = vmatprep.subr.bf16.mxu0 0
      %3633 = vmatpush1.bf16.xpose.msra.mxu0 0
      %3634 = vmatprep.subr.bf16.mxu0 0
      %3635 = vmatpush1.bf16.xpose.msra.mxu0 0
      %3636 = vmatprep.subr.bf16.mxu0 0
      %3637 = vmatpush1.bf16.xpose.msra.mxu0 0
      %3638 = vmatprep.subr.bf16.mxu0 0
      %3639 = vmatpush1.bf16.xpose.msra.mxu0 0
      %3640 = vmatprep.subr.bf16.mxu0 0
      %3641 = vmatpush1.bf16.xpose.msra.mxu0 0
      %3642 = vmatprep.subr.bf16.mxu0 0
      %3643 = vmatpush1.bf16.xpose.msra.mxu0 0
      %3644 = vmatprep.subr.bf16.mxu0 0
      %3645 = vmatpush1.bf16.xpose.msra.mxu0 0
      %3646 = vmatprep.mubr.bf16.mxu0 0
      %3647 = vmatmul.mubr.bf16.gmra.mrb[0].mxu0 %v3609
      %v3648 = vpop.f32.mrb[0].mxu0
      %v3649 = vadd.f32 %v1244, %v3648
      %v3650 = vpop.f32.mrb[0].mxu0
      %v3651 = vpop.f32.mrb[0].mxu0
      %v3652 = vpop.f32.mrb[0].mxu0
      %3653 = vdwg.mxu0
      %v3654 = vsel %vm1352, %v3649, -inf
      %3655 = vmax.xlane.f32.xlu0 %v3654
      %v3656 = vpop.xlane.xlu0 %3655
      %v3657 = vsub.f32 %v3649, %v3656
      %v3658 = vmul.f32 %v3657, 1.442695
      %v3659 = vpow.pop %v3658
      %v3660 = vsel %vm1352, %v3659, 0.0
      %3661 = vadd.xlane.f32.xlu0 %v3660
      %v3662 = vpop.xlane.xlu0 %3661
      %v3663 = vrcp.pop %v3662
      %v3664 = vmul.f32 %v3659, %v3663
      %v3665 = vpack.c.bf16 %v3664, %v3664
      %3666 = vrot.lane.b32.xlu0 %v3290, 48
      %v3667 = vpop.permute.xlu0 %3666
      %v3669 = vsel %vm1352, %v3665, 0
      %v3672 = vsel %vm1416, %v3667, 0
      %3674 = vmatprep.subr.bf16.mxu0 0
      %3675 = vmatpush1.bf16.msra.mxu0 %v3672
      %3676 = vmatprep.subr.bf16.mxu0 0
      %3677 = vmatpush1.bf16.msra.mxu0 0
      %3678 = vmatprep.subr.bf16.mxu0 0
      %3679 = vmatpush1.bf16.msra.mxu0 0
      %3680 = vmatprep.subr.bf16.mxu0 0
      %3681 = vmatpush1.bf16.msra.mxu0 0
      %3682 = vmatprep.subr.bf16.mxu0 0
      %3683 = vmatpush1.bf16.msra.mxu0 0
      %3684 = vmatprep.subr.bf16.mxu0 0
      %3685 = vmatpush1.bf16.msra.mxu0 0
      %3686 = vmatprep.subr.bf16.mxu0 0
      %3687 = vmatpush1.bf16.msra.mxu0 0
      %3688 = vmatprep.subr.bf16.mxu0 0
      %3689 = vmatpush1.bf16.msra.mxu0 0
      %3690 = vmatprep.subr.bf16.mxu0 0
      %3691 = vmatpush1.bf16.msra.mxu0 0
      %3692 = vmatprep.subr.bf16.mxu0 0
      %3693 = vmatpush1.bf16.msra.mxu0 0
      %3694 = vmatprep.subr.bf16.mxu0 0
      %3695 = vmatpush1.bf16.msra.mxu0 0
      %3696 = vmatprep.subr.bf16.mxu0 0
      %3697 = vmatpush1.bf16.msra.mxu0 0
      %3698 = vmatprep.subr.bf16.mxu0 0
      %3699 = vmatpush1.bf16.msra.mxu0 0
      %3700 = vmatprep.subr.bf16.mxu0 0
      %3701 = vmatpush1.bf16.msra.mxu0 0
      %3702 = vmatprep.subr.bf16.mxu0 0
      %3703 = vmatpush1.bf16.msra.mxu0 0
      %3704 = vmatprep.subr.bf16.mxu0 0
      %3705 = vmatpush1.bf16.msra.mxu0 0
      %3706 = vmatprep.mubr.bf16.mxu0 0
      %3707 = vmatmul.mubr.bf16.gmra.mrb[0].mxu0 %v3669
      %v3708 = vpop.f32.mrb[0].mxu0
      %v3709 = vadd.f32 0.0, %v3708
      %v3710 = vpop.f32.mrb[0].mxu0
      %v3711 = vpop.f32.mrb[0].mxu0
      %v3712 = vpop.f32.mrb[0].mxu0
      %3713 = vdwg.mxu0
      %v3714 = vpack.c.bf16 %v3709, %v3709
      %v3716 = vsel %vm1352, %v3714, 0
      %v3719 = vsel %vm1416, %v3225, 0
      %3721 = vmatprep.subr.bf16.mxu0 0
      %3722 = vmatpush1.bf16.msra.mxu0 %v3719
      %3723 = vmatprep.subr.bf16.mxu0 0
      %3724 = vmatpush1.bf16.msra.mxu0 0
      %3725 = vmatprep.subr.bf16.mxu0 0
      %3726 = vmatpush1.bf16.msra.mxu0 0
      %3727 = vmatprep.subr.bf16.mxu0 0
      %3728 = vmatpush1.bf16.msra.mxu0 0
      %3729 = vmatprep.subr.bf16.mxu0 0
      %3730 = vmatpush1.bf16.msra.mxu0 0
      %3731 = vmatprep.subr.bf16.mxu0 0
      %3732 = vmatpush1.bf16.msra.mxu0 0
      %3733 = vmatprep.subr.bf16.mxu0 0
      %3734 = vmatpush1.bf16.msra.mxu0 0
      %3735 = vmatprep.subr.bf16.mxu0 0
      %3736 = vmatpush1.bf16.msra.mxu0 0
      %3737 = vmatprep.subr.bf16.mxu0 0
      %3738 = vmatpush1.bf16.msra.mxu0 0
      %3739 = vmatprep.subr.bf16.mxu0 0
      %3740 = vmatpush1.bf16.msra.mxu0 0
      %3741 = vmatprep.subr.bf16.mxu0 0
      %3742 = vmatpush1.bf16.msra.mxu0 0
      %3743 = vmatprep.subr.bf16.mxu0 0
      %3744 = vmatpush1.bf16.msra.mxu0 0
      %3745 = vmatprep.subr.bf16.mxu0 0
      %3746 = vmatpush1.bf16.msra.mxu0 0
      %3747 = vmatprep.subr.bf16.mxu0 0
      %3748 = vmatpush1.bf16.msra.mxu0 0
      %3749 = vmatprep.subr.bf16.mxu0 0
      %3750 = vmatpush1.bf16.msra.mxu0 0
      %3751 = vmatprep.subr.bf16.mxu0 0
      %3752 = vmatpush1.bf16.msra.mxu0 0
      %3753 = vmatprep.mubr.bf16.mxu0 0
      %3754 = vmatmul.mubr.bf16.gmra.mrb[0].mxu0 %v3716
      %v3755 = vpop.f32.mrb[0].mxu0
      %v3756 = vadd.f32 0.0, %v3755
      %v3757 = vpop.f32.mrb[0].mxu0
      %v3758 = vpop.f32.mrb[0].mxu0
      %v3759 = vpop.f32.mrb[0].mxu0
      %3760 = vdwg.mxu0
      %v3761 = vadd.f32 %v3599, %v3756
      %3762 = vrot.lane.b32.xlu0 %v3290, 104
      %v3763 = vpop.permute.xlu0 %3762
      %3764 = vrot.lane.b32.xlu0 %v3290, 72
      %v3765 = vpop.permute.xlu0 %3764
      %v3767 = vsel %vm1352, %v3763, 0
      %v3770 = vsel %vm1352, %v3765, 0
      %3772 = vmatprep.subr.bf16.mxu0 0
      %3773 = vmatpush1.bf16.xpose.msra.mxu0 %v3770
      %3774 = vmatprep.subr.bf16.mxu0 0
      %3775 = vmatpush1.bf16.xpose.msra.mxu0 0
      %3776 = vmatprep.subr.bf16.mxu0 0
      %3777 = vmatpush1.bf16.xpose.msra.mxu0 0
      %3778 = vmatprep.subr.bf16.mxu0 0
      %3779 = vmatpush1.bf16.xpose.msra.mxu0 0
      %3780 = vmatprep.subr.bf16.mxu0 0
      %3781 = vmatpush1.bf16.xpose.msra.mxu0 0
      %3782 = vmatprep.subr.bf16.mxu0 0
      %3783 = vmatpush1.bf16.xpose.msra.mxu0 0
      %3784 = vmatprep.subr.bf16.mxu0 0
      %3785 = vmatpush1.bf16.xpose.msra.mxu0 0
      %3786 = vmatprep.subr.bf16.mxu0 0
      %3787 = vmatpush1.bf16.xpose.msra.mxu0 0
      %3788 = vmatprep.subr.bf16.mxu0 0
      %3789 = vmatpush1.bf16.xpose.msra.mxu0 0
      %3790 = vmatprep.subr.bf16.mxu0 0
      %3791 = vmatpush1.bf16.xpose.msra.mxu0 0
      %3792 = vmatprep.subr.bf16.mxu0 0
      %3793 = vmatpush1.bf16.xpose.msra.mxu0 0
      %3794 = vmatprep.subr.bf16.mxu0 0
      %3795 = vmatpush1.bf16.xpose.msra.mxu0 0
      %3796 = vmatprep.subr.bf16.mxu0 0
      %3797 = vmatpush1.bf16.xpose.msra.mxu0 0
      %3798 = vmatprep.subr.bf16.mxu0 0
      %3799 = vmatpush1.bf16.xpose.msra.mxu0 0
      %3800 = vmatprep.subr.bf16.mxu0 0
      %3801 = vmatpush1.bf16.xpose.msra.mxu0 0
      %3802 = vmatprep.subr.bf16.mxu0 0
      %3803 = vmatpush1.bf16.xpose.msra.mxu0 0
      %3804 = vmatprep.mubr.bf16.mxu0 0
      %3805 = vmatmul.mubr.bf16.gmra.mrb[0].mxu0 %v3767
      %v3806 = vpop.f32.mrb[0].mxu0
      %v3807 = vadd.f32 %v1244, %v3806
      %v3808 = vpop.f32.mrb[0].mxu0
      %v3809 = vpop.f32.mrb[0].mxu0
      %v3810 = vpop.f32.mrb[0].mxu0
      %3811 = vdwg.mxu0
      %v3812 = vsel %vm1352, %v3807, -inf
      %3813 = vmax.xlane.f32.xlu0 %v3812
      %v3814 = vpop.xlane.xlu0 %3813
      %v3815 = vsub.f32 %v3807, %v3814
      %v3816 = vmul.f32 %v3815, 1.442695
      %v3817 = vpow.pop %v3816
      %v3818 = vsel %vm1352, %v3817, 0.0
      %3819 = vadd.xlane.f32.xlu0 %v3818
      %v3820 = vpop.xlane.xlu0 %3819
      %v3821 = vrcp.pop %v3820
      %v3822 = vmul.f32 %v3817, %v3821
      %v3823 = vpack.c.bf16 %v3822, %v3822
      %3824 = vrot.lane.b32.xlu0 %v3290, 40
      %v3825 = vpop.permute.xlu0 %3824
      %v3827 = vsel %vm1352, %v3823, 0
      %v3830 = vsel %vm1416, %v3825, 0
      %3832 = vmatprep.subr.bf16.mxu0 0
      %3833 = vmatpush1.bf16.msra.mxu0 %v3830
      %3834 = vmatprep.subr.bf16.mxu0 0
      %3835 = vmatpush1.bf16.msra.mxu0 0
      %3836 = vmatprep.subr.bf16.mxu0 0
      %3837 = vmatpush1.bf16.msra.mxu0 0
      %3838 = vmatprep.subr.bf16.mxu0 0
      %3839 = vmatpush1.bf16.msra.mxu0 0
      %3840 = vmatprep.subr.bf16.mxu0 0
      %3841 = vmatpush1.bf16.msra.mxu0 0
      %3842 = vmatprep.subr.bf16.mxu0 0
      %3843 = vmatpush1.bf16.msra.mxu0 0
      %3844 = vmatprep.subr.bf16.mxu0 0
      %3845 = vmatpush1.bf16.msra.mxu0 0
      %3846 = vmatprep.subr.bf16.mxu0 0
      %3847 = vmatpush1.bf16.msra.mxu0 0
      %3848 = vmatprep.subr.bf16.mxu0 0
      %3849 = vmatpush1.bf16.msra.mxu0 0
      %3850 = vmatprep.subr.bf16.mxu0 0
      %3851 = vmatpush1.bf16.msra.mxu0 0
      %3852 = vmatprep.subr.bf16.mxu0 0
      %3853 = vmatpush1.bf16.msra.mxu0 0
      %3854 = vmatprep.subr.bf16.mxu0 0
      %3855 = vmatpush1.bf16.msra.mxu0 0
      %3856 = vmatprep.subr.bf16.mxu0 0
      %3857 = vmatpush1.bf16.msra.mxu0 0
      %3858 = vmatprep.subr.bf16.mxu0 0
      %3859 = vmatpush1.bf16.msra.mxu0 0
      %3860 = vmatprep.subr.bf16.mxu0 0
      %3861 = vmatpush1.bf16.msra.mxu0 0
      %3862 = vmatprep.subr.bf16.mxu0 0
      %3863 = vmatpush1.bf16.msra.mxu0 0
      %3864 = vmatprep.mubr.bf16.mxu0 0
      %3865 = vmatmul.mubr.bf16.gmra.mrb[0].mxu0 %v3827
      %v3866 = vpop.f32.mrb[0].mxu0
      %v3867 = vadd.f32 0.0, %v3866
      %v3868 = vpop.f32.mrb[0].mxu0
      %v3869 = vpop.f32.mrb[0].mxu0
      %v3870 = vpop.f32.mrb[0].mxu0
      %3871 = vdwg.mxu0
      %v3872 = vpack.c.bf16 %v3867, %v3867
      %v3874 = vsel %vm1352, %v3872, 0
      %v3877 = vsel %vm1416, %v3226, 0
      %3879 = vmatprep.subr.bf16.mxu0 0
      %3880 = vmatpush1.bf16.msra.mxu0 %v3877
      %3881 = vmatprep.subr.bf16.mxu0 0
      %3882 = vmatpush1.bf16.msra.mxu0 0
      %3883 = vmatprep.subr.bf16.mxu0 0
      %3884 = vmatpush1.bf16.msra.mxu0 0
      %3885 = vmatprep.subr.bf16.mxu0 0
      %3886 = vmatpush1.bf16.msra.mxu0 0
      %3887 = vmatprep.subr.bf16.mxu0 0
      %3888 = vmatpush1.bf16.msra.mxu0 0
      %3889 = vmatprep.subr.bf16.mxu0 0
      %3890 = vmatpush1.bf16.msra.mxu0 0
      %3891 = vmatprep.subr.bf16.mxu0 0
      %3892 = vmatpush1.bf16.msra.mxu0 0
      %3893 = vmatprep.subr.bf16.mxu0 0
      %3894 = vmatpush1.bf16.msra.mxu0 0
      %3895 = vmatprep.subr.bf16.mxu0 0
      %3896 = vmatpush1.bf16.msra.mxu0 0
      %3897 = vmatprep.subr.bf16.mxu0 0
      %3898 = vmatpush1.bf16.msra.mxu0 0
      %3899 = vmatprep.subr.bf16.mxu0 0
      %3900 = vmatpush1.bf16.msra.mxu0 0
      %3901 = vmatprep.subr.bf16.mxu0 0
      %3902 = vmatpush1.bf16.msra.mxu0 0
      %3903 = vmatprep.subr.bf16.mxu0 0
      %3904 = vmatpush1.bf16.msra.mxu0 0
      %3905 = vmatprep.subr.bf16.mxu0 0
      %3906 = vmatpush1.bf16.msra.mxu0 0
      %3907 = vmatprep.subr.bf16.mxu0 0
      %3908 = vmatpush1.bf16.msra.mxu0 0
      %3909 = vmatprep.subr.bf16.mxu0 0
      %3910 = vmatpush1.bf16.msra.mxu0 0
      %3911 = vmatprep.mubr.bf16.mxu0 0
      %3912 = vmatmul.mubr.bf16.gmra.mrb[0].mxu0 %v3874
      %v3913 = vpop.f32.mrb[0].mxu0
      %v3914 = vadd.f32 0.0, %v3913
      %v3915 = vpop.f32.mrb[0].mxu0
      %v3916 = vpop.f32.mrb[0].mxu0
      %v3917 = vpop.f32.mrb[0].mxu0
      %3918 = vdwg.mxu0
      %v3919 = vadd.f32 %v3761, %v3914
      %v3921 = vlaneseq
      %v3922 = vshrl.u32 %v3921, 7
      %v3923 = vsub.s32 0, %v3922
      %v3924 = vrot.slane %v3227, %v3923
      %v3926 = vadd.f32 %v3919, %v3924
      %v3927 = vadd.f32 %v1233, %v3926
      %v3928 = vld [vmem:[%s43] sm:$0x1]
      %v3929 = vld [vmem:[%s45] sm:$0x1]
      %v3930 = vsel %vm1247, %v3927, 0.0
      %3931 = vadd.xlane.f32.xlu0 %v3930
      %v3932 = vpop.xlane.xlu0 %3931
      %v3933 = vmul.f32 %v3932, %v1251
      %v3934 = vsub.f32 %v3927, %v3933
      %v3935 = vmul.f32 %v3934, %v3934
      %v3936 = vsel %vm1247, %v3935, 0.0
      %3937 = vadd.xlane.f32.xlu0 %v3936
      %v3938 = vpop.xlane.xlu0 %3937
      %v3939 = vmul.f32 %v3938, %v1251
      %v3940 = vadd.f32 %v3939, 1e-05
      %v3941 = vrsqrt.pop %v3940
      %v3942 = vmul.f32 %v3934, %v3941
      %v3944 = vlaneseq
      %v3945 = vshrl.u32 %v3944, 7
      %v3946 = vsub.s32 0, %v3945
      %v3947 = vrot.slane %v3928, %v3946
      %v3949 = vmul.f32 %v3942, %v3947
      %v3951 = vlaneseq
      %v3952 = vshrl.u32 %v3951, 7
      %v3953 = vsub.s32 0, %v3952
      %v3954 = vrot.slane %v3929, %v3953
      %v3956 = vadd.f32 %v3949, %v3954
      %v3957 = vld [vmem:[%s47] sm:$0xf]
      %v3958 = vld [vmem:[%s47 + $0x4] sm:$0xf]
      %v3959 = vld [vmem:[%s47 + $0x8] sm:$0xf]
      %v3960 = vld [vmem:[%s47 + $0xc] sm:$0xf]
      %v3961 = vld [vmem:[%s49] sm:$0x1]
      %v3962 = vld [vmem:[%s51] sm:$0xf]
      %v3963 = vld [vmem:[%s51 + $0x4] sm:$0xf]
      %v3964 = vld [vmem:[%s51 + $0x8] sm:$0xf]
      %v3965 = vld [vmem:[%s51 + $0xc] sm:$0xf]
      %v3966 = vld [vmem:[%s53] sm:$0x1]
      %v3967 = vld [vmem:[%s55] sm:$0xf]
      %v3968 = vld [vmem:[%s55 + $0x4] sm:$0xf]
      %v3969 = vld [vmem:[%s55 + $0x8] sm:$0xf]
      %v3970 = vld [vmem:[%s55 + $0xc] sm:$0xf]
      %v3971 = vld [vmem:[%s57] sm:$0x1]
      %v3972 = vpack.c.bf16 %v3956, %v3956
      %v3974 = vlaneseq
      %v3975 = vshrl.u32 %v3974, 7
      %v3976 = vsub.s32 0, %v3975
      %v3977 = vrot.slane %v3961, %v3976
      %v3983 = vunpack.c.l.b16 %v3957
      %v3984 = vunpack.c.l.b16 %v3958
      %v3985 = vunpack.c.l.b16 %v3959
      %v3986 = vunpack.c.l.b16 %v3960
      %v3987 = vpack.c.b16 %v3984, %v3983
      %v3988 = vpack.c.b16 %v3986, %v3985
      %v3992 = vsel %vm1247, %v3972, 0
      %3994 = vmatprep.subr.bf16.mxu0 0
      %3995 = vmatpush1.bf16.msra.mxu0 %v3987
      %3996 = vmatprep.subr.bf16.mxu0 0
      %3997 = vmatpush1.bf16.msra.mxu0 %v3988
      %3998 = vmatprep.subr.bf16.mxu0 0
      %3999 = vmatpush1.bf16.msra.mxu0 0
      %4000 = vmatprep.subr.bf16.mxu0 0
      %4001 = vmatpush1.bf16.msra.mxu0 0
      %4002 = vmatprep.subr.bf16.mxu0 0
      %4003 = vmatpush1.bf16.msra.mxu0 0
      %4004 = vmatprep.subr.bf16.mxu0 0
      %4005 = vmatpush1.bf16.msra.mxu0 0
      %4006 = vmatprep.subr.bf16.mxu0 0
      %4007 = vmatpush1.bf16.msra.mxu0 0
      %4008 = vmatprep.subr.bf16.mxu0 0
      %4009 = vmatpush1.bf16.msra.mxu0 0
      %4010 = vmatprep.subr.bf16.mxu0 0
      %4011 = vmatpush1.bf16.msra.mxu0 0
      %4012 = vmatprep.subr.bf16.mxu0 0
      %4013 = vmatpush1.bf16.msra.mxu0 0
      %4014 = vmatprep.subr.bf16.mxu0 0
      %4015 = vmatpush1.bf16.msra.mxu0 0
      %4016 = vmatprep.subr.bf16.mxu0 0
      %4017 = vmatpush1.bf16.msra.mxu0 0
      %4018 = vmatprep.subr.bf16.mxu0 0
      %4019 = vmatpush1.bf16.msra.mxu0 0
      %4020 = vmatprep.subr.bf16.mxu0 0
      %4021 = vmatpush1.bf16.msra.mxu0 0
      %4022 = vmatprep.subr.bf16.mxu0 0
      %4023 = vmatpush1.bf16.msra.mxu0 0
      %4024 = vmatprep.subr.bf16.mxu0 0
      %4025 = vmatpush1.bf16.msra.mxu0 0
      %4026 = vmatprep.mubr.bf16.mxu0 0
      %4027 = vmatmul.mubr.bf16.gmra.mrb[0].mxu0 %v3992
      %v4028 = vpop.f32.mrb[0].mxu0
      %v4029 = vadd.f32 %v3977, %v4028
      %v4030 = vpop.f32.mrb[0].mxu0
      %v4031 = vpop.f32.mrb[0].mxu0
      %v4032 = vpop.f32.mrb[0].mxu0
      %4033 = vdwg.mxu0
      %v4034 = vpack.c.bf16 %v4029, %v4029
      %v4036 = vlaneseq
      %v4037 = vshrl.u32 %v4036, 7
      %v4038 = vsub.s32 0, %v4037
      %v4039 = vrot.slane %v3966, %v4038
      %v4045 = vunpack.c.l.b16 %v3962
      %v4046 = vunpack.c.l.b16 %v3963
      %v4047 = vunpack.c.l.b16 %v3964
      %v4048 = vunpack.c.l.b16 %v3965
      %v4049 = vpack.c.b16 %v4046, %v4045
      %v4050 = vpack.c.b16 %v4048, %v4047
      %v4054 = vsel %vm1247, %v3188, 0
      %4056 = vmatprep.subr.bf16.mxu0 0
      %4057 = vmatpush1.bf16.msra.mxu0 %v4049
      %4058 = vmatprep.subr.bf16.mxu0 0
      %4059 = vmatpush1.bf16.msra.mxu0 %v4050
      %4060 = vmatprep.subr.bf16.mxu0 0
      %4061 = vmatpush1.bf16.msra.mxu0 0
      %4062 = vmatprep.subr.bf16.mxu0 0
      %4063 = vmatpush1.bf16.msra.mxu0 0
      %4064 = vmatprep.subr.bf16.mxu0 0
      %4065 = vmatpush1.bf16.msra.mxu0 0
      %4066 = vmatprep.subr.bf16.mxu0 0
      %4067 = vmatpush1.bf16.msra.mxu0 0
      %4068 = vmatprep.subr.bf16.mxu0 0
      %4069 = vmatpush1.bf16.msra.mxu0 0
      %4070 = vmatprep.subr.bf16.mxu0 0
      %4071 = vmatpush1.bf16.msra.mxu0 0
      %4072 = vmatprep.subr.bf16.mxu0 0
      %4073 = vmatpush1.bf16.msra.mxu0 0
      %4074 = vmatprep.subr.bf16.mxu0 0
      %4075 = vmatpush1.bf16.msra.mxu0 0
      %4076 = vmatprep.subr.bf16.mxu0 0
      %4077 = vmatpush1.bf16.msra.mxu0 0
      %4078 = vmatprep.subr.bf16.mxu0 0
      %4079 = vmatpush1.bf16.msra.mxu0 0
      %4080 = vmatprep.subr.bf16.mxu0 0
      %4081 = vmatpush1.bf16.msra.mxu0 0
      %4082 = vmatprep.subr.bf16.mxu0 0
      %4083 = vmatpush1.bf16.msra.mxu0 0
      %4084 = vmatprep.subr.bf16.mxu0 0
      %4085 = vmatpush1.bf16.msra.mxu0 0
      %4086 = vmatprep.subr.bf16.mxu0 0
      %4087 = vmatpush1.bf16.msra.mxu0 0
      %4088 = vmatprep.mubr.bf16.mxu0 0
      %4089 = vmatmul.mubr.bf16.gmra.mrb[0].mxu0 %v4054
      %v4090 = vpop.f32.mrb[0].mxu0
      %v4091 = vadd.f32 %v4039, %v4090
      %v4092 = vpop.f32.mrb[0].mxu0
      %v4093 = vpop.f32.mrb[0].mxu0
      %v4094 = vpop.f32.mrb[0].mxu0
      %4095 = vdwg.mxu0
      %v4096 = vpack.c.bf16 %v4091, %v4091
      %v4098 = vsel %vm1352, %v4034, 0
      %v4101 = vsel %vm1352, %v4096, 0
      %4103 = vmatprep.subr.bf16.mxu0 0
      %4104 = vmatpush1.bf16.xpose.msra.mxu0 %v4101
      %4105 = vmatprep.subr.bf16.mxu0 0
      %4106 = vmatpush1.bf16.xpose.msra.mxu0 0
      %4107 = vmatprep.subr.bf16.mxu0 0
      %4108 = vmatpush1.bf16.xpose.msra.mxu0 0
      %4109 = vmatprep.subr.bf16.mxu0 0
      %4110 = vmatpush1.bf16.xpose.msra.mxu0 0
      %4111 = vmatprep.subr.bf16.mxu0 0
      %4112 = vmatpush1.bf16.xpose.msra.mxu0 0
      %4113 = vmatprep.subr.bf16.mxu0 0
      %4114 = vmatpush1.bf16.xpose.msra.mxu0 0
      %4115 = vmatprep.subr.bf16.mxu0 0
      %4116 = vmatpush1.bf16.xpose.msra.mxu0 0
      %4117 = vmatprep.subr.bf16.mxu0 0
      %4118 = vmatpush1.bf16.xpose.msra.mxu0 0
      %4119 = vmatprep.subr.bf16.mxu0 0
      %4120 = vmatpush1.bf16.xpose.msra.mxu0 0
      %4121 = vmatprep.subr.bf16.mxu0 0
      %4122 = vmatpush1.bf16.xpose.msra.mxu0 0
      %4123 = vmatprep.subr.bf16.mxu0 0
      %4124 = vmatpush1.bf16.xpose.msra.mxu0 0
      %4125 = vmatprep.subr.bf16.mxu0 0
      %4126 = vmatpush1.bf16.xpose.msra.mxu0 0
      %4127 = vmatprep.subr.bf16.mxu0 0
      %4128 = vmatpush1.bf16.xpose.msra.mxu0 0
      %4129 = vmatprep.subr.bf16.mxu0 0
      %4130 = vmatpush1.bf16.xpose.msra.mxu0 0
      %4131 = vmatprep.subr.bf16.mxu0 0
      %4132 = vmatpush1.bf16.xpose.msra.mxu0 0
      %4133 = vmatprep.subr.bf16.mxu0 0
      %4134 = vmatpush1.bf16.xpose.msra.mxu0 0
      %4135 = vmatprep.mubr.bf16.mxu0 0
      %4136 = vmatmul.mubr.bf16.gmra.mrb[0].mxu0 %v4098
      %v4137 = vpop.f32.mrb[0].mxu0
      %v4138 = vadd.f32 %v1240, %v4137
      %v4139 = vpop.f32.mrb[0].mxu0
      %v4140 = vpop.f32.mrb[0].mxu0
      %v4141 = vpop.f32.mrb[0].mxu0
      %4142 = vdwg.mxu0
      %v4143 = vsel %vm1352, %v4138, -inf
      %4144 = vmax.xlane.f32.xlu0 %v4143
      %v4145 = vpop.xlane.xlu0 %4144
      %v4146 = vsub.f32 %v4138, %v4145
      %v4147 = vmul.f32 %v4146, 1.442695
      %v4148 = vpow.pop %v4147
      %v4149 = vsel %vm1352, %v4148, 0.0
      %4150 = vadd.xlane.f32.xlu0 %v4149
      %v4151 = vpop.xlane.xlu0 %4150
      %v4152 = vrcp.pop %v4151
      %v4153 = vmul.f32 %v4148, %v4152
      %v4154 = vpack.c.bf16 %v4153, %v4153
      %4156 = vrot.lane.b32.xlu0 %v4096, 96
      %v4157 = vpop.permute.xlu0 %4156
      %v4159 = vsel %vm1352, %v4154, 0
      %v4162 = vsel %vm1416, %v4157, 0
      %4164 = vmatprep.subr.bf16.mxu0 0
      %4165 = vmatpush1.bf16.msra.mxu0 %v4162
      %4166 = vmatprep.subr.bf16.mxu0 0
      %4167 = vmatpush1.bf16.msra.mxu0 0
      %4168 = vmatprep.subr.bf16.mxu0 0
      %4169 = vmatpush1.bf16.msra.mxu0 0
      %4170 = vmatprep.subr.bf16.mxu0 0
      %4171 = vmatpush1.bf16.msra.mxu0 0
      %4172 = vmatprep.subr.bf16.mxu0 0
      %4173 = vmatpush1.bf16.msra.mxu0 0
      %4174 = vmatprep.subr.bf16.mxu0 0
      %4175 = vmatpush1.bf16.msra.mxu0 0
      %4176 = vmatprep.subr.bf16.mxu0 0
      %4177 = vmatpush1.bf16.msra.mxu0 0
      %4178 = vmatprep.subr.bf16.mxu0 0
      %4179 = vmatpush1.bf16.msra.mxu0 0
      %4180 = vmatprep.subr.bf16.mxu0 0
      %4181 = vmatpush1.bf16.msra.mxu0 0
      %4182 = vmatprep.subr.bf16.mxu0 0
      %4183 = vmatpush1.bf16.msra.mxu0 0
      %4184 = vmatprep.subr.bf16.mxu0 0
      %4185 = vmatpush1.bf16.msra.mxu0 0
      %4186 = vmatprep.subr.bf16.mxu0 0
      %4187 = vmatpush1.bf16.msra.mxu0 0
      %4188 = vmatprep.subr.bf16.mxu0 0
      %4189 = vmatpush1.bf16.msra.mxu0 0
      %4190 = vmatprep.subr.bf16.mxu0 0
      %4191 = vmatpush1.bf16.msra.mxu0 0
      %4192 = vmatprep.subr.bf16.mxu0 0
      %4193 = vmatpush1.bf16.msra.mxu0 0
      %4194 = vmatprep.subr.bf16.mxu0 0
      %4195 = vmatpush1.bf16.msra.mxu0 0
      %4196 = vmatprep.mubr.bf16.mxu0 0
      %4197 = vmatmul.mubr.bf16.gmra.mrb[0].mxu0 %v4159
      %v4198 = vpop.f32.mrb[0].mxu0
      %v4199 = vadd.f32 0.0, %v4198
      %v4200 = vpop.f32.mrb[0].mxu0
      %v4201 = vpop.f32.mrb[0].mxu0
      %v4202 = vpop.f32.mrb[0].mxu0
      %4203 = vdwg.mxu0
      %v4204 = vpack.c.bf16 %v4199, %v4199
      %4206 = vrot.lane.b32.xlu0 %v4034, 120
      %v4207 = vpop.permute.xlu0 %4206
      %4208 = vrot.lane.b32.xlu0 %v4096, 120
      %v4209 = vpop.permute.xlu0 %4208
      %v4211 = vsel %vm1352, %v4207, 0
      %v4214 = vsel %vm1352, %v4209, 0
      %4216 = vmatprep.subr.bf16.mxu0 0
      %4217 = vmatpush1.bf16.xpose.msra.mxu0 %v4214
      %4218 = vmatprep.subr.bf16.mxu0 0
      %4219 = vmatpush1.bf16.xpose.msra.mxu0 0
      %4220 = vmatprep.subr.bf16.mxu0 0
      %4221 = vmatpush1.bf16.xpose.msra.mxu0 0
      %4222 = vmatprep.subr.bf16.mxu0 0
      %4223 = vmatpush1.bf16.xpose.msra.mxu0 0
      %4224 = vmatprep.subr.bf16.mxu0 0
      %4225 = vmatpush1.bf16.xpose.msra.mxu0 0
      %4226 = vmatprep.subr.bf16.mxu0 0
      %4227 = vmatpush1.bf16.xpose.msra.mxu0 0
      %4228 = vmatprep.subr.bf16.mxu0 0
      %4229 = vmatpush1.bf16.xpose.msra.mxu0 0
      %4230 = vmatprep.subr.bf16.mxu0 0
      %4231 = vmatpush1.bf16.xpose.msra.mxu0 0
      %4232 = vmatprep.subr.bf16.mxu0 0
      %4233 = vmatpush1.bf16.xpose.msra.mxu0 0
      %4234 = vmatprep.subr.bf16.mxu0 0
      %4235 = vmatpush1.bf16.xpose.msra.mxu0 0
      %4236 = vmatprep.subr.bf16.mxu0 0
      %4237 = vmatpush1.bf16.xpose.msra.mxu0 0
      %4238 = vmatprep.subr.bf16.mxu0 0
      %4239 = vmatpush1.bf16.xpose.msra.mxu0 0
      %4240 = vmatprep.subr.bf16.mxu0 0
      %4241 = vmatpush1.bf16.xpose.msra.mxu0 0
      %4242 = vmatprep.subr.bf16.mxu0 0
      %4243 = vmatpush1.bf16.xpose.msra.mxu0 0
      %4244 = vmatprep.subr.bf16.mxu0 0
      %4245 = vmatpush1.bf16.xpose.msra.mxu0 0
      %4246 = vmatprep.subr.bf16.mxu0 0
      %4247 = vmatpush1.bf16.xpose.msra.mxu0 0
      %4248 = vmatprep.mubr.bf16.mxu0 0
      %4249 = vmatmul.mubr.bf16.gmra.mrb[0].mxu0 %v4211
      %v4250 = vpop.f32.mrb[0].mxu0
      %v4251 = vadd.f32 %v1240, %v4250
      %v4252 = vpop.f32.mrb[0].mxu0
      %v4253 = vpop.f32.mrb[0].mxu0
      %v4254 = vpop.f32.mrb[0].mxu0
      %4255 = vdwg.mxu0
      %v4256 = vsel %vm1352, %v4251, -inf
      %4257 = vmax.xlane.f32.xlu0 %v4256
      %v4258 = vpop.xlane.xlu0 %4257
      %v4259 = vsub.f32 %v4251, %v4258
      %v4260 = vmul.f32 %v4259, 1.442695
      %v4261 = vpow.pop %v4260
      %v4262 = vsel %vm1352, %v4261, 0.0
      %4263 = vadd.xlane.f32.xlu0 %v4262
      %v4264 = vpop.xlane.xlu0 %4263
      %v4265 = vrcp.pop %v4264
      %v4266 = vmul.f32 %v4261, %v4265
      %v4267 = vpack.c.bf16 %v4266, %v4266
      %4268 = vrot.lane.b32.xlu0 %v4096, 88
      %v4269 = vpop.permute.xlu0 %4268
      %v4271 = vsel %vm1352, %v4267, 0
      %v4274 = vsel %vm1416, %v4269, 0
      %4276 = vmatprep.subr.bf16.mxu0 0
      %4277 = vmatpush1.bf16.msra.mxu0 %v4274
      %4278 = vmatprep.subr.bf16.mxu0 0
      %4279 = vmatpush1.bf16.msra.mxu0 0
      %4280 = vmatprep.subr.bf16.mxu0 0
      %4281 = vmatpush1.bf16.msra.mxu0 0
      %4282 = vmatprep.subr.bf16.mxu0 0
      %4283 = vmatpush1.bf16.msra.mxu0 0
      %4284 = vmatprep.subr.bf16.mxu0 0
      %4285 = vmatpush1.bf16.msra.mxu0 0
      %4286 = vmatprep.subr.bf16.mxu0 0
      %4287 = vmatpush1.bf16.msra.mxu0 0
      %4288 = vmatprep.subr.bf16.mxu0 0
      %4289 = vmatpush1.bf16.msra.mxu0 0
      %4290 = vmatprep.subr.bf16.mxu0 0
      %4291 = vmatpush1.bf16.msra.mxu0 0
      %4292 = vmatprep.subr.bf16.mxu0 0
      %4293 = vmatpush1.bf16.msra.mxu0 0
      %4294 = vmatprep.subr.bf16.mxu0 0
      %4295 = vmatpush1.bf16.msra.mxu0 0
      %4296 = vmatprep.subr.bf16.mxu0 0
      %4297 = vmatpush1.bf16.msra.mxu0 0
      %4298 = vmatprep.subr.bf16.mxu0 0
      %4299 = vmatpush1.bf16.msra.mxu0 0
      %4300 = vmatprep.subr.bf16.mxu0 0
      %4301 = vmatpush1.bf16.msra.mxu0 0
      %4302 = vmatprep.subr.bf16.mxu0 0
      %4303 = vmatpush1.bf16.msra.mxu0 0
      %4304 = vmatprep.subr.bf16.mxu0 0
      %4305 = vmatpush1.bf16.msra.mxu0 0
      %4306 = vmatprep.subr.bf16.mxu0 0
      %4307 = vmatpush1.bf16.msra.mxu0 0
      %4308 = vmatprep.mubr.bf16.mxu0 0
      %4309 = vmatmul.mubr.bf16.gmra.mrb[0].mxu0 %v4271
      %v4310 = vpop.f32.mrb[0].mxu0
      %v4311 = vadd.f32 0.0, %v4310
      %v4312 = vpop.f32.mrb[0].mxu0
      %v4313 = vpop.f32.mrb[0].mxu0
      %v4314 = vpop.f32.mrb[0].mxu0
      %4315 = vdwg.mxu0
      %v4316 = vpack.c.bf16 %v4311, %v4311
      %v4318 = vsel %vm1352, %v4316, 0
      %v4321 = vsel %vm1416, %v3968, 0
      %4323 = vmatprep.subr.bf16.mxu0 0
      %4324 = vmatpush1.bf16.msra.mxu0 %v4321
      %4325 = vmatprep.subr.bf16.mxu0 0
      %4326 = vmatpush1.bf16.msra.mxu0 0
      %4327 = vmatprep.subr.bf16.mxu0 0
      %4328 = vmatpush1.bf16.msra.mxu0 0
      %4329 = vmatprep.subr.bf16.mxu0 0
      %4330 = vmatpush1.bf16.msra.mxu0 0
      %4331 = vmatprep.subr.bf16.mxu0 0
      %4332 = vmatpush1.bf16.msra.mxu0 0
      %4333 = vmatprep.subr.bf16.mxu0 0
      %4334 = vmatpush1.bf16.msra.mxu0 0
      %4335 = vmatprep.subr.bf16.mxu0 0
      %4336 = vmatpush1.bf16.msra.mxu0 0
      %4337 = vmatprep.subr.bf16.mxu0 0
      %4338 = vmatpush1.bf16.msra.mxu0 0
      %4339 = vmatprep.subr.bf16.mxu0 0
      %4340 = vmatpush1.bf16.msra.mxu0 0
      %4341 = vmatprep.subr.bf16.mxu0 0
      %4342 = vmatpush1.bf16.msra.mxu0 0
      %4343 = vmatprep.subr.bf16.mxu0 0
      %4344 = vmatpush1.bf16.msra.mxu0 0
      %4345 = vmatprep.subr.bf16.mxu0 0
      %4346 = vmatpush1.bf16.msra.mxu0 0
      %4347 = vmatprep.subr.bf16.mxu0 0
      %4348 = vmatpush1.bf16.msra.mxu0 0
      %4349 = vmatprep.subr.bf16.mxu0 0
      %4350 = vmatpush1.bf16.msra.mxu0 0
      %4351 = vmatprep.subr.bf16.mxu0 0
      %4352 = vmatpush1.bf16.msra.mxu0 0
      %4353 = vmatprep.subr.bf16.mxu0 0
      %4354 = vmatpush1.bf16.msra.mxu0 0
      %4355 = vmatprep.mubr.bf16.mxu0 0
      %4356 = vmatmul.mubr.bf16.gmra.mrb[0].mxu0 %v4318
      %v4357 = vpop.f32.mrb[0].mxu0
      %v4358 = vadd.f32 0.0, %v4357
      %v4359 = vpop.f32.mrb[0].mxu0
      %v4360 = vpop.f32.mrb[0].mxu0
      %v4361 = vpop.f32.mrb[0].mxu0
      %4362 = vdwg.mxu0
      %v4364 = vsel %vm1352, %v4204, 0
      %v4367 = vsel %vm1416, %v3967, 0
      %4369 = vmatprep.subr.bf16.mxu0 0
      %4370 = vmatpush1.bf16.msra.mxu0 %v4367
      %4371 = vmatprep.subr.bf16.mxu0 0
      %4372 = vmatpush1.bf16.msra.mxu0 0
      %4373 = vmatprep.subr.bf16.mxu0 0
      %4374 = vmatpush1.bf16.msra.mxu0 0
      %4375 = vmatprep.subr.bf16.mxu0 0
      %4376 = vmatpush1.bf16.msra.mxu0 0
      %4377 = vmatprep.subr.bf16.mxu0 0
      %4378 = vmatpush1.bf16.msra.mxu0 0
      %4379 = vmatprep.subr.bf16.mxu0 0
      %4380 = vmatpush1.bf16.msra.mxu0 0
      %4381 = vmatprep.subr.bf16.mxu0 0
      %4382 = vmatpush1.bf16.msra.mxu0 0
      %4383 = vmatprep.subr.bf16.mxu0 0
      %4384 = vmatpush1.bf16.msra.mxu0 0
      %4385 = vmatprep.subr.bf16.mxu0 0
      %4386 = vmatpush1.bf16.msra.mxu0 0
      %4387 = vmatprep.subr.bf16.mxu0 0
      %4388 = vmatpush1.bf16.msra.mxu0 0
      %4389 = vmatprep.subr.bf16.mxu0 0
      %4390 = vmatpush1.bf16.msra.mxu0 0
      %4391 = vmatprep.subr.bf16.mxu0 0
      %4392 = vmatpush1.bf16.msra.mxu0 0
      %4393 = vmatprep.subr.bf16.mxu0 0
      %4394 = vmatpush1.bf16.msra.mxu0 0
      %4395 = vmatprep.subr.bf16.mxu0 0
      %4396 = vmatpush1.bf16.msra.mxu0 0
      %4397 = vmatprep.subr.bf16.mxu0 0
      %4398 = vmatpush1.bf16.msra.mxu0 0
      %4399 = vmatprep.subr.bf16.mxu0 0
      %4400 = vmatpush1.bf16.msra.mxu0 0
      %4401 = vmatprep.mubr.bf16.mxu0 0
      %4402 = vmatmul.mubr.bf16.gmra.mrb[0].mxu0 %v4364
      %v4403 = vpop.f32.mrb[0].mxu0
      %v4404 = vadd.f32 %v4358, %v4403
      %v4405 = vpop.f32.mrb[0].mxu0
      %v4406 = vpop.f32.mrb[0].mxu0
      %v4407 = vpop.f32.mrb[0].mxu0
      %4408 = vdwg.mxu0
      %4409 = vrot.lane.b32.xlu0 %v4034, 112
      %v4410 = vpop.permute.xlu0 %4409
      %4411 = vrot.lane.b32.xlu0 %v4096, 112
      %v4412 = vpop.permute.xlu0 %4411
      %v4414 = vsel %vm1352, %v4410, 0
      %v4417 = vsel %vm1352, %v4412, 0
      %4419 = vmatprep.subr.bf16.mxu0 0
      %4420 = vmatpush1.bf16.xpose.msra.mxu0 %v4417
      %4421 = vmatprep.subr.bf16.mxu0 0
      %4422 = vmatpush1.bf16.xpose.msra.mxu0 0
      %4423 = vmatprep.subr.bf16.mxu0 0
      %4424 = vmatpush1.bf16.xpose.msra.mxu0 0
      %4425 = vmatprep.subr.bf16.mxu0 0
      %4426 = vmatpush1.bf16.xpose.msra.mxu0 0
      %4427 = vmatprep.subr.bf16.mxu0 0
      %4428 = vmatpush1.bf16.xpose.msra.mxu0 0
      %4429 = vmatprep.subr.bf16.mxu0 0
      %4430 = vmatpush1.bf16.xpose.msra.mxu0 0
      %4431 = vmatprep.subr.bf16.mxu0 0
      %4432 = vmatpush1.bf16.xpose.msra.mxu0 0
      %4433 = vmatprep.subr.bf16.mxu0 0
      %4434 = vmatpush1.bf16.xpose.msra.mxu0 0
      %4435 = vmatprep.subr.bf16.mxu0 0
      %4436 = vmatpush1.bf16.xpose.msra.mxu0 0
      %4437 = vmatprep.subr.bf16.mxu0 0
      %4438 = vmatpush1.bf16.xpose.msra.mxu0 0
      %4439 = vmatprep.subr.bf16.mxu0 0
      %4440 = vmatpush1.bf16.xpose.msra.mxu0 0
      %4441 = vmatprep.subr.bf16.mxu0 0
      %4442 = vmatpush1.bf16.xpose.msra.mxu0 0
      %4443 = vmatprep.subr.bf16.mxu0 0
      %4444 = vmatpush1.bf16.xpose.msra.mxu0 0
      %4445 = vmatprep.subr.bf16.mxu0 0
      %4446 = vmatpush1.bf16.xpose.msra.mxu0 0
      %4447 = vmatprep.subr.bf16.mxu0 0
      %4448 = vmatpush1.bf16.xpose.msra.mxu0 0
      %4449 = vmatprep.subr.bf16.mxu0 0
      %4450 = vmatpush1.bf16.xpose.msra.mxu0 0
      %4451 = vmatprep.mubr.bf16.mxu0 0
      %4452 = vmatmul.mubr.bf16.gmra.mrb[0].mxu0 %v4414
      %v4453 = vpop.f32.mrb[0].mxu0
      %v4454 = vadd.f32 %v1240, %v4453
      %v4455 = vpop.f32.mrb[0].mxu0
      %v4456 = vpop.f32.mrb[0].mxu0
      %v4457 = vpop.f32.mrb[0].mxu0
      %4458 = vdwg.mxu0
      %v4459 = vsel %vm1352, %v4454, -inf
      %4460 = vmax.xlane.f32.xlu0 %v4459
      %v4461 = vpop.xlane.xlu0 %4460
      %v4462 = vsub.f32 %v4454, %v4461
      %v4463 = vmul.f32 %v4462, 1.442695
      %v4464 = vpow.pop %v4463
      %v4465 = vsel %vm1352, %v4464, 0.0
      %4466 = vadd.xlane.f32.xlu0 %v4465
      %v4467 = vpop.xlane.xlu0 %4466
      %v4468 = vrcp.pop %v4467
      %v4469 = vmul.f32 %v4464, %v4468
      %v4470 = vpack.c.bf16 %v4469, %v4469
      %4471 = vrot.lane.b32.xlu0 %v4096, 80
      %v4472 = vpop.permute.xlu0 %4471
      %v4474 = vsel %vm1352, %v4470, 0
      %v4477 = vsel %vm1416, %v4472, 0
      %4479 = vmatprep.subr.bf16.mxu0 0
      %4480 = vmatpush1.bf16.msra.mxu0 %v4477
      %4481 = vmatprep.subr.bf16.mxu0 0
      %4482 = vmatpush1.bf16.msra.mxu0 0
      %4483 = vmatprep.subr.bf16.mxu0 0
      %4484 = vmatpush1.bf16.msra.mxu0 0
      %4485 = vmatprep.subr.bf16.mxu0 0
      %4486 = vmatpush1.bf16.msra.mxu0 0
      %4487 = vmatprep.subr.bf16.mxu0 0
      %4488 = vmatpush1.bf16.msra.mxu0 0
      %4489 = vmatprep.subr.bf16.mxu0 0
      %4490 = vmatpush1.bf16.msra.mxu0 0
      %4491 = vmatprep.subr.bf16.mxu0 0
      %4492 = vmatpush1.bf16.msra.mxu0 0
      %4493 = vmatprep.subr.bf16.mxu0 0
      %4494 = vmatpush1.bf16.msra.mxu0 0
      %4495 = vmatprep.subr.bf16.mxu0 0
      %4496 = vmatpush1.bf16.msra.mxu0 0
      %4497 = vmatprep.subr.bf16.mxu0 0
      %4498 = vmatpush1.bf16.msra.mxu0 0
      %4499 = vmatprep.subr.bf16.mxu0 0
      %4500 = vmatpush1.bf16.msra.mxu0 0
      %4501 = vmatprep.subr.bf16.mxu0 0
      %4502 = vmatpush1.bf16.msra.mxu0 0
      %4503 = vmatprep.subr.bf16.mxu0 0
      %4504 = vmatpush1.bf16.msra.mxu0 0
      %4505 = vmatprep.subr.bf16.mxu0 0
      %4506 = vmatpush1.bf16.msra.mxu0 0
      %4507 = vmatprep.subr.bf16.mxu0 0
      %4508 = vmatpush1.bf16.msra.mxu0 0
      %4509 = vmatprep.subr.bf16.mxu0 0
      %4510 = vmatpush1.bf16.msra.mxu0 0
      %4511 = vmatprep.mubr.bf16.mxu0 0
      %4512 = vmatmul.mubr.bf16.gmra.mrb[0].mxu0 %v4474
      %v4513 = vpop.f32.mrb[0].mxu0
      %v4514 = vadd.f32 0.0, %v4513
      %v4515 = vpop.f32.mrb[0].mxu0
      %v4516 = vpop.f32.mrb[0].mxu0
      %v4517 = vpop.f32.mrb[0].mxu0
      %4518 = vdwg.mxu0
      %v4519 = vpack.c.bf16 %v4514, %v4514
      %v4521 = vsel %vm1352, %v4519, 0
      %v4524 = vsel %vm1416, %v3969, 0
      %4526 = vmatprep.subr.bf16.mxu0 0
      %4527 = vmatpush1.bf16.msra.mxu0 %v4524
      %4528 = vmatprep.subr.bf16.mxu0 0
      %4529 = vmatpush1.bf16.msra.mxu0 0
      %4530 = vmatprep.subr.bf16.mxu0 0
      %4531 = vmatpush1.bf16.msra.mxu0 0
      %4532 = vmatprep.subr.bf16.mxu0 0
      %4533 = vmatpush1.bf16.msra.mxu0 0
      %4534 = vmatprep.subr.bf16.mxu0 0
      %4535 = vmatpush1.bf16.msra.mxu0 0
      %4536 = vmatprep.subr.bf16.mxu0 0
      %4537 = vmatpush1.bf16.msra.mxu0 0
      %4538 = vmatprep.subr.bf16.mxu0 0
      %4539 = vmatpush1.bf16.msra.mxu0 0
      %4540 = vmatprep.subr.bf16.mxu0 0
      %4541 = vmatpush1.bf16.msra.mxu0 0
      %4542 = vmatprep.subr.bf16.mxu0 0
      %4543 = vmatpush1.bf16.msra.mxu0 0
      %4544 = vmatprep.subr.bf16.mxu0 0
      %4545 = vmatpush1.bf16.msra.mxu0 0
      %4546 = vmatprep.subr.bf16.mxu0 0
      %4547 = vmatpush1.bf16.msra.mxu0 0
      %4548 = vmatprep.subr.bf16.mxu0 0
      %4549 = vmatpush1.bf16.msra.mxu0 0
      %4550 = vmatprep.subr.bf16.mxu0 0
      %4551 = vmatpush1.bf16.msra.mxu0 0
      %4552 = vmatprep.subr.bf16.mxu0 0
      %4553 = vmatpush1.bf16.msra.mxu0 0
      %4554 = vmatprep.subr.bf16.mxu0 0
      %4555 = vmatpush1.bf16.msra.mxu0 0
      %4556 = vmatprep.subr.bf16.mxu0 0
      %4557 = vmatpush1.bf16.msra.mxu0 0
      %4558 = vmatprep.mubr.bf16.mxu0 0
      %4559 = vmatmul.mubr.bf16.gmra.mrb[0].mxu0 %v4521
      %v4560 = vpop.f32.mrb[0].mxu0
      %v4561 = vadd.f32 0.0, %v4560
      %v4562 = vpop.f32.mrb[0].mxu0
      %v4563 = vpop.f32.mrb[0].mxu0
      %v4564 = vpop.f32.mrb[0].mxu0
      %4565 = vdwg.mxu0
      %v4566 = vadd.f32 %v4404, %v4561
      %4567 = vrot.lane.b32.xlu0 %v4034, 104
      %v4568 = vpop.permute.xlu0 %4567
      %4569 = vrot.lane.b32.xlu0 %v4096, 104
      %v4570 = vpop.permute.xlu0 %4569
      %v4572 = vsel %vm1352, %v4568, 0
      %v4575 = vsel %vm1352, %v4570, 0
      %4577 = vmatprep.subr.bf16.mxu0 0
      %4578 = vmatpush1.bf16.xpose.msra.mxu0 %v4575
      %4579 = vmatprep.subr.bf16.mxu0 0
      %4580 = vmatpush1.bf16.xpose.msra.mxu0 0
      %4581 = vmatprep.subr.bf16.mxu0 0
      %4582 = vmatpush1.bf16.xpose.msra.mxu0 0
      %4583 = vmatprep.subr.bf16.mxu0 0
      %4584 = vmatpush1.bf16.xpose.msra.mxu0 0
      %4585 = vmatprep.subr.bf16.mxu0 0
      %4586 = vmatpush1.bf16.xpose.msra.mxu0 0
      %4587 = vmatprep.subr.bf16.mxu0 0
      %4588 = vmatpush1.bf16.xpose.msra.mxu0 0
      %4589 = vmatprep.subr.bf16.mxu0 0
      %4590 = vmatpush1.bf16.xpose.msra.mxu0 0
      %4591 = vmatprep.subr.bf16.mxu0 0
      %4592 = vmatpush1.bf16.xpose.msra.mxu0 0
      %4593 = vmatprep.subr.bf16.mxu0 0
      %4594 = vmatpush1.bf16.xpose.msra.mxu0 0
      %4595 = vmatprep.subr.bf16.mxu0 0
      %4596 = vmatpush1.bf16.xpose.msra.mxu0 0
      %4597 = vmatprep.subr.bf16.mxu0 0
      %4598 = vmatpush1.bf16.xpose.msra.mxu0 0
      %4599 = vmatprep.subr.bf16.mxu0 0
      %4600 = vmatpush1.bf16.xpose.msra.mxu0 0
      %4601 = vmatprep.subr.bf16.mxu0 0
      %4602 = vmatpush1.bf16.xpose.msra.mxu0 0
      %4603 = vmatprep.subr.bf16.mxu0 0
      %4604 = vmatpush1.bf16.xpose.msra.mxu0 0
      %4605 = vmatprep.subr.bf16.mxu0 0
      %4606 = vmatpush1.bf16.xpose.msra.mxu0 0
      %4607 = vmatprep.subr.bf16.mxu0 0
      %4608 = vmatpush1.bf16.xpose.msra.mxu0 0
      %4609 = vmatprep.mubr.bf16.mxu0 0
      %4610 = vmatmul.mubr.bf16.gmra.mrb[0].mxu0 %v4572
      %v4611 = vpop.f32.mrb[0].mxu0
      %v4612 = vadd.f32 %v1240, %v4611
      %v4613 = vpop.f32.mrb[0].mxu0
      %v4614 = vpop.f32.mrb[0].mxu0
      %v4615 = vpop.f32.mrb[0].mxu0
      %4616 = vdwg.mxu0
      %v4617 = vsel %vm1352, %v4612, -inf
      %4618 = vmax.xlane.f32.xlu0 %v4617
      %v4619 = vpop.xlane.xlu0 %4618
      %v4620 = vsub.f32 %v4612, %v4619
      %v4621 = vmul.f32 %v4620, 1.442695
      %v4622 = vpow.pop %v4621
      %v4623 = vsel %vm1352, %v4622, 0.0
      %4624 = vadd.xlane.f32.xlu0 %v4623
      %v4625 = vpop.xlane.xlu0 %4624
      %v4626 = vrcp.pop %v4625
      %v4627 = vmul.f32 %v4622, %v4626
      %v4628 = vpack.c.bf16 %v4627, %v4627
      %4629 = vrot.lane.b32.xlu0 %v4096, 72
      %v4630 = vpop.permute.xlu0 %4629
      %v4632 = vsel %vm1352, %v4628, 0
      %v4635 = vsel %vm1416, %v4630, 0
      %4637 = vmatprep.subr.bf16.mxu0 0
      %4638 = vmatpush1.bf16.msra.mxu0 %v4635
      %4639 = vmatprep.subr.bf16.mxu0 0
      %4640 = vmatpush1.bf16.msra.mxu0 0
      %4641 = vmatprep.subr.bf16.mxu0 0
      %4642 = vmatpush1.bf16.msra.mxu0 0
      %4643 = vmatprep.subr.bf16.mxu0 0
      %4644 = vmatpush1.bf16.msra.mxu0 0
      %4645 = vmatprep.subr.bf16.mxu0 0
      %4646 = vmatpush1.bf16.msra.mxu0 0
      %4647 = vmatprep.subr.bf16.mxu0 0
      %4648 = vmatpush1.bf16.msra.mxu0 0
      %4649 = vmatprep.subr.bf16.mxu0 0
      %4650 = vmatpush1.bf16.msra.mxu0 0
      %4651 = vmatprep.subr.bf16.mxu0 0
      %4652 = vmatpush1.bf16.msra.mxu0 0
      %4653 = vmatprep.subr.bf16.mxu0 0
      %4654 = vmatpush1.bf16.msra.mxu0 0
      %4655 = vmatprep.subr.bf16.mxu0 0
      %4656 = vmatpush1.bf16.msra.mxu0 0
      %4657 = vmatprep.subr.bf16.mxu0 0
      %4658 = vmatpush1.bf16.msra.mxu0 0
      %4659 = vmatprep.subr.bf16.mxu0 0
      %4660 = vmatpush1.bf16.msra.mxu0 0
      %4661 = vmatprep.subr.bf16.mxu0 0
      %4662 = vmatpush1.bf16.msra.mxu0 0
      %4663 = vmatprep.subr.bf16.mxu0 0
      %4664 = vmatpush1.bf16.msra.mxu0 0
      %4665 = vmatprep.subr.bf16.mxu0 0
      %4666 = vmatpush1.bf16.msra.mxu0 0
      %4667 = vmatprep.subr.bf16.mxu0 0
      %4668 = vmatpush1.bf16.msra.mxu0 0
      %4669 = vmatprep.mubr.bf16.mxu0 0
      %4670 = vmatmul.mubr.bf16.gmra.mrb[0].mxu0 %v4632
      %v4671 = vpop.f32.mrb[0].mxu0
      %v4672 = vadd.f32 0.0, %v4671
      %v4673 = vpop.f32.mrb[0].mxu0
      %v4674 = vpop.f32.mrb[0].mxu0
      %v4675 = vpop.f32.mrb[0].mxu0
      %4676 = vdwg.mxu0
      %v4677 = vpack.c.bf16 %v4672, %v4672
      %v4679 = vsel %vm1352, %v4677, 0
      %v4682 = vsel %vm1416, %v3970, 0
      %4684 = vmatprep.subr.bf16.mxu0 0
      %4685 = vmatpush1.bf16.msra.mxu0 %v4682
      %4686 = vmatprep.subr.bf16.mxu0 0
      %4687 = vmatpush1.bf16.msra.mxu0 0
      %4688 = vmatprep.subr.bf16.mxu0 0
      %4689 = vmatpush1.bf16.msra.mxu0 0
      %4690 = vmatprep.subr.bf16.mxu0 0
      %4691 = vmatpush1.bf16.msra.mxu0 0
      %4692 = vmatprep.subr.bf16.mxu0 0
      %4693 = vmatpush1.bf16.msra.mxu0 0
      %4694 = vmatprep.subr.bf16.mxu0 0
      %4695 = vmatpush1.bf16.msra.mxu0 0
      %4696 = vmatprep.subr.bf16.mxu0 0
      %4697 = vmatpush1.bf16.msra.mxu0 0
      %4698 = vmatprep.subr.bf16.mxu0 0
      %4699 = vmatpush1.bf16.msra.mxu0 0
      %4700 = vmatprep.subr.bf16.mxu0 0
      %4701 = vmatpush1.bf16.msra.mxu0 0
      %4702 = vmatprep.subr.bf16.mxu0 0
      %4703 = vmatpush1.bf16.msra.mxu0 0
      %4704 = vmatprep.subr.bf16.mxu0 0
      %4705 = vmatpush1.bf16.msra.mxu0 0
      %4706 = vmatprep.subr.bf16.mxu0 0
      %4707 = vmatpush1.bf16.msra.mxu0 0
      %4708 = vmatprep.subr.bf16.mxu0 0
      %4709 = vmatpush1.bf16.msra.mxu0 0
      %4710 = vmatprep.subr.bf16.mxu0 0
      %4711 = vmatpush1.bf16.msra.mxu0 0
      %4712 = vmatprep.subr.bf16.mxu0 0
      %4713 = vmatpush1.bf16.msra.mxu0 0
      %4714 = vmatprep.subr.bf16.mxu0 0
      %4715 = vmatpush1.bf16.msra.mxu0 0
      %4716 = vmatprep.mubr.bf16.mxu0 0
      %4717 = vmatmul.mubr.bf16.gmra.mrb[0].mxu0 %v4679
      %v4718 = vpop.f32.mrb[0].mxu0
      %v4719 = vadd.f32 0.0, %v4718
      %v4720 = vpop.f32.mrb[0].mxu0
      %v4721 = vpop.f32.mrb[0].mxu0
      %v4722 = vpop.f32.mrb[0].mxu0
      %4723 = vdwg.mxu0
      %v4724 = vadd.f32 %v4566, %v4719
      %v4726 = vlaneseq
      %v4727 = vshrl.u32 %v4726, 7
      %v4728 = vsub.s32 0, %v4727
      %v4729 = vrot.slane %v3971, %v4728
      %v4731 = vadd.f32 %v4724, %v4729
      %v4732 = vadd.f32 %v3927, %v4731
      %v4733 = vld [vmem:[%s59] sm:$0x1]
      %v4734 = vld [vmem:[%s61] sm:$0x1]
      %v4735 = vsel %vm1247, %v4732, 0.0
      %4736 = vadd.xlane.f32.xlu0 %v4735
      %v4737 = vpop.xlane.xlu0 %4736
      %v4738 = vmul.f32 %v4737, %v1251
      %v4739 = vsub.f32 %v4732, %v4738
      %v4740 = vmul.f32 %v4739, %v4739
      %v4741 = vsel %vm1247, %v4740, 0.0
      %4742 = vadd.xlane.f32.xlu0 %v4741
      %v4743 = vpop.xlane.xlu0 %4742
      %v4744 = vmul.f32 %v4743, %v1251
      %v4745 = vadd.f32 %v4744, 1e-05
      %v4746 = vrsqrt.pop %v4745
      %v4747 = vmul.f32 %v4739, %v4746
      %v4749 = vlaneseq
      %v4750 = vshrl.u32 %v4749, 7
      %v4751 = vsub.s32 0, %v4750
      %v4752 = vrot.slane %v4733, %v4751
      %v4754 = vmul.f32 %v4747, %v4752
      %v4756 = vlaneseq
      %v4757 = vshrl.u32 %v4756, 7
      %v4758 = vsub.s32 0, %v4757
      %v4759 = vrot.slane %v4734, %v4758
      %v4761 = vadd.f32 %v4754, %v4759
      %v4762 = vld [vmem:[%s63] sm:$0xf]
      %v4763 = vld [vmem:[%s63 + $0x4] sm:$0xf]
      %v4764 = vld [vmem:[%s63 + $0x8] sm:$0xf]
      %v4765 = vld [vmem:[%s63 + $0xc] sm:$0xf]
      %v4766 = vld [vmem:[%s65] sm:$0x1]
      %v4767 = vld [vmem:[%s67] sm:$0xf]
      %v4768 = vld [vmem:[%s67 + $0x4] sm:$0xf]
      %v4769 = vld [vmem:[%s67 + $0x8] sm:$0xf]
      %v4770 = vld [vmem:[%s67 + $0xc] sm:$0xf]
      %v4771 = vld [vmem:[%s67 + $0x10] sm:$0xf]
      %v4772 = vld [vmem:[%s67 + $0x14] sm:$0xf]
      %v4773 = vld [vmem:[%s67 + $0x18] sm:$0xf]
      %v4774 = vld [vmem:[%s67 + $0x1c] sm:$0xf]
      %v4775 = vld [vmem:[%s67 + $0x20] sm:$0xf]
      %v4776 = vld [vmem:[%s67 + $0x24] sm:$0xf]
      %v4777 = vld [vmem:[%s67 + $0x28] sm:$0xf]
      %v4778 = vld [vmem:[%s67 + $0x2c] sm:$0xf]
      %v4779 = vld [vmem:[%s67 + $0x30] sm:$0xf]
      %v4780 = vld [vmem:[%s67 + $0x34] sm:$0xf]
      %v4781 = vld [vmem:[%s67 + $0x38] sm:$0xf]
      %v4782 = vld [vmem:[%s67 + $0x3c] sm:$0xf]
      %v4783 = vld [vmem:[%s69] sm:$0x1]
      %v4784 = vpack.c.bf16 %v4761, %v4761
      %v4786 = vlaneseq
      %v4787 = vshrl.u32 %v4786, 7
      %v4788 = vsub.s32 0, %v4787
      %v4789 = vrot.slane %v4766, %v4788
      %v4795 = vunpack.c.l.b16 %v4762
      %v4796 = vunpack.c.l.b16 %v4763
      %v4797 = vunpack.c.l.b16 %v4764
      %v4798 = vunpack.c.l.b16 %v4765
      %v4799 = vpack.c.b16 %v4796, %v4795
      %v4800 = vpack.c.b16 %v4798, %v4797
      %v4804 = vsel %vm1247, %v4784, 0
      %4806 = vmatprep.subr.bf16.mxu0 0
      %4807 = vmatpush1.bf16.msra.mxu0 %v4799
      %4808 = vmatprep.subr.bf16.mxu0 0
      %4809 = vmatpush1.bf16.msra.mxu0 %v4800
      %4810 = vmatprep.subr.bf16.mxu0 0
      %4811 = vmatpush1.bf16.msra.mxu0 0
      %4812 = vmatprep.subr.bf16.mxu0 0
      %4813 = vmatpush1.bf16.msra.mxu0 0
      %4814 = vmatprep.subr.bf16.mxu0 0
      %4815 = vmatpush1.bf16.msra.mxu0 0
      %4816 = vmatprep.subr.bf16.mxu0 0
      %4817 = vmatpush1.bf16.msra.mxu0 0
      %4818 = vmatprep.subr.bf16.mxu0 0
      %4819 = vmatpush1.bf16.msra.mxu0 0
      %4820 = vmatprep.subr.bf16.mxu0 0
      %4821 = vmatpush1.bf16.msra.mxu0 0
      %4822 = vmatprep.subr.bf16.mxu0 0
      %4823 = vmatpush1.bf16.msra.mxu0 0
      %4824 = vmatprep.subr.bf16.mxu0 0
      %4825 = vmatpush1.bf16.msra.mxu0 0
      %4826 = vmatprep.subr.bf16.mxu0 0
      %4827 = vmatpush1.bf16.msra.mxu0 0
      %4828 = vmatprep.subr.bf16.mxu0 0
      %4829 = vmatpush1.bf16.msra.mxu0 0
      %4830 = vmatprep.subr.bf16.mxu0 0
      %4831 = vmatpush1.bf16.msra.mxu0 0
      %4832 = vmatprep.subr.bf16.mxu0 0
      %4833 = vmatpush1.bf16.msra.mxu0 0
      %4834 = vmatprep.subr.bf16.mxu0 0
      %4835 = vmatpush1.bf16.msra.mxu0 0
      %4836 = vmatprep.subr.bf16.mxu0 0
      %4837 = vmatpush1.bf16.msra.mxu0 0
      %4838 = vmatprep.mubr.bf16.mxu0 0
      %4839 = vmatmul.mubr.bf16.gmra.mrb[0].mxu0 %v4804
      %v4840 = vpop.f32.mrb[0].mxu0
      %v4841 = vadd.f32 %v4789, %v4840
      %v4842 = vpop.f32.mrb[0].mxu0
      %v4843 = vpop.f32.mrb[0].mxu0
      %v4844 = vpop.f32.mrb[0].mxu0
      %4845 = vdwg.mxu0
      %v4846 = vmax.f32 %v4841, 0.0
      %v4847 = vpack.c.bf16 %v4846, %v4846
      %v4849 = vlaneseq
      %v4850 = vshrl.u32 %v4849, 7
      %v4851 = vsub.s32 0, %v4850
      %v4852 = vrot.slane %v4783, %v4851
      %v4870 = vunpack.c.l.b16 %v4767
      %v4871 = vunpack.c.l.b16 %v4768
      %v4872 = vunpack.c.l.b16 %v4769
      %v4873 = vunpack.c.l.b16 %v4770
      %v4874 = vunpack.c.l.b16 %v4771
      %v4875 = vunpack.c.l.b16 %v4772
      %v4876 = vunpack.c.l.b16 %v4773
      %v4877 = vunpack.c.l.b16 %v4774
      %v4878 = vunpack.c.l.b16 %v4775
      %v4879 = vunpack.c.l.b16 %v4776
      %v4880 = vunpack.c.l.b16 %v4777
      %v4881 = vunpack.c.l.b16 %v4778
      %v4882 = vunpack.c.l.b16 %v4779
      %v4883 = vunpack.c.l.b16 %v4780
      %v4884 = vunpack.c.l.b16 %v4781
      %v4885 = vunpack.c.l.b16 %v4782
      %v4886 = vpack.c.b16 %v4871, %v4870
      %v4887 = vpack.c.b16 %v4873, %v4872
      %v4888 = vpack.c.b16 %v4875, %v4874
      %v4889 = vpack.c.b16 %v4877, %v4876
      %v4890 = vpack.c.b16 %v4879, %v4878
      %v4891 = vpack.c.b16 %v4881, %v4880
      %v4892 = vpack.c.b16 %v4883, %v4882
      %v4893 = vpack.c.b16 %v4885, %v4884
      %4902 = vmatprep.subr.bf16.mxu0 0
      %4903 = vmatpush1.bf16.msra.mxu0 %v4886
      %4904 = vmatprep.subr.bf16.mxu0 0
      %4905 = vmatpush1.bf16.msra.mxu0 %v4887
      %4906 = vmatprep.subr.bf16.mxu0 0
      %4907 = vmatpush1.bf16.msra.mxu0 %v4888
      %4908 = vmatprep.subr.bf16.mxu0 0
      %4909 = vmatpush1.bf16.msra.mxu0 %v4889
      %4910 = vmatprep.subr.bf16.mxu0 0
      %4911 = vmatpush1.bf16.msra.mxu0 %v4890
      %4912 = vmatprep.subr.bf16.mxu0 0
      %4913 = vmatpush1.bf16.msra.mxu0 %v4891
      %4914 = vmatprep.subr.bf16.mxu0 0
      %4915 = vmatpush1.bf16.msra.mxu0 %v4892
      %4916 = vmatprep.subr.bf16.mxu0 0
      %4917 = vmatpush1.bf16.msra.mxu0 %v4893
      %4918 = vmatprep.subr.bf16.mxu0 0
      %4919 = vmatpush1.bf16.msra.mxu0 0
      %4920 = vmatprep.subr.bf16.mxu0 0
      %4921 = vmatpush1.bf16.msra.mxu0 0
      %4922 = vmatprep.subr.bf16.mxu0 0
      %4923 = vmatpush1.bf16.msra.mxu0 0
      %4924 = vmatprep.subr.bf16.mxu0 0
      %4925 = vmatpush1.bf16.msra.mxu0 0
      %4926 = vmatprep.subr.bf16.mxu0 0
      %4927 = vmatpush1.bf16.msra.mxu0 0
      %4928 = vmatprep.subr.bf16.mxu0 0
      %4929 = vmatpush1.bf16.msra.mxu0 0
      %4930 = vmatprep.subr.bf16.mxu0 0
      %4931 = vmatpush1.bf16.msra.mxu0 0
      %4932 = vmatprep.subr.bf16.mxu0 0
      %4933 = vmatpush1.bf16.msra.mxu0 0
      %4934 = vmatprep.mubr.bf16.mxu0 0
      %4935 = vmatmul.mubr.bf16.gmra.mrb[0].mxu0 %v4847
      %v4936 = vpop.f32.mrb[0].mxu0
      %v4937 = vadd.f32 %v4852, %v4936
      %v4938 = vpop.f32.mrb[0].mxu0
      %v4939 = vpop.f32.mrb[0].mxu0
      %v4940 = vpop.f32.mrb[0].mxu0
      %4941 = vdwg.mxu0
      %v4942 = vadd.f32 %v4732, %v4937
      %s4943 = scalar_lea.vmem %s31, 1
      %v4944 = vld [vmem:[%s4943] sm:$0x1]
      %s4945 = scalar_lea.vmem %s33, 1
      %v4946 = vld [vmem:[%s4945] sm:$0x1]
      %v4947 = vsel %vm1247, %v4942, 0.0
      %4948 = vadd.xlane.f32.xlu0 %v4947
      %v4949 = vpop.xlane.xlu0 %4948
      %v4950 = vmul.f32 %v4949, %v1251
      %v4951 = vsub.f32 %v4942, %v4950
      %v4952 = vmul.f32 %v4951, %v4951
      %v4953 = vsel %vm1247, %v4952, 0.0
      %4954 = vadd.xlane.f32.xlu0 %v4953
      %v4955 = vpop.xlane.xlu0 %4954
      %v4956 = vmul.f32 %v4955, %v1251
      %v4957 = vadd.f32 %v4956, 1e-05
      %v4958 = vrsqrt.pop %v4957
      %v4959 = vmul.f32 %v4951, %v4958
      %v4961 = vlaneseq
      %v4962 = vshrl.u32 %v4961, 7
      %v4963 = vsub.s32 0, %v4962
      %v4964 = vrot.slane %v4944, %v4963
      %v4966 = vmul.f32 %v4959, %v4964
      %v4968 = vlaneseq
      %v4969 = vshrl.u32 %v4968, 7
      %v4970 = vsub.s32 0, %v4969
      %v4971 = vrot.slane %v4946, %v4970
      %v4973 = vadd.f32 %v4966, %v4971
      %s4974 = scalar_lea.vmem %s35, 16
      %v4975 = vld [vmem:[%s4974] sm:$0xf]
      %v4976 = vld [vmem:[%s4974 + $0x4] sm:$0xf]
      %v4977 = vld [vmem:[%s4974 + $0x8] sm:$0xf]
      %v4978 = vld [vmem:[%s4974 + $0xc] sm:$0xf]
      %s4979 = scalar_lea.vmem %s37, 1
      %v4980 = vld [vmem:[%s4979] sm:$0x1]
      %s4981 = scalar_lea.vmem %s39, 16
      %v4982 = vld [vmem:[%s4981] sm:$0xf]
      %v4983 = vld [vmem:[%s4981 + $0x4] sm:$0xf]
      %v4984 = vld [vmem:[%s4981 + $0x8] sm:$0xf]
      %v4985 = vld [vmem:[%s4981 + $0xc] sm:$0xf]
      %s4986 = scalar_lea.vmem %s41, 1
      %v4987 = vld [vmem:[%s4986] sm:$0x1]
      %v4988 = vpack.c.bf16 %v4973, %v4973
      %v4990 = vlaneseq
      %v4991 = vshrl.u32 %v4990, 7
      %v4992 = vsub.s32 0, %v4991
      %v4993 = vrot.slane %v4980, %v4992
      %v4999 = vunpack.c.l.b16 %v4975
      %v5000 = vunpack.c.l.b16 %v4976
      %v5001 = vunpack.c.l.b16 %v4977
      %v5002 = vunpack.c.l.b16 %v4978
      %v5003 = vpack.c.b16 %v5000, %v4999
      %v5004 = vpack.c.b16 %v5002, %v5001
      %v5008 = vsel %vm1247, %v4988, 0
      %5010 = vmatprep.subr.bf16.mxu0 0
      %5011 = vmatpush1.bf16.msra.mxu0 %v5003
      %5012 = vmatprep.subr.bf16.mxu0 0
      %5013 = vmatpush1.bf16.msra.mxu0 %v5004
      %5014 = vmatprep.subr.bf16.mxu0 0
      %5015 = vmatpush1.bf16.msra.mxu0 0
      %5016 = vmatprep.subr.bf16.mxu0 0
      %5017 = vmatpush1.bf16.msra.mxu0 0
      %5018 = vmatprep.subr.bf16.mxu0 0
      %5019 = vmatpush1.bf16.msra.mxu0 0
      %5020 = vmatprep.subr.bf16.mxu0 0
      %5021 = vmatpush1.bf16.msra.mxu0 0
      %5022 = vmatprep.subr.bf16.mxu0 0
      %5023 = vmatpush1.bf16.msra.mxu0 0
      %5024 = vmatprep.subr.bf16.mxu0 0
      %5025 = vmatpush1.bf16.msra.mxu0 0
      %5026 = vmatprep.subr.bf16.mxu0 0
      %5027 = vmatpush1.bf16.msra.mxu0 0
      %5028 = vmatprep.subr.bf16.mxu0 0
      %5029 = vmatpush1.bf16.msra.mxu0 0
      %5030 = vmatprep.subr.bf16.mxu0 0
      %5031 = vmatpush1.bf16.msra.mxu0 0
      %5032 = vmatprep.subr.bf16.mxu0 0
      %5033 = vmatpush1.bf16.msra.mxu0 0
      %5034 = vmatprep.subr.bf16.mxu0 0
      %5035 = vmatpush1.bf16.msra.mxu0 0
      %5036 = vmatprep.subr.bf16.mxu0 0
      %5037 = vmatpush1.bf16.msra.mxu0 0
      %5038 = vmatprep.subr.bf16.mxu0 0
      %5039 = vmatpush1.bf16.msra.mxu0 0
      %5040 = vmatprep.subr.bf16.mxu0 0
      %5041 = vmatpush1.bf16.msra.mxu0 0
      %5042 = vmatprep.mubr.bf16.mxu0 0
      %5043 = vmatmul.mubr.bf16.gmra.mrb[0].mxu0 %v5008
      %v5044 = vpop.f32.mrb[0].mxu0
      %v5045 = vadd.f32 %v4993, %v5044
      %v5046 = vpop.f32.mrb[0].mxu0
      %v5047 = vpop.f32.mrb[0].mxu0
      %v5048 = vpop.f32.mrb[0].mxu0
      %5049 = vdwg.mxu0
      %v5050 = vpack.c.bf16 %v5045, %v5045
      %5052 = vrot.lane.b32.xlu0 %v5050, 96
      %v5053 = vpop.permute.xlu0 %5052
      %v5055 = vsel %vm1352, %v5050, 0
      %v5058 = vsel %vm1352, %v5053, 0
      %5060 = vmatprep.subr.bf16.mxu0 0
      %5061 = vmatpush1.bf16.xpose.msra.mxu0 %v5058
      %5062 = vmatprep.subr.bf16.mxu0 0
      %5063 = vmatpush1.bf16.xpose.msra.mxu0 0
      %5064 = vmatprep.subr.bf16.mxu0 0
      %5065 = vmatpush1.bf16.xpose.msra.mxu0 0
      %5066 = vmatprep.subr.bf16.mxu0 0
      %5067 = vmatpush1.bf16.xpose.msra.mxu0 0
      %5068 = vmatprep.subr.bf16.mxu0 0
      %5069 = vmatpush1.bf16.xpose.msra.mxu0 0
      %5070 = vmatprep.subr.bf16.mxu0 0
      %5071 = vmatpush1.bf16.xpose.msra.mxu0 0
      %5072 = vmatprep.subr.bf16.mxu0 0
      %5073 = vmatpush1.bf16.xpose.msra.mxu0 0
      %5074 = vmatprep.subr.bf16.mxu0 0
      %5075 = vmatpush1.bf16.xpose.msra.mxu0 0
      %5076 = vmatprep.subr.bf16.mxu0 0
      %5077 = vmatpush1.bf16.xpose.msra.mxu0 0
      %5078 = vmatprep.subr.bf16.mxu0 0
      %5079 = vmatpush1.bf16.xpose.msra.mxu0 0
      %5080 = vmatprep.subr.bf16.mxu0 0
      %5081 = vmatpush1.bf16.xpose.msra.mxu0 0
      %5082 = vmatprep.subr.bf16.mxu0 0
      %5083 = vmatpush1.bf16.xpose.msra.mxu0 0
      %5084 = vmatprep.subr.bf16.mxu0 0
      %5085 = vmatpush1.bf16.xpose.msra.mxu0 0
      %5086 = vmatprep.subr.bf16.mxu0 0
      %5087 = vmatpush1.bf16.xpose.msra.mxu0 0
      %5088 = vmatprep.subr.bf16.mxu0 0
      %5089 = vmatpush1.bf16.xpose.msra.mxu0 0
      %5090 = vmatprep.subr.bf16.mxu0 0
      %5091 = vmatpush1.bf16.xpose.msra.mxu0 0
      %5092 = vmatprep.mubr.bf16.mxu0 0
      %5093 = vmatmul.mubr.bf16.gmra.mrb[0].mxu0 %v5055
      %v5094 = vpop.f32.mrb[0].mxu0
      %v5095 = vadd.f32 %v1244, %v5094
      %v5096 = vpop.f32.mrb[0].mxu0
      %v5097 = vpop.f32.mrb[0].mxu0
      %v5098 = vpop.f32.mrb[0].mxu0
      %5099 = vdwg.mxu0
      %v5100 = vsel %vm1352, %v5095, -inf
      %5101 = vmax.xlane.f32.xlu0 %v5100
      %v5102 = vpop.xlane.xlu0 %5101
      %v5103 = vsub.f32 %v5095, %v5102
      %v5104 = vmul.f32 %v5103, 1.442695
      %v5105 = vpow.pop %v5104
      %v5106 = vsel %vm1352, %v5105, 0.0
      %5107 = vadd.xlane.f32.xlu0 %v5106
      %v5108 = vpop.xlane.xlu0 %5107
      %v5109 = vrcp.pop %v5108
      %v5110 = vmul.f32 %v5105, %v5109
      %v5111 = vpack.c.bf16 %v5110, %v5110
      %5112 = vrot.lane.b32.xlu0 %v5050, 64
      %v5113 = vpop.permute.xlu0 %5112
      %v5115 = vsel %vm1352, %v5111, 0
      %v5118 = vsel %vm1416, %v5113, 0
      %5120 = vmatprep.subr.bf16.mxu0 0
      %5121 = vmatpush1.bf16.msra.mxu0 %v5118
      %5122 = vmatprep.subr.bf16.mxu0 0
      %5123 = vmatpush1.bf16.msra.mxu0 0
      %5124 = vmatprep.subr.bf16.mxu0 0
      %5125 = vmatpush1.bf16.msra.mxu0 0
      %5126 = vmatprep.subr.bf16.mxu0 0
      %5127 = vmatpush1.bf16.msra.mxu0 0
      %5128 = vmatprep.subr.bf16.mxu0 0
      %5129 = vmatpush1.bf16.msra.mxu0 0
      %5130 = vmatprep.subr.bf16.mxu0 0
      %5131 = vmatpush1.bf16.msra.mxu0 0
      %5132 = vmatprep.subr.bf16.mxu0 0
      %5133 = vmatpush1.bf16.msra.mxu0 0
      %5134 = vmatprep.subr.bf16.mxu0 0
      %5135 = vmatpush1.bf16.msra.mxu0 0
      %5136 = vmatprep.subr.bf16.mxu0 0
      %5137 = vmatpush1.bf16.msra.mxu0 0
      %5138 = vmatprep.subr.bf16.mxu0 0
      %5139 = vmatpush1.bf16.msra.mxu0 0
      %5140 = vmatprep.subr.bf16.mxu0 0
      %5141 = vmatpush1.bf16.msra.mxu0 0
      %5142 = vmatprep.subr.bf16.mxu0 0
      %5143 = vmatpush1.bf16.msra.mxu0 0
      %5144 = vmatprep.subr.bf16.mxu0 0
      %5145 = vmatpush1.bf16.msra.mxu0 0
      %5146 = vmatprep.subr.bf16.mxu0 0
      %5147 = vmatpush1.bf16.msra.mxu0 0
      %5148 = vmatprep.subr.bf16.mxu0 0
      %5149 = vmatpush1.bf16.msra.mxu0 0
      %5150 = vmatprep.subr.bf16.mxu0 0
      %5151 = vmatpush1.bf16.msra.mxu0 0
      %5152 = vmatprep.mubr.bf16.mxu0 0
      %5153 = vmatmul.mubr.bf16.gmra.mrb[0].mxu0 %v5115
      %v5154 = vpop.f32.mrb[0].mxu0
      %v5155 = vadd.f32 0.0, %v5154
      %v5156 = vpop.f32.mrb[0].mxu0
      %v5157 = vpop.f32.mrb[0].mxu0
      %v5158 = vpop.f32.mrb[0].mxu0
      %5159 = vdwg.mxu0
      %v5160 = vpack.c.bf16 %v5155, %v5155
      %5161 = vrot.lane.b32.xlu0 %v5050, 120
      %v5162 = vpop.permute.xlu0 %5161
      %5163 = vrot.lane.b32.xlu0 %v5050, 88
      %v5164 = vpop.permute.xlu0 %5163
      %v5166 = vsel %vm1352, %v5162, 0
      %v5169 = vsel %vm1352, %v5164, 0
      %5171 = vmatprep.subr.bf16.mxu0 0
      %5172 = vmatpush1.bf16.xpose.msra.mxu0 %v5169
      %5173 = vmatprep.subr.bf16.mxu0 0
      %5174 = vmatpush1.bf16.xpose.msra.mxu0 0
      %5175 = vmatprep.subr.bf16.mxu0 0
      %5176 = vmatpush1.bf16.xpose.msra.mxu0 0
      %5177 = vmatprep.subr.bf16.mxu0 0
      %5178 = vmatpush1.bf16.xpose.msra.mxu0 0
      %5179 = vmatprep.subr.bf16.mxu0 0
      %5180 = vmatpush1.bf16.xpose.msra.mxu0 0
      %5181 = vmatprep.subr.bf16.mxu0 0
      %5182 = vmatpush1.bf16.xpose.msra.mxu0 0
      %5183 = vmatprep.subr.bf16.mxu0 0
      %5184 = vmatpush1.bf16.xpose.msra.mxu0 0
      %5185 = vmatprep.subr.bf16.mxu0 0
      %5186 = vmatpush1.bf16.xpose.msra.mxu0 0
      %5187 = vmatprep.subr.bf16.mxu0 0
      %5188 = vmatpush1.bf16.xpose.msra.mxu0 0
      %5189 = vmatprep.subr.bf16.mxu0 0
      %5190 = vmatpush1.bf16.xpose.msra.mxu0 0
      %5191 = vmatprep.subr.bf16.mxu0 0
      %5192 = vmatpush1.bf16.xpose.msra.mxu0 0
      %5193 = vmatprep.subr.bf16.mxu0 0
      %5194 = vmatpush1.bf16.xpose.msra.mxu0 0
      %5195 = vmatprep.subr.bf16.mxu0 0
      %5196 = vmatpush1.bf16.xpose.msra.mxu0 0
      %5197 = vmatprep.subr.bf16.mxu0 0
      %5198 = vmatpush1.bf16.xpose.msra.mxu0 0
      %5199 = vmatprep.subr.bf16.mxu0 0
      %5200 = vmatpush1.bf16.xpose.msra.mxu0 0
      %5201 = vmatprep.subr.bf16.mxu0 0
      %5202 = vmatpush1.bf16.xpose.msra.mxu0 0
      %5203 = vmatprep.mubr.bf16.mxu0 0
      %5204 = vmatmul.mubr.bf16.gmra.mrb[0].mxu0 %v5166
      %v5205 = vpop.f32.mrb[0].mxu0
      %v5206 = vadd.f32 %v1244, %v5205
      %v5207 = vpop.f32.mrb[0].mxu0
      %v5208 = vpop.f32.mrb[0].mxu0
      %v5209 = vpop.f32.mrb[0].mxu0
      %5210 = vdwg.mxu0
      %v5211 = vsel %vm1352, %v5206, -inf
      %5212 = vmax.xlane.f32.xlu0 %v5211
      %v5213 = vpop.xlane.xlu0 %5212
      %v5214 = vsub.f32 %v5206, %v5213
      %v5215 = vmul.f32 %v5214, 1.442695
      %v5216 = vpow.pop %v5215
      %v5217 = vsel %vm1352, %v5216, 0.0
      %5218 = vadd.xlane.f32.xlu0 %v5217
      %v5219 = vpop.xlane.xlu0 %5218
      %v5220 = vrcp.pop %v5219
      %v5221 = vmul.f32 %v5216, %v5220
      %v5222 = vpack.c.bf16 %v5221, %v5221
      %5223 = vrot.lane.b32.xlu0 %v5050, 56
      %v5224 = vpop.permute.xlu0 %5223
      %v5226 = vsel %vm1352, %v5222, 0
      %v5229 = vsel %vm1416, %v5224, 0
      %5231 = vmatprep.subr.bf16.mxu0 0
      %5232 = vmatpush1.bf16.msra.mxu0 %v5229
      %5233 = vmatprep.subr.bf16.mxu0 0
      %5234 = vmatpush1.bf16.msra.mxu0 0
      %5235 = vmatprep.subr.bf16.mxu0 0
      %5236 = vmatpush1.bf16.msra.mxu0 0
      %5237 = vmatprep.subr.bf16.mxu0 0
      %5238 = vmatpush1.bf16.msra.mxu0 0
      %5239 = vmatprep.subr.bf16.mxu0 0
      %5240 = vmatpush1.bf16.msra.mxu0 0
      %5241 = vmatprep.subr.bf16.mxu0 0
      %5242 = vmatpush1.bf16.msra.mxu0 0
      %5243 = vmatprep.subr.bf16.mxu0 0
      %5244 = vmatpush1.bf16.msra.mxu0 0
      %5245 = vmatprep.subr.bf16.mxu0 0
      %5246 = vmatpush1.bf16.msra.mxu0 0
      %5247 = vmatprep.subr.bf16.mxu0 0
      %5248 = vmatpush1.bf16.msra.mxu0 0
      %5249 = vmatprep.subr.bf16.mxu0 0
      %5250 = vmatpush1.bf16.msra.mxu0 0
      %5251 = vmatprep.subr.bf16.mxu0 0
      %5252 = vmatpush1.bf16.msra.mxu0 0
      %5253 = vmatprep.subr.bf16.mxu0 0
      %5254 = vmatpush1.bf16.msra.mxu0 0
      %5255 = vmatprep.subr.bf16.mxu0 0
      %5256 = vmatpush1.bf16.msra.mxu0 0
      %5257 = vmatprep.subr.bf16.mxu0 0
      %5258 = vmatpush1.bf16.msra.mxu0 0
      %5259 = vmatprep.subr.bf16.mxu0 0
      %5260 = vmatpush1.bf16.msra.mxu0 0
      %5261 = vmatprep.subr.bf16.mxu0 0
      %5262 = vmatpush1.bf16.msra.mxu0 0
      %5263 = vmatprep.mubr.bf16.mxu0 0
      %5264 = vmatmul.mubr.bf16.gmra.mrb[0].mxu0 %v5226
      %v5265 = vpop.f32.mrb[0].mxu0
      %v5266 = vadd.f32 0.0, %v5265
      %v5267 = vpop.f32.mrb[0].mxu0
      %v5268 = vpop.f32.mrb[0].mxu0
      %v5269 = vpop.f32.mrb[0].mxu0
      %5270 = vdwg.mxu0
      %v5271 = vpack.c.bf16 %v5266, %v5266
      %v5273 = vsel %vm1352, %v5271, 0
      %v5276 = vsel %vm1416, %v4983, 0
      %5278 = vmatprep.subr.bf16.mxu0 0
      %5279 = vmatpush1.bf16.msra.mxu0 %v5276
      %5280 = vmatprep.subr.bf16.mxu0 0
      %5281 = vmatpush1.bf16.msra.mxu0 0
      %5282 = vmatprep.subr.bf16.mxu0 0
      %5283 = vmatpush1.bf16.msra.mxu0 0
      %5284 = vmatprep.subr.bf16.mxu0 0
      %5285 = vmatpush1.bf16.msra.mxu0 0
      %5286 = vmatprep.subr.bf16.mxu0 0
      %5287 = vmatpush1.bf16.msra.mxu0 0
      %5288 = vmatprep.subr.bf16.mxu0 0
      %5289 = vmatpush1.bf16.msra.mxu0 0
      %5290 = vmatprep.subr.bf16.mxu0 0
      %5291 = vmatpush1.bf16.msra.mxu0 0
      %5292 = vmatprep.subr.bf16.mxu0 0
      %5293 = vmatpush1.bf16.msra.mxu0 0
      %5294 = vmatprep.subr.bf16.mxu0 0
      %5295 = vmatpush1.bf16.msra.mxu0 0
      %5296 = vmatprep.subr.bf16.mxu0 0
      %5297 = vmatpush1.bf16.msra.mxu0 0
      %5298 = vmatprep.subr.bf16.mxu0 0
      %5299 = vmatpush1.bf16.msra.mxu0 0
      %5300 = vmatprep.subr.bf16.mxu0 0
      %5301 = vmatpush1.bf16.msra.mxu0 0
      %5302 = vmatprep.subr.bf16.mxu0 0
      %5303 = vmatpush1.bf16.msra.mxu0 0
      %5304 = vmatprep.subr.bf16.mxu0 0
      %5305 = vmatpush1.bf16.msra.mxu0 0
      %5306 = vmatprep.subr.bf16.mxu0 0
      %5307 = vmatpush1.bf16.msra.mxu0 0
      %5308 = vmatprep.subr.bf16.mxu0 0
      %5309 = vmatpush1.bf16.msra.mxu0 0
      %5310 = vmatprep.mubr.bf16.mxu0 0
      %5311 = vmatmul.mubr.bf16.gmra.mrb[0].mxu0 %v5273
      %v5312 = vpop.f32.mrb[0].mxu0
      %v5313 = vadd.f32 0.0, %v5312
      %v5314 = vpop.f32.mrb[0].mxu0
      %v5315 = vpop.f32.mrb[0].mxu0
      %v5316 = vpop.f32.mrb[0].mxu0
      %5317 = vdwg.mxu0
      %v5319 = vsel %vm1352, %v5160, 0
      %v5322 = vsel %vm1416, %v4982, 0
      %5324 = vmatprep.subr.bf16.mxu0 0
      %5325 = vmatpush1.bf16.msra.mxu0 %v5322
      %5326 = vmatprep.subr.bf16.mxu0 0
      %5327 = vmatpush1.bf16.msra.mxu0 0
      %5328 = vmatprep.subr.bf16.mxu0 0
      %5329 = vmatpush1.bf16.msra.mxu0 0
      %5330 = vmatprep.subr.bf16.mxu0 0
      %5331 = vmatpush1.bf16.msra.mxu0 0
      %5332 = vmatprep.subr.bf16.mxu0 0
      %5333 = vmatpush1.bf16.msra.mxu0 0
      %5334 = vmatprep.subr.bf16.mxu0 0
      %5335 = vmatpush1.bf16.msra.mxu0 0
      %5336 = vmatprep.subr.bf16.mxu0 0
      %5337 = vmatpush1.bf16.msra.mxu0 0
      %5338 = vmatprep.subr.bf16.mxu0 0
      %5339 = vmatpush1.bf16.msra.mxu0 0
      %5340 = vmatprep.subr.bf16.mxu0 0
      %5341 = vmatpush1.bf16.msra.mxu0 0
      %5342 = vmatprep.subr.bf16.mxu0 0
      %5343 = vmatpush1.bf16.msra.mxu0 0
      %5344 = vmatprep.subr.bf16.mxu0 0
      %5345 = vmatpush1.bf16.msra.mxu0 0
      %5346 = vmatprep.subr.bf16.mxu0 0
      %5347 = vmatpush1.bf16.msra.mxu0 0
      %5348 = vmatprep.subr.bf16.mxu0 0
      %5349 = vmatpush1.bf16.msra.mxu0 0
      %5350 = vmatprep.subr.bf16.mxu0 0
      %5351 = vmatpush1.bf16.msra.mxu0 0
      %5352 = vmatprep.subr.bf16.mxu0 0
      %5353 = vmatpush1.bf16.msra.mxu0 0
      %5354 = vmatprep.subr.bf16.mxu0 0
      %5355 = vmatpush1.bf16.msra.mxu0 0
      %5356 = vmatprep.mubr.bf16.mxu0 0
      %5357 = vmatmul.mubr.bf16.gmra.mrb[0].mxu0 %v5319
      %v5358 = vpop.f32.mrb[0].mxu0
      %v5359 = vadd.f32 %v5313, %v5358
      %v5360 = vpop.f32.mrb[0].mxu0
      %v5361 = vpop.f32.mrb[0].mxu0
      %v5362 = vpop.f32.mrb[0].mxu0
      %5363 = vdwg.mxu0
      %5364 = vrot.lane.b32.xlu0 %v5050, 112
      %v5365 = vpop.permute.xlu0 %5364
      %5366 = vrot.lane.b32.xlu0 %v5050, 80
      %v5367 = vpop.permute.xlu0 %5366
      %v5369 = vsel %vm1352, %v5365, 0
      %v5372 = vsel %vm1352, %v5367, 0
      %5374 = vmatprep.subr.bf16.mxu0 0
      %5375 = vmatpush1.bf16.xpose.msra.mxu0 %v5372
      %5376 = vmatprep.subr.bf16.mxu0 0
      %5377 = vmatpush1.bf16.xpose.msra.mxu0 0
      %5378 = vmatprep.subr.bf16.mxu0 0
      %5379 = vmatpush1.bf16.xpose.msra.mxu0 0
      %5380 = vmatprep.subr.bf16.mxu0 0
      %5381 = vmatpush1.bf16.xpose.msra.mxu0 0
      %5382 = vmatprep.subr.bf16.mxu0 0
      %5383 = vmatpush1.bf16.xpose.msra.mxu0 0
      %5384 = vmatprep.subr.bf16.mxu0 0
      %5385 = vmatpush1.bf16.xpose.msra.mxu0 0
      %5386 = vmatprep.subr.bf16.mxu0 0
      %5387 = vmatpush1.bf16.xpose.msra.mxu0 0
      %5388 = vmatprep.subr.bf16.mxu0 0
      %5389 = vmatpush1.bf16.xpose.msra.mxu0 0
      %5390 = vmatprep.subr.bf16.mxu0 0
      %5391 = vmatpush1.bf16.xpose.msra.mxu0 0
      %5392 = vmatprep.subr.bf16.mxu0 0
      %5393 = vmatpush1.bf16.xpose.msra.mxu0 0
      %5394 = vmatprep.subr.bf16.mxu0 0
      %5395 = vmatpush1.bf16.xpose.msra.mxu0 0
      %5396 = vmatprep.subr.bf16.mxu0 0
      %5397 = vmatpush1.bf16.xpose.msra.mxu0 0
      %5398 = vmatprep.subr.bf16.mxu0 0
      %5399 = vmatpush1.bf16.xpose.msra.mxu0 0
      %5400 = vmatprep.subr.bf16.mxu0 0
      %5401 = vmatpush1.bf16.xpose.msra.mxu0 0
      %5402 = vmatprep.subr.bf16.mxu0 0
      %5403 = vmatpush1.bf16.xpose.msra.mxu0 0
      %5404 = vmatprep.subr.bf16.mxu0 0
      %5405 = vmatpush1.bf16.xpose.msra.mxu0 0
      %5406 = vmatprep.mubr.bf16.mxu0 0
      %5407 = vmatmul.mubr.bf16.gmra.mrb[0].mxu0 %v5369
      %v5408 = vpop.f32.mrb[0].mxu0
      %v5409 = vadd.f32 %v1244, %v5408
      %v5410 = vpop.f32.mrb[0].mxu0
      %v5411 = vpop.f32.mrb[0].mxu0
      %v5412 = vpop.f32.mrb[0].mxu0
      %5413 = vdwg.mxu0
      %v5414 = vsel %vm1352, %v5409, -inf
      %5415 = vmax.xlane.f32.xlu0 %v5414
      %v5416 = vpop.xlane.xlu0 %5415
      %v5417 = vsub.f32 %v5409, %v5416
      %v5418 = vmul.f32 %v5417, 1.442695
      %v5419 = vpow.pop %v5418
      %v5420 = vsel %vm1352, %v5419, 0.0
      %5421 = vadd.xlane.f32.xlu0 %v5420
      %v5422 = vpop.xlane.xlu0 %5421
      %v5423 = vrcp.pop %v5422
      %v5424 = vmul.f32 %v5419, %v5423
      %v5425 = vpack.c.bf16 %v5424, %v5424
      %5426 = vrot.lane.b32.xlu0 %v5050, 48
      %v5427 = vpop.permute.xlu0 %5426
      %v5429 = vsel %vm1352, %v5425, 0
      %v5432 = vsel %vm1416, %v5427, 0
      %5434 = vmatprep.subr.bf16.mxu0 0
      %5435 = vmatpush1.bf16.msra.mxu0 %v5432
      %5436 = vmatprep.subr.bf16.mxu0 0
      %5437 = vmatpush1.bf16.msra.mxu0 0
      %5438 = vmatprep.subr.bf16.mxu0 0
      %5439 = vmatpush1.bf16.msra.mxu0 0
      %5440 = vmatprep.subr.bf16.mxu0 0
      %5441 = vmatpush1.bf16.msra.mxu0 0
      %5442 = vmatprep.subr.bf16.mxu0 0
      %5443 = vmatpush1.bf16.msra.mxu0 0
      %5444 = vmatprep.subr.bf16.mxu0 0
      %5445 = vmatpush1.bf16.msra.mxu0 0
      %5446 = vmatprep.subr.bf16.mxu0 0
      %5447 = vmatpush1.bf16.msra.mxu0 0
      %5448 = vmatprep.subr.bf16.mxu0 0
      %5449 = vmatpush1.bf16.msra.mxu0 0
      %5450 = vmatprep.subr.bf16.mxu0 0
      %5451 = vmatpush1.bf16.msra.mxu0 0
      %5452 = vmatprep.subr.bf16.mxu0 0
      %5453 = vmatpush1.bf16.msra.mxu0 0
      %5454 = vmatprep.subr.bf16.mxu0 0
      %5455 = vmatpush1.bf16.msra.mxu0 0
      %5456 = vmatprep.subr.bf16.mxu0 0
      %5457 = vmatpush1.bf16.msra.mxu0 0
      %5458 = vmatprep.subr.bf16.mxu0 0
      %5459 = vmatpush1.bf16.msra.mxu0 0
      %5460 = vmatprep.subr.bf16.mxu0 0
      %5461 = vmatpush1.bf16.msra.mxu0 0
      %5462 = vmatprep.subr.bf16.mxu0 0
      %5463 = vmatpush1.bf16.msra.mxu0 0
      %5464 = vmatprep.subr.bf16.mxu0 0
      %5465 = vmatpush1.bf16.msra.mxu0 0
      %5466 = vmatprep.mubr.bf16.mxu0 0
      %5467 = vmatmul.mubr.bf16.gmra.mrb[0].mxu0 %v5429
      %v5468 = vpop.f32.mrb[0].mxu0
      %v5469 = vadd.f32 0.0, %v5468
      %v5470 = vpop.f32.mrb[0].mxu0
      %v5471 = vpop.f32.mrb[0].mxu0
      %v5472 = vpop.f32.mrb[0].mxu0
      %5473 = vdwg.mxu0
      %v5474 = vpack.c.bf16 %v5469, %v5469
      %v5476 = vsel %vm1352, %v5474, 0
      %v5479 = vsel %vm1416, %v4984, 0
      %5481 = vmatprep.subr.bf16.mxu0 0
      %5482 = vmatpush1.bf16.msra.mxu0 %v5479
      %5483 = vmatprep.subr.bf16.mxu0 0
      %5484 = vmatpush1.bf16.msra.mxu0 0
      %5485 = vmatprep.subr.bf16.mxu0 0
      %5486 = vmatpush1.bf16.msra.mxu0 0
      %5487 = vmatprep.subr.bf16.mxu0 0
      %5488 = vmatpush1.bf16.msra.mxu0 0
      %5489 = vmatprep.subr.bf16.mxu0 0
      %5490 = vmatpush1.bf16.msra.mxu0 0
      %5491 = vmatprep.subr.bf16.mxu0 0
      %5492 = vmatpush1.bf16.msra.mxu0 0
      %5493 = vmatprep.subr.bf16.mxu0 0
      %5494 = vmatpush1.bf16.msra.mxu0 0
      %5495 = vmatprep.subr.bf16.mxu0 0
      %5496 = vmatpush1.bf16.msra.mxu0 0
      %5497 = vmatprep.subr.bf16.mxu0 0
      %5498 = vmatpush1.bf16.msra.mxu0 0
      %5499 = vmatprep.subr.bf16.mxu0 0
      %5500 = vmatpush1.bf16.msra.mxu0 0
      %5501 = vmatprep.subr.bf16.mxu0 0
      %5502 = vmatpush1.bf16.msra.mxu0 0
      %5503 = vmatprep.subr.bf16.mxu0 0
      %5504 = vmatpush1.bf16.msra.mxu0 0
      %5505 = vmatprep.subr.bf16.mxu0 0
      %5506 = vmatpush1.bf16.msra.mxu0 0
      %5507 = vmatprep.subr.bf16.mxu0 0
      %5508 = vmatpush1.bf16.msra.mxu0 0
      %5509 = vmatprep.subr.bf16.mxu0 0
      %5510 = vmatpush1.bf16.msra.mxu0 0
      %5511 = vmatprep.subr.bf16.mxu0 0
      %5512 = vmatpush1.bf16.msra.mxu0 0
      %5513 = vmatprep.mubr.bf16.mxu0 0
      %5514 = vmatmul.mubr.bf16.gmra.mrb[0].mxu0 %v5476
      %v5515 = vpop.f32.mrb[0].mxu0
      %v5516 = vadd.f32 0.0, %v5515
      %v5517 = vpop.f32.mrb[0].mxu0
      %v5518 = vpop.f32.mrb[0].mxu0
      %v5519 = vpop.f32.mrb[0].mxu0
      %5520 = vdwg.mxu0
      %v5521 = vadd.f32 %v5359, %v5516
      %5522 = vrot.lane.b32.xlu0 %v5050, 104
      %v5523 = vpop.permute.xlu0 %5522
      %5524 = vrot.lane.b32.xlu0 %v5050, 72
      %v5525 = vpop.permute.xlu0 %5524
      %v5527 = vsel %vm1352, %v5523, 0
      %v5530 = vsel %vm1352, %v5525, 0
      %5532 = vmatprep.subr.bf16.mxu0 0
      %5533 = vmatpush1.bf16.xpose.msra.mxu0 %v5530
      %5534 = vmatprep.subr.bf16.mxu0 0
      %5535 = vmatpush1.bf16.xpose.msra.mxu0 0
      %5536 = vmatprep.subr.bf16.mxu0 0
      %5537 = vmatpush1.bf16.xpose.msra.mxu0 0
      %5538 = vmatprep.subr.bf16.mxu0 0
      %5539 = vmatpush1.bf16.xpose.msra.mxu0 0
      %5540 = vmatprep.subr.bf16.mxu0 0
      %5541 = vmatpush1.bf16.xpose.msra.mxu0 0
      %5542 = vmatprep.subr.bf16.mxu0 0
      %5543 = vmatpush1.bf16.xpose.msra.mxu0 0
      %5544 = vmatprep.subr.bf16.mxu0 0
      %5545 = vmatpush1.bf16.xpose.msra.mxu0 0
      %5546 = vmatprep.subr.bf16.mxu0 0
      %5547 = vmatpush1.bf16.xpose.msra.mxu0 0
      %5548 = vmatprep.subr.bf16.mxu0 0
      %5549 = vmatpush1.bf16.xpose.msra.mxu0 0
      %5550 = vmatprep.subr.bf16.mxu0 0
      %5551 = vmatpush1.bf16.xpose.msra.mxu0 0
      %5552 = vmatprep.subr.bf16.mxu0 0
      %5553 = vmatpush1.bf16.xpose.msra.mxu0 0
      %5554 = vmatprep.subr.bf16.mxu0 0
      %5555 = vmatpush1.bf16.xpose.msra.mxu0 0
      %5556 = vmatprep.subr.bf16.mxu0 0
      %5557 = vmatpush1.bf16.xpose.msra.mxu0 0
      %5558 = vmatprep.subr.bf16.mxu0 0
      %5559 = vmatpush1.bf16.xpose.msra.mxu0 0
      %5560 = vmatprep.subr.bf16.mxu0 0
      %5561 = vmatpush1.bf16.xpose.msra.mxu0 0
      %5562 = vmatprep.subr.bf16.mxu0 0
      %5563 = vmatpush1.bf16.xpose.msra.mxu0 0
      %5564 = vmatprep.mubr.bf16.mxu0 0
      %5565 = vmatmul.mubr.bf16.gmra.mrb[0].mxu0 %v5527
      %v5566 = vpop.f32.mrb[0].mxu0
      %v5567 = vadd.f32 %v1244, %v5566
      %v5568 = vpop.f32.mrb[0].mxu0
      %v5569 = vpop.f32.mrb[0].mxu0
      %v5570 = vpop.f32.mrb[0].mxu0
      %5571 = vdwg.mxu0
      %v5572 = vsel %vm1352, %v5567, -inf
      %5573 = vmax.xlane.f32.xlu0 %v5572
      %v5574 = vpop.xlane.xlu0 %5573
      %v5575 = vsub.f32 %v5567, %v5574
      %v5576 = vmul.f32 %v5575, 1.442695
      %v5577 = vpow.pop %v5576
      %v5578 = vsel %vm1352, %v5577, 0.0
      %5579 = vadd.xlane.f32.xlu0 %v5578
      %v5580 = vpop.xlane.xlu0 %5579
      %v5581 = vrcp.pop %v5580
      %v5582 = vmul.f32 %v5577, %v5581
      %v5583 = vpack.c.bf16 %v5582, %v5582
      %5584 = vrot.lane.b32.xlu0 %v5050, 40
      %v5585 = vpop.permute.xlu0 %5584
      %v5587 = vsel %vm1352, %v5583, 0
      %v5590 = vsel %vm1416, %v5585, 0
      %5592 = vmatprep.subr.bf16.mxu0 0
      %5593 = vmatpush1.bf16.msra.mxu0 %v5590
      %5594 = vmatprep.subr.bf16.mxu0 0
      %5595 = vmatpush1.bf16.msra.mxu0 0
      %5596 = vmatprep.subr.bf16.mxu0 0
      %5597 = vmatpush1.bf16.msra.mxu0 0
      %5598 = vmatprep.subr.bf16.mxu0 0
      %5599 = vmatpush1.bf16.msra.mxu0 0
      %5600 = vmatprep.subr.bf16.mxu0 0
      %5601 = vmatpush1.bf16.msra.mxu0 0
      %5602 = vmatprep.subr.bf16.mxu0 0
      %5603 = vmatpush1.bf16.msra.mxu0 0
      %5604 = vmatprep.subr.bf16.mxu0 0
      %5605 = vmatpush1.bf16.msra.mxu0 0
      %5606 = vmatprep.subr.bf16.mxu0 0
      %5607 = vmatpush1.bf16.msra.mxu0 0
      %5608 = vmatprep.subr.bf16.mxu0 0
      %5609 = vmatpush1.bf16.msra.mxu0 0
      %5610 = vmatprep.subr.bf16.mxu0 0
      %5611 = vmatpush1.bf16.msra.mxu0 0
      %5612 = vmatprep.subr.bf16.mxu0 0
      %5613 = vmatpush1.bf16.msra.mxu0 0
      %5614 = vmatprep.subr.bf16.mxu0 0
      %5615 = vmatpush1.bf16.msra.mxu0 0
      %5616 = vmatprep.subr.bf16.mxu0 0
      %5617 = vmatpush1.bf16.msra.mxu0 0
      %5618 = vmatprep.subr.bf16.mxu0 0
      %5619 = vmatpush1.bf16.msra.mxu0 0
      %5620 = vmatprep.subr.bf16.mxu0 0
      %5621 = vmatpush1.bf16.msra.mxu0 0
      %5622 = vmatprep.subr.bf16.mxu0 0
      %5623 = vmatpush1.bf16.msra.mxu0 0
      %5624 = vmatprep.mubr.bf16.mxu0 0
      %5625 = vmatmul.mubr.bf16.gmra.mrb[0].mxu0 %v5587
      %v5626 = vpop.f32.mrb[0].mxu0
      %v5627 = vadd.f32 0.0, %v5626
      %v5628 = vpop.f32.mrb[0].mxu0
      %v5629 = vpop.f32.mrb[0].mxu0
      %v5630 = vpop.f32.mrb[0].mxu0
      %5631 = vdwg.mxu0
      %v5632 = vpack.c.bf16 %v5627, %v5627
      %v5634 = vsel %vm1352, %v5632, 0
      %v5637 = vsel %vm1416, %v4985, 0
      %5639 = vmatprep.subr.bf16.mxu0 0
      %5640 = vmatpush1.bf16.msra.mxu0 %v5637
      %5641 = vmatprep.subr.bf16.mxu0 0
      %5642 = vmatpush1.bf16.msra.mxu0 0
      %5643 = vmatprep.subr.bf16.mxu0 0
      %5644 = vmatpush1.bf16.msra.mxu0 0
      %5645 = vmatprep.subr.bf16.mxu0 0
      %5646 = vmatpush1.bf16.msra.mxu0 0
      %5647 = vmatprep.subr.bf16.mxu0 0
      %5648 = vmatpush1.bf16.msra.mxu0 0
      %5649 = vmatprep.subr.bf16.mxu0 0
      %5650 = vmatpush1.bf16.msra.mxu0 0
      %5651 = vmatprep.subr.bf16.mxu0 0
      %5652 = vmatpush1.bf16.msra.mxu0 0
      %5653 = vmatprep.subr.bf16.mxu0 0
      %5654 = vmatpush1.bf16.msra.mxu0 0
      %5655 = vmatprep.subr.bf16.mxu0 0
      %5656 = vmatpush1.bf16.msra.mxu0 0
      %5657 = vmatprep.subr.bf16.mxu0 0
      %5658 = vmatpush1.bf16.msra.mxu0 0
      %5659 = vmatprep.subr.bf16.mxu0 0
      %5660 = vmatpush1.bf16.msra.mxu0 0
      %5661 = vmatprep.subr.bf16.mxu0 0
      %5662 = vmatpush1.bf16.msra.mxu0 0
      %5663 = vmatprep.subr.bf16.mxu0 0
      %5664 = vmatpush1.bf16.msra.mxu0 0
      %5665 = vmatprep.subr.bf16.mxu0 0
      %5666 = vmatpush1.bf16.msra.mxu0 0
      %5667 = vmatprep.subr.bf16.mxu0 0
      %5668 = vmatpush1.bf16.msra.mxu0 0
      %5669 = vmatprep.subr.bf16.mxu0 0
      %5670 = vmatpush1.bf16.msra.mxu0 0
      %5671 = vmatprep.mubr.bf16.mxu0 0
      %5672 = vmatmul.mubr.bf16.gmra.mrb[0].mxu0 %v5634
      %v5673 = vpop.f32.mrb[0].mxu0
      %v5674 = vadd.f32 0.0, %v5673
      %v5675 = vpop.f32.mrb[0].mxu0
      %v5676 = vpop.f32.mrb[0].mxu0
      %v5677 = vpop.f32.mrb[0].mxu0
      %5678 = vdwg.mxu0
      %v5679 = vadd.f32 %v5521, %v5674
      %v5681 = vlaneseq
      %v5682 = vshrl.u32 %v5681, 7
      %v5683 = vsub.s32 0, %v5682
      %v5684 = vrot.slane %v4987, %v5683
      %v5686 = vadd.f32 %v5679, %v5684
      %v5687 = vadd.f32 %v4942, %v5686
      %s5688 = scalar_lea.vmem %s43, 1
      %v5689 = vld [vmem:[%s5688] sm:$0x1]
      %s5690 = scalar_lea.vmem %s45, 1
      %v5691 = vld [vmem:[%s5690] sm:$0x1]
      %v5692 = vsel %vm1247, %v5687, 0.0
      %5693 = vadd.xlane.f32.xlu0 %v5692
      %v5694 = vpop.xlane.xlu0 %5693
      %v5695 = vmul.f32 %v5694, %v1251
      %v5696 = vsub.f32 %v5687, %v5695
      %v5697 = vmul.f32 %v5696, %v5696
      %v5698 = vsel %vm1247, %v5697, 0.0
      %5699 = vadd.xlane.f32.xlu0 %v5698
      %v5700 = vpop.xlane.xlu0 %5699
      %v5701 = vmul.f32 %v5700, %v1251
      %v5702 = vadd.f32 %v5701, 1e-05
      %v5703 = vrsqrt.pop %v5702
      %v5704 = vmul.f32 %v5696, %v5703
      %v5706 = vlaneseq
      %v5707 = vshrl.u32 %v5706, 7
      %v5708 = vsub.s32 0, %v5707
      %v5709 = vrot.slane %v5689, %v5708
      %v5711 = vmul.f32 %v5704, %v5709
      %v5713 = vlaneseq
      %v5714 = vshrl.u32 %v5713, 7
      %v5715 = vsub.s32 0, %v5714
      %v5716 = vrot.slane %v5691, %v5715
      %v5718 = vadd.f32 %v5711, %v5716
      %s5719 = scalar_lea.vmem %s47, 16
      %v5720 = vld [vmem:[%s5719] sm:$0xf]
      %v5721 = vld [vmem:[%s5719 + $0x4] sm:$0xf]
      %v5722 = vld [vmem:[%s5719 + $0x8] sm:$0xf]
      %v5723 = vld [vmem:[%s5719 + $0xc] sm:$0xf]
      %s5724 = scalar_lea.vmem %s49, 1
      %v5725 = vld [vmem:[%s5724] sm:$0x1]
      %s5726 = scalar_lea.vmem %s51, 16
      %v5727 = vld [vmem:[%s5726] sm:$0xf]
      %v5728 = vld [vmem:[%s5726 + $0x4] sm:$0xf]
      %v5729 = vld [vmem:[%s5726 + $0x8] sm:$0xf]
      %v5730 = vld [vmem:[%s5726 + $0xc] sm:$0xf]
      %s5731 = scalar_lea.vmem %s53, 1
      %v5732 = vld [vmem:[%s5731] sm:$0x1]
      %s5733 = scalar_lea.vmem %s55, 16
      %v5734 = vld [vmem:[%s5733] sm:$0xf]
      %v5735 = vld [vmem:[%s5733 + $0x4] sm:$0xf]
      %v5736 = vld [vmem:[%s5733 + $0x8] sm:$0xf]
      %v5737 = vld [vmem:[%s5733 + $0xc] sm:$0xf]
      %s5738 = scalar_lea.vmem %s57, 1
      %v5739 = vld [vmem:[%s5738] sm:$0x1]
      %v5740 = vpack.c.bf16 %v5718, %v5718
      %v5742 = vlaneseq
      %v5743 = vshrl.u32 %v5742, 7
      %v5744 = vsub.s32 0, %v5743
      %v5745 = vrot.slane %v5725, %v5744
      %v5751 = vunpack.c.l.b16 %v5720
      %v5752 = vunpack.c.l.b16 %v5721
      %v5753 = vunpack.c.l.b16 %v5722
      %v5754 = vunpack.c.l.b16 %v5723
      %v5755 = vpack.c.b16 %v5752, %v5751
      %v5756 = vpack.c.b16 %v5754, %v5753
      %v5760 = vsel %vm1247, %v5740, 0
      %5762 = vmatprep.subr.bf16.mxu0 0
      %5763 = vmatpush1.bf16.msra.mxu0 %v5755
      %5764 = vmatprep.subr.bf16.mxu0 0
      %5765 = vmatpush1.bf16.msra.mxu0 %v5756
      %5766 = vmatprep.subr.bf16.mxu0 0
      %5767 = vmatpush1.bf16.msra.mxu0 0
      %5768 = vmatprep.subr.bf16.mxu0 0
      %5769 = vmatpush1.bf16.msra.mxu0 0
      %5770 = vmatprep.subr.bf16.mxu0 0
      %5771 = vmatpush1.bf16.msra.mxu0 0
      %5772 = vmatprep.subr.bf16.mxu0 0
      %5773 = vmatpush1.bf16.msra.mxu0 0
      %5774 = vmatprep.subr.bf16.mxu0 0
      %5775 = vmatpush1.bf16.msra.mxu0 0
      %5776 = vmatprep.subr.bf16.mxu0 0
      %5777 = vmatpush1.bf16.msra.mxu0 0
      %5778 = vmatprep.subr.bf16.mxu0 0
      %5779 = vmatpush1.bf16.msra.mxu0 0
      %5780 = vmatprep.subr.bf16.mxu0 0
      %5781 = vmatpush1.bf16.msra.mxu0 0
      %5782 = vmatprep.subr.bf16.mxu0 0
      %5783 = vmatpush1.bf16.msra.mxu0 0
      %5784 = vmatprep.subr.bf16.mxu0 0
      %5785 = vmatpush1.bf16.msra.mxu0 0
      %5786 = vmatprep.subr.bf16.mxu0 0
      %5787 = vmatpush1.bf16.msra.mxu0 0
      %5788 = vmatprep.subr.bf16.mxu0 0
      %5789 = vmatpush1.bf16.msra.mxu0 0
      %5790 = vmatprep.subr.bf16.mxu0 0
      %5791 = vmatpush1.bf16.msra.mxu0 0
      %5792 = vmatprep.subr.bf16.mxu0 0
      %5793 = vmatpush1.bf16.msra.mxu0 0
      %5794 = vmatprep.mubr.bf16.mxu0 0
      %5795 = vmatmul.mubr.bf16.gmra.mrb[0].mxu0 %v5760
      %v5796 = vpop.f32.mrb[0].mxu0
      %v5797 = vadd.f32 %v5745, %v5796
      %v5798 = vpop.f32.mrb[0].mxu0
      %v5799 = vpop.f32.mrb[0].mxu0
      %v5800 = vpop.f32.mrb[0].mxu0
      %5801 = vdwg.mxu0
      %v5802 = vpack.c.bf16 %v5797, %v5797
      %v5804 = vlaneseq
      %v5805 = vshrl.u32 %v5804, 7
      %v5806 = vsub.s32 0, %v5805
      %v5807 = vrot.slane %v5732, %v5806
      %v5813 = vunpack.c.l.b16 %v5727
      %v5814 = vunpack.c.l.b16 %v5728
      %v5815 = vunpack.c.l.b16 %v5729
      %v5816 = vunpack.c.l.b16 %v5730
      %v5817 = vpack.c.b16 %v5814, %v5813
      %v5818 = vpack.c.b16 %v5816, %v5815
      %5821 = vmatprep.subr.bf16.mxu0 0
      %5822 = vmatpush1.bf16.msra.mxu0 %v5817
      %5823 = vmatprep.subr.bf16.mxu0 0
      %5824 = vmatpush1.bf16.msra.mxu0 %v5818
      %5825 = vmatprep.subr.bf16.mxu0 0
      %5826 = vmatpush1.bf16.msra.mxu0 0
      %5827 = vmatprep.subr.bf16.mxu0 0
      %5828 = vmatpush1.bf16.msra.mxu0 0
      %5829 = vmatprep.subr.bf16.mxu0 0
      %5830 = vmatpush1.bf16.msra.mxu0 0
      %5831 = vmatprep.subr.bf16.mxu0 0
      %5832 = vmatpush1.bf16.msra.mxu0 0
      %5833 = vmatprep.subr.bf16.mxu0 0
      %5834 = vmatpush1.bf16.msra.mxu0 0
      %5835 = vmatprep.subr.bf16.mxu0 0
      %5836 = vmatpush1.bf16.msra.mxu0 0
      %5837 = vmatprep.subr.bf16.mxu0 0
      %5838 = vmatpush1.bf16.msra.mxu0 0
      %5839 = vmatprep.subr.bf16.mxu0 0
      %5840 = vmatpush1.bf16.msra.mxu0 0
      %5841 = vmatprep.subr.bf16.mxu0 0
      %5842 = vmatpush1.bf16.msra.mxu0 0
      %5843 = vmatprep.subr.bf16.mxu0 0
      %5844 = vmatpush1.bf16.msra.mxu0 0
      %5845 = vmatprep.subr.bf16.mxu0 0
      %5846 = vmatpush1.bf16.msra.mxu0 0
      %5847 = vmatprep.subr.bf16.mxu0 0
      %5848 = vmatpush1.bf16.msra.mxu0 0
      %5849 = vmatprep.subr.bf16.mxu0 0
      %5850 = vmatpush1.bf16.msra.mxu0 0
      %5851 = vmatprep.subr.bf16.mxu0 0
      %5852 = vmatpush1.bf16.msra.mxu0 0
      %5853 = vmatprep.mubr.bf16.mxu0 0
      %5854 = vmatmul.mubr.bf16.gmra.mrb[0].mxu0 %v4054
      %v5855 = vpop.f32.mrb[0].mxu0
      %v5856 = vadd.f32 %v5807, %v5855
      %v5857 = vpop.f32.mrb[0].mxu0
      %v5858 = vpop.f32.mrb[0].mxu0
      %v5859 = vpop.f32.mrb[0].mxu0
      %5860 = vdwg.mxu0
      %v5861 = vpack.c.bf16 %v5856, %v5856
      %v5863 = vsel %vm1352, %v5802, 0
      %v5866 = vsel %vm1352, %v5861, 0
      %5868 = vmatprep.subr.bf16.mxu0 0
      %5869 = vmatpush1.bf16.xpose.msra.mxu0 %v5866
      %5870 = vmatprep.subr.bf16.mxu0 0
      %5871 = vmatpush1.bf16.xpose.msra.mxu0 0
      %5872 = vmatprep.subr.bf16.mxu0 0
      %5873 = vmatpush1.bf16.xpose.msra.mxu0 0
      %5874 = vmatprep.subr.bf16.mxu0 0
      %5875 = vmatpush1.bf16.xpose.msra.mxu0 0
      %5876 = vmatprep.subr.bf16.mxu0 0
      %5877 = vmatpush1.bf16.xpose.msra.mxu0 0
      %5878 = vmatprep.subr.bf16.mxu0 0
      %5879 = vmatpush1.bf16.xpose.msra.mxu0 0
      %5880 = vmatprep.subr.bf16.mxu0 0
      %5881 = vmatpush1.bf16.xpose.msra.mxu0 0
      %5882 = vmatprep.subr.bf16.mxu0 0
      %5883 = vmatpush1.bf16.xpose.msra.mxu0 0
      %5884 = vmatprep.subr.bf16.mxu0 0
      %5885 = vmatpush1.bf16.xpose.msra.mxu0 0
      %5886 = vmatprep.subr.bf16.mxu0 0
      %5887 = vmatpush1.bf16.xpose.msra.mxu0 0
      %5888 = vmatprep.subr.bf16.mxu0 0
      %5889 = vmatpush1.bf16.xpose.msra.mxu0 0
      %5890 = vmatprep.subr.bf16.mxu0 0
      %5891 = vmatpush1.bf16.xpose.msra.mxu0 0
      %5892 = vmatprep.subr.bf16.mxu0 0
      %5893 = vmatpush1.bf16.xpose.msra.mxu0 0
      %5894 = vmatprep.subr.bf16.mxu0 0
      %5895 = vmatpush1.bf16.xpose.msra.mxu0 0
      %5896 = vmatprep.subr.bf16.mxu0 0
      %5897 = vmatpush1.bf16.xpose.msra.mxu0 0
      %5898 = vmatprep.subr.bf16.mxu0 0
      %5899 = vmatpush1.bf16.xpose.msra.mxu0 0
      %5900 = vmatprep.mubr.bf16.mxu0 0
      %5901 = vmatmul.mubr.bf16.gmra.mrb[0].mxu0 %v5863
      %v5902 = vpop.f32.mrb[0].mxu0
      %v5903 = vadd.f32 %v1240, %v5902
      %v5904 = vpop.f32.mrb[0].mxu0
      %v5905 = vpop.f32.mrb[0].mxu0
      %v5906 = vpop.f32.mrb[0].mxu0
      %5907 = vdwg.mxu0
      %v5908 = vsel %vm1352, %v5903, -inf
      %5909 = vmax.xlane.f32.xlu0 %v5908
      %v5910 = vpop.xlane.xlu0 %5909
      %v5911 = vsub.f32 %v5903, %v5910
      %v5912 = vmul.f32 %v5911, 1.442695
      %v5913 = vpow.pop %v5912
      %v5914 = vsel %vm1352, %v5913, 0.0
      %5915 = vadd.xlane.f32.xlu0 %v5914
      %v5916 = vpop.xlane.xlu0 %5915
      %v5917 = vrcp.pop %v5916
      %v5918 = vmul.f32 %v5913, %v5917
      %v5919 = vpack.c.bf16 %v5918, %v5918
      %5921 = vrot.lane.b32.xlu0 %v5861, 96
      %v5922 = vpop.permute.xlu0 %5921
      %v5924 = vsel %vm1352, %v5919, 0
      %v5927 = vsel %vm1416, %v5922, 0
      %5929 = vmatprep.subr.bf16.mxu0 0
      %5930 = vmatpush1.bf16.msra.mxu0 %v5927
      %5931 = vmatprep.subr.bf16.mxu0 0
      %5932 = vmatpush1.bf16.msra.mxu0 0
      %5933 = vmatprep.subr.bf16.mxu0 0
      %5934 = vmatpush1.bf16.msra.mxu0 0
      %5935 = vmatprep.subr.bf16.mxu0 0
      %5936 = vmatpush1.bf16.msra.mxu0 0
      %5937 = vmatprep.subr.bf16.mxu0 0
      %5938 = vmatpush1.bf16.msra.mxu0 0
      %5939 = vmatprep.subr.bf16.mxu0 0
      %5940 = vmatpush1.bf16.msra.mxu0 0
      %5941 = vmatprep.subr.bf16.mxu0 0
      %5942 = vmatpush1.bf16.msra.mxu0 0
      %5943 = vmatprep.subr.bf16.mxu0 0
      %5944 = vmatpush1.bf16.msra.mxu0 0
      %5945 = vmatprep.subr.bf16.mxu0 0
      %5946 = vmatpush1.bf16.msra.mxu0 0
      %5947 = vmatprep.subr.bf16.mxu0 0
      %5948 = vmatpush1.bf16.msra.mxu0 0
      %5949 = vmatprep.subr.bf16.mxu0 0
      %5950 = vmatpush1.bf16.msra.mxu0 0
      %5951 = vmatprep.subr.bf16.mxu0 0
      %5952 = vmatpush1.bf16.msra.mxu0 0
      %5953 = vmatprep.subr.bf16.mxu0 0
      %5954 = vmatpush1.bf16.msra.mxu0 0
      %5955 = vmatprep.subr.bf16.mxu0 0
      %5956 = vmatpush1.bf16.msra.mxu0 0
      %5957 = vmatprep.subr.bf16.mxu0 0
      %5958 = vmatpush1.bf16.msra.mxu0 0
      %5959 = vmatprep.subr.bf16.mxu0 0
      %5960 = vmatpush1.bf16.msra.mxu0 0
      %5961 = vmatprep.mubr.bf16.mxu0 0
      %5962 = vmatmul.mubr.bf16.gmra.mrb[0].mxu0 %v5924
      %v5963 = vpop.f32.mrb[0].mxu0
      %v5964 = vadd.f32 0.0, %v5963
      %v5965 = vpop.f32.mrb[0].mxu0
      %v5966 = vpop.f32.mrb[0].mxu0
      %v5967 = vpop.f32.mrb[0].mxu0
      %5968 = vdwg.mxu0
      %v5969 = vpack.c.bf16 %v5964, %v5964
      %5971 = vrot.lane.b32.xlu0 %v5802, 120
      %v5972 = vpop.permute.xlu0 %5971
      %5973 = vrot.lane.b32.xlu0 %v5861, 120
      %v5974 = vpop.permute.xlu0 %5973
      %v5976 = vsel %vm1352, %v5972, 0
      %v5979 = vsel %vm1352, %v5974, 0
      %5981 = vmatprep.subr.bf16.mxu0 0
      %5982 = vmatpush1.bf16.xpose.msra.mxu0 %v5979
      %5983 = vmatprep.subr.bf16.mxu0 0
      %5984 = vmatpush1.bf16.xpose.msra.mxu0 0
      %5985 = vmatprep.subr.bf16.mxu0 0
      %5986 = vmatpush1.bf16.xpose.msra.mxu0 0
      %5987 = vmatprep.subr.bf16.mxu0 0
      %5988 = vmatpush1.bf16.xpose.msra.mxu0 0
      %5989 = vmatprep.subr.bf16.mxu0 0
      %5990 = vmatpush1.bf16.xpose.msra.mxu0 0
      %5991 = vmatprep.subr.bf16.mxu0 0
      %5992 = vmatpush1.bf16.xpose.msra.mxu0 0
      %5993 = vmatprep.subr.bf16.mxu0 0
      %5994 = vmatpush1.bf16.xpose.msra.mxu0 0
      %5995 = vmatprep.subr.bf16.mxu0 0
      %5996 = vmatpush1.bf16.xpose.msra.mxu0 0
      %5997 = vmatprep.subr.bf16.mxu0 0
      %5998 = vmatpush1.bf16.xpose.msra.mxu0 0
      %5999 = vmatprep.subr.bf16.mxu0 0
      %6000 = vmatpush1.bf16.xpose.msra.mxu0 0
      %6001 = vmatprep.subr.bf16.mxu0 0
      %6002 = vmatpush1.bf16.xpose.msra.mxu0 0
      %6003 = vmatprep.subr.bf16.mxu0 0
      %6004 = vmatpush1.bf16.xpose.msra.mxu0 0
      %6005 = vmatprep.subr.bf16.mxu0 0
      %6006 = vmatpush1.bf16.xpose.msra.mxu0 0
      %6007 = vmatprep.subr.bf16.mxu0 0
      %6008 = vmatpush1.bf16.xpose.msra.mxu0 0
      %6009 = vmatprep.subr.bf16.mxu0 0
      %6010 = vmatpush1.bf16.xpose.msra.mxu0 0
      %6011 = vmatprep.subr.bf16.mxu0 0
      %6012 = vmatpush1.bf16.xpose.msra.mxu0 0
      %6013 = vmatprep.mubr.bf16.mxu0 0
      %6014 = vmatmul.mubr.bf16.gmra.mrb[0].mxu0 %v5976
      %v6015 = vpop.f32.mrb[0].mxu0
      %v6016 = vadd.f32 %v1240, %v6015
      %v6017 = vpop.f32.mrb[0].mxu0
      %v6018 = vpop.f32.mrb[0].mxu0
      %v6019 = vpop.f32.mrb[0].mxu0
      %6020 = vdwg.mxu0
      %v6021 = vsel %vm1352, %v6016, -inf
      %6022 = vmax.xlane.f32.xlu0 %v6021
      %v6023 = vpop.xlane.xlu0 %6022
      %v6024 = vsub.f32 %v6016, %v6023
      %v6025 = vmul.f32 %v6024, 1.442695
      %v6026 = vpow.pop %v6025
      %v6027 = vsel %vm1352, %v6026, 0.0
      %6028 = vadd.xlane.f32.xlu0 %v6027
      %v6029 = vpop.xlane.xlu0 %6028
      %v6030 = vrcp.pop %v6029
      %v6031 = vmul.f32 %v6026, %v6030
      %v6032 = vpack.c.bf16 %v6031, %v6031
      %6033 = vrot.lane.b32.xlu0 %v5861, 88
      %v6034 = vpop.permute.xlu0 %6033
      %v6036 = vsel %vm1352, %v6032, 0
      %v6039 = vsel %vm1416, %v6034, 0
      %6041 = vmatprep.subr.bf16.mxu0 0
      %6042 = vmatpush1.bf16.msra.mxu0 %v6039
      %6043 = vmatprep.subr.bf16.mxu0 0
      %6044 = vmatpush1.bf16.msra.mxu0 0
      %6045 = vmatprep.subr.bf16.mxu0 0
      %6046 = vmatpush1.bf16.msra.mxu0 0
      %6047 = vmatprep.subr.bf16.mxu0 0
      %6048 = vmatpush1.bf16.msra.mxu0 0
      %6049 = vmatprep.subr.bf16.mxu0 0
      %6050 = vmatpush1.bf16.msra.mxu0 0
      %6051 = vmatprep.subr.bf16.mxu0 0
      %6052 = vmatpush1.bf16.msra.mxu0 0
      %6053 = vmatprep.subr.bf16.mxu0 0
      %6054 = vmatpush1.bf16.msra.mxu0 0
      %6055 = vmatprep.subr.bf16.mxu0 0
      %6056 = vmatpush1.bf16.msra.mxu0 0
      %6057 = vmatprep.subr.bf16.mxu0 0
      %6058 = vmatpush1.bf16.msra.mxu0 0
      %6059 = vmatprep.subr.bf16.mxu0 0
      %6060 = vmatpush1.bf16.msra.mxu0 0
      %6061 = vmatprep.subr.bf16.mxu0 0
      %6062 = vmatpush1.bf16.msra.mxu0 0
      %6063 = vmatprep.subr.bf16.mxu0 0
      %6064 = vmatpush1.bf16.msra.mxu0 0
      %6065 = vmatprep.subr.bf16.mxu0 0
      %6066 = vmatpush1.bf16.msra.mxu0 0
      %6067 = vmatprep.subr.bf16.mxu0 0
      %6068 = vmatpush1.bf16.msra.mxu0 0
      %6069 = vmatprep.subr.bf16.mxu0 0
      %6070 = vmatpush1.bf16.msra.mxu0 0
      %6071 = vmatprep.subr.bf16.mxu0 0
      %6072 = vmatpush1.bf16.msra.mxu0 0
      %6073 = vmatprep.mubr.bf16.mxu0 0
      %6074 = vmatmul.mubr.bf16.gmra.mrb[0].mxu0 %v6036
      %v6075 = vpop.f32.mrb[0].mxu0
      %v6076 = vadd.f32 0.0, %v6075
      %v6077 = vpop.f32.mrb[0].mxu0
      %v6078 = vpop.f32.mrb[0].mxu0
      %v6079 = vpop.f32.mrb[0].mxu0
      %6080 = vdwg.mxu0
      %v6081 = vpack.c.bf16 %v6076, %v6076
      %v6083 = vsel %vm1352, %v6081, 0
      %v6086 = vsel %vm1416, %v5735, 0
      %6088 = vmatprep.subr.bf16.mxu0 0
      %6089 = vmatpush1.bf16.msra.mxu0 %v6086
      %6090 = vmatprep.subr.bf16.mxu0 0
      %6091 = vmatpush1.bf16.msra.mxu0 0
      %6092 = vmatprep.subr.bf16.mxu0 0
      %6093 = vmatpush1.bf16.msra.mxu0 0
      %6094 = vmatprep.subr.bf16.mxu0 0
      %6095 = vmatpush1.bf16.msra.mxu0 0
      %6096 = vmatprep.subr.bf16.mxu0 0
      %6097 = vmatpush1.bf16.msra.mxu0 0
      %6098 = vmatprep.subr.bf16.mxu0 0
      %6099 = vmatpush1.bf16.msra.mxu0 0
      %6100 = vmatprep.subr.bf16.mxu0 0
      %6101 = vmatpush1.bf16.msra.mxu0 0
      %6102 = vmatprep.subr.bf16.mxu0 0
      %6103 = vmatpush1.bf16.msra.mxu0 0
      %6104 = vmatprep.subr.bf16.mxu0 0
      %6105 = vmatpush1.bf16.msra.mxu0 0
      %6106 = vmatprep.subr.bf16.mxu0 0
      %6107 = vmatpush1.bf16.msra.mxu0 0
      %6108 = vmatprep.subr.bf16.mxu0 0
      %6109 = vmatpush1.bf16.msra.mxu0 0
      %6110 = vmatprep.subr.bf16.mxu0 0
      %6111 = vmatpush1.bf16.msra.mxu0 0
      %6112 = vmatprep.subr.bf16.mxu0 0
      %6113 = vmatpush1.bf16.msra.mxu0 0
      %6114 = vmatprep.subr.bf16.mxu0 0
      %6115 = vmatpush1.bf16.msra.mxu0 0
      %6116 = vmatprep.subr.bf16.mxu0 0
      %6117 = vmatpush1.bf16.msra.mxu0 0
      %6118 = vmatprep.subr.bf16.mxu0 0
      %6119 = vmatpush1.bf16.msra.mxu0 0
      %6120 = vmatprep.mubr.bf16.mxu0 0
      %6121 = vmatmul.mubr.bf16.gmra.mrb[0].mxu0 %v6083
      %v6122 = vpop.f32.mrb[0].mxu0
      %v6123 = vadd.f32 0.0, %v6122
      %v6124 = vpop.f32.mrb[0].mxu0
      %v6125 = vpop.f32.mrb[0].mxu0
      %v6126 = vpop.f32.mrb[0].mxu0
      %6127 = vdwg.mxu0
      %v6129 = vsel %vm1352, %v5969, 0
      %v6132 = vsel %vm1416, %v5734, 0
      %6134 = vmatprep.subr.bf16.mxu0 0
      %6135 = vmatpush1.bf16.msra.mxu0 %v6132
      %6136 = vmatprep.subr.bf16.mxu0 0
      %6137 = vmatpush1.bf16.msra.mxu0 0
      %6138 = vmatprep.subr.bf16.mxu0 0
      %6139 = vmatpush1.bf16.msra.mxu0 0
      %6140 = vmatprep.subr.bf16.mxu0 0
      %6141 = vmatpush1.bf16.msra.mxu0 0
      %6142 = vmatprep.subr.bf16.mxu0 0
      %6143 = vmatpush1.bf16.msra.mxu0 0
      %6144 = vmatprep.subr.bf16.mxu0 0
      %6145 = vmatpush1.bf16.msra.mxu0 0
      %6146 = vmatprep.subr.bf16.mxu0 0
      %6147 = vmatpush1.bf16.msra.mxu0 0
      %6148 = vmatprep.subr.bf16.mxu0 0
      %6149 = vmatpush1.bf16.msra.mxu0 0
      %6150 = vmatprep.subr.bf16.mxu0 0
      %6151 = vmatpush1.bf16.msra.mxu0 0
      %6152 = vmatprep.subr.bf16.mxu0 0
      %6153 = vmatpush1.bf16.msra.mxu0 0
      %6154 = vmatprep.subr.bf16.mxu0 0
      %6155 = vmatpush1.bf16.msra.mxu0 0
      %6156 = vmatprep.subr.bf16.mxu0 0
      %6157 = vmatpush1.bf16.msra.mxu0 0
      %6158 = vmatprep.subr.bf16.mxu0 0
      %6159 = vmatpush1.bf16.msra.mxu0 0
      %6160 = vmatprep.subr.bf16.mxu0 0
      %6161 = vmatpush1.bf16.msra.mxu0 0
      %6162 = vmatprep.subr.bf16.mxu0 0
      %6163 = vmatpush1.bf16.msra.mxu0 0
      %6164 = vmatprep.subr.bf16.mxu0 0
      %6165 = vmatpush1.bf16.msra.mxu0 0
      %6166 = vmatprep.mubr.bf16.mxu0 0
      %6167 = vmatmul.mubr.bf16.gmra.mrb[0].mxu0 %v6129
      %v6168 = vpop.f32.mrb[0].mxu0
      %v6169 = vadd.f32 %v6123, %v6168
      %v6170 = vpop.f32.mrb[0].mxu0
      %v6171 = vpop.f32.mrb[0].mxu0
      %v6172 = vpop.f32.mrb[0].mxu0
      %6173 = vdwg.mxu0
      %6174 = vrot.lane.b32.xlu0 %v5802, 112
      %v6175 = vpop.permute.xlu0 %6174
      %6176 = vrot.lane.b32.xlu0 %v5861, 112
      %v6177 = vpop.permute.xlu0 %6176
      %v6179 = vsel %vm1352, %v6175, 0
      %v6182 = vsel %vm1352, %v6177, 0
      %6184 = vmatprep.subr.bf16.mxu0 0
      %6185 = vmatpush1.bf16.xpose.msra.mxu0 %v6182
      %6186 = vmatprep.subr.bf16.mxu0 0
      %6187 = vmatpush1.bf16.xpose.msra.mxu0 0
      %6188 = vmatprep.subr.bf16.mxu0 0
      %6189 = vmatpush1.bf16.xpose.msra.mxu0 0
      %6190 = vmatprep.subr.bf16.mxu0 0
      %6191 = vmatpush1.bf16.xpose.msra.mxu0 0
      %6192 = vmatprep.subr.bf16.mxu0 0
      %6193 = vmatpush1.bf16.xpose.msra.mxu0 0
      %6194 = vmatprep.subr.bf16.mxu0 0
      %6195 = vmatpush1.bf16.xpose.msra.mxu0 0
      %6196 = vmatprep.subr.bf16.mxu0 0
      %6197 = vmatpush1.bf16.xpose.msra.mxu0 0
      %6198 = vmatprep.subr.bf16.mxu0 0
      %6199 = vmatpush1.bf16.xpose.msra.mxu0 0
      %6200 = vmatprep.subr.bf16.mxu0 0
      %6201 = vmatpush1.bf16.xpose.msra.mxu0 0
      %6202 = vmatprep.subr.bf16.mxu0 0
      %6203 = vmatpush1.bf16.xpose.msra.mxu0 0
      %6204 = vmatprep.subr.bf16.mxu0 0
      %6205 = vmatpush1.bf16.xpose.msra.mxu0 0
      %6206 = vmatprep.subr.bf16.mxu0 0
      %6207 = vmatpush1.bf16.xpose.msra.mxu0 0
      %6208 = vmatprep.subr.bf16.mxu0 0
      %6209 = vmatpush1.bf16.xpose.msra.mxu0 0
      %6210 = vmatprep.subr.bf16.mxu0 0
      %6211 = vmatpush1.bf16.xpose.msra.mxu0 0
      %6212 = vmatprep.subr.bf16.mxu0 0
      %6213 = vmatpush1.bf16.xpose.msra.mxu0 0
      %6214 = vmatprep.subr.bf16.mxu0 0
      %6215 = vmatpush1.bf16.xpose.msra.mxu0 0
      %6216 = vmatprep.mubr.bf16.mxu0 0
      %6217 = vmatmul.mubr.bf16.gmra.mrb[0].mxu0 %v6179
      %v6218 = vpop.f32.mrb[0].mxu0
      %v6219 = vadd.f32 %v1240, %v6218
      %v6220 = vpop.f32.mrb[0].mxu0
      %v6221 = vpop.f32.mrb[0].mxu0
      %v6222 = vpop.f32.mrb[0].mxu0
      %6223 = vdwg.mxu0
      %v6224 = vsel %vm1352, %v6219, -inf
      %6225 = vmax.xlane.f32.xlu0 %v6224
      %v6226 = vpop.xlane.xlu0 %6225
      %v6227 = vsub.f32 %v6219, %v6226
      %v6228 = vmul.f32 %v6227, 1.442695
      %v6229 = vpow.pop %v6228
      %v6230 = vsel %vm1352, %v6229, 0.0
      %6231 = vadd.xlane.f32.xlu0 %v6230
      %v6232 = vpop.xlane.xlu0 %6231
      %v6233 = vrcp.pop %v6232
      %v6234 = vmul.f32 %v6229, %v6233
      %v6235 = vpack.c.bf16 %v6234, %v6234
      %6236 = vrot.lane.b32.xlu0 %v5861, 80
      %v6237 = vpop.permute.xlu0 %6236
      %v6239 = vsel %vm1352, %v6235, 0
      %v6242 = vsel %vm1416, %v6237, 0
      %6244 = vmatprep.subr.bf16.mxu0 0
      %6245 = vmatpush1.bf16.msra.mxu0 %v6242
      %6246 = vmatprep.subr.bf16.mxu0 0
      %6247 = vmatpush1.bf16.msra.mxu0 0
      %6248 = vmatprep.subr.bf16.mxu0 0
      %6249 = vmatpush1.bf16.msra.mxu0 0
      %6250 = vmatprep.subr.bf16.mxu0 0
      %6251 = vmatpush1.bf16.msra.mxu0 0
      %6252 = vmatprep.subr.bf16.mxu0 0
      %6253 = vmatpush1.bf16.msra.mxu0 0
      %6254 = vmatprep.subr.bf16.mxu0 0
      %6255 = vmatpush1.bf16.msra.mxu0 0
      %6256 = vmatprep.subr.bf16.mxu0 0
      %6257 = vmatpush1.bf16.msra.mxu0 0
      %6258 = vmatprep.subr.bf16.mxu0 0
      %6259 = vmatpush1.bf16.msra.mxu0 0
      %6260 = vmatprep.subr.bf16.mxu0 0
      %6261 = vmatpush1.bf16.msra.mxu0 0
      %6262 = vmatprep.subr.bf16.mxu0 0
      %6263 = vmatpush1.bf16.msra.mxu0 0
      %6264 = vmatprep.subr.bf16.mxu0 0
      %6265 = vmatpush1.bf16.msra.mxu0 0
      %6266 = vmatprep.subr.bf16.mxu0 0
      %6267 = vmatpush1.bf16.msra.mxu0 0
      %6268 = vmatprep.subr.bf16.mxu0 0
      %6269 = vmatpush1.bf16.msra.mxu0 0
      %6270 = vmatprep.subr.bf16.mxu0 0
      %6271 = vmatpush1.bf16.msra.mxu0 0
      %6272 = vmatprep.subr.bf16.mxu0 0
      %6273 = vmatpush1.bf16.msra.mxu0 0
      %6274 = vmatprep.subr.bf16.mxu0 0
      %6275 = vmatpush1.bf16.msra.mxu0 0
      %6276 = vmatprep.mubr.bf16.mxu0 0
      %6277 = vmatmul.mubr.bf16.gmra.mrb[0].mxu0 %v6239
      %v6278 = vpop.f32.mrb[0].mxu0
      %v6279 = vadd.f32 0.0, %v6278
      %v6280 = vpop.f32.mrb[0].mxu0
      %v6281 = vpop.f32.mrb[0].mxu0
      %v6282 = vpop.f32.mrb[0].mxu0
      %6283 = vdwg.mxu0
      %v6284 = vpack.c.bf16 %v6279, %v6279
      %v6286 = vsel %vm1352, %v6284, 0
      %v6289 = vsel %vm1416, %v5736, 0
      %6291 = vmatprep.subr.bf16.mxu0 0
      %6292 = vmatpush1.bf16.msra.mxu0 %v6289
      %6293 = vmatprep.subr.bf16.mxu0 0
      %6294 = vmatpush1.bf16.msra.mxu0 0
      %6295 = vmatprep.subr.bf16.mxu0 0
      %6296 = vmatpush1.bf16.msra.mxu0 0
      %6297 = vmatprep.subr.bf16.mxu0 0
      %6298 = vmatpush1.bf16.msra.mxu0 0
      %6299 = vmatprep.subr.bf16.mxu0 0
      %6300 = vmatpush1.bf16.msra.mxu0 0
      %6301 = vmatprep.subr.bf16.mxu0 0
      %6302 = vmatpush1.bf16.msra.mxu0 0
      %6303 = vmatprep.subr.bf16.mxu0 0
      %6304 = vmatpush1.bf16.msra.mxu0 0
      %6305 = vmatprep.subr.bf16.mxu0 0
      %6306 = vmatpush1.bf16.msra.mxu0 0
      %6307 = vmatprep.subr.bf16.mxu0 0
      %6308 = vmatpush1.bf16.msra.mxu0 0
      %6309 = vmatprep.subr.bf16.mxu0 0
      %6310 = vmatpush1.bf16.msra.mxu0 0
      %6311 = vmatprep.subr.bf16.mxu0 0
      %6312 = vmatpush1.bf16.msra.mxu0 0
      %6313 = vmatprep.subr.bf16.mxu0 0
      %6314 = vmatpush1.bf16.msra.mxu0 0
      %6315 = vmatprep.subr.bf16.mxu0 0
      %6316 = vmatpush1.bf16.msra.mxu0 0
      %6317 = vmatprep.subr.bf16.mxu0 0
      %6318 = vmatpush1.bf16.msra.mxu0 0
      %6319 = vmatprep.subr.bf16.mxu0 0
      %6320 = vmatpush1.bf16.msra.mxu0 0
      %6321 = vmatprep.subr.bf16.mxu0 0
      %6322 = vmatpush1.bf16.msra.mxu0 0
      %6323 = vmatprep.mubr.bf16.mxu0 0
      %6324 = vmatmul.mubr.bf16.gmra.mrb[0].mxu0 %v6286
      %v6325 = vpop.f32.mrb[0].mxu0
      %v6326 = vadd.f32 0.0, %v6325
      %v6327 = vpop.f32.mrb[0].mxu0
      %v6328 = vpop.f32.mrb[0].mxu0
      %v6329 = vpop.f32.mrb[0].mxu0
      %6330 = vdwg.mxu0
      %v6331 = vadd.f32 %v6169, %v6326
      %6332 = vrot.lane.b32.xlu0 %v5802, 104
      %v6333 = vpop.permute.xlu0 %6332
      %6334 = vrot.lane.b32.xlu0 %v5861, 104
      %v6335 = vpop.permute.xlu0 %6334
      %v6337 = vsel %vm1352, %v6333, 0
      %v6340 = vsel %vm1352, %v6335, 0
      %6342 = vmatprep.subr.bf16.mxu0 0
      %6343 = vmatpush1.bf16.xpose.msra.mxu0 %v6340
      %6344 = vmatprep.subr.bf16.mxu0 0
      %6345 = vmatpush1.bf16.xpose.msra.mxu0 0
      %6346 = vmatprep.subr.bf16.mxu0 0
      %6347 = vmatpush1.bf16.xpose.msra.mxu0 0
      %6348 = vmatprep.subr.bf16.mxu0 0
      %6349 = vmatpush1.bf16.xpose.msra.mxu0 0
      %6350 = vmatprep.subr.bf16.mxu0 0
      %6351 = vmatpush1.bf16.xpose.msra.mxu0 0
      %6352 = vmatprep.subr.bf16.mxu0 0
      %6353 = vmatpush1.bf16.xpose.msra.mxu0 0
      %6354 = vmatprep.subr.bf16.mxu0 0
      %6355 = vmatpush1.bf16.xpose.msra.mxu0 0
      %6356 = vmatprep.subr.bf16.mxu0 0
      %6357 = vmatpush1.bf16.xpose.msra.mxu0 0
      %6358 = vmatprep.subr.bf16.mxu0 0
      %6359 = vmatpush1.bf16.xpose.msra.mxu0 0
      %6360 = vmatprep.subr.bf16.mxu0 0
      %6361 = vmatpush1.bf16.xpose.msra.mxu0 0
      %6362 = vmatprep.subr.bf16.mxu0 0
      %6363 = vmatpush1.bf16.xpose.msra.mxu0 0
      %6364 = vmatprep.subr.bf16.mxu0 0
      %6365 = vmatpush1.bf16.xpose.msra.mxu0 0
      %6366 = vmatprep.subr.bf16.mxu0 0
      %6367 = vmatpush1.bf16.xpose.msra.mxu0 0
      %6368 = vmatprep.subr.bf16.mxu0 0
      %6369 = vmatpush1.bf16.xpose.msra.mxu0 0
      %6370 = vmatprep.subr.bf16.mxu0 0
      %6371 = vmatpush1.bf16.xpose.msra.mxu0 0
      %6372 = vmatprep.subr.bf16.mxu0 0
      %6373 = vmatpush1.bf16.xpose.msra.mxu0 0
      %6374 = vmatprep.mubr.bf16.mxu0 0
      %6375 = vmatmul.mubr.bf16.gmra.mrb[0].mxu0 %v6337
      %v6376 = vpop.f32.mrb[0].mxu0
      %v6377 = vadd.f32 %v1240, %v6376
      %v6378 = vpop.f32.mrb[0].mxu0
      %v6379 = vpop.f32.mrb[0].mxu0
      %v6380 = vpop.f32.mrb[0].mxu0
      %6381 = vdwg.mxu0
      %v6382 = vsel %vm1352, %v6377, -inf
      %6383 = vmax.xlane.f32.xlu0 %v6382
      %v6384 = vpop.xlane.xlu0 %6383
      %v6385 = vsub.f32 %v6377, %v6384
      %v6386 = vmul.f32 %v6385, 1.442695
      %v6387 = vpow.pop %v6386
      %v6388 = vsel %vm1352, %v6387, 0.0
      %6389 = vadd.xlane.f32.xlu0 %v6388
      %v6390 = vpop.xlane.xlu0 %6389
      %v6391 = vrcp.pop %v6390
      %v6392 = vmul.f32 %v6387, %v6391
      %v6393 = vpack.c.bf16 %v6392, %v6392
      %6394 = vrot.lane.b32.xlu0 %v5861, 72
      %v6395 = vpop.permute.xlu0 %6394
      %v6397 = vsel %vm1352, %v6393, 0
      %v6400 = vsel %vm1416, %v6395, 0
      %6402 = vmatprep.subr.bf16.mxu0 0
      %6403 = vmatpush1.bf16.msra.mxu0 %v6400
      %6404 = vmatprep.subr.bf16.mxu0 0
      %6405 = vmatpush1.bf16.msra.mxu0 0
      %6406 = vmatprep.subr.bf16.mxu0 0
      %6407 = vmatpush1.bf16.msra.mxu0 0
      %6408 = vmatprep.subr.bf16.mxu0 0
      %6409 = vmatpush1.bf16.msra.mxu0 0
      %6410 = vmatprep.subr.bf16.mxu0 0
      %6411 = vmatpush1.bf16.msra.mxu0 0
      %6412 = vmatprep.subr.bf16.mxu0 0
      %6413 = vmatpush1.bf16.msra.mxu0 0
      %6414 = vmatprep.subr.bf16.mxu0 0
      %6415 = vmatpush1.bf16.msra.mxu0 0
      %6416 = vmatprep.subr.bf16.mxu0 0
      %6417 = vmatpush1.bf16.msra.mxu0 0
      %6418 = vmatprep.subr.bf16.mxu0 0
      %6419 = vmatpush1.bf16.msra.mxu0 0
      %6420 = vmatprep.subr.bf16.mxu0 0
      %6421 = vmatpush1.bf16.msra.mxu0 0
      %6422 = vmatprep.subr.bf16.mxu0 0
      %6423 = vmatpush1.bf16.msra.mxu0 0
      %6424 = vmatprep.subr.bf16.mxu0 0
      %6425 = vmatpush1.bf16.msra.mxu0 0
      %6426 = vmatprep.subr.bf16.mxu0 0
      %6427 = vmatpush1.bf16.msra.mxu0 0
      %6428 = vmatprep.subr.bf16.mxu0 0
      %6429 = vmatpush1.bf16.msra.mxu0 0
      %6430 = vmatprep.subr.bf16.mxu0 0
      %6431 = vmatpush1.bf16.msra.mxu0 0
      %6432 = vmatprep.subr.bf16.mxu0 0
      %6433 = vmatpush1.bf16.msra.mxu0 0
      %6434 = vmatprep.mubr.bf16.mxu0 0
      %6435 = vmatmul.mubr.bf16.gmra.mrb[0].mxu0 %v6397
      %v6436 = vpop.f32.mrb[0].mxu0
      %v6437 = vadd.f32 0.0, %v6436
      %v6438 = vpop.f32.mrb[0].mxu0
      %v6439 = vpop.f32.mrb[0].mxu0
      %v6440 = vpop.f32.mrb[0].mxu0
      %6441 = vdwg.mxu0
      %v6442 = vpack.c.bf16 %v6437, %v6437
      %v6444 = vsel %vm1352, %v6442, 0
      %v6447 = vsel %vm1416, %v5737, 0
      %6449 = vmatprep.subr.bf16.mxu0 0
      %6450 = vmatpush1.bf16.msra.mxu0 %v6447
      %6451 = vmatprep.subr.bf16.mxu0 0
      %6452 = vmatpush1.bf16.msra.mxu0 0
      %6453 = vmatprep.subr.bf16.mxu0 0
      %6454 = vmatpush1.bf16.msra.mxu0 0
      %6455 = vmatprep.subr.bf16.mxu0 0
      %6456 = vmatpush1.bf16.msra.mxu0 0
      %6457 = vmatprep.subr.bf16.mxu0 0
      %6458 = vmatpush1.bf16.msra.mxu0 0
      %6459 = vmatprep.subr.bf16.mxu0 0
      %6460 = vmatpush1.bf16.msra.mxu0 0
      %6461 = vmatprep.subr.bf16.mxu0 0
      %6462 = vmatpush1.bf16.msra.mxu0 0
      %6463 = vmatprep.subr.bf16.mxu0 0
      %6464 = vmatpush1.bf16.msra.mxu0 0
      %6465 = vmatprep.subr.bf16.mxu0 0
      %6466 = vmatpush1.bf16.msra.mxu0 0
      %6467 = vmatprep.subr.bf16.mxu0 0
      %6468 = vmatpush1.bf16.msra.mxu0 0
      %6469 = vmatprep.subr.bf16.mxu0 0
      %6470 = vmatpush1.bf16.msra.mxu0 0
      %6471 = vmatprep.subr.bf16.mxu0 0
      %6472 = vmatpush1.bf16.msra.mxu0 0
      %6473 = vmatprep.subr.bf16.mxu0 0
      %6474 = vmatpush1.bf16.msra.mxu0 0
      %6475 = vmatprep.subr.bf16.mxu0 0
      %6476 = vmatpush1.bf16.msra.mxu0 0
      %6477 = vmatprep.subr.bf16.mxu0 0
      %6478 = vmatpush1.bf16.msra.mxu0 0
      %6479 = vmatprep.subr.bf16.mxu0 0
      %6480 = vmatpush1.bf16.msra.mxu0 0
      %6481 = vmatprep.mubr.bf16.mxu0 0
      %6482 = vmatmul.mubr.bf16.gmra.mrb[0].mxu0 %v6444
      %v6483 = vpop.f32.mrb[0].mxu0
      %v6484 = vadd.f32 0.0, %v6483
      %v6485 = vpop.f32.mrb[0].mxu0
      %v6486 = vpop.f32.mrb[0].mxu0
      %v6487 = vpop.f32.mrb[0].mxu0
      %6488 = vdwg.mxu0
      %v6489 = vadd.f32 %v6331, %v6484
      %v6491 = vlaneseq
      %v6492 = vshrl.u32 %v6491, 7
      %v6493 = vsub.s32 0, %v6492
      %v6494 = vrot.slane %v5739, %v6493
      %v6496 = vadd.f32 %v6489, %v6494
      %v6497 = vadd.f32 %v5687, %v6496
      %s6498 = scalar_lea.vmem %s59, 1
      %v6499 = vld [vmem:[%s6498] sm:$0x1]
      %s6500 = scalar_lea.vmem %s61, 1
      %v6501 = vld [vmem:[%s6500] sm:$0x1]
      %v6502 = vsel %vm1247, %v6497, 0.0
      %6503 = vadd.xlane.f32.xlu0 %v6502
      %v6504 = vpop.xlane.xlu0 %6503
      %v6505 = vmul.f32 %v6504, %v1251
      %v6506 = vsub.f32 %v6497, %v6505
      %v6507 = vmul.f32 %v6506, %v6506
      %v6508 = vsel %vm1247, %v6507, 0.0
      %6509 = vadd.xlane.f32.xlu0 %v6508
      %v6510 = vpop.xlane.xlu0 %6509
      %v6511 = vmul.f32 %v6510, %v1251
      %v6512 = vadd.f32 %v6511, 1e-05
      %v6513 = vrsqrt.pop %v6512
      %v6514 = vmul.f32 %v6506, %v6513
      %v6516 = vlaneseq
      %v6517 = vshrl.u32 %v6516, 7
      %v6518 = vsub.s32 0, %v6517
      %v6519 = vrot.slane %v6499, %v6518
      %v6521 = vmul.f32 %v6514, %v6519
      %v6523 = vlaneseq
      %v6524 = vshrl.u32 %v6523, 7
      %v6525 = vsub.s32 0, %v6524
      %v6526 = vrot.slane %v6501, %v6525
      %v6528 = vadd.f32 %v6521, %v6526
      %s6529 = scalar_lea.vmem %s63, 16
      %v6530 = vld [vmem:[%s6529] sm:$0xf]
      %v6531 = vld [vmem:[%s6529 + $0x4] sm:$0xf]
      %v6532 = vld [vmem:[%s6529 + $0x8] sm:$0xf]
      %v6533 = vld [vmem:[%s6529 + $0xc] sm:$0xf]
      %s6534 = scalar_lea.vmem %s65, 1
      %v6535 = vld [vmem:[%s6534] sm:$0x1]
      %s6536 = scalar_lea.vmem %s67, 64
      %v6537 = vld [vmem:[%s6536] sm:$0xf]
      %v6538 = vld [vmem:[%s6536 + $0x4] sm:$0xf]
      %v6539 = vld [vmem:[%s6536 + $0x8] sm:$0xf]
      %v6540 = vld [vmem:[%s6536 + $0xc] sm:$0xf]
      %v6541 = vld [vmem:[%s6536 + $0x10] sm:$0xf]
      %v6542 = vld [vmem:[%s6536 + $0x14] sm:$0xf]
      %v6543 = vld [vmem:[%s6536 + $0x18] sm:$0xf]
      %v6544 = vld [vmem:[%s6536 + $0x1c] sm:$0xf]
      %v6545 = vld [vmem:[%s6536 + $0x20] sm:$0xf]
      %v6546 = vld [vmem:[%s6536 + $0x24] sm:$0xf]
      %v6547 = vld [vmem:[%s6536 + $0x28] sm:$0xf]
      %v6548 = vld [vmem:[%s6536 + $0x2c] sm:$0xf]
      %v6549 = vld [vmem:[%s6536 + $0x30] sm:$0xf]
      %v6550 = vld [vmem:[%s6536 + $0x34] sm:$0xf]
      %v6551 = vld [vmem:[%s6536 + $0x38] sm:$0xf]
      %v6552 = vld [vmem:[%s6536 + $0x3c] sm:$0xf]
      %s6553 = scalar_lea.vmem %s69, 1
      %v6554 = vld [vmem:[%s6553] sm:$0x1]
      %v6555 = vpack.c.bf16 %v6528, %v6528
      %v6557 = vlaneseq
      %v6558 = vshrl.u32 %v6557, 7
      %v6559 = vsub.s32 0, %v6558
      %v6560 = vrot.slane %v6535, %v6559
      %v6566 = vunpack.c.l.b16 %v6530
      %v6567 = vunpack.c.l.b16 %v6531
      %v6568 = vunpack.c.l.b16 %v6532
      %v6569 = vunpack.c.l.b16 %v6533
      %v6570 = vpack.c.b16 %v6567, %v6566
      %v6571 = vpack.c.b16 %v6569, %v6568
      %v6575 = vsel %vm1247, %v6555, 0
      %6577 = vmatprep.subr.bf16.mxu0 0
      %6578 = vmatpush1.bf16.msra.mxu0 %v6570
      %6579 = vmatprep.subr.bf16.mxu0 0
      %6580 = vmatpush1.bf16.msra.mxu0 %v6571
      %6581 = vmatprep.subr.bf16.mxu0 0
      %6582 = vmatpush1.bf16.msra.mxu0 0
      %6583 = vmatprep.subr.bf16.mxu0 0
      %6584 = vmatpush1.bf16.msra.mxu0 0
      %6585 = vmatprep.subr.bf16.mxu0 0
      %6586 = vmatpush1.bf16.msra.mxu0 0
      %6587 = vmatprep.subr.bf16.mxu0 0
      %6588 = vmatpush1.bf16.msra.mxu0 0
      %6589 = vmatprep.subr.bf16.mxu0 0
      %6590 = vmatpush1.bf16.msra.mxu0 0
      %6591 = vmatprep.subr.bf16.mxu0 0
      %6592 = vmatpush1.bf16.msra.mxu0 0
      %6593 = vmatprep.subr.bf16.mxu0 0
      %6594 = vmatpush1.bf16.msra.mxu0 0
      %6595 = vmatprep.subr.bf16.mxu0 0
      %6596 = vmatpush1.bf16.msra.mxu0 0
      %6597 = vmatprep.subr.bf16.mxu0 0
      %6598 = vmatpush1.bf16.msra.mxu0 0
      %6599 = vmatprep.subr.bf16.mxu0 0
      %6600 = vmatpush1.bf16.msra.mxu0 0
      %6601 = vmatprep.subr.bf16.mxu0 0
      %6602 = vmatpush1.bf16.msra.mxu0 0
      %6603 = vmatprep.subr.bf16.mxu0 0
      %6604 = vmatpush1.bf16.msra.mxu0 0
      %6605 = vmatprep.subr.bf16.mxu0 0
      %6606 = vmatpush1.bf16.msra.mxu0 0
      %6607 = vmatprep.subr.bf16.mxu0 0
      %6608 = vmatpush1.bf16.msra.mxu0 0
      %6609 = vmatprep.mubr.bf16.mxu0 0
      %6610 = vmatmul.mubr.bf16.gmra.mrb[0].mxu0 %v6575
      %v6611 = vpop.f32.mrb[0].mxu0
      %v6612 = vadd.f32 %v6560, %v6611
      %v6613 = vpop.f32.mrb[0].mxu0
      %v6614 = vpop.f32.mrb[0].mxu0
      %v6615 = vpop.f32.mrb[0].mxu0
      %6616 = vdwg.mxu0
      %v6617 = vmax.f32 %v6612, 0.0
      %v6618 = vpack.c.bf16 %v6617, %v6617
      %v6620 = vlaneseq
      %v6621 = vshrl.u32 %v6620, 7
      %v6622 = vsub.s32 0, %v6621
      %v6623 = vrot.slane %v6554, %v6622
      %v6641 = vunpack.c.l.b16 %v6537
      %v6642 = vunpack.c.l.b16 %v6538
      %v6643 = vunpack.c.l.b16 %v6539
      %v6644 = vunpack.c.l.b16 %v6540
      %v6645 = vunpack.c.l.b16 %v6541
      %v6646 = vunpack.c.l.b16 %v6542
      %v6647 = vunpack.c.l.b16 %v6543
      %v6648 = vunpack.c.l.b16 %v6544
      %v6649 = vunpack.c.l.b16 %v6545
      %v6650 = vunpack.c.l.b16 %v6546
      %v6651 = vunpack.c.l.b16 %v6547
      %v6652 = vunpack.c.l.b16 %v6548
      %v6653 = vunpack.c.l.b16 %v6549
      %v6654 = vunpack.c.l.b16 %v6550
      %v6655 = vunpack.c.l.b16 %v6551
      %v6656 = vunpack.c.l.b16 %v6552
      %v6657 = vpack.c.b16 %v6642, %v6641
      %v6658 = vpack.c.b16 %v6644, %v6643
      %v6659 = vpack.c.b16 %v6646, %v6645
      %v6660 = vpack.c.b16 %v6648, %v6647
      %v6661 = vpack.c.b16 %v6650, %v6649
      %v6662 = vpack.c.b16 %v6652, %v6651
      %v6663 = vpack.c.b16 %v6654, %v6653
      %v6664 = vpack.c.b16 %v6656, %v6655
      %6673 = vmatprep.subr.bf16.mxu0 0
      %6674 = vmatpush1.bf16.msra.mxu0 %v6657
      %6675 = vmatprep.subr.bf16.mxu0 0
      %6676 = vmatpush1.bf16.msra.mxu0 %v6658
      %6677 = vmatprep.subr.bf16.mxu0 0
      %6678 = vmatpush1.bf16.msra.mxu0 %v6659
      %6679 = vmatprep.subr.bf16.mxu0 0
      %6680 = vmatpush1.bf16.msra.mxu0 %v6660
      %6681 = vmatprep.subr.bf16.mxu0 0
      %6682 = vmatpush1.bf16.msra.mxu0 %v6661
      %6683 = vmatprep.subr.bf16.mxu0 0
      %6684 = vmatpush1.bf16.msra.mxu0 %v6662
      %6685 = vmatprep.subr.bf16.mxu0 0
      %6686 = vmatpush1.bf16.msra.mxu0 %v6663
      %6687 = vmatprep.subr.bf16.mxu0 0
      %6688 = vmatpush1.bf16.msra.mxu0 %v6664
      %6689 = vmatprep.subr.bf16.mxu0 0
      %6690 = vmatpush1.bf16.msra.mxu0 0
      %6691 = vmatprep.subr.bf16.mxu0 0
      %6692 = vmatpush1.bf16.msra.mxu0 0
      %6693 = vmatprep.subr.bf16.mxu0 0
      %6694 = vmatpush1.bf16.msra.mxu0 0
      %6695 = vmatprep.subr.bf16.mxu0 0
      %6696 = vmatpush1.bf16.msra.mxu0 0
      %6697 = vmatprep.subr.bf16.mxu0 0
      %6698 = vmatpush1.bf16.msra.mxu0 0
      %6699 = vmatprep.subr.bf16.mxu0 0
      %6700 = vmatpush1.bf16.msra.mxu0 0
      %6701 = vmatprep.subr.bf16.mxu0 0
      %6702 = vmatpush1.bf16.msra.mxu0 0
      %6703 = vmatprep.subr.bf16.mxu0 0
      %6704 = vmatpush1.bf16.msra.mxu0 0
      %6705 = vmatprep.mubr.bf16.mxu0 0
      %6706 = vmatmul.mubr.bf16.gmra.mrb[0].mxu0 %v6618
      %v6707 = vpop.f32.mrb[0].mxu0
      %v6708 = vadd.f32 %v6623, %v6707
      %v6709 = vpop.f32.mrb[0].mxu0
      %v6710 = vpop.f32.mrb[0].mxu0
      %v6711 = vpop.f32.mrb[0].mxu0
      %6712 = vdwg.mxu0
      %v6713 = vadd.f32 %v6497, %v6708
      %v6714 = vld [vmem:[%s75] sm:$0x1]
      %v6715 = vld [vmem:[%s77] sm:$0x1]
      %v6716 = vsel %vm1247, %v6713, 0.0
      %6717 = vadd.xlane.f32.xlu0 %v6716
      %v6718 = vpop.xlane.xlu0 %6717
      %v6719 = vmul.f32 %v6718, %v1251
      %v6720 = vsub.f32 %v6713, %v6719
      %v6721 = vmul.f32 %v6720, %v6720
      %v6722 = vsel %vm1247, %v6721, 0.0
      %6723 = vadd.xlane.f32.xlu0 %v6722
      %v6724 = vpop.xlane.xlu0 %6723
      %v6725 = vmul.f32 %v6724, %v1251
      %v6726 = vadd.f32 %v6725, 1e-05
      %v6727 = vrsqrt.pop %v6726
      %v6728 = vmul.f32 %v6720, %v6727
      %v6730 = vlaneseq
      %v6731 = vshrl.u32 %v6730, 7
      %v6732 = vsub.s32 0, %v6731
      %v6733 = vrot.slane %v6714, %v6732
      %v6735 = vmul.f32 %v6728, %v6733
      %v6737 = vlaneseq
      %v6738 = vshrl.u32 %v6737, 7
      %v6739 = vsub.s32 0, %v6738
      %v6740 = vrot.slane %v6715, %v6739
      %v6742 = vadd.f32 %v6735, %v6740
      %v6743 = vpack.c.bf16 %v6742, %v6742
      %v6744 = vld [vmem:[%s79] sm:$0xf]
      %v6745 = vld [vmem:[%s79 + $0x4] sm:$0xf]
      %v6746 = vld [vmem:[%s79 + $0x8] sm:$0xf]
      %v6747 = vld [vmem:[%s79 + $0xc] sm:$0xf]
      %v6748 = vld [vmem:[%s81] sm:$0x1]
      %v6750 = vlaneseq
      %v6751 = vshrl.u32 %v6750, 7
      %v6752 = vsub.s32 0, %v6751
      %v6753 = vrot.slane %v6748, %v6752
      %v6759 = vunpack.c.l.b16 %v6744
      %v6760 = vunpack.c.l.b16 %v6745
      %v6761 = vunpack.c.l.b16 %v6746
      %v6762 = vunpack.c.l.b16 %v6747
      %v6763 = vpack.c.b16 %v6760, %v6759
      %v6764 = vpack.c.b16 %v6762, %v6761
      %v6768 = vsel %vm1247, %v6743, 0
      %6770 = vmatprep.subr.bf16.mxu0 0
      %6771 = vmatpush1.bf16.msra.mxu0 %v6763
      %6772 = vmatprep.subr.bf16.mxu0 0
      %6773 = vmatpush1.bf16.msra.mxu0 %v6764
      %6774 = vmatprep.subr.bf16.mxu0 0
      %6775 = vmatpush1.bf16.msra.mxu0 0
      %6776 = vmatprep.subr.bf16.mxu0 0
      %6777 = vmatpush1.bf16.msra.mxu0 0
      %6778 = vmatprep.subr.bf16.mxu0 0
      %6779 = vmatpush1.bf16.msra.mxu0 0
      %6780 = vmatprep.subr.bf16.mxu0 0
      %6781 = vmatpush1.bf16.msra.mxu0 0
      %6782 = vmatprep.subr.bf16.mxu0 0
      %6783 = vmatpush1.bf16.msra.mxu0 0
      %6784 = vmatprep.subr.bf16.mxu0 0
      %6785 = vmatpush1.bf16.msra.mxu0 0
      %6786 = vmatprep.subr.bf16.mxu0 0
      %6787 = vmatpush1.bf16.msra.mxu0 0
      %6788 = vmatprep.subr.bf16.mxu0 0
      %6789 = vmatpush1.bf16.msra.mxu0 0
      %6790 = vmatprep.subr.bf16.mxu0 0
      %6791 = vmatpush1.bf16.msra.mxu0 0
      %6792 = vmatprep.subr.bf16.mxu0 0
      %6793 = vmatpush1.bf16.msra.mxu0 0
      %6794 = vmatprep.subr.bf16.mxu0 0
      %6795 = vmatpush1.bf16.msra.mxu0 0
      %6796 = vmatprep.subr.bf16.mxu0 0
      %6797 = vmatpush1.bf16.msra.mxu0 0
      %6798 = vmatprep.subr.bf16.mxu0 0
      %6799 = vmatpush1.bf16.msra.mxu0 0
      %6800 = vmatprep.subr.bf16.mxu0 0
      %6801 = vmatpush1.bf16.msra.mxu0 0
      %6802 = vmatprep.mubr.bf16.mxu0 0
      %6803 = vmatmul.mubr.bf16.gmra.mrb[0].mxu0 %v6768
      %v6804 = vpop.f32.mrb[0].mxu0
      %v6805 = vadd.f32 %v6753, %v6804
      %v6806 = vpop.f32.mrb[0].mxu0
      %v6807 = vpop.f32.mrb[0].mxu0
      %v6808 = vpop.f32.mrb[0].mxu0
      %6809 = vdwg.mxu0
      %6810 = vmax.xlane.f32.xlu0 %v6805
      %v6811 = vpop.xlane.xlu0 %6810
      %v6812 = vsub.f32 %v6805, %v6811
      %v6813 = vmul.f32 %v6812, 1.442695
      %v6814 = vpow.pop %v6813
      %6815 = vadd.xlane.f32.xlu0 %v6814
      %v6816 = vpop.xlane.xlu0 %6815
      %v6817 = vlog2.pop %v6816
      %v6818 = vmul.f32 %v6817, 0.6931472
      %v6819 = vadd.f32 %v6811, %v6818
      %v6820 = vsub.f32 %v6805, %v6819
      %6821 = vst [vmem:[%s1230] sm:$0xff] %v6820
      %p6822 = scmp.lt.s32.totalorder %s100, 1
      %s6823 = scalar_select %p6822, %s100, 1
      %s6824 = smul.addr %s6823, 8
      %s6825 = scalar_lea.vmem %s83, %s6824
      // Predicated region
      $region181: #{_lambda_.1} parent=179 // pred_check
        %p6826 = pneg %p968
      $region182: #{_lambda_.1} parent=179 // pred_check_branch
        %6828 = sbr.rel (%p6826) target = $region184
      $region183: #{_lambda_.1} parent=179 // pred_region
        _
      $region184: #{_lambda_.1} parent=179 // pred_fallthru
        _
    $region180: #{_lambda_.1} parent=5 // pred_fallthru
      _
    %p6829 = scmp.le.s32.totalorder 2, %s95
    // Predicated region
    $region185: #{_lambda_.1} parent=5 // pred_check
      %p6830 = pneg %p6829
    $region186: #{_lambda_.1} parent=5 // pred_check_branch
      %6832 = sbr.rel (%p6830) target = $region188
    $region187: #{_lambda_.1} parent=5 // pred_region
      %s6833 = ssub.s32 %s95, 2
      // Predicated region
      $region189: #{_lambda_.1} parent=187 // pred_check
        %p6834 = pneg %p974
      $region190: #{_lambda_.1} parent=187 // pred_check_branch
        %6836 = sbr.rel (%p6834) target = $region192
      $region191: #{_lambda_.1} parent=187 // pred_region
        %p6837 = scmp.lt.s32.totalorder %s101, 1
        %s6838 = scalar_select %p6837, %s101, 1
        %s6839 = smul.addr %s6838, 8
        %s6840 = scalar_lea.vmem %s83, %s6839
      $region192: #{_lambda_.1} parent=187 // pred_fallthru
        _
    $region188: #{_lambda_.1} parent=5 // pred_fallthru
      _
  $region6: #{_lambda_.1} parent=0 // loop_footer
    %s99 = sadd.s32 1, %s95
  $region7: #{_lambda_.1} parent=0 // loop_footer_branch
    %94 = sbr.rel target = $region3
  $region8: #{_lambda_.1} parent=0 // loop_exit
    _

</llo_original>
